<compile_context>
chip_gen: v7x
topology: tpu7x:2x2x1
jax: 0.10.0
libtpu: 0.0.40
codegen_flags: <defaults>
</compile_context>

<pallas_src>
import functools

import jax
import jax.numpy as jnp
from jax.experimental import pallas as pl
from jax.experimental.pallas import tpu as pltpu

OUT_DIM = 2048
TM = 8  # padded batch rows (sublane alignment)


def _round_up(x, m):
    return ((x + m - 1) // m) * m


# ----------------------------- Pallas kernel -------------------------------


def _fused_projector_kernel(xg_ref, xl_ref, xa_ref,
                            wg_ref, wl_ref, wa_ref,
                            b_ref, o_ref):
    """relu(x_p @ w_p + b_p) for all 3 projectors on one (Mp, tn) N-tile."""
    # Unrolled Python loop over the 3 projectors; each dot uses that
    # projector's full (un-shared) K, so no zero rows are ever multiplied.
    for p, (x_ref, w_ref) in enumerate(
            ((xg_ref, wg_ref), (xl_ref, wl_ref), (xa_ref, wa_ref))):
        y = jnp.dot(x_ref[...], w_ref[...], preferred_element_type=jnp.float32)
        o_ref[p] = jnp.maximum(y + b_ref[p], 0.0).astype(o_ref.dtype)


def fused_projectors(xg, xl, xa, wg, wl, wa, b_stack, *, tn):
    """One pallas_call computing all three projectors.

    xg/xl/xa: (Mp, K_p) bf16, wg/wl/wa: (K_p, N) bf16, b_stack: (3, 1, N) f32
    -> (3, Mp, N) f32
    """
    Mp = xg.shape[0]
    N = wg.shape[1]
    assert wl.shape[1] == N and wa.shape[1] == N
    assert N % tn == 0 and Mp % 8 == 0 and tn % 128 == 0, (Mp, N, tn)

    def x_spec(arr):
        return pl.BlockSpec(arr.shape, lambda j: (0, 0))          # full x block

    def w_spec(arr):
        return pl.BlockSpec((arr.shape[0], tn), lambda j: (0, j))  # full-K, N-tiled

    return pl.pallas_call(
        _fused_projector_kernel,
        out_shape=jax.ShapeDtypeStruct((3, Mp, N), jnp.float32),
        grid_spec=pltpu.PrefetchScalarGridSpec(
            num_scalar_prefetch=0,
            grid=(N // tn,),
            in_specs=[
                x_spec(xg), x_spec(xl), x_spec(xa),
                w_spec(wg), w_spec(wl), w_spec(wa),
                pl.BlockSpec((3, 1, tn), lambda j: (0, 0, j)),     # biases
            ],
            out_specs=pl.BlockSpec((3, Mp, tn), lambda j: (0, 0, j)),
        ),
        compiler_params=pltpu.CompilerParams(
            dimension_semantics=("parallel",),
            vmem_limit_bytes=32 * 1024 * 1024,
        ),
    )(xg, xl, xa, wg, wl, wa, b_stack)


# ----------------------------- Model wrapper --------------------------------


def _init_linear(key, in_dim, out_dim):
    """PyTorch nn.Linear default init; weight stored transposed as (K, N)."""
    kw, kb = jax.random.split(key)
    bound = 1.0 / jnp.sqrt(jnp.float32(in_dim))
    w = jax.random.uniform(kw, (in_dim, out_dim), jnp.float32, -bound, bound)
    b = jax.random.uniform(kb, (out_dim,), jnp.float32, -bound, bound)
    return w, b


def _pick_tn(out_dim):
    """Full-N tile on single-TC chips; N/2 on dual-TC v7x for megacore split."""
    try:
        kind = jax.devices()[0].device_kind.lower()
    except Exception:
        kind = ""
    dual_tc = any(tag in kind for tag in ("v7", "tpu7", "7x"))
    if dual_tc and out_dim % 256 == 0:
        return out_dim // 2
    return out_dim


@functools.partial(jax.jit, static_argnames=("tn",))
def _forward(v_g, v_l, a, wg, wl, wa, b_stack, *, tn):
    """Glue (reshape / pad / cast) + one fused pallas_call, in a single jit."""
    B = v_g.shape[0]
    Mp = _round_up(max(B, 1), TM)

    def prep(t, k_pad):
        t = t.reshape(B, -1)
        t = jnp.pad(t, ((0, Mp - B), (0, k_pad - t.shape[1])))
        return t.astype(jnp.bfloat16)

    xg = prep(v_g, wg.shape[0])
    xl = prep(v_l, wl.shape[0])
    xa = prep(a, wa.shape[0])

    out = fused_projectors(xg, xl, xa, wg, wl, wa, b_stack, tn=tn)  # (3, Mp, N)
    return out[0, :B], out[1, :B], out[2, :B]


class TotalModelPallas:
    """Pallas port of TotalModel.forward (is_train=True branch)."""

    def __init__(self, v_feat, a_feat, out_dim=OUT_DIM, is_train=True):
        self.is_train = is_train
        self.tn = _pick_tn(out_dim)

        k = jax.random.PRNGKey(42)
        kg, kl, ka = jax.random.split(k, 3)
        wg, bg = _init_linear(kg, v_feat, out_dim)  # projector_g
        wl, bl = _init_linear(kl, v_feat, out_dim)  # projector_l
        wa, ba = _init_linear(ka, a_feat, out_dim)  # projector_a

        # bf16 master weights for the kernel (halves HBM weight traffic);
        # bias and accumulation stay f32.
        self.wg = wg.astype(jnp.bfloat16)
        self.wl = wl.astype(jnp.bfloat16)
        self.wa = wa.astype(jnp.bfloat16)
        self.bg, self.bl, self.ba = bg, bl, ba

        # Per-projector K padding to the next multiple of 128 only (no shared
        # Kmax) -> the small audio projector streams no zero weight rows.
        def padk(w):
            pad = _round_up(w.shape[0], 128) - w.shape[0]
            return jnp.pad(w, ((0, pad), (0, 0)))

        self.wg_pad = padk(self.wg)
        self.wl_pad = padk(self.wl)
        self.wa_pad = padk(self.wa)
        self.b_stack = jnp.stack([bg, bl, ba], axis=0).reshape(3, 1, out_dim)

    def __call__(self, v_g, v_l, a):
        # TODO(synk): VMo / AMo encoders and Weight(length=2) have no source
        # available; encoder feature maps are taken as inputs and the index
        # op is treated as identity.
        return _forward(v_g, v_l, a, self.wg_pad, self.wl_pad, self.wa_pad,
                        self.b_stack, tn=self.tn)


# --------------------------------- main --------------------------------------

if __name__ == "__main__":
    key = jax.random.PRNGKey(0)
    k1, k2, k3 = jax.random.split(key, 3)

    # Small stand-ins for the encoder feature maps:
    #   video global / local features: (B, C, H, W) = (2, 8, 8, 8) -> K = 512
    #   audio features:                (B, C, T)    = (2, 32, 8)   -> K = 256
    B = 2
    v_g = jax.random.normal(k1, (B, 8, 8, 8), jnp.float32)
    v_l = jax.random.normal(k2, (B, 8, 8, 8), jnp.float32)
    a = jax.random.normal(k3, (B, 32, 8), jnp.float32)

    model = TotalModelPallas(v_feat=8 * 8 * 8, a_feat=32 * 8, out_dim=OUT_DIM)

    out_g, out_l, out_a = model(v_g, v_l, a)
    jax.block_until_ready((out_g, out_l, out_a))

    # Sanity check against a plain JAX reference (same bf16 weights).
    def ref(x, w_bf16, b):
        xb = x.reshape(B, -1).astype(jnp.bfloat16)
        y = jnp.dot(xb, w_bf16, preferred_element_type=jnp.float32)
        return jnp.maximum(y + b, 0.0)

    assert out_g.shape == (B, OUT_DIM)
    assert out_l.shape == (B, OUT_DIM)
    assert out_a.shape == (B, OUT_DIM)
    assert jnp.allclose(out_g, ref(v_g, model.wg, model.bg), atol=1e-2, rtol=1e-2)
    assert jnp.allclose(out_l, ref(v_l, model.wl, model.bl), atol=1e-2, rtol=1e-2)
    assert jnp.allclose(out_a, ref(a, model.wa, model.ba), atol=1e-2, rtol=1e-2)

    print("KERNEL_OK")
</pallas_src>

<mosaic_0001>
module attributes {stable_mosaic.version = 11 : i64} {
  func.func @_fused_projector_kernel(%arg0: i32, %arg1: memref<8x512xbf16, #tpu.memory_space<vmem>>, %arg2: memref<8x512xbf16, #tpu.memory_space<vmem>>, %arg3: memref<8x256xbf16, #tpu.memory_space<vmem>>, %arg4: memref<512x2048xbf16, #tpu.memory_space<vmem>>, %arg5: memref<512x2048xbf16, #tpu.memory_space<vmem>>, %arg6: memref<256x2048xbf16, #tpu.memory_space<vmem>>, %arg7: memref<3x1x2048xf32, #tpu.memory_space<vmem>>, %arg8: memref<3x8x2048xf32, #tpu.memory_space<vmem>>) attributes {dimension_semantics = [#tpu.dimension_semantics<parallel>], iteration_bounds = array<i64: 1>, scalar_prefetch = 0 : i64, scratch_operands = 0 : i64, tpu.core_type = #tpu.core_type<tc>, window_params = [{pipeline_mode = #tpu.pipeline_mode<synchronous>, transform_indices = @transform_0, window_bounds = array<i64: 8, 512>}, {pipeline_mode = #tpu.pipeline_mode<synchronous>, transform_indices = @transform_1, window_bounds = array<i64: 8, 512>}, {pipeline_mode = #tpu.pipeline_mode<synchronous>, transform_indices = @transform_2, window_bounds = array<i64: 8, 256>}, {transform_indices = @transform_3, window_bounds = array<i64: 512, 2048>}, {transform_indices = @transform_4, window_bounds = array<i64: 512, 2048>}, {transform_indices = @transform_5, window_bounds = array<i64: 256, 2048>}, {transform_indices = @transform_6, window_bounds = array<i64: 3, 1, 2048>}, {transform_indices = @transform_7, window_bounds = array<i64: 3, 8, 2048>}]} {
    %c0 = arith.constant 0 : index
    %c0_0 = arith.constant 0 : index
    %0 = vector.load %arg1[%c0, %c0_0] : memref<8x512xbf16, #tpu.memory_space<vmem>>, vector<8x512xbf16>
    %c0_1 = arith.constant 0 : index
    %c0_2 = arith.constant 0 : index
    %1 = vector.load %arg4[%c0_1, %c0_2] : memref<512x2048xbf16, #tpu.memory_space<vmem>>, vector<512x2048xbf16>
    %cst = arith.constant dense<0.000000e+00> : vector<8x2048xf32>
    %2 = tpu.matmul %0, %1, %cst {dimension_numbers = #tpu.dot_dimension_numbers<[1], [0], [0], [1], [0, 0, 1, 1], [], []>} : vector<8x512xbf16>, vector<512x2048xbf16>, vector<8x2048xf32> -> vector<8x2048xf32>
    %c0_3 = arith.constant 0 : index
    %c0_4 = arith.constant 0 : index
    %c0_5 = arith.constant 0 : index
    %3 = vector.load %arg7[%c0_3, %c0_4, %c0_5] : memref<3x1x2048xf32, #tpu.memory_space<vmem>>, vector<1x1x2048xf32>
    %4 = vector.shape_cast %3 : vector<1x1x2048xf32> to vector<1x2048xf32>
    %5 = vector.broadcast %4 : vector<1x2048xf32> to vector<8x2048xf32>
    %6 = arith.addf %2, %5 : vector<8x2048xf32>
    %cst_6 = arith.constant 0.000000e+00 : f32
    %7 = vector.broadcast %cst_6 : f32 to vector<8x2048xf32>
    %8 = arith.maximumf %6, %7 : vector<8x2048xf32>
    %c0_7 = arith.constant 0 : index
    %c0_8 = arith.constant 0 : index
    %c0_9 = arith.constant 0 : index
    %9 = vector.load %arg8[%c0_7, %c0_8, %c0_9] : memref<3x8x2048xf32, #tpu.memory_space<vmem>>, vector<1x8x2048xf32>
    %10 = vector.shape_cast %9 : vector<1x8x2048xf32> to vector<8x2048xf32>
    %11 = vector.shape_cast %8 : vector<8x2048xf32> to vector<1x8x2048xf32>
    tpu.vector_store %arg8[%c0_7, %c0_8, %c0_9], %11 {strides = array<i32>} : memref<3x8x2048xf32, #tpu.memory_space<vmem>>, vector<1x8x2048xf32>,
    %c0_10 = arith.constant 0 : index
    %c0_11 = arith.constant 0 : index
    %12 = vector.load %arg2[%c0_10, %c0_11] : memref<8x512xbf16, #tpu.memory_space<vmem>>, vector<8x512xbf16>
    %c0_12 = arith.constant 0 : index
    %c0_13 = arith.constant 0 : index
    %13 = vector.load %arg5[%c0_12, %c0_13] : memref<512x2048xbf16, #tpu.memory_space<vmem>>, vector<512x2048xbf16>
    %cst_14 = arith.constant dense<0.000000e+00> : vector<8x2048xf32>
    %14 = tpu.matmul %12, %13, %cst_14 {dimension_numbers = #tpu.dot_dimension_numbers<[1], [0], [0], [1], [0, 0, 1, 1], [], []>} : vector<8x512xbf16>, vector<512x2048xbf16>, vector<8x2048xf32> -> vector<8x2048xf32>
    %c1 = arith.constant 1 : index
    %c0_15 = arith.constant 0 : index
    %c0_16 = arith.constant 0 : index
    %15 = vector.load %arg7[%c1, %c0_15, %c0_16] : memref<3x1x2048xf32, #tpu.memory_space<vmem>>, vector<1x1x2048xf32>
    %16 = vector.shape_cast %15 : vector<1x1x2048xf32> to vector<1x2048xf32>
    %17 = vector.broadcast %16 : vector<1x2048xf32> to vector<8x2048xf32>
    %18 = arith.addf %14, %17 : vector<8x2048xf32>
    %cst_17 = arith.constant 0.000000e+00 : f32
    %19 = vector.broadcast %cst_17 : f32 to vector<8x2048xf32>
    %20 = arith.maximumf %18, %19 : vector<8x2048xf32>
    %c1_18 = arith.constant 1 : index
    %c0_19 = arith.constant 0 : index
    %c0_20 = arith.constant 0 : index
    %21 = vector.load %arg8[%c1_18, %c0_19, %c0_20] : memref<3x8x2048xf32, #tpu.memory_space<vmem>>, vector<1x8x2048xf32>
    %22 = vector.shape_cast %21 : vector<1x8x2048xf32> to vector<8x2048xf32>
    %23 = vector.shape_cast %20 : vector<8x2048xf32> to vector<1x8x2048xf32>
    tpu.vector_store %arg8[%c1_18, %c0_19, %c0_20], %23 {strides = array<i32>} : memref<3x8x2048xf32, #tpu.memory_space<vmem>>, vector<1x8x2048xf32>,
    %c0_21 = arith.constant 0 : index
    %c0_22 = arith.constant 0 : index
    %24 = vector.load %arg3[%c0_21, %c0_22] : memref<8x256xbf16, #tpu.memory_space<vmem>>, vector<8x256xbf16>
    %c0_23 = arith.constant 0 : index
    %c0_24 = arith.constant 0 : index
    %25 = vector.load %arg6[%c0_23, %c0_24] : memref<256x2048xbf16, #tpu.memory_space<vmem>>, vector<256x2048xbf16>
    %cst_25 = arith.constant dense<0.000000e+00> : vector<8x2048xf32>
    %26 = tpu.matmul %24, %25, %cst_25 {dimension_numbers = #tpu.dot_dimension_numbers<[1], [0], [0], [1], [0, 0, 1, 1], [], []>} : vector<8x256xbf16>, vector<256x2048xbf16>, vector<8x2048xf32> -> vector<8x2048xf32>
    %c2 = arith.constant 2 : index
    %c0_26 = arith.constant 0 : index
    %c0_27 = arith.constant 0 : index
    %27 = vector.load %arg7[%c2, %c0_26, %c0_27] : memref<3x1x2048xf32, #tpu.memory_space<vmem>>, vector<1x1x2048xf32>
    %28 = vector.shape_cast %27 : vector<1x1x2048xf32> to vector<1x2048xf32>
    %29 = vector.broadcast %28 : vector<1x2048xf32> to vector<8x2048xf32>
    %30 = arith.addf %26, %29 : vector<8x2048xf32>
    %cst_28 = arith.constant 0.000000e+00 : f32
    %31 = vector.broadcast %cst_28 : f32 to vector<8x2048xf32>
    %32 = arith.maximumf %30, %31 : vector<8x2048xf32>
    %c2_29 = arith.constant 2 : index
    %c0_30 = arith.constant 0 : index
    %c0_31 = arith.constant 0 : index
    %33 = vector.load %arg8[%c2_29, %c0_30, %c0_31] : memref<3x8x2048xf32, #tpu.memory_space<vmem>>, vector<1x8x2048xf32>
    %34 = vector.shape_cast %33 : vector<1x8x2048xf32> to vector<8x2048xf32>
    %35 = vector.shape_cast %32 : vector<8x2048xf32> to vector<1x8x2048xf32>
    tpu.vector_store %arg8[%c2_29, %c0_30, %c0_31], %35 {strides = array<i32>} : memref<3x8x2048xf32, #tpu.memory_space<vmem>>, vector<1x8x2048xf32>,
    return
  }
  func.func @transform_0(%arg0: i32) -> (i32, i32) {
    %c0_i32 = arith.constant 0 : i32
    %c0_i32_0 = arith.constant 0 : i32
    %c0_i32_1 = arith.constant 0 : i32
    return %c0_i32, %c0_i32_0 : i32, i32
  }
  func.func @transform_1(%arg0: i32) -> (i32, i32) {
    %c0_i32 = arith.constant 0 : i32
    %c0_i32_0 = arith.constant 0 : i32
    %c0_i32_1 = arith.constant 0 : i32
    return %c0_i32, %c0_i32_0 : i32, i32
  }
  func.func @transform_2(%arg0: i32) -> (i32, i32) {
    %c0_i32 = arith.constant 0 : i32
    %c0_i32_0 = arith.constant 0 : i32
    %c0_i32_1 = arith.constant 0 : i32
    return %c0_i32, %c0_i32_0 : i32, i32
  }
  func.func @transform_3(%arg0: i32) -> (i32, i32) {
    %c0_i32 = arith.constant 0 : i32
    %c0_i32_0 = arith.constant 0 : i32
    return %c0_i32, %arg0 : i32, i32
  }
  func.func @transform_4(%arg0: i32) -> (i32, i32) {
    %c0_i32 = arith.constant 0 : i32
    %c0_i32_0 = arith.constant 0 : i32
    return %c0_i32, %arg0 : i32, i32
  }
  func.func @transform_5(%arg0: i32) -> (i32, i32) {
    %c0_i32 = arith.constant 0 : i32
    %c0_i32_0 = arith.constant 0 : i32
    return %c0_i32, %arg0 : i32, i32
  }
  func.func @transform_6(%arg0: i32) -> (i32, i32, i32) {
    %c0_i32 = arith.constant 0 : i32
    %c0_i32_0 = arith.constant 0 : i32
    %c0_i32_1 = arith.constant 0 : i32
    return %c0_i32, %c0_i32_0, %arg0 : i32, i32, i32
  }
  func.func @transform_7(%arg0: i32) -> (i32, i32, i32) {
    %c0_i32 = arith.constant 0 : i32
    %c0_i32_0 = arith.constant 0 : i32
    %c0_i32_1 = arith.constant 0 : i32
    return %c0_i32, %c0_i32_0, %arg0 : i32, i32, i32
  }
}

</mosaic_0001>

<llo_original>
// kernel: _forward.1
$region0: #{_forward.1}
  #allocation0 [shape = 'u32[]', space=smem, size = 0x4, offset = 0x4, fixed_abs, tag = 'smem constant byte address 0x4 - core index']
  #allocation1 [shape = 'u32[144,128]{1,0:T(1,128)}', space=vmem, size = 0x12000, scoped, tag = 'internal scratch']
  %s0 = inlined_call_operand.vmem [shape: bf16[8,512], index: 0, kind: input, shape index: {}]
  %s1 = inlined_call_operand.vmem [shape: bf16[8,512], index: 1, kind: input, shape index: {}]
  %s2 = inlined_call_operand.vmem [shape: bf16[8,256], index: 2, kind: input, shape index: {}]
  %s3 = inlined_call_operand.hbm [shape: bf16[512,2048], index: 3, kind: input, shape index: {}]
  %s4 = inlined_call_operand.hbm [shape: bf16[512,2048], index: 4, kind: input, shape index: {}]
  %s5 = inlined_call_operand.hbm [shape: bf16[256,2048], index: 5, kind: input, shape index: {}]
  %s6 = inlined_call_operand.hbm [shape: f32[3,1,2048], index: 6, kind: input, shape index: {}]
  %s7 = inlined_call_operand.vmem [shape: f32[3,8,2048], index: 7, kind: output, shape index: {}]
  %s8 = sld [smem:[#allocation0]]
  $region54: #{_forward.1} parent=0
    _
  %s10 = ssub.s32 1, %s8
  %s11 = scalar_select 0, %s10, %s8
  $region1: #{_forward.1} parent=0
    #allocation2 [shape = 'u8[2097152]{0}', space=vmem, size = 0x200000, scoped, tag = 'input window, operand 3, single buffered']
    #allocation3 [shape = 's32[1]{0}', space=sflag, size = 0x4, scoped, tag = 'scoped memory for _forward.1']
    #allocation4 [shape = 'u8[2097152]{0}', space=vmem, size = 0x200000, scoped, tag = 'input window, operand 4, single buffered']
    #allocation5 [shape = 's32[1]{0}', space=sflag, size = 0x4, scoped, tag = 'scoped memory for _forward.1']
    #allocation6 [shape = 'u8[1048576]{0}', space=vmem, size = 0x100000, scoped, tag = 'input window, operand 5, single buffered']
    #allocation7 [shape = 'u8[24576]{0}', space=vmem, size = 0x6000, scoped, tag = 'input window, operand 6, single buffered']
    #allocation8 [shape = 's32[1]{0}', space=sflag, size = 0x4, scoped, tag = 'scoped memory for _forward.1']
    %12 = vsyncpa [#allocation3], 0
    %13 = vsyncpa [#allocation5], 0
    %14 = vsyncpa [#allocation8], 0
    // Predicated region
    $region2: #{_forward.1} parent=1 // pred_check
      _
    $region3: #{_forward.1} parent=1 // pred_check_branch
      %16 = sbr.rel (0) target = $region5
    $region4: #{_forward.1} parent=1 // pred_region
      _
    $region5: #{_forward.1} parent=1 // pred_fallthru
      _
    // Predicated region
    $region6: #{_forward.1} parent=1 // pred_check
      _
    $region7: #{_forward.1} parent=1 // pred_check_branch
      %18 = sbr.rel (0) target = $region9
    $region8: #{_forward.1} parent=1 // pred_region
      _
    $region9: #{_forward.1} parent=1 // pred_fallthru
      _
    // Predicated region
    $region10: #{_forward.1} parent=1 // pred_check
      _
    $region11: #{_forward.1} parent=1 // pred_check_branch
      %20 = sbr.rel (0) target = $region13
    $region12: #{_forward.1} parent=1 // pred_region
      _
    $region13: #{_forward.1} parent=1 // pred_fallthru
      _
    // Predicated region
    $region14: #{_forward.1} parent=1 // pred_check
      _
    $region15: #{_forward.1} parent=1 // pred_check_branch
      %22 = sbr.rel (0) target = $region17
    $region16: #{_forward.1} parent=1 // pred_region
      %s24 = ssub.s32 65536, 65536
      %25 = vsyncadd [#allocation3], %s24
      %s26 = sshll.u32 [#allocation2], 4
      %s27 = int_to_ptr.vmem [resolvable:$true] %s26
      %32 = dma.hbm_to_vmem [thread:$0]  %s3, 65536, %s27, [#allocation3], 1024, 1024, 64
    $region17: #{_forward.1} parent=1 // pred_fallthru
      _
    // Predicated region
    $region18: #{_forward.1} parent=1 // pred_check
      _
    $region19: #{_forward.1} parent=1 // pred_check_branch
      %34 = sbr.rel (0) target = $region21
    $region20: #{_forward.1} parent=1 // pred_region
      %s36 = ssub.s32 65536, 65536
      %37 = vsyncadd [#allocation5], %s36
      %s38 = sshll.u32 [#allocation4], 4
      %s39 = int_to_ptr.vmem [resolvable:$true] %s38
      %44 = dma.hbm_to_vmem [thread:$0]  %s4, 65536, %s39, [#allocation5], 1024, 1024, 64
    $region21: #{_forward.1} parent=1 // pred_fallthru
      _
    // Predicated region
    $region22: #{_forward.1} parent=1 // pred_check
      _
    $region23: #{_forward.1} parent=1 // pred_check_branch
      %46 = sbr.rel (0) target = $region25
    $region24: #{_forward.1} parent=1 // pred_region
      %s48 = ssub.s32 32768, 32768
      %49 = vsyncadd [#allocation5], %s48
      %s50 = sshll.u32 [#allocation6], 4
      %s51 = int_to_ptr.vmem [resolvable:$true] %s50
      %56 = dma.hbm_to_vmem [thread:$0]  %s5, 32768, %s51, [#allocation5], 1024, 1024, 64
    $region25: #{_forward.1} parent=1 // pred_fallthru
      _
    // Predicated region
    $region26: #{_forward.1} parent=1 // pred_check
      _
    $region27: #{_forward.1} parent=1 // pred_check_branch
      %58 = sbr.rel (0) target = $region29
    $region28: #{_forward.1} parent=1 // pred_region
      %s60 = ssub.s32 768, 768
      %61 = vsyncadd [#allocation8], %s60
      %s62 = sshll.u32 [#allocation7], 4
      %s63 = int_to_ptr.vmem [resolvable:$true] %s62
      %68 = dma.hbm_to_vmem [thread:$0]  %s6, 768, %s63, [#allocation8], 256, 256, 16
    $region29: #{_forward.1} parent=1 // pred_fallthru
      _
    // Predicated region
    $region30: #{_forward.1} parent=1 // pred_check
      _
    $region31: #{_forward.1} parent=1 // pred_check_branch
      %70 = sbr.rel (0) target = $region33
    $region32: #{_forward.1} parent=1 // pred_region
      %71 = dma.done [#allocation3], 65536
    $region33: #{_forward.1} parent=1 // pred_fallthru
      _
    // Predicated region
    $region34: #{_forward.1} parent=1 // pred_check
      _
    $region35: #{_forward.1} parent=1 // pred_check_branch
      %73 = sbr.rel (0) target = $region37
    $region36: #{_forward.1} parent=1 // pred_region
      %74 = dma.done [#allocation5], 65536
    $region37: #{_forward.1} parent=1 // pred_fallthru
      _
    // Predicated region
    $region38: #{_forward.1} parent=1 // pred_check
      _
    $region39: #{_forward.1} parent=1 // pred_check_branch
      %76 = sbr.rel (0) target = $region41
    $region40: #{_forward.1} parent=1 // pred_region
      %77 = dma.done [#allocation5], 32768
    $region41: #{_forward.1} parent=1 // pred_fallthru
      _
    // Predicated region
    $region42: #{_forward.1} parent=1 // pred_check
      _
    $region43: #{_forward.1} parent=1 // pred_check_branch
      %79 = sbr.rel (0) target = $region45
    $region44: #{_forward.1} parent=1 // pred_region
      %80 = dma.done [#allocation8], 768
    $region45: #{_forward.1} parent=1 // pred_fallthru
      _
    %v81 = vld [vmem:[%s0] sm:$0xff]
    %v82 = vld [vmem:[%s0 + $0x8] sm:$0xff]
    %v83 = vld [vmem:[#allocation2] sm:$0xff]
    %v84 = vld [vmem:[#allocation2 + $0x8] sm:$0xff]
    %v85 = vld [vmem:[#allocation2 + $0x10] sm:$0xff]
    %v86 = vld [vmem:[#allocation2 + $0x18] sm:$0xff]
    %v87 = vld [vmem:[#allocation2 + $0x20] sm:$0xff]
    %v88 = vld [vmem:[#allocation2 + $0x28] sm:$0xff]
    %v89 = vld [vmem:[#allocation2 + $0x30] sm:$0xff]
    %v90 = vld [vmem:[#allocation2 + $0x38] sm:$0xff]
    %v91 = vld [vmem:[#allocation2 + $0x40] sm:$0xff]
    %v92 = vld [vmem:[#allocation2 + $0x48] sm:$0xff]
    %v93 = vld [vmem:[#allocation2 + $0x50] sm:$0xff]
    %v94 = vld [vmem:[#allocation2 + $0x58] sm:$0xff]
    %v95 = vld [vmem:[#allocation2 + $0x60] sm:$0xff]
    %v96 = vld [vmem:[#allocation2 + $0x68] sm:$0xff]
    %v97 = vld [vmem:[#allocation2 + $0x70] sm:$0xff]
    %v98 = vld [vmem:[#allocation2 + $0x78] sm:$0xff]
    %v99 = vld [vmem:[#allocation2 + $0x80] sm:$0xff]
    %v100 = vld [vmem:[#allocation2 + $0x88] sm:$0xff]
    %v101 = vld [vmem:[#allocation2 + $0x90] sm:$0xff]
    %v102 = vld [vmem:[#allocation2 + $0x98] sm:$0xff]
    %v103 = vld [vmem:[#allocation2 + $0xa0] sm:$0xff]
    %v104 = vld [vmem:[#allocation2 + $0xa8] sm:$0xff]
    %v105 = vld [vmem:[#allocation2 + $0xb0] sm:$0xff]
    %v106 = vld [vmem:[#allocation2 + $0xb8] sm:$0xff]
    %v107 = vld [vmem:[#allocation2 + $0xc0] sm:$0xff]
    %v108 = vld [vmem:[#allocation2 + $0xc8] sm:$0xff]
    %v109 = vld [vmem:[#allocation2 + $0xd0] sm:$0xff]
    %v110 = vld [vmem:[#allocation2 + $0xd8] sm:$0xff]
    %v111 = vld [vmem:[#allocation2 + $0xe0] sm:$0xff]
    %v112 = vld [vmem:[#allocation2 + $0xe8] sm:$0xff]
    %v113 = vld [vmem:[#allocation2 + $0xf0] sm:$0xff]
    %v114 = vld [vmem:[#allocation2 + $0xf8] sm:$0xff]
    %v115 = vld [vmem:[#allocation2 + $0x100] sm:$0xff]
    %v116 = vld [vmem:[#allocation2 + $0x108] sm:$0xff]
    %v117 = vld [vmem:[#allocation2 + $0x110] sm:$0xff]
    %v118 = vld [vmem:[#allocation2 + $0x118] sm:$0xff]
    %v119 = vld [vmem:[#allocation2 + $0x120] sm:$0xff]
    %v120 = vld [vmem:[#allocation2 + $0x128] sm:$0xff]
    %v121 = vld [vmem:[#allocation2 + $0x130] sm:$0xff]
    %v122 = vld [vmem:[#allocation2 + $0x138] sm:$0xff]
    %v123 = vld [vmem:[#allocation2 + $0x140] sm:$0xff]
    %v124 = vld [vmem:[#allocation2 + $0x148] sm:$0xff]
    %v125 = vld [vmem:[#allocation2 + $0x150] sm:$0xff]
    %v126 = vld [vmem:[#allocation2 + $0x158] sm:$0xff]
    %v127 = vld [vmem:[#allocation2 + $0x160] sm:$0xff]
    %v128 = vld [vmem:[#allocation2 + $0x168] sm:$0xff]
    %v129 = vld [vmem:[#allocation2 + $0x170] sm:$0xff]
    %v130 = vld [vmem:[#allocation2 + $0x178] sm:$0xff]
    %v131 = vld [vmem:[#allocation2 + $0x180] sm:$0xff]
    %v132 = vld [vmem:[#allocation2 + $0x188] sm:$0xff]
    %v133 = vld [vmem:[#allocation2 + $0x190] sm:$0xff]
    %v134 = vld [vmem:[#allocation2 + $0x198] sm:$0xff]
    %v135 = vld [vmem:[#allocation2 + $0x1a0] sm:$0xff]
    %v136 = vld [vmem:[#allocation2 + $0x1a8] sm:$0xff]
    %v137 = vld [vmem:[#allocation2 + $0x1b0] sm:$0xff]
    %v138 = vld [vmem:[#allocation2 + $0x1b8] sm:$0xff]
    %v139 = vld [vmem:[#allocation2 + $0x1c0] sm:$0xff]
    %v140 = vld [vmem:[#allocation2 + $0x1c8] sm:$0xff]
    %v141 = vld [vmem:[#allocation2 + $0x1d0] sm:$0xff]
    %v142 = vld [vmem:[#allocation2 + $0x1d8] sm:$0xff]
    %v143 = vld [vmem:[#allocation2 + $0x1e0] sm:$0xff]
    %v144 = vld [vmem:[#allocation2 + $0x1e8] sm:$0xff]
    %v145 = vld [vmem:[#allocation2 + $0x1f0] sm:$0xff]
    %v146 = vld [vmem:[#allocation2 + $0x1f8] sm:$0xff]
    %v147 = vld [vmem:[#allocation2 + $0x200] sm:$0xff]
    %v148 = vld [vmem:[#allocation2 + $0x208] sm:$0xff]
    %v149 = vld [vmem:[#allocation2 + $0x210] sm:$0xff]
    %v150 = vld [vmem:[#allocation2 + $0x218] sm:$0xff]
    %v151 = vld [vmem:[#allocation2 + $0x220] sm:$0xff]
    %v152 = vld [vmem:[#allocation2 + $0x228] sm:$0xff]
    %v153 = vld [vmem:[#allocation2 + $0x230] sm:$0xff]
    %v154 = vld [vmem:[#allocation2 + $0x238] sm:$0xff]
    %v155 = vld [vmem:[#allocation2 + $0x240] sm:$0xff]
    %v156 = vld [vmem:[#allocation2 + $0x248] sm:$0xff]
    %v157 = vld [vmem:[#allocation2 + $0x250] sm:$0xff]
    %v158 = vld [vmem:[#allocation2 + $0x258] sm:$0xff]
    %v159 = vld [vmem:[#allocation2 + $0x260] sm:$0xff]
    %v160 = vld [vmem:[#allocation2 + $0x268] sm:$0xff]
    %v161 = vld [vmem:[#allocation2 + $0x270] sm:$0xff]
    %v162 = vld [vmem:[#allocation2 + $0x278] sm:$0xff]
    %v163 = vld [vmem:[#allocation2 + $0x280] sm:$0xff]
    %v164 = vld [vmem:[#allocation2 + $0x288] sm:$0xff]
    %v165 = vld [vmem:[#allocation2 + $0x290] sm:$0xff]
    %v166 = vld [vmem:[#allocation2 + $0x298] sm:$0xff]
    %v167 = vld [vmem:[#allocation2 + $0x2a0] sm:$0xff]
    %v168 = vld [vmem:[#allocation2 + $0x2a8] sm:$0xff]
    %v169 = vld [vmem:[#allocation2 + $0x2b0] sm:$0xff]
    %v170 = vld [vmem:[#allocation2 + $0x2b8] sm:$0xff]
    %v171 = vld [vmem:[#allocation2 + $0x2c0] sm:$0xff]
    %v172 = vld [vmem:[#allocation2 + $0x2c8] sm:$0xff]
    %v173 = vld [vmem:[#allocation2 + $0x2d0] sm:$0xff]
    %v174 = vld [vmem:[#allocation2 + $0x2d8] sm:$0xff]
    %v175 = vld [vmem:[#allocation2 + $0x2e0] sm:$0xff]
    %v176 = vld [vmem:[#allocation2 + $0x2e8] sm:$0xff]
    %v177 = vld [vmem:[#allocation2 + $0x2f0] sm:$0xff]
    %v178 = vld [vmem:[#allocation2 + $0x2f8] sm:$0xff]
    %v179 = vld [vmem:[#allocation2 + $0x300] sm:$0xff]
    %v180 = vld [vmem:[#allocation2 + $0x308] sm:$0xff]
    %v181 = vld [vmem:[#allocation2 + $0x310] sm:$0xff]
    %v182 = vld [vmem:[#allocation2 + $0x318] sm:$0xff]
    %v183 = vld [vmem:[#allocation2 + $0x320] sm:$0xff]
    %v184 = vld [vmem:[#allocation2 + $0x328] sm:$0xff]
    %v185 = vld [vmem:[#allocation2 + $0x330] sm:$0xff]
    %v186 = vld [vmem:[#allocation2 + $0x338] sm:$0xff]
    %v187 = vld [vmem:[#allocation2 + $0x340] sm:$0xff]
    %v188 = vld [vmem:[#allocation2 + $0x348] sm:$0xff]
    %v189 = vld [vmem:[#allocation2 + $0x350] sm:$0xff]
    %v190 = vld [vmem:[#allocation2 + $0x358] sm:$0xff]
    %v191 = vld [vmem:[#allocation2 + $0x360] sm:$0xff]
    %v192 = vld [vmem:[#allocation2 + $0x368] sm:$0xff]
    %v193 = vld [vmem:[#allocation2 + $0x370] sm:$0xff]
    %v194 = vld [vmem:[#allocation2 + $0x378] sm:$0xff]
    %v195 = vld [vmem:[#allocation2 + $0x380] sm:$0xff]
    %v196 = vld [vmem:[#allocation2 + $0x388] sm:$0xff]
    %v197 = vld [vmem:[#allocation2 + $0x390] sm:$0xff]
    %v198 = vld [vmem:[#allocation2 + $0x398] sm:$0xff]
    %v199 = vld [vmem:[#allocation2 + $0x3a0] sm:$0xff]
    %v200 = vld [vmem:[#allocation2 + $0x3a8] sm:$0xff]
    %v201 = vld [vmem:[#allocation2 + $0x3b0] sm:$0xff]
    %v202 = vld [vmem:[#allocation2 + $0x3b8] sm:$0xff]
    %v203 = vld [vmem:[#allocation2 + $0x3c0] sm:$0xff]
    %v204 = vld [vmem:[#allocation2 + $0x3c8] sm:$0xff]
    %v205 = vld [vmem:[#allocation2 + $0x3d0] sm:$0xff]
    %v206 = vld [vmem:[#allocation2 + $0x3d8] sm:$0xff]
    %v207 = vld [vmem:[#allocation2 + $0x3e0] sm:$0xff]
    %v208 = vld [vmem:[#allocation2 + $0x3e8] sm:$0xff]
    %v209 = vld [vmem:[#allocation2 + $0x3f0] sm:$0xff]
    %v210 = vld [vmem:[#allocation2 + $0x3f8] sm:$0xff]
    %v211 = vld [vmem:[#allocation2 + $0x400] sm:$0xff]
    %v212 = vld [vmem:[#allocation2 + $0x408] sm:$0xff]
    %v213 = vld [vmem:[#allocation2 + $0x410] sm:$0xff]
    %v214 = vld [vmem:[#allocation2 + $0x418] sm:$0xff]
    %v215 = vld [vmem:[#allocation2 + $0x420] sm:$0xff]
    %v216 = vld [vmem:[#allocation2 + $0x428] sm:$0xff]
    %v217 = vld [vmem:[#allocation2 + $0x430] sm:$0xff]
    %v218 = vld [vmem:[#allocation2 + $0x438] sm:$0xff]
    %v219 = vld [vmem:[#allocation2 + $0x440] sm:$0xff]
    %v220 = vld [vmem:[#allocation2 + $0x448] sm:$0xff]
    %v221 = vld [vmem:[#allocation2 + $0x450] sm:$0xff]
    %v222 = vld [vmem:[#allocation2 + $0x458] sm:$0xff]
    %v223 = vld [vmem:[#allocation2 + $0x460] sm:$0xff]
    %v224 = vld [vmem:[#allocation2 + $0x468] sm:$0xff]
    %v225 = vld [vmem:[#allocation2 + $0x470] sm:$0xff]
    %v226 = vld [vmem:[#allocation2 + $0x478] sm:$0xff]
    %v227 = vld [vmem:[#allocation2 + $0x480] sm:$0xff]
    %v228 = vld [vmem:[#allocation2 + $0x488] sm:$0xff]
    %v229 = vld [vmem:[#allocation2 + $0x490] sm:$0xff]
    %v230 = vld [vmem:[#allocation2 + $0x498] sm:$0xff]
    %v231 = vld [vmem:[#allocation2 + $0x4a0] sm:$0xff]
    %v232 = vld [vmem:[#allocation2 + $0x4a8] sm:$0xff]
    %v233 = vld [vmem:[#allocation2 + $0x4b0] sm:$0xff]
    %v234 = vld [vmem:[#allocation2 + $0x4b8] sm:$0xff]
    %v235 = vld [vmem:[#allocation2 + $0x4c0] sm:$0xff]
    %v236 = vld [vmem:[#allocation2 + $0x4c8] sm:$0xff]
    %v237 = vld [vmem:[#allocation2 + $0x4d0] sm:$0xff]
    %v238 = vld [vmem:[#allocation2 + $0x4d8] sm:$0xff]
    %v239 = vld [vmem:[#allocation2 + $0x4e0] sm:$0xff]
    %v240 = vld [vmem:[#allocation2 + $0x4e8] sm:$0xff]
    %v241 = vld [vmem:[#allocation2 + $0x4f0] sm:$0xff]
    %v242 = vld [vmem:[#allocation2 + $0x4f8] sm:$0xff]
    %v243 = vld [vmem:[#allocation2 + $0x500] sm:$0xff]
    %v244 = vld [vmem:[#allocation2 + $0x508] sm:$0xff]
    %v245 = vld [vmem:[#allocation2 + $0x510] sm:$0xff]
    %v246 = vld [vmem:[#allocation2 + $0x518] sm:$0xff]
    %v247 = vld [vmem:[#allocation2 + $0x520] sm:$0xff]
    %v248 = vld [vmem:[#allocation2 + $0x528] sm:$0xff]
    %v249 = vld [vmem:[#allocation2 + $0x530] sm:$0xff]
    %v250 = vld [vmem:[#allocation2 + $0x538] sm:$0xff]
    %v251 = vld [vmem:[#allocation2 + $0x540] sm:$0xff]
    %v252 = vld [vmem:[#allocation2 + $0x548] sm:$0xff]
    %v253 = vld [vmem:[#allocation2 + $0x550] sm:$0xff]
    %v254 = vld [vmem:[#allocation2 + $0x558] sm:$0xff]
    %v255 = vld [vmem:[#allocation2 + $0x560] sm:$0xff]
    %v256 = vld [vmem:[#allocation2 + $0x568] sm:$0xff]
    %v257 = vld [vmem:[#allocation2 + $0x570] sm:$0xff]
    %v258 = vld [vmem:[#allocation2 + $0x578] sm:$0xff]
    %v259 = vld [vmem:[#allocation2 + $0x580] sm:$0xff]
    %v260 = vld [vmem:[#allocation2 + $0x588] sm:$0xff]
    %v261 = vld [vmem:[#allocation2 + $0x590] sm:$0xff]
    %v262 = vld [vmem:[#allocation2 + $0x598] sm:$0xff]
    %v263 = vld [vmem:[#allocation2 + $0x5a0] sm:$0xff]
    %v264 = vld [vmem:[#allocation2 + $0x5a8] sm:$0xff]
    %v265 = vld [vmem:[#allocation2 + $0x5b0] sm:$0xff]
    %v266 = vld [vmem:[#allocation2 + $0x5b8] sm:$0xff]
    %v267 = vld [vmem:[#allocation2 + $0x5c0] sm:$0xff]
    %v268 = vld [vmem:[#allocation2 + $0x5c8] sm:$0xff]
    %v269 = vld [vmem:[#allocation2 + $0x5d0] sm:$0xff]
    %v270 = vld [vmem:[#allocation2 + $0x5d8] sm:$0xff]
    %v271 = vld [vmem:[#allocation2 + $0x5e0] sm:$0xff]
    %v272 = vld [vmem:[#allocation2 + $0x5e8] sm:$0xff]
    %v273 = vld [vmem:[#allocation2 + $0x5f0] sm:$0xff]
    %v274 = vld [vmem:[#allocation2 + $0x5f8] sm:$0xff]
    %v275 = vld [vmem:[#allocation2 + $0x600] sm:$0xff]
    %v276 = vld [vmem:[#allocation2 + $0x608] sm:$0xff]
    %v277 = vld [vmem:[#allocation2 + $0x610] sm:$0xff]
    %v278 = vld [vmem:[#allocation2 + $0x618] sm:$0xff]
    %v279 = vld [vmem:[#allocation2 + $0x620] sm:$0xff]
    %v280 = vld [vmem:[#allocation2 + $0x628] sm:$0xff]
    %v281 = vld [vmem:[#allocation2 + $0x630] sm:$0xff]
    %v282 = vld [vmem:[#allocation2 + $0x638] sm:$0xff]
    %v283 = vld [vmem:[#allocation2 + $0x640] sm:$0xff]
    %v284 = vld [vmem:[#allocation2 + $0x648] sm:$0xff]
    %v285 = vld [vmem:[#allocation2 + $0x650] sm:$0xff]
    %v286 = vld [vmem:[#allocation2 + $0x658] sm:$0xff]
    %v287 = vld [vmem:[#allocation2 + $0x660] sm:$0xff]
    %v288 = vld [vmem:[#allocation2 + $0x668] sm:$0xff]
    %v289 = vld [vmem:[#allocation2 + $0x670] sm:$0xff]
    %v290 = vld [vmem:[#allocation2 + $0x678] sm:$0xff]
    %v291 = vld [vmem:[#allocation2 + $0x680] sm:$0xff]
    %v292 = vld [vmem:[#allocation2 + $0x688] sm:$0xff]
    %v293 = vld [vmem:[#allocation2 + $0x690] sm:$0xff]
    %v294 = vld [vmem:[#allocation2 + $0x698] sm:$0xff]
    %v295 = vld [vmem:[#allocation2 + $0x6a0] sm:$0xff]
    %v296 = vld [vmem:[#allocation2 + $0x6a8] sm:$0xff]
    %v297 = vld [vmem:[#allocation2 + $0x6b0] sm:$0xff]
    %v298 = vld [vmem:[#allocation2 + $0x6b8] sm:$0xff]
    %v299 = vld [vmem:[#allocation2 + $0x6c0] sm:$0xff]
    %v300 = vld [vmem:[#allocation2 + $0x6c8] sm:$0xff]
    %v301 = vld [vmem:[#allocation2 + $0x6d0] sm:$0xff]
    %v302 = vld [vmem:[#allocation2 + $0x6d8] sm:$0xff]
    %v303 = vld [vmem:[#allocation2 + $0x6e0] sm:$0xff]
    %v304 = vld [vmem:[#allocation2 + $0x6e8] sm:$0xff]
    %v305 = vld [vmem:[#allocation2 + $0x6f0] sm:$0xff]
    %v306 = vld [vmem:[#allocation2 + $0x6f8] sm:$0xff]
    %v307 = vld [vmem:[#allocation2 + $0x700] sm:$0xff]
    %v308 = vld [vmem:[#allocation2 + $0x708] sm:$0xff]
    %v309 = vld [vmem:[#allocation2 + $0x710] sm:$0xff]
    %v310 = vld [vmem:[#allocation2 + $0x718] sm:$0xff]
    %v311 = vld [vmem:[#allocation2 + $0x720] sm:$0xff]
    %v312 = vld [vmem:[#allocation2 + $0x728] sm:$0xff]
    %v313 = vld [vmem:[#allocation2 + $0x730] sm:$0xff]
    %v314 = vld [vmem:[#allocation2 + $0x738] sm:$0xff]
    %v315 = vld [vmem:[#allocation2 + $0x740] sm:$0xff]
    %v316 = vld [vmem:[#allocation2 + $0x748] sm:$0xff]
    %v317 = vld [vmem:[#allocation2 + $0x750] sm:$0xff]
    %v318 = vld [vmem:[#allocation2 + $0x758] sm:$0xff]
    %v319 = vld [vmem:[#allocation2 + $0x760] sm:$0xff]
    %v320 = vld [vmem:[#allocation2 + $0x768] sm:$0xff]
    %v321 = vld [vmem:[#allocation2 + $0x770] sm:$0xff]
    %v322 = vld [vmem:[#allocation2 + $0x778] sm:$0xff]
    %v323 = vld [vmem:[#allocation2 + $0x780] sm:$0xff]
    %v324 = vld [vmem:[#allocation2 + $0x788] sm:$0xff]
    %v325 = vld [vmem:[#allocation2 + $0x790] sm:$0xff]
    %v326 = vld [vmem:[#allocation2 + $0x798] sm:$0xff]
    %v327 = vld [vmem:[#allocation2 + $0x7a0] sm:$0xff]
    %v328 = vld [vmem:[#allocation2 + $0x7a8] sm:$0xff]
    %v329 = vld [vmem:[#allocation2 + $0x7b0] sm:$0xff]
    %v330 = vld [vmem:[#allocation2 + $0x7b8] sm:$0xff]
    %v331 = vld [vmem:[#allocation2 + $0x7c0] sm:$0xff]
    %v332 = vld [vmem:[#allocation2 + $0x7c8] sm:$0xff]
    %v333 = vld [vmem:[#allocation2 + $0x7d0] sm:$0xff]
    %v334 = vld [vmem:[#allocation2 + $0x7d8] sm:$0xff]
    %v335 = vld [vmem:[#allocation2 + $0x7e0] sm:$0xff]
    %v336 = vld [vmem:[#allocation2 + $0x7e8] sm:$0xff]
    %v337 = vld [vmem:[#allocation2 + $0x7f0] sm:$0xff]
    %v338 = vld [vmem:[#allocation2 + $0x7f8] sm:$0xff]
    %v339 = vld [vmem:[#allocation2 + $0x800] sm:$0xff]
    %v340 = vld [vmem:[#allocation2 + $0x808] sm:$0xff]
    %v341 = vld [vmem:[#allocation2 + $0x810] sm:$0xff]
    %v342 = vld [vmem:[#allocation2 + $0x818] sm:$0xff]
    %v343 = vld [vmem:[#allocation2 + $0x820] sm:$0xff]
    %v344 = vld [vmem:[#allocation2 + $0x828] sm:$0xff]
    %v345 = vld [vmem:[#allocation2 + $0x830] sm:$0xff]
    %v346 = vld [vmem:[#allocation2 + $0x838] sm:$0xff]
    %v347 = vld [vmem:[#allocation2 + $0x840] sm:$0xff]
    %v348 = vld [vmem:[#allocation2 + $0x848] sm:$0xff]
    %v349 = vld [vmem:[#allocation2 + $0x850] sm:$0xff]
    %v350 = vld [vmem:[#allocation2 + $0x858] sm:$0xff]
    %v351 = vld [vmem:[#allocation2 + $0x860] sm:$0xff]
    %v352 = vld [vmem:[#allocation2 + $0x868] sm:$0xff]
    %v353 = vld [vmem:[#allocation2 + $0x870] sm:$0xff]
    %v354 = vld [vmem:[#allocation2 + $0x878] sm:$0xff]
    %v355 = vld [vmem:[#allocation2 + $0x880] sm:$0xff]
    %v356 = vld [vmem:[#allocation2 + $0x888] sm:$0xff]
    %v357 = vld [vmem:[#allocation2 + $0x890] sm:$0xff]
    %v358 = vld [vmem:[#allocation2 + $0x898] sm:$0xff]
    %v359 = vld [vmem:[#allocation2 + $0x8a0] sm:$0xff]
    %v360 = vld [vmem:[#allocation2 + $0x8a8] sm:$0xff]
    %v361 = vld [vmem:[#allocation2 + $0x8b0] sm:$0xff]
    %v362 = vld [vmem:[#allocation2 + $0x8b8] sm:$0xff]
    %v363 = vld [vmem:[#allocation2 + $0x8c0] sm:$0xff]
    %v364 = vld [vmem:[#allocation2 + $0x8c8] sm:$0xff]
    %v365 = vld [vmem:[#allocation2 + $0x8d0] sm:$0xff]
    %v366 = vld [vmem:[#allocation2 + $0x8d8] sm:$0xff]
    %v367 = vld [vmem:[#allocation2 + $0x8e0] sm:$0xff]
    %v368 = vld [vmem:[#allocation2 + $0x8e8] sm:$0xff]
    %v369 = vld [vmem:[#allocation2 + $0x8f0] sm:$0xff]
    %v370 = vld [vmem:[#allocation2 + $0x8f8] sm:$0xff]
    %v371 = vld [vmem:[#allocation2 + $0x900] sm:$0xff]
    %v372 = vld [vmem:[#allocation2 + $0x908] sm:$0xff]
    %v373 = vld [vmem:[#allocation2 + $0x910] sm:$0xff]
    %v374 = vld [vmem:[#allocation2 + $0x918] sm:$0xff]
    %v375 = vld [vmem:[#allocation2 + $0x920] sm:$0xff]
    %v376 = vld [vmem:[#allocation2 + $0x928] sm:$0xff]
    %v377 = vld [vmem:[#allocation2 + $0x930] sm:$0xff]
    %v378 = vld [vmem:[#allocation2 + $0x938] sm:$0xff]
    %v379 = vld [vmem:[#allocation2 + $0x940] sm:$0xff]
    %v380 = vld [vmem:[#allocation2 + $0x948] sm:$0xff]
    %v381 = vld [vmem:[#allocation2 + $0x950] sm:$0xff]
    %v382 = vld [vmem:[#allocation2 + $0x958] sm:$0xff]
    %v383 = vld [vmem:[#allocation2 + $0x960] sm:$0xff]
    %v384 = vld [vmem:[#allocation2 + $0x968] sm:$0xff]
    %v385 = vld [vmem:[#allocation2 + $0x970] sm:$0xff]
    %v386 = vld [vmem:[#allocation2 + $0x978] sm:$0xff]
    %v387 = vld [vmem:[#allocation2 + $0x980] sm:$0xff]
    %v388 = vld [vmem:[#allocation2 + $0x988] sm:$0xff]
    %v389 = vld [vmem:[#allocation2 + $0x990] sm:$0xff]
    %v390 = vld [vmem:[#allocation2 + $0x998] sm:$0xff]
    %v391 = vld [vmem:[#allocation2 + $0x9a0] sm:$0xff]
    %v392 = vld [vmem:[#allocation2 + $0x9a8] sm:$0xff]
    %v393 = vld [vmem:[#allocation2 + $0x9b0] sm:$0xff]
    %v394 = vld [vmem:[#allocation2 + $0x9b8] sm:$0xff]
    %v395 = vld [vmem:[#allocation2 + $0x9c0] sm:$0xff]
    %v396 = vld [vmem:[#allocation2 + $0x9c8] sm:$0xff]
    %v397 = vld [vmem:[#allocation2 + $0x9d0] sm:$0xff]
    %v398 = vld [vmem:[#allocation2 + $0x9d8] sm:$0xff]
    %v399 = vld [vmem:[#allocation2 + $0x9e0] sm:$0xff]
    %v400 = vld [vmem:[#allocation2 + $0x9e8] sm:$0xff]
    %v401 = vld [vmem:[#allocation2 + $0x9f0] sm:$0xff]
    %v402 = vld [vmem:[#allocation2 + $0x9f8] sm:$0xff]
    %v403 = vld [vmem:[#allocation2 + $0xa00] sm:$0xff]
    %v404 = vld [vmem:[#allocation2 + $0xa08] sm:$0xff]
    %v405 = vld [vmem:[#allocation2 + $0xa10] sm:$0xff]
    %v406 = vld [vmem:[#allocation2 + $0xa18] sm:$0xff]
    %v407 = vld [vmem:[#allocation2 + $0xa20] sm:$0xff]
    %v408 = vld [vmem:[#allocation2 + $0xa28] sm:$0xff]
    %v409 = vld [vmem:[#allocation2 + $0xa30] sm:$0xff]
    %v410 = vld [vmem:[#allocation2 + $0xa38] sm:$0xff]
    %v411 = vld [vmem:[#allocation2 + $0xa40] sm:$0xff]
    %v412 = vld [vmem:[#allocation2 + $0xa48] sm:$0xff]
    %v413 = vld [vmem:[#allocation2 + $0xa50] sm:$0xff]
    %v414 = vld [vmem:[#allocation2 + $0xa58] sm:$0xff]
    %v415 = vld [vmem:[#allocation2 + $0xa60] sm:$0xff]
    %v416 = vld [vmem:[#allocation2 + $0xa68] sm:$0xff]
    %v417 = vld [vmem:[#allocation2 + $0xa70] sm:$0xff]
    %v418 = vld [vmem:[#allocation2 + $0xa78] sm:$0xff]
    %v419 = vld [vmem:[#allocation2 + $0xa80] sm:$0xff]
    %v420 = vld [vmem:[#allocation2 + $0xa88] sm:$0xff]
    %v421 = vld [vmem:[#allocation2 + $0xa90] sm:$0xff]
    %v422 = vld [vmem:[#allocation2 + $0xa98] sm:$0xff]
    %v423 = vld [vmem:[#allocation2 + $0xaa0] sm:$0xff]
    %v424 = vld [vmem:[#allocation2 + $0xaa8] sm:$0xff]
    %v425 = vld [vmem:[#allocation2 + $0xab0] sm:$0xff]
    %v426 = vld [vmem:[#allocation2 + $0xab8] sm:$0xff]
    %v427 = vld [vmem:[#allocation2 + $0xac0] sm:$0xff]
    %v428 = vld [vmem:[#allocation2 + $0xac8] sm:$0xff]
    %v429 = vld [vmem:[#allocation2 + $0xad0] sm:$0xff]
    %v430 = vld [vmem:[#allocation2 + $0xad8] sm:$0xff]
    %v431 = vld [vmem:[#allocation2 + $0xae0] sm:$0xff]
    %v432 = vld [vmem:[#allocation2 + $0xae8] sm:$0xff]
    %v433 = vld [vmem:[#allocation2 + $0xaf0] sm:$0xff]
    %v434 = vld [vmem:[#allocation2 + $0xaf8] sm:$0xff]
    %v435 = vld [vmem:[#allocation2 + $0xb00] sm:$0xff]
    %v436 = vld [vmem:[#allocation2 + $0xb08] sm:$0xff]
    %v437 = vld [vmem:[#allocation2 + $0xb10] sm:$0xff]
    %v438 = vld [vmem:[#allocation2 + $0xb18] sm:$0xff]
    %v439 = vld [vmem:[#allocation2 + $0xb20] sm:$0xff]
    %v440 = vld [vmem:[#allocation2 + $0xb28] sm:$0xff]
    %v441 = vld [vmem:[#allocation2 + $0xb30] sm:$0xff]
    %v442 = vld [vmem:[#allocation2 + $0xb38] sm:$0xff]
    %v443 = vld [vmem:[#allocation2 + $0xb40] sm:$0xff]
    %v444 = vld [vmem:[#allocation2 + $0xb48] sm:$0xff]
    %v445 = vld [vmem:[#allocation2 + $0xb50] sm:$0xff]
    %v446 = vld [vmem:[#allocation2 + $0xb58] sm:$0xff]
    %v447 = vld [vmem:[#allocation2 + $0xb60] sm:$0xff]
    %v448 = vld [vmem:[#allocation2 + $0xb68] sm:$0xff]
    %v449 = vld [vmem:[#allocation2 + $0xb70] sm:$0xff]
    %v450 = vld [vmem:[#allocation2 + $0xb78] sm:$0xff]
    %v451 = vld [vmem:[#allocation2 + $0xb80] sm:$0xff]
    %v452 = vld [vmem:[#allocation2 + $0xb88] sm:$0xff]
    %v453 = vld [vmem:[#allocation2 + $0xb90] sm:$0xff]
    %v454 = vld [vmem:[#allocation2 + $0xb98] sm:$0xff]
    %v455 = vld [vmem:[#allocation2 + $0xba0] sm:$0xff]
    %v456 = vld [vmem:[#allocation2 + $0xba8] sm:$0xff]
    %v457 = vld [vmem:[#allocation2 + $0xbb0] sm:$0xff]
    %v458 = vld [vmem:[#allocation2 + $0xbb8] sm:$0xff]
    %v459 = vld [vmem:[#allocation2 + $0xbc0] sm:$0xff]
    %v460 = vld [vmem:[#allocation2 + $0xbc8] sm:$0xff]
    %v461 = vld [vmem:[#allocation2 + $0xbd0] sm:$0xff]
    %v462 = vld [vmem:[#allocation2 + $0xbd8] sm:$0xff]
    %v463 = vld [vmem:[#allocation2 + $0xbe0] sm:$0xff]
    %v464 = vld [vmem:[#allocation2 + $0xbe8] sm:$0xff]
    %v465 = vld [vmem:[#allocation2 + $0xbf0] sm:$0xff]
    %v466 = vld [vmem:[#allocation2 + $0xbf8] sm:$0xff]
    %v467 = vld [vmem:[#allocation2 + $0xc00] sm:$0xff]
    %v468 = vld [vmem:[#allocation2 + $0xc08] sm:$0xff]
    %v469 = vld [vmem:[#allocation2 + $0xc10] sm:$0xff]
    %v470 = vld [vmem:[#allocation2 + $0xc18] sm:$0xff]
    %v471 = vld [vmem:[#allocation2 + $0xc20] sm:$0xff]
    %v472 = vld [vmem:[#allocation2 + $0xc28] sm:$0xff]
    %v473 = vld [vmem:[#allocation2 + $0xc30] sm:$0xff]
    %v474 = vld [vmem:[#allocation2 + $0xc38] sm:$0xff]
    %v475 = vld [vmem:[#allocation2 + $0xc40] sm:$0xff]
    %v476 = vld [vmem:[#allocation2 + $0xc48] sm:$0xff]
    %v477 = vld [vmem:[#allocation2 + $0xc50] sm:$0xff]
    %v478 = vld [vmem:[#allocation2 + $0xc58] sm:$0xff]
    %v479 = vld [vmem:[#allocation2 + $0xc60] sm:$0xff]
    %v480 = vld [vmem:[#allocation2 + $0xc68] sm:$0xff]
    %v481 = vld [vmem:[#allocation2 + $0xc70] sm:$0xff]
    %v482 = vld [vmem:[#allocation2 + $0xc78] sm:$0xff]
    %v483 = vld [vmem:[#allocation2 + $0xc80] sm:$0xff]
    %v484 = vld [vmem:[#allocation2 + $0xc88] sm:$0xff]
    %v485 = vld [vmem:[#allocation2 + $0xc90] sm:$0xff]
    %v486 = vld [vmem:[#allocation2 + $0xc98] sm:$0xff]
    %v487 = vld [vmem:[#allocation2 + $0xca0] sm:$0xff]
    %v488 = vld [vmem:[#allocation2 + $0xca8] sm:$0xff]
    %v489 = vld [vmem:[#allocation2 + $0xcb0] sm:$0xff]
    %v490 = vld [vmem:[#allocation2 + $0xcb8] sm:$0xff]
    %v491 = vld [vmem:[#allocation2 + $0xcc0] sm:$0xff]
    %v492 = vld [vmem:[#allocation2 + $0xcc8] sm:$0xff]
    %v493 = vld [vmem:[#allocation2 + $0xcd0] sm:$0xff]
    %v494 = vld [vmem:[#allocation2 + $0xcd8] sm:$0xff]
    %v495 = vld [vmem:[#allocation2 + $0xce0] sm:$0xff]
    %v496 = vld [vmem:[#allocation2 + $0xce8] sm:$0xff]
    %v497 = vld [vmem:[#allocation2 + $0xcf0] sm:$0xff]
    %v498 = vld [vmem:[#allocation2 + $0xcf8] sm:$0xff]
    %v499 = vld [vmem:[#allocation2 + $0xd00] sm:$0xff]
    %v500 = vld [vmem:[#allocation2 + $0xd08] sm:$0xff]
    %v501 = vld [vmem:[#allocation2 + $0xd10] sm:$0xff]
    %v502 = vld [vmem:[#allocation2 + $0xd18] sm:$0xff]
    %v503 = vld [vmem:[#allocation2 + $0xd20] sm:$0xff]
    %v504 = vld [vmem:[#allocation2 + $0xd28] sm:$0xff]
    %v505 = vld [vmem:[#allocation2 + $0xd30] sm:$0xff]
    %v506 = vld [vmem:[#allocation2 + $0xd38] sm:$0xff]
    %v507 = vld [vmem:[#allocation2 + $0xd40] sm:$0xff]
    %v508 = vld [vmem:[#allocation2 + $0xd48] sm:$0xff]
    %v509 = vld [vmem:[#allocation2 + $0xd50] sm:$0xff]
    %v510 = vld [vmem:[#allocation2 + $0xd58] sm:$0xff]
    %v511 = vld [vmem:[#allocation2 + $0xd60] sm:$0xff]
    %v512 = vld [vmem:[#allocation2 + $0xd68] sm:$0xff]
    %v513 = vld [vmem:[#allocation2 + $0xd70] sm:$0xff]
    %v514 = vld [vmem:[#allocation2 + $0xd78] sm:$0xff]
    %v515 = vld [vmem:[#allocation2 + $0xd80] sm:$0xff]
    %v516 = vld [vmem:[#allocation2 + $0xd88] sm:$0xff]
    %v517 = vld [vmem:[#allocation2 + $0xd90] sm:$0xff]
    %v518 = vld [vmem:[#allocation2 + $0xd98] sm:$0xff]
    %v519 = vld [vmem:[#allocation2 + $0xda0] sm:$0xff]
    %v520 = vld [vmem:[#allocation2 + $0xda8] sm:$0xff]
    %v521 = vld [vmem:[#allocation2 + $0xdb0] sm:$0xff]
    %v522 = vld [vmem:[#allocation2 + $0xdb8] sm:$0xff]
    %v523 = vld [vmem:[#allocation2 + $0xdc0] sm:$0xff]
    %v524 = vld [vmem:[#allocation2 + $0xdc8] sm:$0xff]
    %v525 = vld [vmem:[#allocation2 + $0xdd0] sm:$0xff]
    %v526 = vld [vmem:[#allocation2 + $0xdd8] sm:$0xff]
    %v527 = vld [vmem:[#allocation2 + $0xde0] sm:$0xff]
    %v528 = vld [vmem:[#allocation2 + $0xde8] sm:$0xff]
    %v529 = vld [vmem:[#allocation2 + $0xdf0] sm:$0xff]
    %v530 = vld [vmem:[#allocation2 + $0xdf8] sm:$0xff]
    %v531 = vld [vmem:[#allocation2 + $0xe00] sm:$0xff]
    %v532 = vld [vmem:[#allocation2 + $0xe08] sm:$0xff]
    %v533 = vld [vmem:[#allocation2 + $0xe10] sm:$0xff]
    %v534 = vld [vmem:[#allocation2 + $0xe18] sm:$0xff]
    %v535 = vld [vmem:[#allocation2 + $0xe20] sm:$0xff]
    %v536 = vld [vmem:[#allocation2 + $0xe28] sm:$0xff]
    %v537 = vld [vmem:[#allocation2 + $0xe30] sm:$0xff]
    %v538 = vld [vmem:[#allocation2 + $0xe38] sm:$0xff]
    %v539 = vld [vmem:[#allocation2 + $0xe40] sm:$0xff]
    %v540 = vld [vmem:[#allocation2 + $0xe48] sm:$0xff]
    %v541 = vld [vmem:[#allocation2 + $0xe50] sm:$0xff]
    %v542 = vld [vmem:[#allocation2 + $0xe58] sm:$0xff]
    %v543 = vld [vmem:[#allocation2 + $0xe60] sm:$0xff]
    %v544 = vld [vmem:[#allocation2 + $0xe68] sm:$0xff]
    %v545 = vld [vmem:[#allocation2 + $0xe70] sm:$0xff]
    %v546 = vld [vmem:[#allocation2 + $0xe78] sm:$0xff]
    %v547 = vld [vmem:[#allocation2 + $0xe80] sm:$0xff]
    %v548 = vld [vmem:[#allocation2 + $0xe88] sm:$0xff]
    %v549 = vld [vmem:[#allocation2 + $0xe90] sm:$0xff]
    %v550 = vld [vmem:[#allocation2 + $0xe98] sm:$0xff]
    %v551 = vld [vmem:[#allocation2 + $0xea0] sm:$0xff]
    %v552 = vld [vmem:[#allocation2 + $0xea8] sm:$0xff]
    %v553 = vld [vmem:[#allocation2 + $0xeb0] sm:$0xff]
    %v554 = vld [vmem:[#allocation2 + $0xeb8] sm:$0xff]
    %v555 = vld [vmem:[#allocation2 + $0xec0] sm:$0xff]
    %v556 = vld [vmem:[#allocation2 + $0xec8] sm:$0xff]
    %v557 = vld [vmem:[#allocation2 + $0xed0] sm:$0xff]
    %v558 = vld [vmem:[#allocation2 + $0xed8] sm:$0xff]
    %v559 = vld [vmem:[#allocation2 + $0xee0] sm:$0xff]
    %v560 = vld [vmem:[#allocation2 + $0xee8] sm:$0xff]
    %v561 = vld [vmem:[#allocation2 + $0xef0] sm:$0xff]
    %v562 = vld [vmem:[#allocation2 + $0xef8] sm:$0xff]
    %v563 = vld [vmem:[#allocation2 + $0xf00] sm:$0xff]
    %v564 = vld [vmem:[#allocation2 + $0xf08] sm:$0xff]
    %v565 = vld [vmem:[#allocation2 + $0xf10] sm:$0xff]
    %v566 = vld [vmem:[#allocation2 + $0xf18] sm:$0xff]
    %v567 = vld [vmem:[#allocation2 + $0xf20] sm:$0xff]
    %v568 = vld [vmem:[#allocation2 + $0xf28] sm:$0xff]
    %v569 = vld [vmem:[#allocation2 + $0xf30] sm:$0xff]
    %v570 = vld [vmem:[#allocation2 + $0xf38] sm:$0xff]
    %v571 = vld [vmem:[#allocation2 + $0xf40] sm:$0xff]
    %v572 = vld [vmem:[#allocation2 + $0xf48] sm:$0xff]
    %v573 = vld [vmem:[#allocation2 + $0xf50] sm:$0xff]
    %v574 = vld [vmem:[#allocation2 + $0xf58] sm:$0xff]
    %v575 = vld [vmem:[#allocation2 + $0xf60] sm:$0xff]
    %v576 = vld [vmem:[#allocation2 + $0xf68] sm:$0xff]
    %v577 = vld [vmem:[#allocation2 + $0xf70] sm:$0xff]
    %v578 = vld [vmem:[#allocation2 + $0xf78] sm:$0xff]
    %v579 = vld [vmem:[#allocation2 + $0xf80] sm:$0xff]
    %v580 = vld [vmem:[#allocation2 + $0xf88] sm:$0xff]
    %v581 = vld [vmem:[#allocation2 + $0xf90] sm:$0xff]
    %v582 = vld [vmem:[#allocation2 + $0xf98] sm:$0xff]
    %v583 = vld [vmem:[#allocation2 + $0xfa0] sm:$0xff]
    %v584 = vld [vmem:[#allocation2 + $0xfa8] sm:$0xff]
    %v585 = vld [vmem:[#allocation2 + $0xfb0] sm:$0xff]
    %v586 = vld [vmem:[#allocation2 + $0xfb8] sm:$0xff]
    %v587 = vld [vmem:[#allocation2 + $0xfc0] sm:$0xff]
    %v588 = vld [vmem:[#allocation2 + $0xfc8] sm:$0xff]
    %v589 = vld [vmem:[#allocation2 + $0xfd0] sm:$0xff]
    %v590 = vld [vmem:[#allocation2 + $0xfd8] sm:$0xff]
    %v591 = vld [vmem:[#allocation2 + $0xfe0] sm:$0xff]
    %v592 = vld [vmem:[#allocation2 + $0xfe8] sm:$0xff]
    %v593 = vld [vmem:[#allocation2 + $0xff0] sm:$0xff]
    %v594 = vld [vmem:[#allocation2 + $0xff8] sm:$0xff]
    %v595 = vld [vmem:[#allocation7] sm:$0xff]
    %v596 = vld [vmem:[#allocation7 + $0x8] sm:$0xff]
    %v599 = vlaneseq
    %v600 = vshrl.u32 %v599, 7
    %v601 = vsub.s32 0, %v600
    %v602 = vrot.slane %v595, %v601
    %v603 = vlaneseq
    %v604 = vshrl.u32 %v603, 7
    %v605 = vsub.s32 1, %v604
    %v606 = vrot.slane %v595, %v605
    %v607 = vlaneseq
    %v608 = vshrl.u32 %v607, 7
    %v609 = vsub.s32 2, %v608
    %v610 = vrot.slane %v595, %v609
    %v611 = vlaneseq
    %v612 = vshrl.u32 %v611, 7
    %v613 = vsub.s32 3, %v612
    %v614 = vrot.slane %v595, %v613
    %v615 = vlaneseq
    %v616 = vshrl.u32 %v615, 7
    %v617 = vsub.s32 4, %v616
    %v618 = vrot.slane %v595, %v617
    %v619 = vlaneseq
    %v620 = vshrl.u32 %v619, 7
    %v621 = vsub.s32 5, %v620
    %v622 = vrot.slane %v595, %v621
    %v623 = vlaneseq
    %v624 = vshrl.u32 %v623, 7
    %v625 = vsub.s32 6, %v624
    %v626 = vrot.slane %v595, %v625
    %v627 = vlaneseq
    %v628 = vshrl.u32 %v627, 7
    %v629 = vsub.s32 7, %v628
    %v630 = vrot.slane %v595, %v629
    %v631 = vlaneseq
    %v632 = vshrl.u32 %v631, 7
    %v633 = vsub.s32 0, %v632
    %v634 = vrot.slane %v596, %v633
    %v635 = vlaneseq
    %v636 = vshrl.u32 %v635, 7
    %v637 = vsub.s32 1, %v636
    %v638 = vrot.slane %v596, %v637
    %v639 = vlaneseq
    %v640 = vshrl.u32 %v639, 7
    %v641 = vsub.s32 2, %v640
    %v642 = vrot.slane %v596, %v641
    %v643 = vlaneseq
    %v644 = vshrl.u32 %v643, 7
    %v645 = vsub.s32 3, %v644
    %v646 = vrot.slane %v596, %v645
    %v647 = vlaneseq
    %v648 = vshrl.u32 %v647, 7
    %v649 = vsub.s32 4, %v648
    %v650 = vrot.slane %v596, %v649
    %v651 = vlaneseq
    %v652 = vshrl.u32 %v651, 7
    %v653 = vsub.s32 5, %v652
    %v654 = vrot.slane %v596, %v653
    %v655 = vlaneseq
    %v656 = vshrl.u32 %v655, 7
    %v657 = vsub.s32 6, %v656
    %v658 = vrot.slane %v596, %v657
    %v659 = vlaneseq
    %v660 = vshrl.u32 %v659, 7
    %v661 = vsub.s32 7, %v660
    %v662 = vrot.slane %v596, %v661
    %v681 = vunpack.c.l.b16 %v81
    %v682 = vunpack.c.h.b16 %v81
    %v683 = vunpack.c.l.b16 %v82
    %v684 = vunpack.c.h.b16 %v82
    %v685 = vpack.c.b16 %v681, %v681
    %v686 = vpack.c.b16 %v682, %v682
    %v687 = vpack.c.b16 %v683, %v683
    %v688 = vpack.c.b16 %v684, %v684
    %v1205 = vunpack.c.l.b16 %v83
    %v1206 = vunpack.c.h.b16 %v83
    %v1207 = vunpack.c.l.b16 %v84
    %v1208 = vunpack.c.h.b16 %v84
    %v1209 = vunpack.c.l.b16 %v85
    %v1210 = vunpack.c.h.b16 %v85
    %v1211 = vunpack.c.l.b16 %v86
    %v1212 = vunpack.c.h.b16 %v86
    %v1213 = vunpack.c.l.b16 %v87
    %v1214 = vunpack.c.h.b16 %v87
    %v1215 = vunpack.c.l.b16 %v88
    %v1216 = vunpack.c.h.b16 %v88
    %v1217 = vunpack.c.l.b16 %v89
    %v1218 = vunpack.c.h.b16 %v89
    %v1219 = vunpack.c.l.b16 %v90
    %v1220 = vunpack.c.h.b16 %v90
    %v1221 = vunpack.c.l.b16 %v91
    %v1222 = vunpack.c.h.b16 %v91
    %v1223 = vunpack.c.l.b16 %v92
    %v1224 = vunpack.c.h.b16 %v92
    %v1225 = vunpack.c.l.b16 %v93
    %v1226 = vunpack.c.h.b16 %v93
    %v1227 = vunpack.c.l.b16 %v94
    %v1228 = vunpack.c.h.b16 %v94
    %v1229 = vunpack.c.l.b16 %v95
    %v1230 = vunpack.c.h.b16 %v95
    %v1231 = vunpack.c.l.b16 %v96
    %v1232 = vunpack.c.h.b16 %v96
    %v1233 = vunpack.c.l.b16 %v97
    %v1234 = vunpack.c.h.b16 %v97
    %v1235 = vunpack.c.l.b16 %v98
    %v1236 = vunpack.c.h.b16 %v98
    %v1237 = vunpack.c.l.b16 %v99
    %v1238 = vunpack.c.h.b16 %v99
    %v1239 = vunpack.c.l.b16 %v100
    %v1240 = vunpack.c.h.b16 %v100
    %v1241 = vunpack.c.l.b16 %v101
    %v1242 = vunpack.c.h.b16 %v101
    %v1243 = vunpack.c.l.b16 %v102
    %v1244 = vunpack.c.h.b16 %v102
    %v1245 = vunpack.c.l.b16 %v103
    %v1246 = vunpack.c.h.b16 %v103
    %v1247 = vunpack.c.l.b16 %v104
    %v1248 = vunpack.c.h.b16 %v104
    %v1249 = vunpack.c.l.b16 %v105
    %v1250 = vunpack.c.h.b16 %v105
    %v1251 = vunpack.c.l.b16 %v106
    %v1252 = vunpack.c.h.b16 %v106
    %v1253 = vunpack.c.l.b16 %v107
    %v1254 = vunpack.c.h.b16 %v107
    %v1255 = vunpack.c.l.b16 %v108
    %v1256 = vunpack.c.h.b16 %v108
    %v1257 = vunpack.c.l.b16 %v109
    %v1258 = vunpack.c.h.b16 %v109
    %v1259 = vunpack.c.l.b16 %v110
    %v1260 = vunpack.c.h.b16 %v110
    %v1261 = vunpack.c.l.b16 %v111
    %v1262 = vunpack.c.h.b16 %v111
    %v1263 = vunpack.c.l.b16 %v112
    %v1264 = vunpack.c.h.b16 %v112
    %v1265 = vunpack.c.l.b16 %v113
    %v1266 = vunpack.c.h.b16 %v113
    %v1267 = vunpack.c.l.b16 %v114
    %v1268 = vunpack.c.h.b16 %v114
    %v1269 = vunpack.c.l.b16 %v115
    %v1270 = vunpack.c.h.b16 %v115
    %v1271 = vunpack.c.l.b16 %v116
    %v1272 = vunpack.c.h.b16 %v116
    %v1273 = vunpack.c.l.b16 %v117
    %v1274 = vunpack.c.h.b16 %v117
    %v1275 = vunpack.c.l.b16 %v118
    %v1276 = vunpack.c.h.b16 %v118
    %v1277 = vunpack.c.l.b16 %v119
    %v1278 = vunpack.c.h.b16 %v119
    %v1279 = vunpack.c.l.b16 %v120
    %v1280 = vunpack.c.h.b16 %v120
    %v1281 = vunpack.c.l.b16 %v121
    %v1282 = vunpack.c.h.b16 %v121
    %v1283 = vunpack.c.l.b16 %v122
    %v1284 = vunpack.c.h.b16 %v122
    %v1285 = vunpack.c.l.b16 %v123
    %v1286 = vunpack.c.h.b16 %v123
    %v1287 = vunpack.c.l.b16 %v124
    %v1288 = vunpack.c.h.b16 %v124
    %v1289 = vunpack.c.l.b16 %v125
    %v1290 = vunpack.c.h.b16 %v125
    %v1291 = vunpack.c.l.b16 %v126
    %v1292 = vunpack.c.h.b16 %v126
    %v1293 = vunpack.c.l.b16 %v127
    %v1294 = vunpack.c.h.b16 %v127
    %v1295 = vunpack.c.l.b16 %v128
    %v1296 = vunpack.c.h.b16 %v128
    %v1297 = vunpack.c.l.b16 %v129
    %v1298 = vunpack.c.h.b16 %v129
    %v1299 = vunpack.c.l.b16 %v130
    %v1300 = vunpack.c.h.b16 %v130
    %v1301 = vunpack.c.l.b16 %v131
    %v1302 = vunpack.c.h.b16 %v131
    %v1303 = vunpack.c.l.b16 %v132
    %v1304 = vunpack.c.h.b16 %v132
    %v1305 = vunpack.c.l.b16 %v133
    %v1306 = vunpack.c.h.b16 %v133
    %v1307 = vunpack.c.l.b16 %v134
    %v1308 = vunpack.c.h.b16 %v134
    %v1309 = vunpack.c.l.b16 %v135
    %v1310 = vunpack.c.h.b16 %v135
    %v1311 = vunpack.c.l.b16 %v136
    %v1312 = vunpack.c.h.b16 %v136
    %v1313 = vunpack.c.l.b16 %v137
    %v1314 = vunpack.c.h.b16 %v137
    %v1315 = vunpack.c.l.b16 %v138
    %v1316 = vunpack.c.h.b16 %v138
    %v1317 = vunpack.c.l.b16 %v139
    %v1318 = vunpack.c.h.b16 %v139
    %v1319 = vunpack.c.l.b16 %v140
    %v1320 = vunpack.c.h.b16 %v140
    %v1321 = vunpack.c.l.b16 %v141
    %v1322 = vunpack.c.h.b16 %v141
    %v1323 = vunpack.c.l.b16 %v142
    %v1324 = vunpack.c.h.b16 %v142
    %v1325 = vunpack.c.l.b16 %v143
    %v1326 = vunpack.c.h.b16 %v143
    %v1327 = vunpack.c.l.b16 %v144
    %v1328 = vunpack.c.h.b16 %v144
    %v1329 = vunpack.c.l.b16 %v145
    %v1330 = vunpack.c.h.b16 %v145
    %v1331 = vunpack.c.l.b16 %v146
    %v1332 = vunpack.c.h.b16 %v146
    %v1333 = vunpack.c.l.b16 %v147
    %v1334 = vunpack.c.h.b16 %v147
    %v1335 = vunpack.c.l.b16 %v148
    %v1336 = vunpack.c.h.b16 %v148
    %v1337 = vunpack.c.l.b16 %v149
    %v1338 = vunpack.c.h.b16 %v149
    %v1339 = vunpack.c.l.b16 %v150
    %v1340 = vunpack.c.h.b16 %v150
    %v1341 = vunpack.c.l.b16 %v151
    %v1342 = vunpack.c.h.b16 %v151
    %v1343 = vunpack.c.l.b16 %v152
    %v1344 = vunpack.c.h.b16 %v152
    %v1345 = vunpack.c.l.b16 %v153
    %v1346 = vunpack.c.h.b16 %v153
    %v1347 = vunpack.c.l.b16 %v154
    %v1348 = vunpack.c.h.b16 %v154
    %v1349 = vunpack.c.l.b16 %v155
    %v1350 = vunpack.c.h.b16 %v155
    %v1351 = vunpack.c.l.b16 %v156
    %v1352 = vunpack.c.h.b16 %v156
    %v1353 = vunpack.c.l.b16 %v157
    %v1354 = vunpack.c.h.b16 %v157
    %v1355 = vunpack.c.l.b16 %v158
    %v1356 = vunpack.c.h.b16 %v158
    %v1357 = vunpack.c.l.b16 %v159
    %v1358 = vunpack.c.h.b16 %v159
    %v1359 = vunpack.c.l.b16 %v160
    %v1360 = vunpack.c.h.b16 %v160
    %v1361 = vunpack.c.l.b16 %v161
    %v1362 = vunpack.c.h.b16 %v161
    %v1363 = vunpack.c.l.b16 %v162
    %v1364 = vunpack.c.h.b16 %v162
    %v1365 = vunpack.c.l.b16 %v163
    %v1366 = vunpack.c.h.b16 %v163
    %v1367 = vunpack.c.l.b16 %v164
    %v1368 = vunpack.c.h.b16 %v164
    %v1369 = vunpack.c.l.b16 %v165
    %v1370 = vunpack.c.h.b16 %v165
    %v1371 = vunpack.c.l.b16 %v166
    %v1372 = vunpack.c.h.b16 %v166
    %v1373 = vunpack.c.l.b16 %v167
    %v1374 = vunpack.c.h.b16 %v167
    %v1375 = vunpack.c.l.b16 %v168
    %v1376 = vunpack.c.h.b16 %v168
    %v1377 = vunpack.c.l.b16 %v169
    %v1378 = vunpack.c.h.b16 %v169
    %v1379 = vunpack.c.l.b16 %v170
    %v1380 = vunpack.c.h.b16 %v170
    %v1381 = vunpack.c.l.b16 %v171
    %v1382 = vunpack.c.h.b16 %v171
    %v1383 = vunpack.c.l.b16 %v172
    %v1384 = vunpack.c.h.b16 %v172
    %v1385 = vunpack.c.l.b16 %v173
    %v1386 = vunpack.c.h.b16 %v173
    %v1387 = vunpack.c.l.b16 %v174
    %v1388 = vunpack.c.h.b16 %v174
    %v1389 = vunpack.c.l.b16 %v175
    %v1390 = vunpack.c.h.b16 %v175
    %v1391 = vunpack.c.l.b16 %v176
    %v1392 = vunpack.c.h.b16 %v176
    %v1393 = vunpack.c.l.b16 %v177
    %v1394 = vunpack.c.h.b16 %v177
    %v1395 = vunpack.c.l.b16 %v178
    %v1396 = vunpack.c.h.b16 %v178
    %v1397 = vunpack.c.l.b16 %v179
    %v1398 = vunpack.c.h.b16 %v179
    %v1399 = vunpack.c.l.b16 %v180
    %v1400 = vunpack.c.h.b16 %v180
    %v1401 = vunpack.c.l.b16 %v181
    %v1402 = vunpack.c.h.b16 %v181
    %v1403 = vunpack.c.l.b16 %v182
    %v1404 = vunpack.c.h.b16 %v182
    %v1405 = vunpack.c.l.b16 %v183
    %v1406 = vunpack.c.h.b16 %v183
    %v1407 = vunpack.c.l.b16 %v184
    %v1408 = vunpack.c.h.b16 %v184
    %v1409 = vunpack.c.l.b16 %v185
    %v1410 = vunpack.c.h.b16 %v185
    %v1411 = vunpack.c.l.b16 %v186
    %v1412 = vunpack.c.h.b16 %v186
    %v1413 = vunpack.c.l.b16 %v187
    %v1414 = vunpack.c.h.b16 %v187
    %v1415 = vunpack.c.l.b16 %v188
    %v1416 = vunpack.c.h.b16 %v188
    %v1417 = vunpack.c.l.b16 %v189
    %v1418 = vunpack.c.h.b16 %v189
    %v1419 = vunpack.c.l.b16 %v190
    %v1420 = vunpack.c.h.b16 %v190
    %v1421 = vunpack.c.l.b16 %v191
    %v1422 = vunpack.c.h.b16 %v191
    %v1423 = vunpack.c.l.b16 %v192
    %v1424 = vunpack.c.h.b16 %v192
    %v1425 = vunpack.c.l.b16 %v193
    %v1426 = vunpack.c.h.b16 %v193
    %v1427 = vunpack.c.l.b16 %v194
    %v1428 = vunpack.c.h.b16 %v194
    %v1429 = vunpack.c.l.b16 %v195
    %v1430 = vunpack.c.h.b16 %v195
    %v1431 = vunpack.c.l.b16 %v196
    %v1432 = vunpack.c.h.b16 %v196
    %v1433 = vunpack.c.l.b16 %v197
    %v1434 = vunpack.c.h.b16 %v197
    %v1435 = vunpack.c.l.b16 %v198
    %v1436 = vunpack.c.h.b16 %v198
    %v1437 = vunpack.c.l.b16 %v199
    %v1438 = vunpack.c.h.b16 %v199
    %v1439 = vunpack.c.l.b16 %v200
    %v1440 = vunpack.c.h.b16 %v200
    %v1441 = vunpack.c.l.b16 %v201
    %v1442 = vunpack.c.h.b16 %v201
    %v1443 = vunpack.c.l.b16 %v202
    %v1444 = vunpack.c.h.b16 %v202
    %v1445 = vunpack.c.l.b16 %v203
    %v1446 = vunpack.c.h.b16 %v203
    %v1447 = vunpack.c.l.b16 %v204
    %v1448 = vunpack.c.h.b16 %v204
    %v1449 = vunpack.c.l.b16 %v205
    %v1450 = vunpack.c.h.b16 %v205
    %v1451 = vunpack.c.l.b16 %v206
    %v1452 = vunpack.c.h.b16 %v206
    %v1453 = vunpack.c.l.b16 %v207
    %v1454 = vunpack.c.h.b16 %v207
    %v1455 = vunpack.c.l.b16 %v208
    %v1456 = vunpack.c.h.b16 %v208
    %v1457 = vunpack.c.l.b16 %v209
    %v1458 = vunpack.c.h.b16 %v209
    %v1459 = vunpack.c.l.b16 %v210
    %v1460 = vunpack.c.h.b16 %v210
    %v1461 = vunpack.c.l.b16 %v211
    %v1462 = vunpack.c.h.b16 %v211
    %v1463 = vunpack.c.l.b16 %v212
    %v1464 = vunpack.c.h.b16 %v212
    %v1465 = vunpack.c.l.b16 %v213
    %v1466 = vunpack.c.h.b16 %v213
    %v1467 = vunpack.c.l.b16 %v214
    %v1468 = vunpack.c.h.b16 %v214
    %v1469 = vunpack.c.l.b16 %v215
    %v1470 = vunpack.c.h.b16 %v215
    %v1471 = vunpack.c.l.b16 %v216
    %v1472 = vunpack.c.h.b16 %v216
    %v1473 = vunpack.c.l.b16 %v217
    %v1474 = vunpack.c.h.b16 %v217
    %v1475 = vunpack.c.l.b16 %v218
    %v1476 = vunpack.c.h.b16 %v218
    %v1477 = vunpack.c.l.b16 %v219
    %v1478 = vunpack.c.h.b16 %v219
    %v1479 = vunpack.c.l.b16 %v220
    %v1480 = vunpack.c.h.b16 %v220
    %v1481 = vunpack.c.l.b16 %v221
    %v1482 = vunpack.c.h.b16 %v221
    %v1483 = vunpack.c.l.b16 %v222
    %v1484 = vunpack.c.h.b16 %v222
    %v1485 = vunpack.c.l.b16 %v223
    %v1486 = vunpack.c.h.b16 %v223
    %v1487 = vunpack.c.l.b16 %v224
    %v1488 = vunpack.c.h.b16 %v224
    %v1489 = vunpack.c.l.b16 %v225
    %v1490 = vunpack.c.h.b16 %v225
    %v1491 = vunpack.c.l.b16 %v226
    %v1492 = vunpack.c.h.b16 %v226
    %v1493 = vunpack.c.l.b16 %v227
    %v1494 = vunpack.c.h.b16 %v227
    %v1495 = vunpack.c.l.b16 %v228
    %v1496 = vunpack.c.h.b16 %v228
    %v1497 = vunpack.c.l.b16 %v229
    %v1498 = vunpack.c.h.b16 %v229
    %v1499 = vunpack.c.l.b16 %v230
    %v1500 = vunpack.c.h.b16 %v230
    %v1501 = vunpack.c.l.b16 %v231
    %v1502 = vunpack.c.h.b16 %v231
    %v1503 = vunpack.c.l.b16 %v232
    %v1504 = vunpack.c.h.b16 %v232
    %v1505 = vunpack.c.l.b16 %v233
    %v1506 = vunpack.c.h.b16 %v233
    %v1507 = vunpack.c.l.b16 %v234
    %v1508 = vunpack.c.h.b16 %v234
    %v1509 = vunpack.c.l.b16 %v235
    %v1510 = vunpack.c.h.b16 %v235
    %v1511 = vunpack.c.l.b16 %v236
    %v1512 = vunpack.c.h.b16 %v236
    %v1513 = vunpack.c.l.b16 %v237
    %v1514 = vunpack.c.h.b16 %v237
    %v1515 = vunpack.c.l.b16 %v238
    %v1516 = vunpack.c.h.b16 %v238
    %v1517 = vunpack.c.l.b16 %v239
    %v1518 = vunpack.c.h.b16 %v239
    %v1519 = vunpack.c.l.b16 %v240
    %v1520 = vunpack.c.h.b16 %v240
    %v1521 = vunpack.c.l.b16 %v241
    %v1522 = vunpack.c.h.b16 %v241
    %v1523 = vunpack.c.l.b16 %v242
    %v1524 = vunpack.c.h.b16 %v242
    %v1525 = vunpack.c.l.b16 %v243
    %v1526 = vunpack.c.h.b16 %v243
    %v1527 = vunpack.c.l.b16 %v244
    %v1528 = vunpack.c.h.b16 %v244
    %v1529 = vunpack.c.l.b16 %v245
    %v1530 = vunpack.c.h.b16 %v245
    %v1531 = vunpack.c.l.b16 %v246
    %v1532 = vunpack.c.h.b16 %v246
    %v1533 = vunpack.c.l.b16 %v247
    %v1534 = vunpack.c.h.b16 %v247
    %v1535 = vunpack.c.l.b16 %v248
    %v1536 = vunpack.c.h.b16 %v248
    %v1537 = vunpack.c.l.b16 %v249
    %v1538 = vunpack.c.h.b16 %v249
    %v1539 = vunpack.c.l.b16 %v250
    %v1540 = vunpack.c.h.b16 %v250
    %v1541 = vunpack.c.l.b16 %v251
    %v1542 = vunpack.c.h.b16 %v251
    %v1543 = vunpack.c.l.b16 %v252
    %v1544 = vunpack.c.h.b16 %v252
    %v1545 = vunpack.c.l.b16 %v253
    %v1546 = vunpack.c.h.b16 %v253
    %v1547 = vunpack.c.l.b16 %v254
    %v1548 = vunpack.c.h.b16 %v254
    %v1549 = vunpack.c.l.b16 %v255
    %v1550 = vunpack.c.h.b16 %v255
    %v1551 = vunpack.c.l.b16 %v256
    %v1552 = vunpack.c.h.b16 %v256
    %v1553 = vunpack.c.l.b16 %v257
    %v1554 = vunpack.c.h.b16 %v257
    %v1555 = vunpack.c.l.b16 %v258
    %v1556 = vunpack.c.h.b16 %v258
    %v1557 = vunpack.c.l.b16 %v259
    %v1558 = vunpack.c.h.b16 %v259
    %v1559 = vunpack.c.l.b16 %v260
    %v1560 = vunpack.c.h.b16 %v260
    %v1561 = vunpack.c.l.b16 %v261
    %v1562 = vunpack.c.h.b16 %v261
    %v1563 = vunpack.c.l.b16 %v262
    %v1564 = vunpack.c.h.b16 %v262
    %v1565 = vunpack.c.l.b16 %v263
    %v1566 = vunpack.c.h.b16 %v263
    %v1567 = vunpack.c.l.b16 %v264
    %v1568 = vunpack.c.h.b16 %v264
    %v1569 = vunpack.c.l.b16 %v265
    %v1570 = vunpack.c.h.b16 %v265
    %v1571 = vunpack.c.l.b16 %v266
    %v1572 = vunpack.c.h.b16 %v266
    %v1573 = vunpack.c.l.b16 %v267
    %v1574 = vunpack.c.h.b16 %v267
    %v1575 = vunpack.c.l.b16 %v268
    %v1576 = vunpack.c.h.b16 %v268
    %v1577 = vunpack.c.l.b16 %v269
    %v1578 = vunpack.c.h.b16 %v269
    %v1579 = vunpack.c.l.b16 %v270
    %v1580 = vunpack.c.h.b16 %v270
    %v1581 = vunpack.c.l.b16 %v271
    %v1582 = vunpack.c.h.b16 %v271
    %v1583 = vunpack.c.l.b16 %v272
    %v1584 = vunpack.c.h.b16 %v272
    %v1585 = vunpack.c.l.b16 %v273
    %v1586 = vunpack.c.h.b16 %v273
    %v1587 = vunpack.c.l.b16 %v274
    %v1588 = vunpack.c.h.b16 %v274
    %v1589 = vunpack.c.l.b16 %v275
    %v1590 = vunpack.c.h.b16 %v275
    %v1591 = vunpack.c.l.b16 %v276
    %v1592 = vunpack.c.h.b16 %v276
    %v1593 = vunpack.c.l.b16 %v277
    %v1594 = vunpack.c.h.b16 %v277
    %v1595 = vunpack.c.l.b16 %v278
    %v1596 = vunpack.c.h.b16 %v278
    %v1597 = vunpack.c.l.b16 %v279
    %v1598 = vunpack.c.h.b16 %v279
    %v1599 = vunpack.c.l.b16 %v280
    %v1600 = vunpack.c.h.b16 %v280
    %v1601 = vunpack.c.l.b16 %v281
    %v1602 = vunpack.c.h.b16 %v281
    %v1603 = vunpack.c.l.b16 %v282
    %v1604 = vunpack.c.h.b16 %v282
    %v1605 = vunpack.c.l.b16 %v283
    %v1606 = vunpack.c.h.b16 %v283
    %v1607 = vunpack.c.l.b16 %v284
    %v1608 = vunpack.c.h.b16 %v284
    %v1609 = vunpack.c.l.b16 %v285
    %v1610 = vunpack.c.h.b16 %v285
    %v1611 = vunpack.c.l.b16 %v286
    %v1612 = vunpack.c.h.b16 %v286
    %v1613 = vunpack.c.l.b16 %v287
    %v1614 = vunpack.c.h.b16 %v287
    %v1615 = vunpack.c.l.b16 %v288
    %v1616 = vunpack.c.h.b16 %v288
    %v1617 = vunpack.c.l.b16 %v289
    %v1618 = vunpack.c.h.b16 %v289
    %v1619 = vunpack.c.l.b16 %v290
    %v1620 = vunpack.c.h.b16 %v290
    %v1621 = vunpack.c.l.b16 %v291
    %v1622 = vunpack.c.h.b16 %v291
    %v1623 = vunpack.c.l.b16 %v292
    %v1624 = vunpack.c.h.b16 %v292
    %v1625 = vunpack.c.l.b16 %v293
    %v1626 = vunpack.c.h.b16 %v293
    %v1627 = vunpack.c.l.b16 %v294
    %v1628 = vunpack.c.h.b16 %v294
    %v1629 = vunpack.c.l.b16 %v295
    %v1630 = vunpack.c.h.b16 %v295
    %v1631 = vunpack.c.l.b16 %v296
    %v1632 = vunpack.c.h.b16 %v296
    %v1633 = vunpack.c.l.b16 %v297
    %v1634 = vunpack.c.h.b16 %v297
    %v1635 = vunpack.c.l.b16 %v298
    %v1636 = vunpack.c.h.b16 %v298
    %v1637 = vunpack.c.l.b16 %v299
    %v1638 = vunpack.c.h.b16 %v299
    %v1639 = vunpack.c.l.b16 %v300
    %v1640 = vunpack.c.h.b16 %v300
    %v1641 = vunpack.c.l.b16 %v301
    %v1642 = vunpack.c.h.b16 %v301
    %v1643 = vunpack.c.l.b16 %v302
    %v1644 = vunpack.c.h.b16 %v302
    %v1645 = vunpack.c.l.b16 %v303
    %v1646 = vunpack.c.h.b16 %v303
    %v1647 = vunpack.c.l.b16 %v304
    %v1648 = vunpack.c.h.b16 %v304
    %v1649 = vunpack.c.l.b16 %v305
    %v1650 = vunpack.c.h.b16 %v305
    %v1651 = vunpack.c.l.b16 %v306
    %v1652 = vunpack.c.h.b16 %v306
    %v1653 = vunpack.c.l.b16 %v307
    %v1654 = vunpack.c.h.b16 %v307
    %v1655 = vunpack.c.l.b16 %v308
    %v1656 = vunpack.c.h.b16 %v308
    %v1657 = vunpack.c.l.b16 %v309
    %v1658 = vunpack.c.h.b16 %v309
    %v1659 = vunpack.c.l.b16 %v310
    %v1660 = vunpack.c.h.b16 %v310
    %v1661 = vunpack.c.l.b16 %v311
    %v1662 = vunpack.c.h.b16 %v311
    %v1663 = vunpack.c.l.b16 %v312
    %v1664 = vunpack.c.h.b16 %v312
    %v1665 = vunpack.c.l.b16 %v313
    %v1666 = vunpack.c.h.b16 %v313
    %v1667 = vunpack.c.l.b16 %v314
    %v1668 = vunpack.c.h.b16 %v314
    %v1669 = vunpack.c.l.b16 %v315
    %v1670 = vunpack.c.h.b16 %v315
    %v1671 = vunpack.c.l.b16 %v316
    %v1672 = vunpack.c.h.b16 %v316
    %v1673 = vunpack.c.l.b16 %v317
    %v1674 = vunpack.c.h.b16 %v317
    %v1675 = vunpack.c.l.b16 %v318
    %v1676 = vunpack.c.h.b16 %v318
    %v1677 = vunpack.c.l.b16 %v319
    %v1678 = vunpack.c.h.b16 %v319
    %v1679 = vunpack.c.l.b16 %v320
    %v1680 = vunpack.c.h.b16 %v320
    %v1681 = vunpack.c.l.b16 %v321
    %v1682 = vunpack.c.h.b16 %v321
    %v1683 = vunpack.c.l.b16 %v322
    %v1684 = vunpack.c.h.b16 %v322
    %v1685 = vunpack.c.l.b16 %v323
    %v1686 = vunpack.c.h.b16 %v323
    %v1687 = vunpack.c.l.b16 %v324
    %v1688 = vunpack.c.h.b16 %v324
    %v1689 = vunpack.c.l.b16 %v325
    %v1690 = vunpack.c.h.b16 %v325
    %v1691 = vunpack.c.l.b16 %v326
    %v1692 = vunpack.c.h.b16 %v326
    %v1693 = vunpack.c.l.b16 %v327
    %v1694 = vunpack.c.h.b16 %v327
    %v1695 = vunpack.c.l.b16 %v328
    %v1696 = vunpack.c.h.b16 %v328
    %v1697 = vunpack.c.l.b16 %v329
    %v1698 = vunpack.c.h.b16 %v329
    %v1699 = vunpack.c.l.b16 %v330
    %v1700 = vunpack.c.h.b16 %v330
    %v1701 = vunpack.c.l.b16 %v331
    %v1702 = vunpack.c.h.b16 %v331
    %v1703 = vunpack.c.l.b16 %v332
    %v1704 = vunpack.c.h.b16 %v332
    %v1705 = vunpack.c.l.b16 %v333
    %v1706 = vunpack.c.h.b16 %v333
    %v1707 = vunpack.c.l.b16 %v334
    %v1708 = vunpack.c.h.b16 %v334
    %v1709 = vunpack.c.l.b16 %v335
    %v1710 = vunpack.c.h.b16 %v335
    %v1711 = vunpack.c.l.b16 %v336
    %v1712 = vunpack.c.h.b16 %v336
    %v1713 = vunpack.c.l.b16 %v337
    %v1714 = vunpack.c.h.b16 %v337
    %v1715 = vunpack.c.l.b16 %v338
    %v1716 = vunpack.c.h.b16 %v338
    %v1717 = vunpack.c.l.b16 %v339
    %v1718 = vunpack.c.h.b16 %v339
    %v1719 = vunpack.c.l.b16 %v340
    %v1720 = vunpack.c.h.b16 %v340
    %v1721 = vunpack.c.l.b16 %v341
    %v1722 = vunpack.c.h.b16 %v341
    %v1723 = vunpack.c.l.b16 %v342
    %v1724 = vunpack.c.h.b16 %v342
    %v1725 = vunpack.c.l.b16 %v343
    %v1726 = vunpack.c.h.b16 %v343
    %v1727 = vunpack.c.l.b16 %v344
    %v1728 = vunpack.c.h.b16 %v344
    %v1729 = vunpack.c.l.b16 %v345
    %v1730 = vunpack.c.h.b16 %v345
    %v1731 = vunpack.c.l.b16 %v346
    %v1732 = vunpack.c.h.b16 %v346
    %v1733 = vunpack.c.l.b16 %v347
    %v1734 = vunpack.c.h.b16 %v347
    %v1735 = vunpack.c.l.b16 %v348
    %v1736 = vunpack.c.h.b16 %v348
    %v1737 = vunpack.c.l.b16 %v349
    %v1738 = vunpack.c.h.b16 %v349
    %v1739 = vunpack.c.l.b16 %v350
    %v1740 = vunpack.c.h.b16 %v350
    %v1741 = vunpack.c.l.b16 %v351
    %v1742 = vunpack.c.h.b16 %v351
    %v1743 = vunpack.c.l.b16 %v352
    %v1744 = vunpack.c.h.b16 %v352
    %v1745 = vunpack.c.l.b16 %v353
    %v1746 = vunpack.c.h.b16 %v353
    %v1747 = vunpack.c.l.b16 %v354
    %v1748 = vunpack.c.h.b16 %v354
    %v1749 = vunpack.c.l.b16 %v355
    %v1750 = vunpack.c.h.b16 %v355
    %v1751 = vunpack.c.l.b16 %v356
    %v1752 = vunpack.c.h.b16 %v356
    %v1753 = vunpack.c.l.b16 %v357
    %v1754 = vunpack.c.h.b16 %v357
    %v1755 = vunpack.c.l.b16 %v358
    %v1756 = vunpack.c.h.b16 %v358
    %v1757 = vunpack.c.l.b16 %v359
    %v1758 = vunpack.c.h.b16 %v359
    %v1759 = vunpack.c.l.b16 %v360
    %v1760 = vunpack.c.h.b16 %v360
    %v1761 = vunpack.c.l.b16 %v361
    %v1762 = vunpack.c.h.b16 %v361
    %v1763 = vunpack.c.l.b16 %v362
    %v1764 = vunpack.c.h.b16 %v362
    %v1765 = vunpack.c.l.b16 %v363
    %v1766 = vunpack.c.h.b16 %v363
    %v1767 = vunpack.c.l.b16 %v364
    %v1768 = vunpack.c.h.b16 %v364
    %v1769 = vunpack.c.l.b16 %v365
    %v1770 = vunpack.c.h.b16 %v365
    %v1771 = vunpack.c.l.b16 %v366
    %v1772 = vunpack.c.h.b16 %v366
    %v1773 = vunpack.c.l.b16 %v367
    %v1774 = vunpack.c.h.b16 %v367
    %v1775 = vunpack.c.l.b16 %v368
    %v1776 = vunpack.c.h.b16 %v368
    %v1777 = vunpack.c.l.b16 %v369
    %v1778 = vunpack.c.h.b16 %v369
    %v1779 = vunpack.c.l.b16 %v370
    %v1780 = vunpack.c.h.b16 %v370
    %v1781 = vunpack.c.l.b16 %v371
    %v1782 = vunpack.c.h.b16 %v371
    %v1783 = vunpack.c.l.b16 %v372
    %v1784 = vunpack.c.h.b16 %v372
    %v1785 = vunpack.c.l.b16 %v373
    %v1786 = vunpack.c.h.b16 %v373
    %v1787 = vunpack.c.l.b16 %v374
    %v1788 = vunpack.c.h.b16 %v374
    %v1789 = vunpack.c.l.b16 %v375
    %v1790 = vunpack.c.h.b16 %v375
    %v1791 = vunpack.c.l.b16 %v376
    %v1792 = vunpack.c.h.b16 %v376
    %v1793 = vunpack.c.l.b16 %v377
    %v1794 = vunpack.c.h.b16 %v377
    %v1795 = vunpack.c.l.b16 %v378
    %v1796 = vunpack.c.h.b16 %v378
    %v1797 = vunpack.c.l.b16 %v379
    %v1798 = vunpack.c.h.b16 %v379
    %v1799 = vunpack.c.l.b16 %v380
    %v1800 = vunpack.c.h.b16 %v380
    %v1801 = vunpack.c.l.b16 %v381
    %v1802 = vunpack.c.h.b16 %v381
    %v1803 = vunpack.c.l.b16 %v382
    %v1804 = vunpack.c.h.b16 %v382
    %v1805 = vunpack.c.l.b16 %v383
    %v1806 = vunpack.c.h.b16 %v383
    %v1807 = vunpack.c.l.b16 %v384
    %v1808 = vunpack.c.h.b16 %v384
    %v1809 = vunpack.c.l.b16 %v385
    %v1810 = vunpack.c.h.b16 %v385
    %v1811 = vunpack.c.l.b16 %v386
    %v1812 = vunpack.c.h.b16 %v386
    %v1813 = vunpack.c.l.b16 %v387
    %v1814 = vunpack.c.h.b16 %v387
    %v1815 = vunpack.c.l.b16 %v388
    %v1816 = vunpack.c.h.b16 %v388
    %v1817 = vunpack.c.l.b16 %v389
    %v1818 = vunpack.c.h.b16 %v389
    %v1819 = vunpack.c.l.b16 %v390
    %v1820 = vunpack.c.h.b16 %v390
    %v1821 = vunpack.c.l.b16 %v391
    %v1822 = vunpack.c.h.b16 %v391
    %v1823 = vunpack.c.l.b16 %v392
    %v1824 = vunpack.c.h.b16 %v392
    %v1825 = vunpack.c.l.b16 %v393
    %v1826 = vunpack.c.h.b16 %v393
    %v1827 = vunpack.c.l.b16 %v394
    %v1828 = vunpack.c.h.b16 %v394
    %v1829 = vunpack.c.l.b16 %v395
    %v1830 = vunpack.c.h.b16 %v395
    %v1831 = vunpack.c.l.b16 %v396
    %v1832 = vunpack.c.h.b16 %v396
    %v1833 = vunpack.c.l.b16 %v397
    %v1834 = vunpack.c.h.b16 %v397
    %v1835 = vunpack.c.l.b16 %v398
    %v1836 = vunpack.c.h.b16 %v398
    %v1837 = vunpack.c.l.b16 %v399
    %v1838 = vunpack.c.h.b16 %v399
    %v1839 = vunpack.c.l.b16 %v400
    %v1840 = vunpack.c.h.b16 %v400
    %v1841 = vunpack.c.l.b16 %v401
    %v1842 = vunpack.c.h.b16 %v401
    %v1843 = vunpack.c.l.b16 %v402
    %v1844 = vunpack.c.h.b16 %v402
    %v1845 = vunpack.c.l.b16 %v403
    %v1846 = vunpack.c.h.b16 %v403
    %v1847 = vunpack.c.l.b16 %v404
    %v1848 = vunpack.c.h.b16 %v404
    %v1849 = vunpack.c.l.b16 %v405
    %v1850 = vunpack.c.h.b16 %v405
    %v1851 = vunpack.c.l.b16 %v406
    %v1852 = vunpack.c.h.b16 %v406
    %v1853 = vunpack.c.l.b16 %v407
    %v1854 = vunpack.c.h.b16 %v407
    %v1855 = vunpack.c.l.b16 %v408
    %v1856 = vunpack.c.h.b16 %v408
    %v1857 = vunpack.c.l.b16 %v409
    %v1858 = vunpack.c.h.b16 %v409
    %v1859 = vunpack.c.l.b16 %v410
    %v1860 = vunpack.c.h.b16 %v410
    %v1861 = vunpack.c.l.b16 %v411
    %v1862 = vunpack.c.h.b16 %v411
    %v1863 = vunpack.c.l.b16 %v412
    %v1864 = vunpack.c.h.b16 %v412
    %v1865 = vunpack.c.l.b16 %v413
    %v1866 = vunpack.c.h.b16 %v413
    %v1867 = vunpack.c.l.b16 %v414
    %v1868 = vunpack.c.h.b16 %v414
    %v1869 = vunpack.c.l.b16 %v415
    %v1870 = vunpack.c.h.b16 %v415
    %v1871 = vunpack.c.l.b16 %v416
    %v1872 = vunpack.c.h.b16 %v416
    %v1873 = vunpack.c.l.b16 %v417
    %v1874 = vunpack.c.h.b16 %v417
    %v1875 = vunpack.c.l.b16 %v418
    %v1876 = vunpack.c.h.b16 %v418
    %v1877 = vunpack.c.l.b16 %v419
    %v1878 = vunpack.c.h.b16 %v419
    %v1879 = vunpack.c.l.b16 %v420
    %v1880 = vunpack.c.h.b16 %v420
    %v1881 = vunpack.c.l.b16 %v421
    %v1882 = vunpack.c.h.b16 %v421
    %v1883 = vunpack.c.l.b16 %v422
    %v1884 = vunpack.c.h.b16 %v422
    %v1885 = vunpack.c.l.b16 %v423
    %v1886 = vunpack.c.h.b16 %v423
    %v1887 = vunpack.c.l.b16 %v424
    %v1888 = vunpack.c.h.b16 %v424
    %v1889 = vunpack.c.l.b16 %v425
    %v1890 = vunpack.c.h.b16 %v425
    %v1891 = vunpack.c.l.b16 %v426
    %v1892 = vunpack.c.h.b16 %v426
    %v1893 = vunpack.c.l.b16 %v427
    %v1894 = vunpack.c.h.b16 %v427
    %v1895 = vunpack.c.l.b16 %v428
    %v1896 = vunpack.c.h.b16 %v428
    %v1897 = vunpack.c.l.b16 %v429
    %v1898 = vunpack.c.h.b16 %v429
    %v1899 = vunpack.c.l.b16 %v430
    %v1900 = vunpack.c.h.b16 %v430
    %v1901 = vunpack.c.l.b16 %v431
    %v1902 = vunpack.c.h.b16 %v431
    %v1903 = vunpack.c.l.b16 %v432
    %v1904 = vunpack.c.h.b16 %v432
    %v1905 = vunpack.c.l.b16 %v433
    %v1906 = vunpack.c.h.b16 %v433
    %v1907 = vunpack.c.l.b16 %v434
    %v1908 = vunpack.c.h.b16 %v434
    %v1909 = vunpack.c.l.b16 %v435
    %v1910 = vunpack.c.h.b16 %v435
    %v1911 = vunpack.c.l.b16 %v436
    %v1912 = vunpack.c.h.b16 %v436
    %v1913 = vunpack.c.l.b16 %v437
    %v1914 = vunpack.c.h.b16 %v437
    %v1915 = vunpack.c.l.b16 %v438
    %v1916 = vunpack.c.h.b16 %v438
    %v1917 = vunpack.c.l.b16 %v439
    %v1918 = vunpack.c.h.b16 %v439
    %v1919 = vunpack.c.l.b16 %v440
    %v1920 = vunpack.c.h.b16 %v440
    %v1921 = vunpack.c.l.b16 %v441
    %v1922 = vunpack.c.h.b16 %v441
    %v1923 = vunpack.c.l.b16 %v442
    %v1924 = vunpack.c.h.b16 %v442
    %v1925 = vunpack.c.l.b16 %v443
    %v1926 = vunpack.c.h.b16 %v443
    %v1927 = vunpack.c.l.b16 %v444
    %v1928 = vunpack.c.h.b16 %v444
    %v1929 = vunpack.c.l.b16 %v445
    %v1930 = vunpack.c.h.b16 %v445
    %v1931 = vunpack.c.l.b16 %v446
    %v1932 = vunpack.c.h.b16 %v446
    %v1933 = vunpack.c.l.b16 %v447
    %v1934 = vunpack.c.h.b16 %v447
    %v1935 = vunpack.c.l.b16 %v448
    %v1936 = vunpack.c.h.b16 %v448
    %v1937 = vunpack.c.l.b16 %v449
    %v1938 = vunpack.c.h.b16 %v449
    %v1939 = vunpack.c.l.b16 %v450
    %v1940 = vunpack.c.h.b16 %v450
    %v1941 = vunpack.c.l.b16 %v451
    %v1942 = vunpack.c.h.b16 %v451
    %v1943 = vunpack.c.l.b16 %v452
    %v1944 = vunpack.c.h.b16 %v452
    %v1945 = vunpack.c.l.b16 %v453
    %v1946 = vunpack.c.h.b16 %v453
    %v1947 = vunpack.c.l.b16 %v454
    %v1948 = vunpack.c.h.b16 %v454
    %v1949 = vunpack.c.l.b16 %v455
    %v1950 = vunpack.c.h.b16 %v455
    %v1951 = vunpack.c.l.b16 %v456
    %v1952 = vunpack.c.h.b16 %v456
    %v1953 = vunpack.c.l.b16 %v457
    %v1954 = vunpack.c.h.b16 %v457
    %v1955 = vunpack.c.l.b16 %v458
    %v1956 = vunpack.c.h.b16 %v458
    %v1957 = vunpack.c.l.b16 %v459
    %v1958 = vunpack.c.h.b16 %v459
    %v1959 = vunpack.c.l.b16 %v460
    %v1960 = vunpack.c.h.b16 %v460
    %v1961 = vunpack.c.l.b16 %v461
    %v1962 = vunpack.c.h.b16 %v461
    %v1963 = vunpack.c.l.b16 %v462
    %v1964 = vunpack.c.h.b16 %v462
    %v1965 = vunpack.c.l.b16 %v463
    %v1966 = vunpack.c.h.b16 %v463
    %v1967 = vunpack.c.l.b16 %v464
    %v1968 = vunpack.c.h.b16 %v464
    %v1969 = vunpack.c.l.b16 %v465
    %v1970 = vunpack.c.h.b16 %v465
    %v1971 = vunpack.c.l.b16 %v466
    %v1972 = vunpack.c.h.b16 %v466
    %v1973 = vunpack.c.l.b16 %v467
    %v1974 = vunpack.c.h.b16 %v467
    %v1975 = vunpack.c.l.b16 %v468
    %v1976 = vunpack.c.h.b16 %v468
    %v1977 = vunpack.c.l.b16 %v469
    %v1978 = vunpack.c.h.b16 %v469
    %v1979 = vunpack.c.l.b16 %v470
    %v1980 = vunpack.c.h.b16 %v470
    %v1981 = vunpack.c.l.b16 %v471
    %v1982 = vunpack.c.h.b16 %v471
    %v1983 = vunpack.c.l.b16 %v472
    %v1984 = vunpack.c.h.b16 %v472
    %v1985 = vunpack.c.l.b16 %v473
    %v1986 = vunpack.c.h.b16 %v473
    %v1987 = vunpack.c.l.b16 %v474
    %v1988 = vunpack.c.h.b16 %v474
    %v1989 = vunpack.c.l.b16 %v475
    %v1990 = vunpack.c.h.b16 %v475
    %v1991 = vunpack.c.l.b16 %v476
    %v1992 = vunpack.c.h.b16 %v476
    %v1993 = vunpack.c.l.b16 %v477
    %v1994 = vunpack.c.h.b16 %v477
    %v1995 = vunpack.c.l.b16 %v478
    %v1996 = vunpack.c.h.b16 %v478
    %v1997 = vunpack.c.l.b16 %v479
    %v1998 = vunpack.c.h.b16 %v479
    %v1999 = vunpack.c.l.b16 %v480
    %v2000 = vunpack.c.h.b16 %v480
    %v2001 = vunpack.c.l.b16 %v481
    %v2002 = vunpack.c.h.b16 %v481
    %v2003 = vunpack.c.l.b16 %v482
    %v2004 = vunpack.c.h.b16 %v482
    %v2005 = vunpack.c.l.b16 %v483
    %v2006 = vunpack.c.h.b16 %v483
    %v2007 = vunpack.c.l.b16 %v484
    %v2008 = vunpack.c.h.b16 %v484
    %v2009 = vunpack.c.l.b16 %v485
    %v2010 = vunpack.c.h.b16 %v485
    %v2011 = vunpack.c.l.b16 %v486
    %v2012 = vunpack.c.h.b16 %v486
    %v2013 = vunpack.c.l.b16 %v487
    %v2014 = vunpack.c.h.b16 %v487
    %v2015 = vunpack.c.l.b16 %v488
    %v2016 = vunpack.c.h.b16 %v488
    %v2017 = vunpack.c.l.b16 %v489
    %v2018 = vunpack.c.h.b16 %v489
    %v2019 = vunpack.c.l.b16 %v490
    %v2020 = vunpack.c.h.b16 %v490
    %v2021 = vunpack.c.l.b16 %v491
    %v2022 = vunpack.c.h.b16 %v491
    %v2023 = vunpack.c.l.b16 %v492
    %v2024 = vunpack.c.h.b16 %v492
    %v2025 = vunpack.c.l.b16 %v493
    %v2026 = vunpack.c.h.b16 %v493
    %v2027 = vunpack.c.l.b16 %v494
    %v2028 = vunpack.c.h.b16 %v494
    %v2029 = vunpack.c.l.b16 %v495
    %v2030 = vunpack.c.h.b16 %v495
    %v2031 = vunpack.c.l.b16 %v496
    %v2032 = vunpack.c.h.b16 %v496
    %v2033 = vunpack.c.l.b16 %v497
    %v2034 = vunpack.c.h.b16 %v497
    %v2035 = vunpack.c.l.b16 %v498
    %v2036 = vunpack.c.h.b16 %v498
    %v2037 = vunpack.c.l.b16 %v499
    %v2038 = vunpack.c.h.b16 %v499
    %v2039 = vunpack.c.l.b16 %v500
    %v2040 = vunpack.c.h.b16 %v500
    %v2041 = vunpack.c.l.b16 %v501
    %v2042 = vunpack.c.h.b16 %v501
    %v2043 = vunpack.c.l.b16 %v502
    %v2044 = vunpack.c.h.b16 %v502
    %v2045 = vunpack.c.l.b16 %v503
    %v2046 = vunpack.c.h.b16 %v503
    %v2047 = vunpack.c.l.b16 %v504
    %v2048 = vunpack.c.h.b16 %v504
    %v2049 = vunpack.c.l.b16 %v505
    %v2050 = vunpack.c.h.b16 %v505
    %v2051 = vunpack.c.l.b16 %v506
    %v2052 = vunpack.c.h.b16 %v506
    %v2053 = vunpack.c.l.b16 %v507
    %v2054 = vunpack.c.h.b16 %v507
    %v2055 = vunpack.c.l.b16 %v508
    %v2056 = vunpack.c.h.b16 %v508
    %v2057 = vunpack.c.l.b16 %v509
    %v2058 = vunpack.c.h.b16 %v509
    %v2059 = vunpack.c.l.b16 %v510
    %v2060 = vunpack.c.h.b16 %v510
    %v2061 = vunpack.c.l.b16 %v511
    %v2062 = vunpack.c.h.b16 %v511
    %v2063 = vunpack.c.l.b16 %v512
    %v2064 = vunpack.c.h.b16 %v512
    %v2065 = vunpack.c.l.b16 %v513
    %v2066 = vunpack.c.h.b16 %v513
    %v2067 = vunpack.c.l.b16 %v514
    %v2068 = vunpack.c.h.b16 %v514
    %v2069 = vunpack.c.l.b16 %v515
    %v2070 = vunpack.c.h.b16 %v515
    %v2071 = vunpack.c.l.b16 %v516
    %v2072 = vunpack.c.h.b16 %v516
    %v2073 = vunpack.c.l.b16 %v517
    %v2074 = vunpack.c.h.b16 %v517
    %v2075 = vunpack.c.l.b16 %v518
    %v2076 = vunpack.c.h.b16 %v518
    %v2077 = vunpack.c.l.b16 %v519
    %v2078 = vunpack.c.h.b16 %v519
    %v2079 = vunpack.c.l.b16 %v520
    %v2080 = vunpack.c.h.b16 %v520
    %v2081 = vunpack.c.l.b16 %v521
    %v2082 = vunpack.c.h.b16 %v521
    %v2083 = vunpack.c.l.b16 %v522
    %v2084 = vunpack.c.h.b16 %v522
    %v2085 = vunpack.c.l.b16 %v523
    %v2086 = vunpack.c.h.b16 %v523
    %v2087 = vunpack.c.l.b16 %v524
    %v2088 = vunpack.c.h.b16 %v524
    %v2089 = vunpack.c.l.b16 %v525
    %v2090 = vunpack.c.h.b16 %v525
    %v2091 = vunpack.c.l.b16 %v526
    %v2092 = vunpack.c.h.b16 %v526
    %v2093 = vunpack.c.l.b16 %v527
    %v2094 = vunpack.c.h.b16 %v527
    %v2095 = vunpack.c.l.b16 %v528
    %v2096 = vunpack.c.h.b16 %v528
    %v2097 = vunpack.c.l.b16 %v529
    %v2098 = vunpack.c.h.b16 %v529
    %v2099 = vunpack.c.l.b16 %v530
    %v2100 = vunpack.c.h.b16 %v530
    %v2101 = vunpack.c.l.b16 %v531
    %v2102 = vunpack.c.h.b16 %v531
    %v2103 = vunpack.c.l.b16 %v532
    %v2104 = vunpack.c.h.b16 %v532
    %v2105 = vunpack.c.l.b16 %v533
    %v2106 = vunpack.c.h.b16 %v533
    %v2107 = vunpack.c.l.b16 %v534
    %v2108 = vunpack.c.h.b16 %v534
    %v2109 = vunpack.c.l.b16 %v535
    %v2110 = vunpack.c.h.b16 %v535
    %v2111 = vunpack.c.l.b16 %v536
    %v2112 = vunpack.c.h.b16 %v536
    %v2113 = vunpack.c.l.b16 %v537
    %v2114 = vunpack.c.h.b16 %v537
    %v2115 = vunpack.c.l.b16 %v538
    %v2116 = vunpack.c.h.b16 %v538
    %v2117 = vunpack.c.l.b16 %v539
    %v2118 = vunpack.c.h.b16 %v539
    %v2119 = vunpack.c.l.b16 %v540
    %v2120 = vunpack.c.h.b16 %v540
    %v2121 = vunpack.c.l.b16 %v541
    %v2122 = vunpack.c.h.b16 %v541
    %v2123 = vunpack.c.l.b16 %v542
    %v2124 = vunpack.c.h.b16 %v542
    %v2125 = vunpack.c.l.b16 %v543
    %v2126 = vunpack.c.h.b16 %v543
    %v2127 = vunpack.c.l.b16 %v544
    %v2128 = vunpack.c.h.b16 %v544
    %v2129 = vunpack.c.l.b16 %v545
    %v2130 = vunpack.c.h.b16 %v545
    %v2131 = vunpack.c.l.b16 %v546
    %v2132 = vunpack.c.h.b16 %v546
    %v2133 = vunpack.c.l.b16 %v547
    %v2134 = vunpack.c.h.b16 %v547
    %v2135 = vunpack.c.l.b16 %v548
    %v2136 = vunpack.c.h.b16 %v548
    %v2137 = vunpack.c.l.b16 %v549
    %v2138 = vunpack.c.h.b16 %v549
    %v2139 = vunpack.c.l.b16 %v550
    %v2140 = vunpack.c.h.b16 %v550
    %v2141 = vunpack.c.l.b16 %v551
    %v2142 = vunpack.c.h.b16 %v551
    %v2143 = vunpack.c.l.b16 %v552
    %v2144 = vunpack.c.h.b16 %v552
    %v2145 = vunpack.c.l.b16 %v553
    %v2146 = vunpack.c.h.b16 %v553
    %v2147 = vunpack.c.l.b16 %v554
    %v2148 = vunpack.c.h.b16 %v554
    %v2149 = vunpack.c.l.b16 %v555
    %v2150 = vunpack.c.h.b16 %v555
    %v2151 = vunpack.c.l.b16 %v556
    %v2152 = vunpack.c.h.b16 %v556
    %v2153 = vunpack.c.l.b16 %v557
    %v2154 = vunpack.c.h.b16 %v557
    %v2155 = vunpack.c.l.b16 %v558
    %v2156 = vunpack.c.h.b16 %v558
    %v2157 = vunpack.c.l.b16 %v559
    %v2158 = vunpack.c.h.b16 %v559
    %v2159 = vunpack.c.l.b16 %v560
    %v2160 = vunpack.c.h.b16 %v560
    %v2161 = vunpack.c.l.b16 %v561
    %v2162 = vunpack.c.h.b16 %v561
    %v2163 = vunpack.c.l.b16 %v562
    %v2164 = vunpack.c.h.b16 %v562
    %v2165 = vunpack.c.l.b16 %v563
    %v2166 = vunpack.c.h.b16 %v563
    %v2167 = vunpack.c.l.b16 %v564
    %v2168 = vunpack.c.h.b16 %v564
    %v2169 = vunpack.c.l.b16 %v565
    %v2170 = vunpack.c.h.b16 %v565
    %v2171 = vunpack.c.l.b16 %v566
    %v2172 = vunpack.c.h.b16 %v566
    %v2173 = vunpack.c.l.b16 %v567
    %v2174 = vunpack.c.h.b16 %v567
    %v2175 = vunpack.c.l.b16 %v568
    %v2176 = vunpack.c.h.b16 %v568
    %v2177 = vunpack.c.l.b16 %v569
    %v2178 = vunpack.c.h.b16 %v569
    %v2179 = vunpack.c.l.b16 %v570
    %v2180 = vunpack.c.h.b16 %v570
    %v2181 = vunpack.c.l.b16 %v571
    %v2182 = vunpack.c.h.b16 %v571
    %v2183 = vunpack.c.l.b16 %v572
    %v2184 = vunpack.c.h.b16 %v572
    %v2185 = vunpack.c.l.b16 %v573
    %v2186 = vunpack.c.h.b16 %v573
    %v2187 = vunpack.c.l.b16 %v574
    %v2188 = vunpack.c.h.b16 %v574
    %v2189 = vunpack.c.l.b16 %v575
    %v2190 = vunpack.c.h.b16 %v575
    %v2191 = vunpack.c.l.b16 %v576
    %v2192 = vunpack.c.h.b16 %v576
    %v2193 = vunpack.c.l.b16 %v577
    %v2194 = vunpack.c.h.b16 %v577
    %v2195 = vunpack.c.l.b16 %v578
    %v2196 = vunpack.c.h.b16 %v578
    %v2197 = vunpack.c.l.b16 %v579
    %v2198 = vunpack.c.h.b16 %v579
    %v2199 = vunpack.c.l.b16 %v580
    %v2200 = vunpack.c.h.b16 %v580
    %v2201 = vunpack.c.l.b16 %v581
    %v2202 = vunpack.c.h.b16 %v581
    %v2203 = vunpack.c.l.b16 %v582
    %v2204 = vunpack.c.h.b16 %v582
    %v2205 = vunpack.c.l.b16 %v583
    %v2206 = vunpack.c.h.b16 %v583
    %v2207 = vunpack.c.l.b16 %v584
    %v2208 = vunpack.c.h.b16 %v584
    %v2209 = vunpack.c.l.b16 %v585
    %v2210 = vunpack.c.h.b16 %v585
    %v2211 = vunpack.c.l.b16 %v586
    %v2212 = vunpack.c.h.b16 %v586
    %v2213 = vunpack.c.l.b16 %v587
    %v2214 = vunpack.c.h.b16 %v587
    %v2215 = vunpack.c.l.b16 %v588
    %v2216 = vunpack.c.h.b16 %v588
    %v2217 = vunpack.c.l.b16 %v589
    %v2218 = vunpack.c.h.b16 %v589
    %v2219 = vunpack.c.l.b16 %v590
    %v2220 = vunpack.c.h.b16 %v590
    %v2221 = vunpack.c.l.b16 %v591
    %v2222 = vunpack.c.h.b16 %v591
    %v2223 = vunpack.c.l.b16 %v592
    %v2224 = vunpack.c.h.b16 %v592
    %v2225 = vunpack.c.l.b16 %v593
    %v2226 = vunpack.c.h.b16 %v593
    %v2227 = vunpack.c.l.b16 %v594
    %v2228 = vunpack.c.h.b16 %v594
    %v2229 = vpack.c.b16 %v1221, %v1205
    %v2230 = vpack.c.b16 %v1222, %v1206
    %v2231 = vpack.c.b16 %v1223, %v1207
    %v2232 = vpack.c.b16 %v1224, %v1208
    %v2233 = vpack.c.b16 %v1225, %v1209
    %v2234 = vpack.c.b16 %v1226, %v1210
    %v2235 = vpack.c.b16 %v1227, %v1211
    %v2236 = vpack.c.b16 %v1228, %v1212
    %v2237 = vpack.c.b16 %v1229, %v1213
    %v2238 = vpack.c.b16 %v1230, %v1214
    %v2239 = vpack.c.b16 %v1231, %v1215
    %v2240 = vpack.c.b16 %v1232, %v1216
    %v2241 = vpack.c.b16 %v1233, %v1217
    %v2242 = vpack.c.b16 %v1234, %v1218
    %v2243 = vpack.c.b16 %v1235, %v1219
    %v2244 = vpack.c.b16 %v1236, %v1220
    %v2245 = vpack.c.b16 %v1253, %v1237
    %v2246 = vpack.c.b16 %v1254, %v1238
    %v2247 = vpack.c.b16 %v1255, %v1239
    %v2248 = vpack.c.b16 %v1256, %v1240
    %v2249 = vpack.c.b16 %v1257, %v1241
    %v2250 = vpack.c.b16 %v1258, %v1242
    %v2251 = vpack.c.b16 %v1259, %v1243
    %v2252 = vpack.c.b16 %v1260, %v1244
    %v2253 = vpack.c.b16 %v1261, %v1245
    %v2254 = vpack.c.b16 %v1262, %v1246
    %v2255 = vpack.c.b16 %v1263, %v1247
    %v2256 = vpack.c.b16 %v1264, %v1248
    %v2257 = vpack.c.b16 %v1265, %v1249
    %v2258 = vpack.c.b16 %v1266, %v1250
    %v2259 = vpack.c.b16 %v1267, %v1251
    %v2260 = vpack.c.b16 %v1268, %v1252
    %v2261 = vpack.c.b16 %v1285, %v1269
    %v2262 = vpack.c.b16 %v1286, %v1270
    %v2263 = vpack.c.b16 %v1287, %v1271
    %v2264 = vpack.c.b16 %v1288, %v1272
    %v2265 = vpack.c.b16 %v1289, %v1273
    %v2266 = vpack.c.b16 %v1290, %v1274
    %v2267 = vpack.c.b16 %v1291, %v1275
    %v2268 = vpack.c.b16 %v1292, %v1276
    %v2269 = vpack.c.b16 %v1293, %v1277
    %v2270 = vpack.c.b16 %v1294, %v1278
    %v2271 = vpack.c.b16 %v1295, %v1279
    %v2272 = vpack.c.b16 %v1296, %v1280
    %v2273 = vpack.c.b16 %v1297, %v1281
    %v2274 = vpack.c.b16 %v1298, %v1282
    %v2275 = vpack.c.b16 %v1299, %v1283
    %v2276 = vpack.c.b16 %v1300, %v1284
    %v2277 = vpack.c.b16 %v1317, %v1301
    %v2278 = vpack.c.b16 %v1318, %v1302
    %v2279 = vpack.c.b16 %v1319, %v1303
    %v2280 = vpack.c.b16 %v1320, %v1304
    %v2281 = vpack.c.b16 %v1321, %v1305
    %v2282 = vpack.c.b16 %v1322, %v1306
    %v2283 = vpack.c.b16 %v1323, %v1307
    %v2284 = vpack.c.b16 %v1324, %v1308
    %v2285 = vpack.c.b16 %v1325, %v1309
    %v2286 = vpack.c.b16 %v1326, %v1310
    %v2287 = vpack.c.b16 %v1327, %v1311
    %v2288 = vpack.c.b16 %v1328, %v1312
    %v2289 = vpack.c.b16 %v1329, %v1313
    %v2290 = vpack.c.b16 %v1330, %v1314
    %v2291 = vpack.c.b16 %v1331, %v1315
    %v2292 = vpack.c.b16 %v1332, %v1316
    %v2293 = vpack.c.b16 %v1349, %v1333
    %v2294 = vpack.c.b16 %v1350, %v1334
    %v2295 = vpack.c.b16 %v1351, %v1335
    %v2296 = vpack.c.b16 %v1352, %v1336
    %v2297 = vpack.c.b16 %v1353, %v1337
    %v2298 = vpack.c.b16 %v1354, %v1338
    %v2299 = vpack.c.b16 %v1355, %v1339
    %v2300 = vpack.c.b16 %v1356, %v1340
    %v2301 = vpack.c.b16 %v1357, %v1341
    %v2302 = vpack.c.b16 %v1358, %v1342
    %v2303 = vpack.c.b16 %v1359, %v1343
    %v2304 = vpack.c.b16 %v1360, %v1344
    %v2305 = vpack.c.b16 %v1361, %v1345
    %v2306 = vpack.c.b16 %v1362, %v1346
    %v2307 = vpack.c.b16 %v1363, %v1347
    %v2308 = vpack.c.b16 %v1364, %v1348
    %v2309 = vpack.c.b16 %v1381, %v1365
    %v2310 = vpack.c.b16 %v1382, %v1366
    %v2311 = vpack.c.b16 %v1383, %v1367
    %v2312 = vpack.c.b16 %v1384, %v1368
    %v2313 = vpack.c.b16 %v1385, %v1369
    %v2314 = vpack.c.b16 %v1386, %v1370
    %v2315 = vpack.c.b16 %v1387, %v1371
    %v2316 = vpack.c.b16 %v1388, %v1372
    %v2317 = vpack.c.b16 %v1389, %v1373
    %v2318 = vpack.c.b16 %v1390, %v1374
    %v2319 = vpack.c.b16 %v1391, %v1375
    %v2320 = vpack.c.b16 %v1392, %v1376
    %v2321 = vpack.c.b16 %v1393, %v1377
    %v2322 = vpack.c.b16 %v1394, %v1378
    %v2323 = vpack.c.b16 %v1395, %v1379
    %v2324 = vpack.c.b16 %v1396, %v1380
    %v2325 = vpack.c.b16 %v1413, %v1397
    %v2326 = vpack.c.b16 %v1414, %v1398
    %v2327 = vpack.c.b16 %v1415, %v1399
    %v2328 = vpack.c.b16 %v1416, %v1400
    %v2329 = vpack.c.b16 %v1417, %v1401
    %v2330 = vpack.c.b16 %v1418, %v1402
    %v2331 = vpack.c.b16 %v1419, %v1403
    %v2332 = vpack.c.b16 %v1420, %v1404
    %v2333 = vpack.c.b16 %v1421, %v1405
    %v2334 = vpack.c.b16 %v1422, %v1406
    %v2335 = vpack.c.b16 %v1423, %v1407
    %v2336 = vpack.c.b16 %v1424, %v1408
    %v2337 = vpack.c.b16 %v1425, %v1409
    %v2338 = vpack.c.b16 %v1426, %v1410
    %v2339 = vpack.c.b16 %v1427, %v1411
    %v2340 = vpack.c.b16 %v1428, %v1412
    %v2341 = vpack.c.b16 %v1445, %v1429
    %v2342 = vpack.c.b16 %v1446, %v1430
    %v2343 = vpack.c.b16 %v1447, %v1431
    %v2344 = vpack.c.b16 %v1448, %v1432
    %v2345 = vpack.c.b16 %v1449, %v1433
    %v2346 = vpack.c.b16 %v1450, %v1434
    %v2347 = vpack.c.b16 %v1451, %v1435
    %v2348 = vpack.c.b16 %v1452, %v1436
    %v2349 = vpack.c.b16 %v1453, %v1437
    %v2350 = vpack.c.b16 %v1454, %v1438
    %v2351 = vpack.c.b16 %v1455, %v1439
    %v2352 = vpack.c.b16 %v1456, %v1440
    %v2353 = vpack.c.b16 %v1457, %v1441
    %v2354 = vpack.c.b16 %v1458, %v1442
    %v2355 = vpack.c.b16 %v1459, %v1443
    %v2356 = vpack.c.b16 %v1460, %v1444
    %v2357 = vpack.c.b16 %v1477, %v1461
    %v2358 = vpack.c.b16 %v1478, %v1462
    %v2359 = vpack.c.b16 %v1479, %v1463
    %v2360 = vpack.c.b16 %v1480, %v1464
    %v2361 = vpack.c.b16 %v1481, %v1465
    %v2362 = vpack.c.b16 %v1482, %v1466
    %v2363 = vpack.c.b16 %v1483, %v1467
    %v2364 = vpack.c.b16 %v1484, %v1468
    %v2365 = vpack.c.b16 %v1485, %v1469
    %v2366 = vpack.c.b16 %v1486, %v1470
    %v2367 = vpack.c.b16 %v1487, %v1471
    %v2368 = vpack.c.b16 %v1488, %v1472
    %v2369 = vpack.c.b16 %v1489, %v1473
    %v2370 = vpack.c.b16 %v1490, %v1474
    %v2371 = vpack.c.b16 %v1491, %v1475
    %v2372 = vpack.c.b16 %v1492, %v1476
    %v2373 = vpack.c.b16 %v1509, %v1493
    %v2374 = vpack.c.b16 %v1510, %v1494
    %v2375 = vpack.c.b16 %v1511, %v1495
    %v2376 = vpack.c.b16 %v1512, %v1496
    %v2377 = vpack.c.b16 %v1513, %v1497
    %v2378 = vpack.c.b16 %v1514, %v1498
    %v2379 = vpack.c.b16 %v1515, %v1499
    %v2380 = vpack.c.b16 %v1516, %v1500
    %v2381 = vpack.c.b16 %v1517, %v1501
    %v2382 = vpack.c.b16 %v1518, %v1502
    %v2383 = vpack.c.b16 %v1519, %v1503
    %v2384 = vpack.c.b16 %v1520, %v1504
    %v2385 = vpack.c.b16 %v1521, %v1505
    %v2386 = vpack.c.b16 %v1522, %v1506
    %v2387 = vpack.c.b16 %v1523, %v1507
    %v2388 = vpack.c.b16 %v1524, %v1508
    %v2389 = vpack.c.b16 %v1541, %v1525
    %v2390 = vpack.c.b16 %v1542, %v1526
    %v2391 = vpack.c.b16 %v1543, %v1527
    %v2392 = vpack.c.b16 %v1544, %v1528
    %v2393 = vpack.c.b16 %v1545, %v1529
    %v2394 = vpack.c.b16 %v1546, %v1530
    %v2395 = vpack.c.b16 %v1547, %v1531
    %v2396 = vpack.c.b16 %v1548, %v1532
    %v2397 = vpack.c.b16 %v1549, %v1533
    %v2398 = vpack.c.b16 %v1550, %v1534
    %v2399 = vpack.c.b16 %v1551, %v1535
    %v2400 = vpack.c.b16 %v1552, %v1536
    %v2401 = vpack.c.b16 %v1553, %v1537
    %v2402 = vpack.c.b16 %v1554, %v1538
    %v2403 = vpack.c.b16 %v1555, %v1539
    %v2404 = vpack.c.b16 %v1556, %v1540
    %v2405 = vpack.c.b16 %v1573, %v1557
    %v2406 = vpack.c.b16 %v1574, %v1558
    %v2407 = vpack.c.b16 %v1575, %v1559
    %v2408 = vpack.c.b16 %v1576, %v1560
    %v2409 = vpack.c.b16 %v1577, %v1561
    %v2410 = vpack.c.b16 %v1578, %v1562
    %v2411 = vpack.c.b16 %v1579, %v1563
    %v2412 = vpack.c.b16 %v1580, %v1564
    %v2413 = vpack.c.b16 %v1581, %v1565
    %v2414 = vpack.c.b16 %v1582, %v1566
    %v2415 = vpack.c.b16 %v1583, %v1567
    %v2416 = vpack.c.b16 %v1584, %v1568
    %v2417 = vpack.c.b16 %v1585, %v1569
    %v2418 = vpack.c.b16 %v1586, %v1570
    %v2419 = vpack.c.b16 %v1587, %v1571
    %v2420 = vpack.c.b16 %v1588, %v1572
    %v2421 = vpack.c.b16 %v1605, %v1589
    %v2422 = vpack.c.b16 %v1606, %v1590
    %v2423 = vpack.c.b16 %v1607, %v1591
    %v2424 = vpack.c.b16 %v1608, %v1592
    %v2425 = vpack.c.b16 %v1609, %v1593
    %v2426 = vpack.c.b16 %v1610, %v1594
    %v2427 = vpack.c.b16 %v1611, %v1595
    %v2428 = vpack.c.b16 %v1612, %v1596
    %v2429 = vpack.c.b16 %v1613, %v1597
    %v2430 = vpack.c.b16 %v1614, %v1598
    %v2431 = vpack.c.b16 %v1615, %v1599
    %v2432 = vpack.c.b16 %v1616, %v1600
    %v2433 = vpack.c.b16 %v1617, %v1601
    %v2434 = vpack.c.b16 %v1618, %v1602
    %v2435 = vpack.c.b16 %v1619, %v1603
    %v2436 = vpack.c.b16 %v1620, %v1604
    %v2437 = vpack.c.b16 %v1637, %v1621
    %v2438 = vpack.c.b16 %v1638, %v1622
    %v2439 = vpack.c.b16 %v1639, %v1623
    %v2440 = vpack.c.b16 %v1640, %v1624
    %v2441 = vpack.c.b16 %v1641, %v1625
    %v2442 = vpack.c.b16 %v1642, %v1626
    %v2443 = vpack.c.b16 %v1643, %v1627
    %v2444 = vpack.c.b16 %v1644, %v1628
    %v2445 = vpack.c.b16 %v1645, %v1629
    %v2446 = vpack.c.b16 %v1646, %v1630
    %v2447 = vpack.c.b16 %v1647, %v1631
    %v2448 = vpack.c.b16 %v1648, %v1632
    %v2449 = vpack.c.b16 %v1649, %v1633
    %v2450 = vpack.c.b16 %v1650, %v1634
    %v2451 = vpack.c.b16 %v1651, %v1635
    %v2452 = vpack.c.b16 %v1652, %v1636
    %v2453 = vpack.c.b16 %v1669, %v1653
    %v2454 = vpack.c.b16 %v1670, %v1654
    %v2455 = vpack.c.b16 %v1671, %v1655
    %v2456 = vpack.c.b16 %v1672, %v1656
    %v2457 = vpack.c.b16 %v1673, %v1657
    %v2458 = vpack.c.b16 %v1674, %v1658
    %v2459 = vpack.c.b16 %v1675, %v1659
    %v2460 = vpack.c.b16 %v1676, %v1660
    %v2461 = vpack.c.b16 %v1677, %v1661
    %v2462 = vpack.c.b16 %v1678, %v1662
    %v2463 = vpack.c.b16 %v1679, %v1663
    %v2464 = vpack.c.b16 %v1680, %v1664
    %v2465 = vpack.c.b16 %v1681, %v1665
    %v2466 = vpack.c.b16 %v1682, %v1666
    %v2467 = vpack.c.b16 %v1683, %v1667
    %v2468 = vpack.c.b16 %v1684, %v1668
    %v2469 = vpack.c.b16 %v1701, %v1685
    %v2470 = vpack.c.b16 %v1702, %v1686
    %v2471 = vpack.c.b16 %v1703, %v1687
    %v2472 = vpack.c.b16 %v1704, %v1688
    %v2473 = vpack.c.b16 %v1705, %v1689
    %v2474 = vpack.c.b16 %v1706, %v1690
    %v2475 = vpack.c.b16 %v1707, %v1691
    %v2476 = vpack.c.b16 %v1708, %v1692
    %v2477 = vpack.c.b16 %v1709, %v1693
    %v2478 = vpack.c.b16 %v1710, %v1694
    %v2479 = vpack.c.b16 %v1711, %v1695
    %v2480 = vpack.c.b16 %v1712, %v1696
    %v2481 = vpack.c.b16 %v1713, %v1697
    %v2482 = vpack.c.b16 %v1714, %v1698
    %v2483 = vpack.c.b16 %v1715, %v1699
    %v2484 = vpack.c.b16 %v1716, %v1700
    %v2485 = vpack.c.b16 %v1733, %v1717
    %v2486 = vpack.c.b16 %v1734, %v1718
    %v2487 = vpack.c.b16 %v1735, %v1719
    %v2488 = vpack.c.b16 %v1736, %v1720
    %v2489 = vpack.c.b16 %v1737, %v1721
    %v2490 = vpack.c.b16 %v1738, %v1722
    %v2491 = vpack.c.b16 %v1739, %v1723
    %v2492 = vpack.c.b16 %v1740, %v1724
    %v2493 = vpack.c.b16 %v1741, %v1725
    %v2494 = vpack.c.b16 %v1742, %v1726
    %v2495 = vpack.c.b16 %v1743, %v1727
    %v2496 = vpack.c.b16 %v1744, %v1728
    %v2497 = vpack.c.b16 %v1745, %v1729
    %v2498 = vpack.c.b16 %v1746, %v1730
    %v2499 = vpack.c.b16 %v1747, %v1731
    %v2500 = vpack.c.b16 %v1748, %v1732
    %v2501 = vpack.c.b16 %v1765, %v1749
    %v2502 = vpack.c.b16 %v1766, %v1750
    %v2503 = vpack.c.b16 %v1767, %v1751
    %v2504 = vpack.c.b16 %v1768, %v1752
    %v2505 = vpack.c.b16 %v1769, %v1753
    %v2506 = vpack.c.b16 %v1770, %v1754
    %v2507 = vpack.c.b16 %v1771, %v1755
    %v2508 = vpack.c.b16 %v1772, %v1756
    %v2509 = vpack.c.b16 %v1773, %v1757
    %v2510 = vpack.c.b16 %v1774, %v1758
    %v2511 = vpack.c.b16 %v1775, %v1759
    %v2512 = vpack.c.b16 %v1776, %v1760
    %v2513 = vpack.c.b16 %v1777, %v1761
    %v2514 = vpack.c.b16 %v1778, %v1762
    %v2515 = vpack.c.b16 %v1779, %v1763
    %v2516 = vpack.c.b16 %v1780, %v1764
    %v2517 = vpack.c.b16 %v1797, %v1781
    %v2518 = vpack.c.b16 %v1798, %v1782
    %v2519 = vpack.c.b16 %v1799, %v1783
    %v2520 = vpack.c.b16 %v1800, %v1784
    %v2521 = vpack.c.b16 %v1801, %v1785
    %v2522 = vpack.c.b16 %v1802, %v1786
    %v2523 = vpack.c.b16 %v1803, %v1787
    %v2524 = vpack.c.b16 %v1804, %v1788
    %v2525 = vpack.c.b16 %v1805, %v1789
    %v2526 = vpack.c.b16 %v1806, %v1790
    %v2527 = vpack.c.b16 %v1807, %v1791
    %v2528 = vpack.c.b16 %v1808, %v1792
    %v2529 = vpack.c.b16 %v1809, %v1793
    %v2530 = vpack.c.b16 %v1810, %v1794
    %v2531 = vpack.c.b16 %v1811, %v1795
    %v2532 = vpack.c.b16 %v1812, %v1796
    %v2533 = vpack.c.b16 %v1829, %v1813
    %v2534 = vpack.c.b16 %v1830, %v1814
    %v2535 = vpack.c.b16 %v1831, %v1815
    %v2536 = vpack.c.b16 %v1832, %v1816
    %v2537 = vpack.c.b16 %v1833, %v1817
    %v2538 = vpack.c.b16 %v1834, %v1818
    %v2539 = vpack.c.b16 %v1835, %v1819
    %v2540 = vpack.c.b16 %v1836, %v1820
    %v2541 = vpack.c.b16 %v1837, %v1821
    %v2542 = vpack.c.b16 %v1838, %v1822
    %v2543 = vpack.c.b16 %v1839, %v1823
    %v2544 = vpack.c.b16 %v1840, %v1824
    %v2545 = vpack.c.b16 %v1841, %v1825
    %v2546 = vpack.c.b16 %v1842, %v1826
    %v2547 = vpack.c.b16 %v1843, %v1827
    %v2548 = vpack.c.b16 %v1844, %v1828
    %v2549 = vpack.c.b16 %v1861, %v1845
    %v2550 = vpack.c.b16 %v1862, %v1846
    %v2551 = vpack.c.b16 %v1863, %v1847
    %v2552 = vpack.c.b16 %v1864, %v1848
    %v2553 = vpack.c.b16 %v1865, %v1849
    %v2554 = vpack.c.b16 %v1866, %v1850
    %v2555 = vpack.c.b16 %v1867, %v1851
    %v2556 = vpack.c.b16 %v1868, %v1852
    %v2557 = vpack.c.b16 %v1869, %v1853
    %v2558 = vpack.c.b16 %v1870, %v1854
    %v2559 = vpack.c.b16 %v1871, %v1855
    %v2560 = vpack.c.b16 %v1872, %v1856
    %v2561 = vpack.c.b16 %v1873, %v1857
    %v2562 = vpack.c.b16 %v1874, %v1858
    %v2563 = vpack.c.b16 %v1875, %v1859
    %v2564 = vpack.c.b16 %v1876, %v1860
    %v2565 = vpack.c.b16 %v1893, %v1877
    %v2566 = vpack.c.b16 %v1894, %v1878
    %v2567 = vpack.c.b16 %v1895, %v1879
    %v2568 = vpack.c.b16 %v1896, %v1880
    %v2569 = vpack.c.b16 %v1897, %v1881
    %v2570 = vpack.c.b16 %v1898, %v1882
    %v2571 = vpack.c.b16 %v1899, %v1883
    %v2572 = vpack.c.b16 %v1900, %v1884
    %v2573 = vpack.c.b16 %v1901, %v1885
    %v2574 = vpack.c.b16 %v1902, %v1886
    %v2575 = vpack.c.b16 %v1903, %v1887
    %v2576 = vpack.c.b16 %v1904, %v1888
    %v2577 = vpack.c.b16 %v1905, %v1889
    %v2578 = vpack.c.b16 %v1906, %v1890
    %v2579 = vpack.c.b16 %v1907, %v1891
    %v2580 = vpack.c.b16 %v1908, %v1892
    %v2581 = vpack.c.b16 %v1925, %v1909
    %v2582 = vpack.c.b16 %v1926, %v1910
    %v2583 = vpack.c.b16 %v1927, %v1911
    %v2584 = vpack.c.b16 %v1928, %v1912
    %v2585 = vpack.c.b16 %v1929, %v1913
    %v2586 = vpack.c.b16 %v1930, %v1914
    %v2587 = vpack.c.b16 %v1931, %v1915
    %v2588 = vpack.c.b16 %v1932, %v1916
    %v2589 = vpack.c.b16 %v1933, %v1917
    %v2590 = vpack.c.b16 %v1934, %v1918
    %v2591 = vpack.c.b16 %v1935, %v1919
    %v2592 = vpack.c.b16 %v1936, %v1920
    %v2593 = vpack.c.b16 %v1937, %v1921
    %v2594 = vpack.c.b16 %v1938, %v1922
    %v2595 = vpack.c.b16 %v1939, %v1923
    %v2596 = vpack.c.b16 %v1940, %v1924
    %v2597 = vpack.c.b16 %v1957, %v1941
    %v2598 = vpack.c.b16 %v1958, %v1942
    %v2599 = vpack.c.b16 %v1959, %v1943
    %v2600 = vpack.c.b16 %v1960, %v1944
    %v2601 = vpack.c.b16 %v1961, %v1945
    %v2602 = vpack.c.b16 %v1962, %v1946
    %v2603 = vpack.c.b16 %v1963, %v1947
    %v2604 = vpack.c.b16 %v1964, %v1948
    %v2605 = vpack.c.b16 %v1965, %v1949
    %v2606 = vpack.c.b16 %v1966, %v1950
    %v2607 = vpack.c.b16 %v1967, %v1951
    %v2608 = vpack.c.b16 %v1968, %v1952
    %v2609 = vpack.c.b16 %v1969, %v1953
    %v2610 = vpack.c.b16 %v1970, %v1954
    %v2611 = vpack.c.b16 %v1971, %v1955
    %v2612 = vpack.c.b16 %v1972, %v1956
    %v2613 = vpack.c.b16 %v1989, %v1973
    %v2614 = vpack.c.b16 %v1990, %v1974
    %v2615 = vpack.c.b16 %v1991, %v1975
    %v2616 = vpack.c.b16 %v1992, %v1976
    %v2617 = vpack.c.b16 %v1993, %v1977
    %v2618 = vpack.c.b16 %v1994, %v1978
    %v2619 = vpack.c.b16 %v1995, %v1979
    %v2620 = vpack.c.b16 %v1996, %v1980
    %v2621 = vpack.c.b16 %v1997, %v1981
    %v2622 = vpack.c.b16 %v1998, %v1982
    %v2623 = vpack.c.b16 %v1999, %v1983
    %v2624 = vpack.c.b16 %v2000, %v1984
    %v2625 = vpack.c.b16 %v2001, %v1985
    %v2626 = vpack.c.b16 %v2002, %v1986
    %v2627 = vpack.c.b16 %v2003, %v1987
    %v2628 = vpack.c.b16 %v2004, %v1988
    %v2629 = vpack.c.b16 %v2021, %v2005
    %v2630 = vpack.c.b16 %v2022, %v2006
    %v2631 = vpack.c.b16 %v2023, %v2007
    %v2632 = vpack.c.b16 %v2024, %v2008
    %v2633 = vpack.c.b16 %v2025, %v2009
    %v2634 = vpack.c.b16 %v2026, %v2010
    %v2635 = vpack.c.b16 %v2027, %v2011
    %v2636 = vpack.c.b16 %v2028, %v2012
    %v2637 = vpack.c.b16 %v2029, %v2013
    %v2638 = vpack.c.b16 %v2030, %v2014
    %v2639 = vpack.c.b16 %v2031, %v2015
    %v2640 = vpack.c.b16 %v2032, %v2016
    %v2641 = vpack.c.b16 %v2033, %v2017
    %v2642 = vpack.c.b16 %v2034, %v2018
    %v2643 = vpack.c.b16 %v2035, %v2019
    %v2644 = vpack.c.b16 %v2036, %v2020
    %v2645 = vpack.c.b16 %v2053, %v2037
    %v2646 = vpack.c.b16 %v2054, %v2038
    %v2647 = vpack.c.b16 %v2055, %v2039
    %v2648 = vpack.c.b16 %v2056, %v2040
    %v2649 = vpack.c.b16 %v2057, %v2041
    %v2650 = vpack.c.b16 %v2058, %v2042
    %v2651 = vpack.c.b16 %v2059, %v2043
    %v2652 = vpack.c.b16 %v2060, %v2044
    %v2653 = vpack.c.b16 %v2061, %v2045
    %v2654 = vpack.c.b16 %v2062, %v2046
    %v2655 = vpack.c.b16 %v2063, %v2047
    %v2656 = vpack.c.b16 %v2064, %v2048
    %v2657 = vpack.c.b16 %v2065, %v2049
    %v2658 = vpack.c.b16 %v2066, %v2050
    %v2659 = vpack.c.b16 %v2067, %v2051
    %v2660 = vpack.c.b16 %v2068, %v2052
    %v2661 = vpack.c.b16 %v2085, %v2069
    %v2662 = vpack.c.b16 %v2086, %v2070
    %v2663 = vpack.c.b16 %v2087, %v2071
    %v2664 = vpack.c.b16 %v2088, %v2072
    %v2665 = vpack.c.b16 %v2089, %v2073
    %v2666 = vpack.c.b16 %v2090, %v2074
    %v2667 = vpack.c.b16 %v2091, %v2075
    %v2668 = vpack.c.b16 %v2092, %v2076
    %v2669 = vpack.c.b16 %v2093, %v2077
    %v2670 = vpack.c.b16 %v2094, %v2078
    %v2671 = vpack.c.b16 %v2095, %v2079
    %v2672 = vpack.c.b16 %v2096, %v2080
    %v2673 = vpack.c.b16 %v2097, %v2081
    %v2674 = vpack.c.b16 %v2098, %v2082
    %v2675 = vpack.c.b16 %v2099, %v2083
    %v2676 = vpack.c.b16 %v2100, %v2084
    %v2677 = vpack.c.b16 %v2117, %v2101
    %v2678 = vpack.c.b16 %v2118, %v2102
    %v2679 = vpack.c.b16 %v2119, %v2103
    %v2680 = vpack.c.b16 %v2120, %v2104
    %v2681 = vpack.c.b16 %v2121, %v2105
    %v2682 = vpack.c.b16 %v2122, %v2106
    %v2683 = vpack.c.b16 %v2123, %v2107
    %v2684 = vpack.c.b16 %v2124, %v2108
    %v2685 = vpack.c.b16 %v2125, %v2109
    %v2686 = vpack.c.b16 %v2126, %v2110
    %v2687 = vpack.c.b16 %v2127, %v2111
    %v2688 = vpack.c.b16 %v2128, %v2112
    %v2689 = vpack.c.b16 %v2129, %v2113
    %v2690 = vpack.c.b16 %v2130, %v2114
    %v2691 = vpack.c.b16 %v2131, %v2115
    %v2692 = vpack.c.b16 %v2132, %v2116
    %v2693 = vpack.c.b16 %v2149, %v2133
    %v2694 = vpack.c.b16 %v2150, %v2134
    %v2695 = vpack.c.b16 %v2151, %v2135
    %v2696 = vpack.c.b16 %v2152, %v2136
    %v2697 = vpack.c.b16 %v2153, %v2137
    %v2698 = vpack.c.b16 %v2154, %v2138
    %v2699 = vpack.c.b16 %v2155, %v2139
    %v2700 = vpack.c.b16 %v2156, %v2140
    %v2701 = vpack.c.b16 %v2157, %v2141
    %v2702 = vpack.c.b16 %v2158, %v2142
    %v2703 = vpack.c.b16 %v2159, %v2143
    %v2704 = vpack.c.b16 %v2160, %v2144
    %v2705 = vpack.c.b16 %v2161, %v2145
    %v2706 = vpack.c.b16 %v2162, %v2146
    %v2707 = vpack.c.b16 %v2163, %v2147
    %v2708 = vpack.c.b16 %v2164, %v2148
    %v2709 = vpack.c.b16 %v2181, %v2165
    %v2710 = vpack.c.b16 %v2182, %v2166
    %v2711 = vpack.c.b16 %v2183, %v2167
    %v2712 = vpack.c.b16 %v2184, %v2168
    %v2713 = vpack.c.b16 %v2185, %v2169
    %v2714 = vpack.c.b16 %v2186, %v2170
    %v2715 = vpack.c.b16 %v2187, %v2171
    %v2716 = vpack.c.b16 %v2188, %v2172
    %v2717 = vpack.c.b16 %v2189, %v2173
    %v2718 = vpack.c.b16 %v2190, %v2174
    %v2719 = vpack.c.b16 %v2191, %v2175
    %v2720 = vpack.c.b16 %v2192, %v2176
    %v2721 = vpack.c.b16 %v2193, %v2177
    %v2722 = vpack.c.b16 %v2194, %v2178
    %v2723 = vpack.c.b16 %v2195, %v2179
    %v2724 = vpack.c.b16 %v2196, %v2180
    %v2725 = vpack.c.b16 %v2213, %v2197
    %v2726 = vpack.c.b16 %v2214, %v2198
    %v2727 = vpack.c.b16 %v2215, %v2199
    %v2728 = vpack.c.b16 %v2216, %v2200
    %v2729 = vpack.c.b16 %v2217, %v2201
    %v2730 = vpack.c.b16 %v2218, %v2202
    %v2731 = vpack.c.b16 %v2219, %v2203
    %v2732 = vpack.c.b16 %v2220, %v2204
    %v2733 = vpack.c.b16 %v2221, %v2205
    %v2734 = vpack.c.b16 %v2222, %v2206
    %v2735 = vpack.c.b16 %v2223, %v2207
    %v2736 = vpack.c.b16 %v2224, %v2208
    %v2737 = vpack.c.b16 %v2225, %v2209
    %v2738 = vpack.c.b16 %v2226, %v2210
    %v2739 = vpack.c.b16 %v2227, %v2211
    %v2740 = vpack.c.b16 %v2228, %v2212
    %3253 = vmatprep.subr.bf16.mxu0 %v2230
    %3254 = vmatpush1.bf16.msra.mxu0 %v2229
    %3255 = vmatprep.subr.bf16.mxu0 %v2246
    %3256 = vmatpush1.bf16.msra.mxu0 %v2245
    %3257 = vmatprep.subr.bf16.mxu0 %v2262
    %3258 = vmatpush1.bf16.msra.mxu0 %v2261
    %3259 = vmatprep.subr.bf16.mxu0 %v2278
    %3260 = vmatpush1.bf16.msra.mxu0 %v2277
    %3261 = vmatprep.subr.bf16.mxu0 %v2294
    %3262 = vmatpush1.bf16.msra.mxu0 %v2293
    %3263 = vmatprep.subr.bf16.mxu0 %v2310
    %3264 = vmatpush1.bf16.msra.mxu0 %v2309
    %3265 = vmatprep.subr.bf16.mxu0 %v2326
    %3266 = vmatpush1.bf16.msra.mxu0 %v2325
    %3267 = vmatprep.subr.bf16.mxu0 %v2342
    %3268 = vmatpush1.bf16.msra.mxu0 %v2341
    %3269 = vmatprep.subr.bf16.mxu0 %v2358
    %3270 = vmatpush1.bf16.msra.mxu0 %v2357
    %3271 = vmatprep.subr.bf16.mxu0 %v2374
    %3272 = vmatpush1.bf16.msra.mxu0 %v2373
    %3273 = vmatprep.subr.bf16.mxu0 %v2390
    %3274 = vmatpush1.bf16.msra.mxu0 %v2389
    %3275 = vmatprep.subr.bf16.mxu0 %v2406
    %3276 = vmatpush1.bf16.msra.mxu0 %v2405
    %3277 = vmatprep.subr.bf16.mxu0 %v2422
    %3278 = vmatpush1.bf16.msra.mxu0 %v2421
    %3279 = vmatprep.subr.bf16.mxu0 %v2438
    %3280 = vmatpush1.bf16.msra.mxu0 %v2437
    %3281 = vmatprep.subr.bf16.mxu0 %v2454
    %3282 = vmatpush1.bf16.msra.mxu0 %v2453
    %3283 = vmatprep.subr.bf16.mxu0 %v2470
    %3284 = vmatpush1.bf16.msra.mxu0 %v2469
    %3285 = vmatprep.mubr.bf16.mxu0 %v686
    %3286 = vmatmul.mubr.bf16.gmra.mrb[0].mxu0 %v685
    %v3287 = vpop.f32.mrb[0].mxu0
    %v3288 = vadd.f32 %v602, %v3287
    %v3289 = vpop.f32.mrb[0].mxu0
    %v3290 = vadd.f32 %v606, %v3289
    %v3291 = vpop.f32.mrb[0].mxu0
    %v3292 = vpop.f32.mrb[0].mxu0
    %3293 = vdwg.mxu0
    %3294 = vmatprep.subr.bf16.mxu0 %v2486
    %3295 = vmatpush1.bf16.msra.mxu0 %v2485
    %3296 = vmatprep.subr.bf16.mxu0 %v2502
    %3297 = vmatpush1.bf16.msra.mxu0 %v2501
    %3298 = vmatprep.subr.bf16.mxu0 %v2518
    %3299 = vmatpush1.bf16.msra.mxu0 %v2517
    %3300 = vmatprep.subr.bf16.mxu0 %v2534
    %3301 = vmatpush1.bf16.msra.mxu0 %v2533
    %3302 = vmatprep.subr.bf16.mxu0 %v2550
    %3303 = vmatpush1.bf16.msra.mxu0 %v2549
    %3304 = vmatprep.subr.bf16.mxu0 %v2566
    %3305 = vmatpush1.bf16.msra.mxu0 %v2565
    %3306 = vmatprep.subr.bf16.mxu0 %v2582
    %3307 = vmatpush1.bf16.msra.mxu0 %v2581
    %3308 = vmatprep.subr.bf16.mxu0 %v2598
    %3309 = vmatpush1.bf16.msra.mxu0 %v2597
    %3310 = vmatprep.subr.bf16.mxu0 %v2614
    %3311 = vmatpush1.bf16.msra.mxu0 %v2613
    %3312 = vmatprep.subr.bf16.mxu0 %v2630
    %3313 = vmatpush1.bf16.msra.mxu0 %v2629
    %3314 = vmatprep.subr.bf16.mxu0 %v2646
    %3315 = vmatpush1.bf16.msra.mxu0 %v2645
    %3316 = vmatprep.subr.bf16.mxu0 %v2662
    %3317 = vmatpush1.bf16.msra.mxu0 %v2661
    %3318 = vmatprep.subr.bf16.mxu0 %v2678
    %3319 = vmatpush1.bf16.msra.mxu0 %v2677
    %3320 = vmatprep.subr.bf16.mxu0 %v2694
    %3321 = vmatpush1.bf16.msra.mxu0 %v2693
    %3322 = vmatprep.subr.bf16.mxu0 %v2710
    %3323 = vmatpush1.bf16.msra.mxu0 %v2709
    %3324 = vmatprep.subr.bf16.mxu0 %v2726
    %3325 = vmatpush1.bf16.msra.mxu0 %v2725
    %3326 = vmatprep.mubr.bf16.mxu0 %v688
    %3327 = vmatmul.mubr.bf16.gmra.mrb[0].mxu0 %v687
    %v3328 = vpop.f32.mrb[0].mxu0
    %v3329 = vadd.f32 %v3288, %v3328
    %v3330 = vpop.f32.mrb[0].mxu0
    %v3331 = vadd.f32 %v3290, %v3330
    %v3332 = vpop.f32.mrb[0].mxu0
    %v3333 = vpop.f32.mrb[0].mxu0
    %3334 = vdwg.mxu0
    %3335 = vmatprep.subr.bf16.mxu0 %v2232
    %3336 = vmatpush1.bf16.msra.mxu0 %v2231
    %3337 = vmatprep.subr.bf16.mxu0 %v2248
    %3338 = vmatpush1.bf16.msra.mxu0 %v2247
    %3339 = vmatprep.subr.bf16.mxu0 %v2264
    %3340 = vmatpush1.bf16.msra.mxu0 %v2263
    %3341 = vmatprep.subr.bf16.mxu0 %v2280
    %3342 = vmatpush1.bf16.msra.mxu0 %v2279
    %3343 = vmatprep.subr.bf16.mxu0 %v2296
    %3344 = vmatpush1.bf16.msra.mxu0 %v2295
    %3345 = vmatprep.subr.bf16.mxu0 %v2312
    %3346 = vmatpush1.bf16.msra.mxu0 %v2311
    %3347 = vmatprep.subr.bf16.mxu0 %v2328
    %3348 = vmatpush1.bf16.msra.mxu0 %v2327
    %3349 = vmatprep.subr.bf16.mxu0 %v2344
    %3350 = vmatpush1.bf16.msra.mxu0 %v2343
    %3351 = vmatprep.subr.bf16.mxu0 %v2360
    %3352 = vmatpush1.bf16.msra.mxu0 %v2359
    %3353 = vmatprep.subr.bf16.mxu0 %v2376
    %3354 = vmatpush1.bf16.msra.mxu0 %v2375
    %3355 = vmatprep.subr.bf16.mxu0 %v2392
    %3356 = vmatpush1.bf16.msra.mxu0 %v2391
    %3357 = vmatprep.subr.bf16.mxu0 %v2408
    %3358 = vmatpush1.bf16.msra.mxu0 %v2407
    %3359 = vmatprep.subr.bf16.mxu0 %v2424
    %3360 = vmatpush1.bf16.msra.mxu0 %v2423
    %3361 = vmatprep.subr.bf16.mxu0 %v2440
    %3362 = vmatpush1.bf16.msra.mxu0 %v2439
    %3363 = vmatprep.subr.bf16.mxu0 %v2456
    %3364 = vmatpush1.bf16.msra.mxu0 %v2455
    %3365 = vmatprep.subr.bf16.mxu0 %v2472
    %3366 = vmatpush1.bf16.msra.mxu0 %v2471
    %3367 = vmatprep.mubr.bf16.mxu0 %v686
    %3368 = vmatmul.mubr.bf16.gmra.mrb[0].mxu0 %v685
    %v3369 = vpop.f32.mrb[0].mxu0
    %v3370 = vadd.f32 %v610, %v3369
    %v3371 = vpop.f32.mrb[0].mxu0
    %v3372 = vadd.f32 %v614, %v3371
    %v3373 = vpop.f32.mrb[0].mxu0
    %v3374 = vpop.f32.mrb[0].mxu0
    %3375 = vdwg.mxu0
    %3376 = vmatprep.subr.bf16.mxu0 %v2488
    %3377 = vmatpush1.bf16.msra.mxu0 %v2487
    %3378 = vmatprep.subr.bf16.mxu0 %v2504
    %3379 = vmatpush1.bf16.msra.mxu0 %v2503
    %3380 = vmatprep.subr.bf16.mxu0 %v2520
    %3381 = vmatpush1.bf16.msra.mxu0 %v2519
    %3382 = vmatprep.subr.bf16.mxu0 %v2536
    %3383 = vmatpush1.bf16.msra.mxu0 %v2535
    %3384 = vmatprep.subr.bf16.mxu0 %v2552
    %3385 = vmatpush1.bf16.msra.mxu0 %v2551
    %3386 = vmatprep.subr.bf16.mxu0 %v2568
    %3387 = vmatpush1.bf16.msra.mxu0 %v2567
    %3388 = vmatprep.subr.bf16.mxu0 %v2584
    %3389 = vmatpush1.bf16.msra.mxu0 %v2583
    %3390 = vmatprep.subr.bf16.mxu0 %v2600
    %3391 = vmatpush1.bf16.msra.mxu0 %v2599
    %3392 = vmatprep.subr.bf16.mxu0 %v2616
    %3393 = vmatpush1.bf16.msra.mxu0 %v2615
    %3394 = vmatprep.subr.bf16.mxu0 %v2632
    %3395 = vmatpush1.bf16.msra.mxu0 %v2631
    %3396 = vmatprep.subr.bf16.mxu0 %v2648
    %3397 = vmatpush1.bf16.msra.mxu0 %v2647
    %3398 = vmatprep.subr.bf16.mxu0 %v2664
    %3399 = vmatpush1.bf16.msra.mxu0 %v2663
    %3400 = vmatprep.subr.bf16.mxu0 %v2680
    %3401 = vmatpush1.bf16.msra.mxu0 %v2679
    %3402 = vmatprep.subr.bf16.mxu0 %v2696
    %3403 = vmatpush1.bf16.msra.mxu0 %v2695
    %3404 = vmatprep.subr.bf16.mxu0 %v2712
    %3405 = vmatpush1.bf16.msra.mxu0 %v2711
    %3406 = vmatprep.subr.bf16.mxu0 %v2728
    %3407 = vmatpush1.bf16.msra.mxu0 %v2727
    %3408 = vmatprep.mubr.bf16.mxu0 %v688
    %3409 = vmatmul.mubr.bf16.gmra.mrb[0].mxu0 %v687
    %v3410 = vpop.f32.mrb[0].mxu0
    %v3411 = vadd.f32 %v3370, %v3410
    %v3412 = vpop.f32.mrb[0].mxu0
    %v3413 = vadd.f32 %v3372, %v3412
    %v3414 = vpop.f32.mrb[0].mxu0
    %v3415 = vpop.f32.mrb[0].mxu0
    %3416 = vdwg.mxu0
    %3417 = vmatprep.subr.bf16.mxu0 %v2234
    %3418 = vmatpush1.bf16.msra.mxu0 %v2233
    %3419 = vmatprep.subr.bf16.mxu0 %v2250
    %3420 = vmatpush1.bf16.msra.mxu0 %v2249
    %3421 = vmatprep.subr.bf16.mxu0 %v2266
    %3422 = vmatpush1.bf16.msra.mxu0 %v2265
    %3423 = vmatprep.subr.bf16.mxu0 %v2282
    %3424 = vmatpush1.bf16.msra.mxu0 %v2281
    %3425 = vmatprep.subr.bf16.mxu0 %v2298
    %3426 = vmatpush1.bf16.msra.mxu0 %v2297
    %3427 = vmatprep.subr.bf16.mxu0 %v2314
    %3428 = vmatpush1.bf16.msra.mxu0 %v2313
    %3429 = vmatprep.subr.bf16.mxu0 %v2330
    %3430 = vmatpush1.bf16.msra.mxu0 %v2329
    %3431 = vmatprep.subr.bf16.mxu0 %v2346
    %3432 = vmatpush1.bf16.msra.mxu0 %v2345
    %3433 = vmatprep.subr.bf16.mxu0 %v2362
    %3434 = vmatpush1.bf16.msra.mxu0 %v2361
    %3435 = vmatprep.subr.bf16.mxu0 %v2378
    %3436 = vmatpush1.bf16.msra.mxu0 %v2377
    %3437 = vmatprep.subr.bf16.mxu0 %v2394
    %3438 = vmatpush1.bf16.msra.mxu0 %v2393
    %3439 = vmatprep.subr.bf16.mxu0 %v2410
    %3440 = vmatpush1.bf16.msra.mxu0 %v2409
    %3441 = vmatprep.subr.bf16.mxu0 %v2426
    %3442 = vmatpush1.bf16.msra.mxu0 %v2425
    %3443 = vmatprep.subr.bf16.mxu0 %v2442
    %3444 = vmatpush1.bf16.msra.mxu0 %v2441
    %3445 = vmatprep.subr.bf16.mxu0 %v2458
    %3446 = vmatpush1.bf16.msra.mxu0 %v2457
    %3447 = vmatprep.subr.bf16.mxu0 %v2474
    %3448 = vmatpush1.bf16.msra.mxu0 %v2473
    %3449 = vmatprep.mubr.bf16.mxu0 %v686
    %3450 = vmatmul.mubr.bf16.gmra.mrb[0].mxu0 %v685
    %v3451 = vpop.f32.mrb[0].mxu0
    %v3452 = vadd.f32 %v618, %v3451
    %v3453 = vpop.f32.mrb[0].mxu0
    %v3454 = vadd.f32 %v622, %v3453
    %v3455 = vpop.f32.mrb[0].mxu0
    %v3456 = vpop.f32.mrb[0].mxu0
    %3457 = vdwg.mxu0
    %3458 = vmatprep.subr.bf16.mxu0 %v2490
    %3459 = vmatpush1.bf16.msra.mxu0 %v2489
    %3460 = vmatprep.subr.bf16.mxu0 %v2506
    %3461 = vmatpush1.bf16.msra.mxu0 %v2505
    %3462 = vmatprep.subr.bf16.mxu0 %v2522
    %3463 = vmatpush1.bf16.msra.mxu0 %v2521
    %3464 = vmatprep.subr.bf16.mxu0 %v2538
    %3465 = vmatpush1.bf16.msra.mxu0 %v2537
    %3466 = vmatprep.subr.bf16.mxu0 %v2554
    %3467 = vmatpush1.bf16.msra.mxu0 %v2553
    %3468 = vmatprep.subr.bf16.mxu0 %v2570
    %3469 = vmatpush1.bf16.msra.mxu0 %v2569
    %3470 = vmatprep.subr.bf16.mxu0 %v2586
    %3471 = vmatpush1.bf16.msra.mxu0 %v2585
    %3472 = vmatprep.subr.bf16.mxu0 %v2602
    %3473 = vmatpush1.bf16.msra.mxu0 %v2601
    %3474 = vmatprep.subr.bf16.mxu0 %v2618
    %3475 = vmatpush1.bf16.msra.mxu0 %v2617
    %3476 = vmatprep.subr.bf16.mxu0 %v2634
    %3477 = vmatpush1.bf16.msra.mxu0 %v2633
    %3478 = vmatprep.subr.bf16.mxu0 %v2650
    %3479 = vmatpush1.bf16.msra.mxu0 %v2649
    %3480 = vmatprep.subr.bf16.mxu0 %v2666
    %3481 = vmatpush1.bf16.msra.mxu0 %v2665
    %3482 = vmatprep.subr.bf16.mxu0 %v2682
    %3483 = vmatpush1.bf16.msra.mxu0 %v2681
    %3484 = vmatprep.subr.bf16.mxu0 %v2698
    %3485 = vmatpush1.bf16.msra.mxu0 %v2697
    %3486 = vmatprep.subr.bf16.mxu0 %v2714
    %3487 = vmatpush1.bf16.msra.mxu0 %v2713
    %3488 = vmatprep.subr.bf16.mxu0 %v2730
    %3489 = vmatpush1.bf16.msra.mxu0 %v2729
    %3490 = vmatprep.mubr.bf16.mxu0 %v688
    %3491 = vmatmul.mubr.bf16.gmra.mrb[0].mxu0 %v687
    %v3492 = vpop.f32.mrb[0].mxu0
    %v3493 = vadd.f32 %v3452, %v3492
    %v3494 = vpop.f32.mrb[0].mxu0
    %v3495 = vadd.f32 %v3454, %v3494
    %v3496 = vpop.f32.mrb[0].mxu0
    %v3497 = vpop.f32.mrb[0].mxu0
    %3498 = vdwg.mxu0
    %3499 = vmatprep.subr.bf16.mxu0 %v2236
    %3500 = vmatpush1.bf16.msra.mxu0 %v2235
    %3501 = vmatprep.subr.bf16.mxu0 %v2252
    %3502 = vmatpush1.bf16.msra.mxu0 %v2251
    %3503 = vmatprep.subr.bf16.mxu0 %v2268
    %3504 = vmatpush1.bf16.msra.mxu0 %v2267
    %3505 = vmatprep.subr.bf16.mxu0 %v2284
    %3506 = vmatpush1.bf16.msra.mxu0 %v2283
    %3507 = vmatprep.subr.bf16.mxu0 %v2300
    %3508 = vmatpush1.bf16.msra.mxu0 %v2299
    %3509 = vmatprep.subr.bf16.mxu0 %v2316
    %3510 = vmatpush1.bf16.msra.mxu0 %v2315
    %3511 = vmatprep.subr.bf16.mxu0 %v2332
    %3512 = vmatpush1.bf16.msra.mxu0 %v2331
    %3513 = vmatprep.subr.bf16.mxu0 %v2348
    %3514 = vmatpush1.bf16.msra.mxu0 %v2347
    %3515 = vmatprep.subr.bf16.mxu0 %v2364
    %3516 = vmatpush1.bf16.msra.mxu0 %v2363
    %3517 = vmatprep.subr.bf16.mxu0 %v2380
    %3518 = vmatpush1.bf16.msra.mxu0 %v2379
    %3519 = vmatprep.subr.bf16.mxu0 %v2396
    %3520 = vmatpush1.bf16.msra.mxu0 %v2395
    %3521 = vmatprep.subr.bf16.mxu0 %v2412
    %3522 = vmatpush1.bf16.msra.mxu0 %v2411
    %3523 = vmatprep.subr.bf16.mxu0 %v2428
    %3524 = vmatpush1.bf16.msra.mxu0 %v2427
    %3525 = vmatprep.subr.bf16.mxu0 %v2444
    %3526 = vmatpush1.bf16.msra.mxu0 %v2443
    %3527 = vmatprep.subr.bf16.mxu0 %v2460
    %3528 = vmatpush1.bf16.msra.mxu0 %v2459
    %3529 = vmatprep.subr.bf16.mxu0 %v2476
    %3530 = vmatpush1.bf16.msra.mxu0 %v2475
    %3531 = vmatprep.mubr.bf16.mxu0 %v686
    %3532 = vmatmul.mubr.bf16.gmra.mrb[0].mxu0 %v685
    %v3533 = vpop.f32.mrb[0].mxu0
    %v3534 = vadd.f32 %v626, %v3533
    %v3535 = vpop.f32.mrb[0].mxu0
    %v3536 = vadd.f32 %v630, %v3535
    %v3537 = vpop.f32.mrb[0].mxu0
    %v3538 = vpop.f32.mrb[0].mxu0
    %3539 = vdwg.mxu0
    %3540 = vmatprep.subr.bf16.mxu0 %v2492
    %3541 = vmatpush1.bf16.msra.mxu0 %v2491
    %3542 = vmatprep.subr.bf16.mxu0 %v2508
    %3543 = vmatpush1.bf16.msra.mxu0 %v2507
    %3544 = vmatprep.subr.bf16.mxu0 %v2524
    %3545 = vmatpush1.bf16.msra.mxu0 %v2523
    %3546 = vmatprep.subr.bf16.mxu0 %v2540
    %3547 = vmatpush1.bf16.msra.mxu0 %v2539
    %3548 = vmatprep.subr.bf16.mxu0 %v2556
    %3549 = vmatpush1.bf16.msra.mxu0 %v2555
    %3550 = vmatprep.subr.bf16.mxu0 %v2572
    %3551 = vmatpush1.bf16.msra.mxu0 %v2571
    %3552 = vmatprep.subr.bf16.mxu0 %v2588
    %3553 = vmatpush1.bf16.msra.mxu0 %v2587
    %3554 = vmatprep.subr.bf16.mxu0 %v2604
    %3555 = vmatpush1.bf16.msra.mxu0 %v2603
    %3556 = vmatprep.subr.bf16.mxu0 %v2620
    %3557 = vmatpush1.bf16.msra.mxu0 %v2619
    %3558 = vmatprep.subr.bf16.mxu0 %v2636
    %3559 = vmatpush1.bf16.msra.mxu0 %v2635
    %3560 = vmatprep.subr.bf16.mxu0 %v2652
    %3561 = vmatpush1.bf16.msra.mxu0 %v2651
    %3562 = vmatprep.subr.bf16.mxu0 %v2668
    %3563 = vmatpush1.bf16.msra.mxu0 %v2667
    %3564 = vmatprep.subr.bf16.mxu0 %v2684
    %3565 = vmatpush1.bf16.msra.mxu0 %v2683
    %3566 = vmatprep.subr.bf16.mxu0 %v2700
    %3567 = vmatpush1.bf16.msra.mxu0 %v2699
    %3568 = vmatprep.subr.bf16.mxu0 %v2716
    %3569 = vmatpush1.bf16.msra.mxu0 %v2715
    %3570 = vmatprep.subr.bf16.mxu0 %v2732
    %3571 = vmatpush1.bf16.msra.mxu0 %v2731
    %3572 = vmatprep.mubr.bf16.mxu0 %v688
    %3573 = vmatmul.mubr.bf16.gmra.mrb[0].mxu0 %v687
    %v3574 = vpop.f32.mrb[0].mxu0
    %v3575 = vadd.f32 %v3534, %v3574
    %v3576 = vpop.f32.mrb[0].mxu0
    %v3577 = vadd.f32 %v3536, %v3576
    %v3578 = vpop.f32.mrb[0].mxu0
    %v3579 = vpop.f32.mrb[0].mxu0
    %3580 = vdwg.mxu0
    %3581 = vmatprep.subr.bf16.mxu0 %v2238
    %3582 = vmatpush1.bf16.msra.mxu0 %v2237
    %3583 = vmatprep.subr.bf16.mxu0 %v2254
    %3584 = vmatpush1.bf16.msra.mxu0 %v2253
    %3585 = vmatprep.subr.bf16.mxu0 %v2270
    %3586 = vmatpush1.bf16.msra.mxu0 %v2269
    %3587 = vmatprep.subr.bf16.mxu0 %v2286
    %3588 = vmatpush1.bf16.msra.mxu0 %v2285
    %3589 = vmatprep.subr.bf16.mxu0 %v2302
    %3590 = vmatpush1.bf16.msra.mxu0 %v2301
    %3591 = vmatprep.subr.bf16.mxu0 %v2318
    %3592 = vmatpush1.bf16.msra.mxu0 %v2317
    %3593 = vmatprep.subr.bf16.mxu0 %v2334
    %3594 = vmatpush1.bf16.msra.mxu0 %v2333
    %3595 = vmatprep.subr.bf16.mxu0 %v2350
    %3596 = vmatpush1.bf16.msra.mxu0 %v2349
    %3597 = vmatprep.subr.bf16.mxu0 %v2366
    %3598 = vmatpush1.bf16.msra.mxu0 %v2365
    %3599 = vmatprep.subr.bf16.mxu0 %v2382
    %3600 = vmatpush1.bf16.msra.mxu0 %v2381
    %3601 = vmatprep.subr.bf16.mxu0 %v2398
    %3602 = vmatpush1.bf16.msra.mxu0 %v2397
    %3603 = vmatprep.subr.bf16.mxu0 %v2414
    %3604 = vmatpush1.bf16.msra.mxu0 %v2413
    %3605 = vmatprep.subr.bf16.mxu0 %v2430
    %3606 = vmatpush1.bf16.msra.mxu0 %v2429
    %3607 = vmatprep.subr.bf16.mxu0 %v2446
    %3608 = vmatpush1.bf16.msra.mxu0 %v2445
    %3609 = vmatprep.subr.bf16.mxu0 %v2462
    %3610 = vmatpush1.bf16.msra.mxu0 %v2461
    %3611 = vmatprep.subr.bf16.mxu0 %v2478
    %3612 = vmatpush1.bf16.msra.mxu0 %v2477
    %3613 = vmatprep.mubr.bf16.mxu0 %v686
    %3614 = vmatmul.mubr.bf16.gmra.mrb[0].mxu0 %v685
    %v3615 = vpop.f32.mrb[0].mxu0
    %v3616 = vadd.f32 %v634, %v3615
    %v3617 = vpop.f32.mrb[0].mxu0
    %v3618 = vadd.f32 %v638, %v3617
    %v3619 = vpop.f32.mrb[0].mxu0
    %v3620 = vpop.f32.mrb[0].mxu0
    %3621 = vdwg.mxu0
    %3622 = vmatprep.subr.bf16.mxu0 %v2494
    %3623 = vmatpush1.bf16.msra.mxu0 %v2493
    %3624 = vmatprep.subr.bf16.mxu0 %v2510
    %3625 = vmatpush1.bf16.msra.mxu0 %v2509
    %3626 = vmatprep.subr.bf16.mxu0 %v2526
    %3627 = vmatpush1.bf16.msra.mxu0 %v2525
    %3628 = vmatprep.subr.bf16.mxu0 %v2542
    %3629 = vmatpush1.bf16.msra.mxu0 %v2541
    %3630 = vmatprep.subr.bf16.mxu0 %v2558
    %3631 = vmatpush1.bf16.msra.mxu0 %v2557
    %3632 = vmatprep.subr.bf16.mxu0 %v2574
    %3633 = vmatpush1.bf16.msra.mxu0 %v2573
    %3634 = vmatprep.subr.bf16.mxu0 %v2590
    %3635 = vmatpush1.bf16.msra.mxu0 %v2589
    %3636 = vmatprep.subr.bf16.mxu0 %v2606
    %3637 = vmatpush1.bf16.msra.mxu0 %v2605
    %3638 = vmatprep.subr.bf16.mxu0 %v2622
    %3639 = vmatpush1.bf16.msra.mxu0 %v2621
    %3640 = vmatprep.subr.bf16.mxu0 %v2638
    %3641 = vmatpush1.bf16.msra.mxu0 %v2637
    %3642 = vmatprep.subr.bf16.mxu0 %v2654
    %3643 = vmatpush1.bf16.msra.mxu0 %v2653
    %3644 = vmatprep.subr.bf16.mxu0 %v2670
    %3645 = vmatpush1.bf16.msra.mxu0 %v2669
    %3646 = vmatprep.subr.bf16.mxu0 %v2686
    %3647 = vmatpush1.bf16.msra.mxu0 %v2685
    %3648 = vmatprep.subr.bf16.mxu0 %v2702
    %3649 = vmatpush1.bf16.msra.mxu0 %v2701
    %3650 = vmatprep.subr.bf16.mxu0 %v2718
    %3651 = vmatpush1.bf16.msra.mxu0 %v2717
    %3652 = vmatprep.subr.bf16.mxu0 %v2734
    %3653 = vmatpush1.bf16.msra.mxu0 %v2733
    %3654 = vmatprep.mubr.bf16.mxu0 %v688
    %3655 = vmatmul.mubr.bf16.gmra.mrb[0].mxu0 %v687
    %v3656 = vpop.f32.mrb[0].mxu0
    %v3657 = vadd.f32 %v3616, %v3656
    %v3658 = vpop.f32.mrb[0].mxu0
    %v3659 = vadd.f32 %v3618, %v3658
    %v3660 = vpop.f32.mrb[0].mxu0
    %v3661 = vpop.f32.mrb[0].mxu0
    %3662 = vdwg.mxu0
    %3663 = vmatprep.subr.bf16.mxu0 %v2240
    %3664 = vmatpush1.bf16.msra.mxu0 %v2239
    %3665 = vmatprep.subr.bf16.mxu0 %v2256
    %3666 = vmatpush1.bf16.msra.mxu0 %v2255
    %3667 = vmatprep.subr.bf16.mxu0 %v2272
    %3668 = vmatpush1.bf16.msra.mxu0 %v2271
    %3669 = vmatprep.subr.bf16.mxu0 %v2288
    %3670 = vmatpush1.bf16.msra.mxu0 %v2287
    %3671 = vmatprep.subr.bf16.mxu0 %v2304
    %3672 = vmatpush1.bf16.msra.mxu0 %v2303
    %3673 = vmatprep.subr.bf16.mxu0 %v2320
    %3674 = vmatpush1.bf16.msra.mxu0 %v2319
    %3675 = vmatprep.subr.bf16.mxu0 %v2336
    %3676 = vmatpush1.bf16.msra.mxu0 %v2335
    %3677 = vmatprep.subr.bf16.mxu0 %v2352
    %3678 = vmatpush1.bf16.msra.mxu0 %v2351
    %3679 = vmatprep.subr.bf16.mxu0 %v2368
    %3680 = vmatpush1.bf16.msra.mxu0 %v2367
    %3681 = vmatprep.subr.bf16.mxu0 %v2384
    %3682 = vmatpush1.bf16.msra.mxu0 %v2383
    %3683 = vmatprep.subr.bf16.mxu0 %v2400
    %3684 = vmatpush1.bf16.msra.mxu0 %v2399
    %3685 = vmatprep.subr.bf16.mxu0 %v2416
    %3686 = vmatpush1.bf16.msra.mxu0 %v2415
    %3687 = vmatprep.subr.bf16.mxu0 %v2432
    %3688 = vmatpush1.bf16.msra.mxu0 %v2431
    %3689 = vmatprep.subr.bf16.mxu0 %v2448
    %3690 = vmatpush1.bf16.msra.mxu0 %v2447
    %3691 = vmatprep.subr.bf16.mxu0 %v2464
    %3692 = vmatpush1.bf16.msra.mxu0 %v2463
    %3693 = vmatprep.subr.bf16.mxu0 %v2480
    %3694 = vmatpush1.bf16.msra.mxu0 %v2479
    %3695 = vmatprep.mubr.bf16.mxu0 %v686
    %3696 = vmatmul.mubr.bf16.gmra.mrb[0].mxu0 %v685
    %v3697 = vpop.f32.mrb[0].mxu0
    %v3698 = vadd.f32 %v642, %v3697
    %v3699 = vpop.f32.mrb[0].mxu0
    %v3700 = vadd.f32 %v646, %v3699
    %v3701 = vpop.f32.mrb[0].mxu0
    %v3702 = vpop.f32.mrb[0].mxu0
    %3703 = vdwg.mxu0
    %3704 = vmatprep.subr.bf16.mxu0 %v2496
    %3705 = vmatpush1.bf16.msra.mxu0 %v2495
    %3706 = vmatprep.subr.bf16.mxu0 %v2512
    %3707 = vmatpush1.bf16.msra.mxu0 %v2511
    %3708 = vmatprep.subr.bf16.mxu0 %v2528
    %3709 = vmatpush1.bf16.msra.mxu0 %v2527
    %3710 = vmatprep.subr.bf16.mxu0 %v2544
    %3711 = vmatpush1.bf16.msra.mxu0 %v2543
    %3712 = vmatprep.subr.bf16.mxu0 %v2560
    %3713 = vmatpush1.bf16.msra.mxu0 %v2559
    %3714 = vmatprep.subr.bf16.mxu0 %v2576
    %3715 = vmatpush1.bf16.msra.mxu0 %v2575
    %3716 = vmatprep.subr.bf16.mxu0 %v2592
    %3717 = vmatpush1.bf16.msra.mxu0 %v2591
    %3718 = vmatprep.subr.bf16.mxu0 %v2608
    %3719 = vmatpush1.bf16.msra.mxu0 %v2607
    %3720 = vmatprep.subr.bf16.mxu0 %v2624
    %3721 = vmatpush1.bf16.msra.mxu0 %v2623
    %3722 = vmatprep.subr.bf16.mxu0 %v2640
    %3723 = vmatpush1.bf16.msra.mxu0 %v2639
    %3724 = vmatprep.subr.bf16.mxu0 %v2656
    %3725 = vmatpush1.bf16.msra.mxu0 %v2655
    %3726 = vmatprep.subr.bf16.mxu0 %v2672
    %3727 = vmatpush1.bf16.msra.mxu0 %v2671
    %3728 = vmatprep.subr.bf16.mxu0 %v2688
    %3729 = vmatpush1.bf16.msra.mxu0 %v2687
    %3730 = vmatprep.subr.bf16.mxu0 %v2704
    %3731 = vmatpush1.bf16.msra.mxu0 %v2703
    %3732 = vmatprep.subr.bf16.mxu0 %v2720
    %3733 = vmatpush1.bf16.msra.mxu0 %v2719
    %3734 = vmatprep.subr.bf16.mxu0 %v2736
    %3735 = vmatpush1.bf16.msra.mxu0 %v2735
    %3736 = vmatprep.mubr.bf16.mxu0 %v688
    %3737 = vmatmul.mubr.bf16.gmra.mrb[0].mxu0 %v687
    %v3738 = vpop.f32.mrb[0].mxu0
    %v3739 = vadd.f32 %v3698, %v3738
    %v3740 = vpop.f32.mrb[0].mxu0
    %v3741 = vadd.f32 %v3700, %v3740
    %v3742 = vpop.f32.mrb[0].mxu0
    %v3743 = vpop.f32.mrb[0].mxu0
    %3744 = vdwg.mxu0
    %3745 = vmatprep.subr.bf16.mxu0 %v2242
    %3746 = vmatpush1.bf16.msra.mxu0 %v2241
    %3747 = vmatprep.subr.bf16.mxu0 %v2258
    %3748 = vmatpush1.bf16.msra.mxu0 %v2257
    %3749 = vmatprep.subr.bf16.mxu0 %v2274
    %3750 = vmatpush1.bf16.msra.mxu0 %v2273
    %3751 = vmatprep.subr.bf16.mxu0 %v2290
    %3752 = vmatpush1.bf16.msra.mxu0 %v2289
    %3753 = vmatprep.subr.bf16.mxu0 %v2306
    %3754 = vmatpush1.bf16.msra.mxu0 %v2305
    %3755 = vmatprep.subr.bf16.mxu0 %v2322
    %3756 = vmatpush1.bf16.msra.mxu0 %v2321
    %3757 = vmatprep.subr.bf16.mxu0 %v2338
    %3758 = vmatpush1.bf16.msra.mxu0 %v2337
    %3759 = vmatprep.subr.bf16.mxu0 %v2354
    %3760 = vmatpush1.bf16.msra.mxu0 %v2353
    %3761 = vmatprep.subr.bf16.mxu0 %v2370
    %3762 = vmatpush1.bf16.msra.mxu0 %v2369
    %3763 = vmatprep.subr.bf16.mxu0 %v2386
    %3764 = vmatpush1.bf16.msra.mxu0 %v2385
    %3765 = vmatprep.subr.bf16.mxu0 %v2402
    %3766 = vmatpush1.bf16.msra.mxu0 %v2401
    %3767 = vmatprep.subr.bf16.mxu0 %v2418
    %3768 = vmatpush1.bf16.msra.mxu0 %v2417
    %3769 = vmatprep.subr.bf16.mxu0 %v2434
    %3770 = vmatpush1.bf16.msra.mxu0 %v2433
    %3771 = vmatprep.subr.bf16.mxu0 %v2450
    %3772 = vmatpush1.bf16.msra.mxu0 %v2449
    %3773 = vmatprep.subr.bf16.mxu0 %v2466
    %3774 = vmatpush1.bf16.msra.mxu0 %v2465
    %3775 = vmatprep.subr.bf16.mxu0 %v2482
    %3776 = vmatpush1.bf16.msra.mxu0 %v2481
    %3777 = vmatprep.mubr.bf16.mxu0 %v686
    %3778 = vmatmul.mubr.bf16.gmra.mrb[0].mxu0 %v685
    %v3779 = vpop.f32.mrb[0].mxu0
    %v3780 = vadd.f32 %v650, %v3779
    %v3781 = vpop.f32.mrb[0].mxu0
    %v3782 = vadd.f32 %v654, %v3781
    %v3783 = vpop.f32.mrb[0].mxu0
    %v3784 = vpop.f32.mrb[0].mxu0
    %3785 = vdwg.mxu0
    %3786 = vmatprep.subr.bf16.mxu0 %v2498
    %3787 = vmatpush1.bf16.msra.mxu0 %v2497
    %3788 = vmatprep.subr.bf16.mxu0 %v2514
    %3789 = vmatpush1.bf16.msra.mxu0 %v2513
    %3790 = vmatprep.subr.bf16.mxu0 %v2530
    %3791 = vmatpush1.bf16.msra.mxu0 %v2529
    %3792 = vmatprep.subr.bf16.mxu0 %v2546
    %3793 = vmatpush1.bf16.msra.mxu0 %v2545
    %3794 = vmatprep.subr.bf16.mxu0 %v2562
    %3795 = vmatpush1.bf16.msra.mxu0 %v2561
    %3796 = vmatprep.subr.bf16.mxu0 %v2578
    %3797 = vmatpush1.bf16.msra.mxu0 %v2577
    %3798 = vmatprep.subr.bf16.mxu0 %v2594
    %3799 = vmatpush1.bf16.msra.mxu0 %v2593
    %3800 = vmatprep.subr.bf16.mxu0 %v2610
    %3801 = vmatpush1.bf16.msra.mxu0 %v2609
    %3802 = vmatprep.subr.bf16.mxu0 %v2626
    %3803 = vmatpush1.bf16.msra.mxu0 %v2625
    %3804 = vmatprep.subr.bf16.mxu0 %v2642
    %3805 = vmatpush1.bf16.msra.mxu0 %v2641
    %3806 = vmatprep.subr.bf16.mxu0 %v2658
    %3807 = vmatpush1.bf16.msra.mxu0 %v2657
    %3808 = vmatprep.subr.bf16.mxu0 %v2674
    %3809 = vmatpush1.bf16.msra.mxu0 %v2673
    %3810 = vmatprep.subr.bf16.mxu0 %v2690
    %3811 = vmatpush1.bf16.msra.mxu0 %v2689
    %3812 = vmatprep.subr.bf16.mxu0 %v2706
    %3813 = vmatpush1.bf16.msra.mxu0 %v2705
    %3814 = vmatprep.subr.bf16.mxu0 %v2722
    %3815 = vmatpush1.bf16.msra.mxu0 %v2721
    %3816 = vmatprep.subr.bf16.mxu0 %v2738
    %3817 = vmatpush1.bf16.msra.mxu0 %v2737
    %3818 = vmatprep.mubr.bf16.mxu0 %v688
    %3819 = vmatmul.mubr.bf16.gmra.mrb[0].mxu0 %v687
    %v3820 = vpop.f32.mrb[0].mxu0
    %v3821 = vadd.f32 %v3780, %v3820
    %v3822 = vpop.f32.mrb[0].mxu0
    %v3823 = vadd.f32 %v3782, %v3822
    %v3824 = vpop.f32.mrb[0].mxu0
    %v3825 = vpop.f32.mrb[0].mxu0
    %3826 = vdwg.mxu0
    %3827 = vmatprep.subr.bf16.mxu0 %v2244
    %3828 = vmatpush1.bf16.msra.mxu0 %v2243
    %3829 = vmatprep.subr.bf16.mxu0 %v2260
    %3830 = vmatpush1.bf16.msra.mxu0 %v2259
    %3831 = vmatprep.subr.bf16.mxu0 %v2276
    %3832 = vmatpush1.bf16.msra.mxu0 %v2275
    %3833 = vmatprep.subr.bf16.mxu0 %v2292
    %3834 = vmatpush1.bf16.msra.mxu0 %v2291
    %3835 = vmatprep.subr.bf16.mxu0 %v2308
    %3836 = vmatpush1.bf16.msra.mxu0 %v2307
    %3837 = vmatprep.subr.bf16.mxu0 %v2324
    %3838 = vmatpush1.bf16.msra.mxu0 %v2323
    %3839 = vmatprep.subr.bf16.mxu0 %v2340
    %3840 = vmatpush1.bf16.msra.mxu0 %v2339
    %3841 = vmatprep.subr.bf16.mxu0 %v2356
    %3842 = vmatpush1.bf16.msra.mxu0 %v2355
    %3843 = vmatprep.subr.bf16.mxu0 %v2372
    %3844 = vmatpush1.bf16.msra.mxu0 %v2371
    %3845 = vmatprep.subr.bf16.mxu0 %v2388
    %3846 = vmatpush1.bf16.msra.mxu0 %v2387
    %3847 = vmatprep.subr.bf16.mxu0 %v2404
    %3848 = vmatpush1.bf16.msra.mxu0 %v2403
    %3849 = vmatprep.subr.bf16.mxu0 %v2420
    %3850 = vmatpush1.bf16.msra.mxu0 %v2419
    %3851 = vmatprep.subr.bf16.mxu0 %v2436
    %3852 = vmatpush1.bf16.msra.mxu0 %v2435
    %3853 = vmatprep.subr.bf16.mxu0 %v2452
    %3854 = vmatpush1.bf16.msra.mxu0 %v2451
    %3855 = vmatprep.subr.bf16.mxu0 %v2468
    %3856 = vmatpush1.bf16.msra.mxu0 %v2467
    %3857 = vmatprep.subr.bf16.mxu0 %v2484
    %3858 = vmatpush1.bf16.msra.mxu0 %v2483
    %3859 = vmatprep.mubr.bf16.mxu0 %v686
    %3860 = vmatmul.mubr.bf16.gmra.mrb[0].mxu0 %v685
    %v3861 = vpop.f32.mrb[0].mxu0
    %v3862 = vadd.f32 %v658, %v3861
    %v3863 = vpop.f32.mrb[0].mxu0
    %v3864 = vadd.f32 %v662, %v3863
    %v3865 = vpop.f32.mrb[0].mxu0
    %v3866 = vpop.f32.mrb[0].mxu0
    %3867 = vdwg.mxu0
    %3868 = vmatprep.subr.bf16.mxu0 %v2500
    %3869 = vmatpush1.bf16.msra.mxu0 %v2499
    %3870 = vmatprep.subr.bf16.mxu0 %v2516
    %3871 = vmatpush1.bf16.msra.mxu0 %v2515
    %3872 = vmatprep.subr.bf16.mxu0 %v2532
    %3873 = vmatpush1.bf16.msra.mxu0 %v2531
    %3874 = vmatprep.subr.bf16.mxu0 %v2548
    %3875 = vmatpush1.bf16.msra.mxu0 %v2547
    %3876 = vmatprep.subr.bf16.mxu0 %v2564
    %3877 = vmatpush1.bf16.msra.mxu0 %v2563
    %3878 = vmatprep.subr.bf16.mxu0 %v2580
    %3879 = vmatpush1.bf16.msra.mxu0 %v2579
    %3880 = vmatprep.subr.bf16.mxu0 %v2596
    %3881 = vmatpush1.bf16.msra.mxu0 %v2595
    %3882 = vmatprep.subr.bf16.mxu0 %v2612
    %3883 = vmatpush1.bf16.msra.mxu0 %v2611
    %3884 = vmatprep.subr.bf16.mxu0 %v2628
    %3885 = vmatpush1.bf16.msra.mxu0 %v2627
    %3886 = vmatprep.subr.bf16.mxu0 %v2644
    %3887 = vmatpush1.bf16.msra.mxu0 %v2643
    %3888 = vmatprep.subr.bf16.mxu0 %v2660
    %3889 = vmatpush1.bf16.msra.mxu0 %v2659
    %3890 = vmatprep.subr.bf16.mxu0 %v2676
    %3891 = vmatpush1.bf16.msra.mxu0 %v2675
    %3892 = vmatprep.subr.bf16.mxu0 %v2692
    %3893 = vmatpush1.bf16.msra.mxu0 %v2691
    %3894 = vmatprep.subr.bf16.mxu0 %v2708
    %3895 = vmatpush1.bf16.msra.mxu0 %v2707
    %3896 = vmatprep.subr.bf16.mxu0 %v2724
    %3897 = vmatpush1.bf16.msra.mxu0 %v2723
    %3898 = vmatprep.subr.bf16.mxu0 %v2740
    %3899 = vmatpush1.bf16.msra.mxu0 %v2739
    %3900 = vmatprep.mubr.bf16.mxu0 %v688
    %3901 = vmatmul.mubr.bf16.gmra.mrb[0].mxu0 %v687
    %v3902 = vpop.f32.mrb[0].mxu0
    %v3903 = vadd.f32 %v3862, %v3902
    %v3904 = vpop.f32.mrb[0].mxu0
    %v3905 = vadd.f32 %v3864, %v3904
    %v3906 = vpop.f32.mrb[0].mxu0
    %v3907 = vpop.f32.mrb[0].mxu0
    %3908 = vdwg.mxu0
    %v3909 = vmax.f32 %v3329, 0.0
    %v3910 = vmax.f32 %v3331, 0.0
    %v3911 = vmax.f32 %v3411, 0.0
    %v3912 = vmax.f32 %v3413, 0.0
    %v3913 = vmax.f32 %v3493, 0.0
    %v3914 = vmax.f32 %v3495, 0.0
    %v3915 = vmax.f32 %v3575, 0.0
    %v3916 = vmax.f32 %v3577, 0.0
    %v3917 = vmax.f32 %v3657, 0.0
    %v3918 = vmax.f32 %v3659, 0.0
    %v3919 = vmax.f32 %v3739, 0.0
    %v3920 = vmax.f32 %v3741, 0.0
    %v3921 = vmax.f32 %v3821, 0.0
    %v3922 = vmax.f32 %v3823, 0.0
    %v3923 = vmax.f32 %v3903, 0.0
    %v3924 = vmax.f32 %v3905, 0.0
    %3925 = vst [vmem:[%s7] sm:$0xff] %v3909
    %3926 = vst [vmem:[%s7 + $0x8] sm:$0xff] %v3910
    %3927 = vst [vmem:[%s7 + $0x10] sm:$0xff] %v3911
    %3928 = vst [vmem:[%s7 + $0x18] sm:$0xff] %v3912
    %3929 = vst [vmem:[%s7 + $0x20] sm:$0xff] %v3913
    %3930 = vst [vmem:[%s7 + $0x28] sm:$0xff] %v3914
    %3931 = vst [vmem:[%s7 + $0x30] sm:$0xff] %v3915
    %3932 = vst [vmem:[%s7 + $0x38] sm:$0xff] %v3916
    %3933 = vst [vmem:[%s7 + $0x40] sm:$0xff] %v3917
    %3934 = vst [vmem:[%s7 + $0x48] sm:$0xff] %v3918
    %3935 = vst [vmem:[%s7 + $0x50] sm:$0xff] %v3919
    %3936 = vst [vmem:[%s7 + $0x58] sm:$0xff] %v3920
    %3937 = vst [vmem:[%s7 + $0x60] sm:$0xff] %v3921
    %3938 = vst [vmem:[%s7 + $0x68] sm:$0xff] %v3922
    %3939 = vst [vmem:[%s7 + $0x70] sm:$0xff] %v3923
    %3940 = vst [vmem:[%s7 + $0x78] sm:$0xff] %v3924
    %v3941 = vld [vmem:[%s1] sm:$0xff]
    %v3942 = vld [vmem:[%s1 + $0x8] sm:$0xff]
    %v3943 = vld [vmem:[#allocation4] sm:$0xff]
    %v3944 = vld [vmem:[#allocation4 + $0x8] sm:$0xff]
    %v3945 = vld [vmem:[#allocation4 + $0x10] sm:$0xff]
    %v3946 = vld [vmem:[#allocation4 + $0x18] sm:$0xff]
    %v3947 = vld [vmem:[#allocation4 + $0x20] sm:$0xff]
    %v3948 = vld [vmem:[#allocation4 + $0x28] sm:$0xff]
    %v3949 = vld [vmem:[#allocation4 + $0x30] sm:$0xff]
    %v3950 = vld [vmem:[#allocation4 + $0x38] sm:$0xff]
    %v3951 = vld [vmem:[#allocation4 + $0x40] sm:$0xff]
    %v3952 = vld [vmem:[#allocation4 + $0x48] sm:$0xff]
    %v3953 = vld [vmem:[#allocation4 + $0x50] sm:$0xff]
    %v3954 = vld [vmem:[#allocation4 + $0x58] sm:$0xff]
    %v3955 = vld [vmem:[#allocation4 + $0x60] sm:$0xff]
    %v3956 = vld [vmem:[#allocation4 + $0x68] sm:$0xff]
    %v3957 = vld [vmem:[#allocation4 + $0x70] sm:$0xff]
    %v3958 = vld [vmem:[#allocation4 + $0x78] sm:$0xff]
    %v3959 = vld [vmem:[#allocation4 + $0x80] sm:$0xff]
    %v3960 = vld [vmem:[#allocation4 + $0x88] sm:$0xff]
    %v3961 = vld [vmem:[#allocation4 + $0x90] sm:$0xff]
    %v3962 = vld [vmem:[#allocation4 + $0x98] sm:$0xff]
    %v3963 = vld [vmem:[#allocation4 + $0xa0] sm:$0xff]
    %v3964 = vld [vmem:[#allocation4 + $0xa8] sm:$0xff]
    %v3965 = vld [vmem:[#allocation4 + $0xb0] sm:$0xff]
    %v3966 = vld [vmem:[#allocation4 + $0xb8] sm:$0xff]
    %v3967 = vld [vmem:[#allocation4 + $0xc0] sm:$0xff]
    %v3968 = vld [vmem:[#allocation4 + $0xc8] sm:$0xff]
    %v3969 = vld [vmem:[#allocation4 + $0xd0] sm:$0xff]
    %v3970 = vld [vmem:[#allocation4 + $0xd8] sm:$0xff]
    %v3971 = vld [vmem:[#allocation4 + $0xe0] sm:$0xff]
    %v3972 = vld [vmem:[#allocation4 + $0xe8] sm:$0xff]
    %v3973 = vld [vmem:[#allocation4 + $0xf0] sm:$0xff]
    %v3974 = vld [vmem:[#allocation4 + $0xf8] sm:$0xff]
    %v3975 = vld [vmem:[#allocation4 + $0x100] sm:$0xff]
    %v3976 = vld [vmem:[#allocation4 + $0x108] sm:$0xff]
    %v3977 = vld [vmem:[#allocation4 + $0x110] sm:$0xff]
    %v3978 = vld [vmem:[#allocation4 + $0x118] sm:$0xff]
    %v3979 = vld [vmem:[#allocation4 + $0x120] sm:$0xff]
    %v3980 = vld [vmem:[#allocation4 + $0x128] sm:$0xff]
    %v3981 = vld [vmem:[#allocation4 + $0x130] sm:$0xff]
    %v3982 = vld [vmem:[#allocation4 + $0x138] sm:$0xff]
    %v3983 = vld [vmem:[#allocation4 + $0x140] sm:$0xff]
    %v3984 = vld [vmem:[#allocation4 + $0x148] sm:$0xff]
    %v3985 = vld [vmem:[#allocation4 + $0x150] sm:$0xff]
    %v3986 = vld [vmem:[#allocation4 + $0x158] sm:$0xff]
    %v3987 = vld [vmem:[#allocation4 + $0x160] sm:$0xff]
    %v3988 = vld [vmem:[#allocation4 + $0x168] sm:$0xff]
    %v3989 = vld [vmem:[#allocation4 + $0x170] sm:$0xff]
    %v3990 = vld [vmem:[#allocation4 + $0x178] sm:$0xff]
    %v3991 = vld [vmem:[#allocation4 + $0x180] sm:$0xff]
    %v3992 = vld [vmem:[#allocation4 + $0x188] sm:$0xff]
    %v3993 = vld [vmem:[#allocation4 + $0x190] sm:$0xff]
    %v3994 = vld [vmem:[#allocation4 + $0x198] sm:$0xff]
    %v3995 = vld [vmem:[#allocation4 + $0x1a0] sm:$0xff]
    %v3996 = vld [vmem:[#allocation4 + $0x1a8] sm:$0xff]
    %v3997 = vld [vmem:[#allocation4 + $0x1b0] sm:$0xff]
    %v3998 = vld [vmem:[#allocation4 + $0x1b8] sm:$0xff]
    %v3999 = vld [vmem:[#allocation4 + $0x1c0] sm:$0xff]
    %v4000 = vld [vmem:[#allocation4 + $0x1c8] sm:$0xff]
    %v4001 = vld [vmem:[#allocation4 + $0x1d0] sm:$0xff]
    %v4002 = vld [vmem:[#allocation4 + $0x1d8] sm:$0xff]
    %v4003 = vld [vmem:[#allocation4 + $0x1e0] sm:$0xff]
    %v4004 = vld [vmem:[#allocation4 + $0x1e8] sm:$0xff]
    %v4005 = vld [vmem:[#allocation4 + $0x1f0] sm:$0xff]
    %v4006 = vld [vmem:[#allocation4 + $0x1f8] sm:$0xff]
    %v4007 = vld [vmem:[#allocation4 + $0x200] sm:$0xff]
    %v4008 = vld [vmem:[#allocation4 + $0x208] sm:$0xff]
    %v4009 = vld [vmem:[#allocation4 + $0x210] sm:$0xff]
    %v4010 = vld [vmem:[#allocation4 + $0x218] sm:$0xff]
    %v4011 = vld [vmem:[#allocation4 + $0x220] sm:$0xff]
    %v4012 = vld [vmem:[#allocation4 + $0x228] sm:$0xff]
    %v4013 = vld [vmem:[#allocation4 + $0x230] sm:$0xff]
    %v4014 = vld [vmem:[#allocation4 + $0x238] sm:$0xff]
    %v4015 = vld [vmem:[#allocation4 + $0x240] sm:$0xff]
    %v4016 = vld [vmem:[#allocation4 + $0x248] sm:$0xff]
    %v4017 = vld [vmem:[#allocation4 + $0x250] sm:$0xff]
    %v4018 = vld [vmem:[#allocation4 + $0x258] sm:$0xff]
    %v4019 = vld [vmem:[#allocation4 + $0x260] sm:$0xff]
    %v4020 = vld [vmem:[#allocation4 + $0x268] sm:$0xff]
    %v4021 = vld [vmem:[#allocation4 + $0x270] sm:$0xff]
    %v4022 = vld [vmem:[#allocation4 + $0x278] sm:$0xff]
    %v4023 = vld [vmem:[#allocation4 + $0x280] sm:$0xff]
    %v4024 = vld [vmem:[#allocation4 + $0x288] sm:$0xff]
    %v4025 = vld [vmem:[#allocation4 + $0x290] sm:$0xff]
    %v4026 = vld [vmem:[#allocation4 + $0x298] sm:$0xff]
    %v4027 = vld [vmem:[#allocation4 + $0x2a0] sm:$0xff]
    %v4028 = vld [vmem:[#allocation4 + $0x2a8] sm:$0xff]
    %v4029 = vld [vmem:[#allocation4 + $0x2b0] sm:$0xff]
    %v4030 = vld [vmem:[#allocation4 + $0x2b8] sm:$0xff]
    %v4031 = vld [vmem:[#allocation4 + $0x2c0] sm:$0xff]
    %v4032 = vld [vmem:[#allocation4 + $0x2c8] sm:$0xff]
    %v4033 = vld [vmem:[#allocation4 + $0x2d0] sm:$0xff]
    %v4034 = vld [vmem:[#allocation4 + $0x2d8] sm:$0xff]
    %v4035 = vld [vmem:[#allocation4 + $0x2e0] sm:$0xff]
    %v4036 = vld [vmem:[#allocation4 + $0x2e8] sm:$0xff]
    %v4037 = vld [vmem:[#allocation4 + $0x2f0] sm:$0xff]
    %v4038 = vld [vmem:[#allocation4 + $0x2f8] sm:$0xff]
    %v4039 = vld [vmem:[#allocation4 + $0x300] sm:$0xff]
    %v4040 = vld [vmem:[#allocation4 + $0x308] sm:$0xff]
    %v4041 = vld [vmem:[#allocation4 + $0x310] sm:$0xff]
    %v4042 = vld [vmem:[#allocation4 + $0x318] sm:$0xff]
    %v4043 = vld [vmem:[#allocation4 + $0x320] sm:$0xff]
    %v4044 = vld [vmem:[#allocation4 + $0x328] sm:$0xff]
    %v4045 = vld [vmem:[#allocation4 + $0x330] sm:$0xff]
    %v4046 = vld [vmem:[#allocation4 + $0x338] sm:$0xff]
    %v4047 = vld [vmem:[#allocation4 + $0x340] sm:$0xff]
    %v4048 = vld [vmem:[#allocation4 + $0x348] sm:$0xff]
    %v4049 = vld [vmem:[#allocation4 + $0x350] sm:$0xff]
    %v4050 = vld [vmem:[#allocation4 + $0x358] sm:$0xff]
    %v4051 = vld [vmem:[#allocation4 + $0x360] sm:$0xff]
    %v4052 = vld [vmem:[#allocation4 + $0x368] sm:$0xff]
    %v4053 = vld [vmem:[#allocation4 + $0x370] sm:$0xff]
    %v4054 = vld [vmem:[#allocation4 + $0x378] sm:$0xff]
    %v4055 = vld [vmem:[#allocation4 + $0x380] sm:$0xff]
    %v4056 = vld [vmem:[#allocation4 + $0x388] sm:$0xff]
    %v4057 = vld [vmem:[#allocation4 + $0x390] sm:$0xff]
    %v4058 = vld [vmem:[#allocation4 + $0x398] sm:$0xff]
    %v4059 = vld [vmem:[#allocation4 + $0x3a0] sm:$0xff]
    %v4060 = vld [vmem:[#allocation4 + $0x3a8] sm:$0xff]
    %v4061 = vld [vmem:[#allocation4 + $0x3b0] sm:$0xff]
    %v4062 = vld [vmem:[#allocation4 + $0x3b8] sm:$0xff]
    %v4063 = vld [vmem:[#allocation4 + $0x3c0] sm:$0xff]
    %v4064 = vld [vmem:[#allocation4 + $0x3c8] sm:$0xff]
    %v4065 = vld [vmem:[#allocation4 + $0x3d0] sm:$0xff]
    %v4066 = vld [vmem:[#allocation4 + $0x3d8] sm:$0xff]
    %v4067 = vld [vmem:[#allocation4 + $0x3e0] sm:$0xff]
    %v4068 = vld [vmem:[#allocation4 + $0x3e8] sm:$0xff]
    %v4069 = vld [vmem:[#allocation4 + $0x3f0] sm:$0xff]
    %v4070 = vld [vmem:[#allocation4 + $0x3f8] sm:$0xff]
    %v4071 = vld [vmem:[#allocation4 + $0x400] sm:$0xff]
    %v4072 = vld [vmem:[#allocation4 + $0x408] sm:$0xff]
    %v4073 = vld [vmem:[#allocation4 + $0x410] sm:$0xff]
    %v4074 = vld [vmem:[#allocation4 + $0x418] sm:$0xff]
    %v4075 = vld [vmem:[#allocation4 + $0x420] sm:$0xff]
    %v4076 = vld [vmem:[#allocation4 + $0x428] sm:$0xff]
    %v4077 = vld [vmem:[#allocation4 + $0x430] sm:$0xff]
    %v4078 = vld [vmem:[#allocation4 + $0x438] sm:$0xff]
    %v4079 = vld [vmem:[#allocation4 + $0x440] sm:$0xff]
    %v4080 = vld [vmem:[#allocation4 + $0x448] sm:$0xff]
    %v4081 = vld [vmem:[#allocation4 + $0x450] sm:$0xff]
    %v4082 = vld [vmem:[#allocation4 + $0x458] sm:$0xff]
    %v4083 = vld [vmem:[#allocation4 + $0x460] sm:$0xff]
    %v4084 = vld [vmem:[#allocation4 + $0x468] sm:$0xff]
    %v4085 = vld [vmem:[#allocation4 + $0x470] sm:$0xff]
    %v4086 = vld [vmem:[#allocation4 + $0x478] sm:$0xff]
    %v4087 = vld [vmem:[#allocation4 + $0x480] sm:$0xff]
    %v4088 = vld [vmem:[#allocation4 + $0x488] sm:$0xff]
    %v4089 = vld [vmem:[#allocation4 + $0x490] sm:$0xff]
    %v4090 = vld [vmem:[#allocation4 + $0x498] sm:$0xff]
    %v4091 = vld [vmem:[#allocation4 + $0x4a0] sm:$0xff]
    %v4092 = vld [vmem:[#allocation4 + $0x4a8] sm:$0xff]
    %v4093 = vld [vmem:[#allocation4 + $0x4b0] sm:$0xff]
    %v4094 = vld [vmem:[#allocation4 + $0x4b8] sm:$0xff]
    %v4095 = vld [vmem:[#allocation4 + $0x4c0] sm:$0xff]
    %v4096 = vld [vmem:[#allocation4 + $0x4c8] sm:$0xff]
    %v4097 = vld [vmem:[#allocation4 + $0x4d0] sm:$0xff]
    %v4098 = vld [vmem:[#allocation4 + $0x4d8] sm:$0xff]
    %v4099 = vld [vmem:[#allocation4 + $0x4e0] sm:$0xff]
    %v4100 = vld [vmem:[#allocation4 + $0x4e8] sm:$0xff]
    %v4101 = vld [vmem:[#allocation4 + $0x4f0] sm:$0xff]
    %v4102 = vld [vmem:[#allocation4 + $0x4f8] sm:$0xff]
    %v4103 = vld [vmem:[#allocation4 + $0x500] sm:$0xff]
    %v4104 = vld [vmem:[#allocation4 + $0x508] sm:$0xff]
    %v4105 = vld [vmem:[#allocation4 + $0x510] sm:$0xff]
    %v4106 = vld [vmem:[#allocation4 + $0x518] sm:$0xff]
    %v4107 = vld [vmem:[#allocation4 + $0x520] sm:$0xff]
    %v4108 = vld [vmem:[#allocation4 + $0x528] sm:$0xff]
    %v4109 = vld [vmem:[#allocation4 + $0x530] sm:$0xff]
    %v4110 = vld [vmem:[#allocation4 + $0x538] sm:$0xff]
    %v4111 = vld [vmem:[#allocation4 + $0x540] sm:$0xff]
    %v4112 = vld [vmem:[#allocation4 + $0x548] sm:$0xff]
    %v4113 = vld [vmem:[#allocation4 + $0x550] sm:$0xff]
    %v4114 = vld [vmem:[#allocation4 + $0x558] sm:$0xff]
    %v4115 = vld [vmem:[#allocation4 + $0x560] sm:$0xff]
    %v4116 = vld [vmem:[#allocation4 + $0x568] sm:$0xff]
    %v4117 = vld [vmem:[#allocation4 + $0x570] sm:$0xff]
    %v4118 = vld [vmem:[#allocation4 + $0x578] sm:$0xff]
    %v4119 = vld [vmem:[#allocation4 + $0x580] sm:$0xff]
    %v4120 = vld [vmem:[#allocation4 + $0x588] sm:$0xff]
    %v4121 = vld [vmem:[#allocation4 + $0x590] sm:$0xff]
    %v4122 = vld [vmem:[#allocation4 + $0x598] sm:$0xff]
    %v4123 = vld [vmem:[#allocation4 + $0x5a0] sm:$0xff]
    %v4124 = vld [vmem:[#allocation4 + $0x5a8] sm:$0xff]
    %v4125 = vld [vmem:[#allocation4 + $0x5b0] sm:$0xff]
    %v4126 = vld [vmem:[#allocation4 + $0x5b8] sm:$0xff]
    %v4127 = vld [vmem:[#allocation4 + $0x5c0] sm:$0xff]
    %v4128 = vld [vmem:[#allocation4 + $0x5c8] sm:$0xff]
    %v4129 = vld [vmem:[#allocation4 + $0x5d0] sm:$0xff]
    %v4130 = vld [vmem:[#allocation4 + $0x5d8] sm:$0xff]
    %v4131 = vld [vmem:[#allocation4 + $0x5e0] sm:$0xff]
    %v4132 = vld [vmem:[#allocation4 + $0x5e8] sm:$0xff]
    %v4133 = vld [vmem:[#allocation4 + $0x5f0] sm:$0xff]
    %v4134 = vld [vmem:[#allocation4 + $0x5f8] sm:$0xff]
    %v4135 = vld [vmem:[#allocation4 + $0x600] sm:$0xff]
    %v4136 = vld [vmem:[#allocation4 + $0x608] sm:$0xff]
    %v4137 = vld [vmem:[#allocation4 + $0x610] sm:$0xff]
    %v4138 = vld [vmem:[#allocation4 + $0x618] sm:$0xff]
    %v4139 = vld [vmem:[#allocation4 + $0x620] sm:$0xff]
    %v4140 = vld [vmem:[#allocation4 + $0x628] sm:$0xff]
    %v4141 = vld [vmem:[#allocation4 + $0x630] sm:$0xff]
    %v4142 = vld [vmem:[#allocation4 + $0x638] sm:$0xff]
    %v4143 = vld [vmem:[#allocation4 + $0x640] sm:$0xff]
    %v4144 = vld [vmem:[#allocation4 + $0x648] sm:$0xff]
    %v4145 = vld [vmem:[#allocation4 + $0x650] sm:$0xff]
    %v4146 = vld [vmem:[#allocation4 + $0x658] sm:$0xff]
    %v4147 = vld [vmem:[#allocation4 + $0x660] sm:$0xff]
    %v4148 = vld [vmem:[#allocation4 + $0x668] sm:$0xff]
    %v4149 = vld [vmem:[#allocation4 + $0x670] sm:$0xff]
    %v4150 = vld [vmem:[#allocation4 + $0x678] sm:$0xff]
    %v4151 = vld [vmem:[#allocation4 + $0x680] sm:$0xff]
    %v4152 = vld [vmem:[#allocation4 + $0x688] sm:$0xff]
    %v4153 = vld [vmem:[#allocation4 + $0x690] sm:$0xff]
    %v4154 = vld [vmem:[#allocation4 + $0x698] sm:$0xff]
    %v4155 = vld [vmem:[#allocation4 + $0x6a0] sm:$0xff]
    %v4156 = vld [vmem:[#allocation4 + $0x6a8] sm:$0xff]
    %v4157 = vld [vmem:[#allocation4 + $0x6b0] sm:$0xff]
    %v4158 = vld [vmem:[#allocation4 + $0x6b8] sm:$0xff]
    %v4159 = vld [vmem:[#allocation4 + $0x6c0] sm:$0xff]
    %v4160 = vld [vmem:[#allocation4 + $0x6c8] sm:$0xff]
    %v4161 = vld [vmem:[#allocation4 + $0x6d0] sm:$0xff]
    %v4162 = vld [vmem:[#allocation4 + $0x6d8] sm:$0xff]
    %v4163 = vld [vmem:[#allocation4 + $0x6e0] sm:$0xff]
    %v4164 = vld [vmem:[#allocation4 + $0x6e8] sm:$0xff]
    %v4165 = vld [vmem:[#allocation4 + $0x6f0] sm:$0xff]
    %v4166 = vld [vmem:[#allocation4 + $0x6f8] sm:$0xff]
    %v4167 = vld [vmem:[#allocation4 + $0x700] sm:$0xff]
    %v4168 = vld [vmem:[#allocation4 + $0x708] sm:$0xff]
    %v4169 = vld [vmem:[#allocation4 + $0x710] sm:$0xff]
    %v4170 = vld [vmem:[#allocation4 + $0x718] sm:$0xff]
    %v4171 = vld [vmem:[#allocation4 + $0x720] sm:$0xff]
    %v4172 = vld [vmem:[#allocation4 + $0x728] sm:$0xff]
    %v4173 = vld [vmem:[#allocation4 + $0x730] sm:$0xff]
    %v4174 = vld [vmem:[#allocation4 + $0x738] sm:$0xff]
    %v4175 = vld [vmem:[#allocation4 + $0x740] sm:$0xff]
    %v4176 = vld [vmem:[#allocation4 + $0x748] sm:$0xff]
    %v4177 = vld [vmem:[#allocation4 + $0x750] sm:$0xff]
    %v4178 = vld [vmem:[#allocation4 + $0x758] sm:$0xff]
    %v4179 = vld [vmem:[#allocation4 + $0x760] sm:$0xff]
    %v4180 = vld [vmem:[#allocation4 + $0x768] sm:$0xff]
    %v4181 = vld [vmem:[#allocation4 + $0x770] sm:$0xff]
    %v4182 = vld [vmem:[#allocation4 + $0x778] sm:$0xff]
    %v4183 = vld [vmem:[#allocation4 + $0x780] sm:$0xff]
    %v4184 = vld [vmem:[#allocation4 + $0x788] sm:$0xff]
    %v4185 = vld [vmem:[#allocation4 + $0x790] sm:$0xff]
    %v4186 = vld [vmem:[#allocation4 + $0x798] sm:$0xff]
    %v4187 = vld [vmem:[#allocation4 + $0x7a0] sm:$0xff]
    %v4188 = vld [vmem:[#allocation4 + $0x7a8] sm:$0xff]
    %v4189 = vld [vmem:[#allocation4 + $0x7b0] sm:$0xff]
    %v4190 = vld [vmem:[#allocation4 + $0x7b8] sm:$0xff]
    %v4191 = vld [vmem:[#allocation4 + $0x7c0] sm:$0xff]
    %v4192 = vld [vmem:[#allocation4 + $0x7c8] sm:$0xff]
    %v4193 = vld [vmem:[#allocation4 + $0x7d0] sm:$0xff]
    %v4194 = vld [vmem:[#allocation4 + $0x7d8] sm:$0xff]
    %v4195 = vld [vmem:[#allocation4 + $0x7e0] sm:$0xff]
    %v4196 = vld [vmem:[#allocation4 + $0x7e8] sm:$0xff]
    %v4197 = vld [vmem:[#allocation4 + $0x7f0] sm:$0xff]
    %v4198 = vld [vmem:[#allocation4 + $0x7f8] sm:$0xff]
    %v4199 = vld [vmem:[#allocation4 + $0x800] sm:$0xff]
    %v4200 = vld [vmem:[#allocation4 + $0x808] sm:$0xff]
    %v4201 = vld [vmem:[#allocation4 + $0x810] sm:$0xff]
    %v4202 = vld [vmem:[#allocation4 + $0x818] sm:$0xff]
    %v4203 = vld [vmem:[#allocation4 + $0x820] sm:$0xff]
    %v4204 = vld [vmem:[#allocation4 + $0x828] sm:$0xff]
    %v4205 = vld [vmem:[#allocation4 + $0x830] sm:$0xff]
    %v4206 = vld [vmem:[#allocation4 + $0x838] sm:$0xff]
    %v4207 = vld [vmem:[#allocation4 + $0x840] sm:$0xff]
    %v4208 = vld [vmem:[#allocation4 + $0x848] sm:$0xff]
    %v4209 = vld [vmem:[#allocation4 + $0x850] sm:$0xff]
    %v4210 = vld [vmem:[#allocation4 + $0x858] sm:$0xff]
    %v4211 = vld [vmem:[#allocation4 + $0x860] sm:$0xff]
    %v4212 = vld [vmem:[#allocation4 + $0x868] sm:$0xff]
    %v4213 = vld [vmem:[#allocation4 + $0x870] sm:$0xff]
    %v4214 = vld [vmem:[#allocation4 + $0x878] sm:$0xff]
    %v4215 = vld [vmem:[#allocation4 + $0x880] sm:$0xff]
    %v4216 = vld [vmem:[#allocation4 + $0x888] sm:$0xff]
    %v4217 = vld [vmem:[#allocation4 + $0x890] sm:$0xff]
    %v4218 = vld [vmem:[#allocation4 + $0x898] sm:$0xff]
    %v4219 = vld [vmem:[#allocation4 + $0x8a0] sm:$0xff]
    %v4220 = vld [vmem:[#allocation4 + $0x8a8] sm:$0xff]
    %v4221 = vld [vmem:[#allocation4 + $0x8b0] sm:$0xff]
    %v4222 = vld [vmem:[#allocation4 + $0x8b8] sm:$0xff]
    %v4223 = vld [vmem:[#allocation4 + $0x8c0] sm:$0xff]
    %v4224 = vld [vmem:[#allocation4 + $0x8c8] sm:$0xff]
    %v4225 = vld [vmem:[#allocation4 + $0x8d0] sm:$0xff]
    %v4226 = vld [vmem:[#allocation4 + $0x8d8] sm:$0xff]
    %v4227 = vld [vmem:[#allocation4 + $0x8e0] sm:$0xff]
    %v4228 = vld [vmem:[#allocation4 + $0x8e8] sm:$0xff]
    %v4229 = vld [vmem:[#allocation4 + $0x8f0] sm:$0xff]
    %v4230 = vld [vmem:[#allocation4 + $0x8f8] sm:$0xff]
    %v4231 = vld [vmem:[#allocation4 + $0x900] sm:$0xff]
    %v4232 = vld [vmem:[#allocation4 + $0x908] sm:$0xff]
    %v4233 = vld [vmem:[#allocation4 + $0x910] sm:$0xff]
    %v4234 = vld [vmem:[#allocation4 + $0x918] sm:$0xff]
    %v4235 = vld [vmem:[#allocation4 + $0x920] sm:$0xff]
    %v4236 = vld [vmem:[#allocation4 + $0x928] sm:$0xff]
    %v4237 = vld [vmem:[#allocation4 + $0x930] sm:$0xff]
    %v4238 = vld [vmem:[#allocation4 + $0x938] sm:$0xff]
    %v4239 = vld [vmem:[#allocation4 + $0x940] sm:$0xff]
    %v4240 = vld [vmem:[#allocation4 + $0x948] sm:$0xff]
    %v4241 = vld [vmem:[#allocation4 + $0x950] sm:$0xff]
    %v4242 = vld [vmem:[#allocation4 + $0x958] sm:$0xff]
    %v4243 = vld [vmem:[#allocation4 + $0x960] sm:$0xff]
    %v4244 = vld [vmem:[#allocation4 + $0x968] sm:$0xff]
    %v4245 = vld [vmem:[#allocation4 + $0x970] sm:$0xff]
    %v4246 = vld [vmem:[#allocation4 + $0x978] sm:$0xff]
    %v4247 = vld [vmem:[#allocation4 + $0x980] sm:$0xff]
    %v4248 = vld [vmem:[#allocation4 + $0x988] sm:$0xff]
    %v4249 = vld [vmem:[#allocation4 + $0x990] sm:$0xff]
    %v4250 = vld [vmem:[#allocation4 + $0x998] sm:$0xff]
    %v4251 = vld [vmem:[#allocation4 + $0x9a0] sm:$0xff]
    %v4252 = vld [vmem:[#allocation4 + $0x9a8] sm:$0xff]
    %v4253 = vld [vmem:[#allocation4 + $0x9b0] sm:$0xff]
    %v4254 = vld [vmem:[#allocation4 + $0x9b8] sm:$0xff]
    %v4255 = vld [vmem:[#allocation4 + $0x9c0] sm:$0xff]
    %v4256 = vld [vmem:[#allocation4 + $0x9c8] sm:$0xff]
    %v4257 = vld [vmem:[#allocation4 + $0x9d0] sm:$0xff]
    %v4258 = vld [vmem:[#allocation4 + $0x9d8] sm:$0xff]
    %v4259 = vld [vmem:[#allocation4 + $0x9e0] sm:$0xff]
    %v4260 = vld [vmem:[#allocation4 + $0x9e8] sm:$0xff]
    %v4261 = vld [vmem:[#allocation4 + $0x9f0] sm:$0xff]
    %v4262 = vld [vmem:[#allocation4 + $0x9f8] sm:$0xff]
    %v4263 = vld [vmem:[#allocation4 + $0xa00] sm:$0xff]
    %v4264 = vld [vmem:[#allocation4 + $0xa08] sm:$0xff]
    %v4265 = vld [vmem:[#allocation4 + $0xa10] sm:$0xff]
    %v4266 = vld [vmem:[#allocation4 + $0xa18] sm:$0xff]
    %v4267 = vld [vmem:[#allocation4 + $0xa20] sm:$0xff]
    %v4268 = vld [vmem:[#allocation4 + $0xa28] sm:$0xff]
    %v4269 = vld [vmem:[#allocation4 + $0xa30] sm:$0xff]
    %v4270 = vld [vmem:[#allocation4 + $0xa38] sm:$0xff]
    %v4271 = vld [vmem:[#allocation4 + $0xa40] sm:$0xff]
    %v4272 = vld [vmem:[#allocation4 + $0xa48] sm:$0xff]
    %v4273 = vld [vmem:[#allocation4 + $0xa50] sm:$0xff]
    %v4274 = vld [vmem:[#allocation4 + $0xa58] sm:$0xff]
    %v4275 = vld [vmem:[#allocation4 + $0xa60] sm:$0xff]
    %v4276 = vld [vmem:[#allocation4 + $0xa68] sm:$0xff]
    %v4277 = vld [vmem:[#allocation4 + $0xa70] sm:$0xff]
    %v4278 = vld [vmem:[#allocation4 + $0xa78] sm:$0xff]
    %v4279 = vld [vmem:[#allocation4 + $0xa80] sm:$0xff]
    %v4280 = vld [vmem:[#allocation4 + $0xa88] sm:$0xff]
    %v4281 = vld [vmem:[#allocation4 + $0xa90] sm:$0xff]
    %v4282 = vld [vmem:[#allocation4 + $0xa98] sm:$0xff]
    %v4283 = vld [vmem:[#allocation4 + $0xaa0] sm:$0xff]
    %v4284 = vld [vmem:[#allocation4 + $0xaa8] sm:$0xff]
    %v4285 = vld [vmem:[#allocation4 + $0xab0] sm:$0xff]
    %v4286 = vld [vmem:[#allocation4 + $0xab8] sm:$0xff]
    %v4287 = vld [vmem:[#allocation4 + $0xac0] sm:$0xff]
    %v4288 = vld [vmem:[#allocation4 + $0xac8] sm:$0xff]
    %v4289 = vld [vmem:[#allocation4 + $0xad0] sm:$0xff]
    %v4290 = vld [vmem:[#allocation4 + $0xad8] sm:$0xff]
    %v4291 = vld [vmem:[#allocation4 + $0xae0] sm:$0xff]
    %v4292 = vld [vmem:[#allocation4 + $0xae8] sm:$0xff]
    %v4293 = vld [vmem:[#allocation4 + $0xaf0] sm:$0xff]
    %v4294 = vld [vmem:[#allocation4 + $0xaf8] sm:$0xff]
    %v4295 = vld [vmem:[#allocation4 + $0xb00] sm:$0xff]
    %v4296 = vld [vmem:[#allocation4 + $0xb08] sm:$0xff]
    %v4297 = vld [vmem:[#allocation4 + $0xb10] sm:$0xff]
    %v4298 = vld [vmem:[#allocation4 + $0xb18] sm:$0xff]
    %v4299 = vld [vmem:[#allocation4 + $0xb20] sm:$0xff]
    %v4300 = vld [vmem:[#allocation4 + $0xb28] sm:$0xff]
    %v4301 = vld [vmem:[#allocation4 + $0xb30] sm:$0xff]
    %v4302 = vld [vmem:[#allocation4 + $0xb38] sm:$0xff]
    %v4303 = vld [vmem:[#allocation4 + $0xb40] sm:$0xff]
    %v4304 = vld [vmem:[#allocation4 + $0xb48] sm:$0xff]
    %v4305 = vld [vmem:[#allocation4 + $0xb50] sm:$0xff]
    %v4306 = vld [vmem:[#allocation4 + $0xb58] sm:$0xff]
    %v4307 = vld [vmem:[#allocation4 + $0xb60] sm:$0xff]
    %v4308 = vld [vmem:[#allocation4 + $0xb68] sm:$0xff]
    %v4309 = vld [vmem:[#allocation4 + $0xb70] sm:$0xff]
    %v4310 = vld [vmem:[#allocation4 + $0xb78] sm:$0xff]
    %v4311 = vld [vmem:[#allocation4 + $0xb80] sm:$0xff]
    %v4312 = vld [vmem:[#allocation4 + $0xb88] sm:$0xff]
    %v4313 = vld [vmem:[#allocation4 + $0xb90] sm:$0xff]
    %v4314 = vld [vmem:[#allocation4 + $0xb98] sm:$0xff]
    %v4315 = vld [vmem:[#allocation4 + $0xba0] sm:$0xff]
    %v4316 = vld [vmem:[#allocation4 + $0xba8] sm:$0xff]
    %v4317 = vld [vmem:[#allocation4 + $0xbb0] sm:$0xff]
    %v4318 = vld [vmem:[#allocation4 + $0xbb8] sm:$0xff]
    %v4319 = vld [vmem:[#allocation4 + $0xbc0] sm:$0xff]
    %v4320 = vld [vmem:[#allocation4 + $0xbc8] sm:$0xff]
    %v4321 = vld [vmem:[#allocation4 + $0xbd0] sm:$0xff]
    %v4322 = vld [vmem:[#allocation4 + $0xbd8] sm:$0xff]
    %v4323 = vld [vmem:[#allocation4 + $0xbe0] sm:$0xff]
    %v4324 = vld [vmem:[#allocation4 + $0xbe8] sm:$0xff]
    %v4325 = vld [vmem:[#allocation4 + $0xbf0] sm:$0xff]
    %v4326 = vld [vmem:[#allocation4 + $0xbf8] sm:$0xff]
    %v4327 = vld [vmem:[#allocation4 + $0xc00] sm:$0xff]
    %v4328 = vld [vmem:[#allocation4 + $0xc08] sm:$0xff]
    %v4329 = vld [vmem:[#allocation4 + $0xc10] sm:$0xff]
    %v4330 = vld [vmem:[#allocation4 + $0xc18] sm:$0xff]
    %v4331 = vld [vmem:[#allocation4 + $0xc20] sm:$0xff]
    %v4332 = vld [vmem:[#allocation4 + $0xc28] sm:$0xff]
    %v4333 = vld [vmem:[#allocation4 + $0xc30] sm:$0xff]
    %v4334 = vld [vmem:[#allocation4 + $0xc38] sm:$0xff]
    %v4335 = vld [vmem:[#allocation4 + $0xc40] sm:$0xff]
    %v4336 = vld [vmem:[#allocation4 + $0xc48] sm:$0xff]
    %v4337 = vld [vmem:[#allocation4 + $0xc50] sm:$0xff]
    %v4338 = vld [vmem:[#allocation4 + $0xc58] sm:$0xff]
    %v4339 = vld [vmem:[#allocation4 + $0xc60] sm:$0xff]
    %v4340 = vld [vmem:[#allocation4 + $0xc68] sm:$0xff]
    %v4341 = vld [vmem:[#allocation4 + $0xc70] sm:$0xff]
    %v4342 = vld [vmem:[#allocation4 + $0xc78] sm:$0xff]
    %v4343 = vld [vmem:[#allocation4 + $0xc80] sm:$0xff]
    %v4344 = vld [vmem:[#allocation4 + $0xc88] sm:$0xff]
    %v4345 = vld [vmem:[#allocation4 + $0xc90] sm:$0xff]
    %v4346 = vld [vmem:[#allocation4 + $0xc98] sm:$0xff]
    %v4347 = vld [vmem:[#allocation4 + $0xca0] sm:$0xff]
    %v4348 = vld [vmem:[#allocation4 + $0xca8] sm:$0xff]
    %v4349 = vld [vmem:[#allocation4 + $0xcb0] sm:$0xff]
    %v4350 = vld [vmem:[#allocation4 + $0xcb8] sm:$0xff]
    %v4351 = vld [vmem:[#allocation4 + $0xcc0] sm:$0xff]
    %v4352 = vld [vmem:[#allocation4 + $0xcc8] sm:$0xff]
    %v4353 = vld [vmem:[#allocation4 + $0xcd0] sm:$0xff]
    %v4354 = vld [vmem:[#allocation4 + $0xcd8] sm:$0xff]
    %v4355 = vld [vmem:[#allocation4 + $0xce0] sm:$0xff]
    %v4356 = vld [vmem:[#allocation4 + $0xce8] sm:$0xff]
    %v4357 = vld [vmem:[#allocation4 + $0xcf0] sm:$0xff]
    %v4358 = vld [vmem:[#allocation4 + $0xcf8] sm:$0xff]
    %v4359 = vld [vmem:[#allocation4 + $0xd00] sm:$0xff]
    %v4360 = vld [vmem:[#allocation4 + $0xd08] sm:$0xff]
    %v4361 = vld [vmem:[#allocation4 + $0xd10] sm:$0xff]
    %v4362 = vld [vmem:[#allocation4 + $0xd18] sm:$0xff]
    %v4363 = vld [vmem:[#allocation4 + $0xd20] sm:$0xff]
    %v4364 = vld [vmem:[#allocation4 + $0xd28] sm:$0xff]
    %v4365 = vld [vmem:[#allocation4 + $0xd30] sm:$0xff]
    %v4366 = vld [vmem:[#allocation4 + $0xd38] sm:$0xff]
    %v4367 = vld [vmem:[#allocation4 + $0xd40] sm:$0xff]
    %v4368 = vld [vmem:[#allocation4 + $0xd48] sm:$0xff]
    %v4369 = vld [vmem:[#allocation4 + $0xd50] sm:$0xff]
    %v4370 = vld [vmem:[#allocation4 + $0xd58] sm:$0xff]
    %v4371 = vld [vmem:[#allocation4 + $0xd60] sm:$0xff]
    %v4372 = vld [vmem:[#allocation4 + $0xd68] sm:$0xff]
    %v4373 = vld [vmem:[#allocation4 + $0xd70] sm:$0xff]
    %v4374 = vld [vmem:[#allocation4 + $0xd78] sm:$0xff]
    %v4375 = vld [vmem:[#allocation4 + $0xd80] sm:$0xff]
    %v4376 = vld [vmem:[#allocation4 + $0xd88] sm:$0xff]
    %v4377 = vld [vmem:[#allocation4 + $0xd90] sm:$0xff]
    %v4378 = vld [vmem:[#allocation4 + $0xd98] sm:$0xff]
    %v4379 = vld [vmem:[#allocation4 + $0xda0] sm:$0xff]
    %v4380 = vld [vmem:[#allocation4 + $0xda8] sm:$0xff]
    %v4381 = vld [vmem:[#allocation4 + $0xdb0] sm:$0xff]
    %v4382 = vld [vmem:[#allocation4 + $0xdb8] sm:$0xff]
    %v4383 = vld [vmem:[#allocation4 + $0xdc0] sm:$0xff]
    %v4384 = vld [vmem:[#allocation4 + $0xdc8] sm:$0xff]
    %v4385 = vld [vmem:[#allocation4 + $0xdd0] sm:$0xff]
    %v4386 = vld [vmem:[#allocation4 + $0xdd8] sm:$0xff]
    %v4387 = vld [vmem:[#allocation4 + $0xde0] sm:$0xff]
    %v4388 = vld [vmem:[#allocation4 + $0xde8] sm:$0xff]
    %v4389 = vld [vmem:[#allocation4 + $0xdf0] sm:$0xff]
    %v4390 = vld [vmem:[#allocation4 + $0xdf8] sm:$0xff]
    %v4391 = vld [vmem:[#allocation4 + $0xe00] sm:$0xff]
    %v4392 = vld [vmem:[#allocation4 + $0xe08] sm:$0xff]
    %v4393 = vld [vmem:[#allocation4 + $0xe10] sm:$0xff]
    %v4394 = vld [vmem:[#allocation4 + $0xe18] sm:$0xff]
    %v4395 = vld [vmem:[#allocation4 + $0xe20] sm:$0xff]
    %v4396 = vld [vmem:[#allocation4 + $0xe28] sm:$0xff]
    %v4397 = vld [vmem:[#allocation4 + $0xe30] sm:$0xff]
    %v4398 = vld [vmem:[#allocation4 + $0xe38] sm:$0xff]
    %v4399 = vld [vmem:[#allocation4 + $0xe40] sm:$0xff]
    %v4400 = vld [vmem:[#allocation4 + $0xe48] sm:$0xff]
    %v4401 = vld [vmem:[#allocation4 + $0xe50] sm:$0xff]
    %v4402 = vld [vmem:[#allocation4 + $0xe58] sm:$0xff]
    %v4403 = vld [vmem:[#allocation4 + $0xe60] sm:$0xff]
    %v4404 = vld [vmem:[#allocation4 + $0xe68] sm:$0xff]
    %v4405 = vld [vmem:[#allocation4 + $0xe70] sm:$0xff]
    %v4406 = vld [vmem:[#allocation4 + $0xe78] sm:$0xff]
    %v4407 = vld [vmem:[#allocation4 + $0xe80] sm:$0xff]
    %v4408 = vld [vmem:[#allocation4 + $0xe88] sm:$0xff]
    %v4409 = vld [vmem:[#allocation4 + $0xe90] sm:$0xff]
    %v4410 = vld [vmem:[#allocation4 + $0xe98] sm:$0xff]
    %v4411 = vld [vmem:[#allocation4 + $0xea0] sm:$0xff]
    %v4412 = vld [vmem:[#allocation4 + $0xea8] sm:$0xff]
    %v4413 = vld [vmem:[#allocation4 + $0xeb0] sm:$0xff]
    %v4414 = vld [vmem:[#allocation4 + $0xeb8] sm:$0xff]
    %v4415 = vld [vmem:[#allocation4 + $0xec0] sm:$0xff]
    %v4416 = vld [vmem:[#allocation4 + $0xec8] sm:$0xff]
    %v4417 = vld [vmem:[#allocation4 + $0xed0] sm:$0xff]
    %v4418 = vld [vmem:[#allocation4 + $0xed8] sm:$0xff]
    %v4419 = vld [vmem:[#allocation4 + $0xee0] sm:$0xff]
    %v4420 = vld [vmem:[#allocation4 + $0xee8] sm:$0xff]
    %v4421 = vld [vmem:[#allocation4 + $0xef0] sm:$0xff]
    %v4422 = vld [vmem:[#allocation4 + $0xef8] sm:$0xff]
    %v4423 = vld [vmem:[#allocation4 + $0xf00] sm:$0xff]
    %v4424 = vld [vmem:[#allocation4 + $0xf08] sm:$0xff]
    %v4425 = vld [vmem:[#allocation4 + $0xf10] sm:$0xff]
    %v4426 = vld [vmem:[#allocation4 + $0xf18] sm:$0xff]
    %v4427 = vld [vmem:[#allocation4 + $0xf20] sm:$0xff]
    %v4428 = vld [vmem:[#allocation4 + $0xf28] sm:$0xff]
    %v4429 = vld [vmem:[#allocation4 + $0xf30] sm:$0xff]
    %v4430 = vld [vmem:[#allocation4 + $0xf38] sm:$0xff]
    %v4431 = vld [vmem:[#allocation4 + $0xf40] sm:$0xff]
    %v4432 = vld [vmem:[#allocation4 + $0xf48] sm:$0xff]
    %v4433 = vld [vmem:[#allocation4 + $0xf50] sm:$0xff]
    %v4434 = vld [vmem:[#allocation4 + $0xf58] sm:$0xff]
    %v4435 = vld [vmem:[#allocation4 + $0xf60] sm:$0xff]
    %v4436 = vld [vmem:[#allocation4 + $0xf68] sm:$0xff]
    %v4437 = vld [vmem:[#allocation4 + $0xf70] sm:$0xff]
    %v4438 = vld [vmem:[#allocation4 + $0xf78] sm:$0xff]
    %v4439 = vld [vmem:[#allocation4 + $0xf80] sm:$0xff]
    %v4440 = vld [vmem:[#allocation4 + $0xf88] sm:$0xff]
    %v4441 = vld [vmem:[#allocation4 + $0xf90] sm:$0xff]
    %v4442 = vld [vmem:[#allocation4 + $0xf98] sm:$0xff]
    %v4443 = vld [vmem:[#allocation4 + $0xfa0] sm:$0xff]
    %v4444 = vld [vmem:[#allocation4 + $0xfa8] sm:$0xff]
    %v4445 = vld [vmem:[#allocation4 + $0xfb0] sm:$0xff]
    %v4446 = vld [vmem:[#allocation4 + $0xfb8] sm:$0xff]
    %v4447 = vld [vmem:[#allocation4 + $0xfc0] sm:$0xff]
    %v4448 = vld [vmem:[#allocation4 + $0xfc8] sm:$0xff]
    %v4449 = vld [vmem:[#allocation4 + $0xfd0] sm:$0xff]
    %v4450 = vld [vmem:[#allocation4 + $0xfd8] sm:$0xff]
    %v4451 = vld [vmem:[#allocation4 + $0xfe0] sm:$0xff]
    %v4452 = vld [vmem:[#allocation4 + $0xfe8] sm:$0xff]
    %v4453 = vld [vmem:[#allocation4 + $0xff0] sm:$0xff]
    %v4454 = vld [vmem:[#allocation4 + $0xff8] sm:$0xff]
    %s4455 = scalar_lea.vmem [#allocation7], 16
    %v4456 = vld [vmem:[%s4455] sm:$0xff]
    %v4457 = vld [vmem:[%s4455 + $0x8] sm:$0xff]
    %v4460 = vlaneseq
    %v4461 = vshrl.u32 %v4460, 7
    %v4462 = vsub.s32 0, %v4461
    %v4463 = vrot.slane %v4456, %v4462
    %v4464 = vlaneseq
    %v4465 = vshrl.u32 %v4464, 7
    %v4466 = vsub.s32 1, %v4465
    %v4467 = vrot.slane %v4456, %v4466
    %v4468 = vlaneseq
    %v4469 = vshrl.u32 %v4468, 7
    %v4470 = vsub.s32 2, %v4469
    %v4471 = vrot.slane %v4456, %v4470
    %v4472 = vlaneseq
    %v4473 = vshrl.u32 %v4472, 7
    %v4474 = vsub.s32 3, %v4473
    %v4475 = vrot.slane %v4456, %v4474
    %v4476 = vlaneseq
    %v4477 = vshrl.u32 %v4476, 7
    %v4478 = vsub.s32 4, %v4477
    %v4479 = vrot.slane %v4456, %v4478
    %v4480 = vlaneseq
    %v4481 = vshrl.u32 %v4480, 7
    %v4482 = vsub.s32 5, %v4481
    %v4483 = vrot.slane %v4456, %v4482
    %v4484 = vlaneseq
    %v4485 = vshrl.u32 %v4484, 7
    %v4486 = vsub.s32 6, %v4485
    %v4487 = vrot.slane %v4456, %v4486
    %v4488 = vlaneseq
    %v4489 = vshrl.u32 %v4488, 7
    %v4490 = vsub.s32 7, %v4489
    %v4491 = vrot.slane %v4456, %v4490
    %v4492 = vlaneseq
    %v4493 = vshrl.u32 %v4492, 7
    %v4494 = vsub.s32 0, %v4493
    %v4495 = vrot.slane %v4457, %v4494
    %v4496 = vlaneseq
    %v4497 = vshrl.u32 %v4496, 7
    %v4498 = vsub.s32 1, %v4497
    %v4499 = vrot.slane %v4457, %v4498
    %v4500 = vlaneseq
    %v4501 = vshrl.u32 %v4500, 7
    %v4502 = vsub.s32 2, %v4501
    %v4503 = vrot.slane %v4457, %v4502
    %v4504 = vlaneseq
    %v4505 = vshrl.u32 %v4504, 7
    %v4506 = vsub.s32 3, %v4505
    %v4507 = vrot.slane %v4457, %v4506
    %v4508 = vlaneseq
    %v4509 = vshrl.u32 %v4508, 7
    %v4510 = vsub.s32 4, %v4509
    %v4511 = vrot.slane %v4457, %v4510
    %v4512 = vlaneseq
    %v4513 = vshrl.u32 %v4512, 7
    %v4514 = vsub.s32 5, %v4513
    %v4515 = vrot.slane %v4457, %v4514
    %v4516 = vlaneseq
    %v4517 = vshrl.u32 %v4516, 7
    %v4518 = vsub.s32 6, %v4517
    %v4519 = vrot.slane %v4457, %v4518
    %v4520 = vlaneseq
    %v4521 = vshrl.u32 %v4520, 7
    %v4522 = vsub.s32 7, %v4521
    %v4523 = vrot.slane %v4457, %v4522
    %v4542 = vunpack.c.l.b16 %v3941
    %v4543 = vunpack.c.h.b16 %v3941
    %v4544 = vunpack.c.l.b16 %v3942
    %v4545 = vunpack.c.h.b16 %v3942
    %v4546 = vpack.c.b16 %v4542, %v4542
    %v4547 = vpack.c.b16 %v4543, %v4543
    %v4548 = vpack.c.b16 %v4544, %v4544
    %v4549 = vpack.c.b16 %v4545, %v4545
    %v5066 = vunpack.c.l.b16 %v3943
    %v5067 = vunpack.c.h.b16 %v3943
    %v5068 = vunpack.c.l.b16 %v3944
    %v5069 = vunpack.c.h.b16 %v3944
    %v5070 = vunpack.c.l.b16 %v3945
    %v5071 = vunpack.c.h.b16 %v3945
    %v5072 = vunpack.c.l.b16 %v3946
    %v5073 = vunpack.c.h.b16 %v3946
    %v5074 = vunpack.c.l.b16 %v3947
    %v5075 = vunpack.c.h.b16 %v3947
    %v5076 = vunpack.c.l.b16 %v3948
    %v5077 = vunpack.c.h.b16 %v3948
    %v5078 = vunpack.c.l.b16 %v3949
    %v5079 = vunpack.c.h.b16 %v3949
    %v5080 = vunpack.c.l.b16 %v3950
    %v5081 = vunpack.c.h.b16 %v3950
    %v5082 = vunpack.c.l.b16 %v3951
    %v5083 = vunpack.c.h.b16 %v3951
    %v5084 = vunpack.c.l.b16 %v3952
    %v5085 = vunpack.c.h.b16 %v3952
    %v5086 = vunpack.c.l.b16 %v3953
    %v5087 = vunpack.c.h.b16 %v3953
    %v5088 = vunpack.c.l.b16 %v3954
    %v5089 = vunpack.c.h.b16 %v3954
    %v5090 = vunpack.c.l.b16 %v3955
    %v5091 = vunpack.c.h.b16 %v3955
    %v5092 = vunpack.c.l.b16 %v3956
    %v5093 = vunpack.c.h.b16 %v3956
    %v5094 = vunpack.c.l.b16 %v3957
    %v5095 = vunpack.c.h.b16 %v3957
    %v5096 = vunpack.c.l.b16 %v3958
    %v5097 = vunpack.c.h.b16 %v3958
    %v5098 = vunpack.c.l.b16 %v3959
    %v5099 = vunpack.c.h.b16 %v3959
    %v5100 = vunpack.c.l.b16 %v3960
    %v5101 = vunpack.c.h.b16 %v3960
    %v5102 = vunpack.c.l.b16 %v3961
    %v5103 = vunpack.c.h.b16 %v3961
    %v5104 = vunpack.c.l.b16 %v3962
    %v5105 = vunpack.c.h.b16 %v3962
    %v5106 = vunpack.c.l.b16 %v3963
    %v5107 = vunpack.c.h.b16 %v3963
    %v5108 = vunpack.c.l.b16 %v3964
    %v5109 = vunpack.c.h.b16 %v3964
    %v5110 = vunpack.c.l.b16 %v3965
    %v5111 = vunpack.c.h.b16 %v3965
    %v5112 = vunpack.c.l.b16 %v3966
    %v5113 = vunpack.c.h.b16 %v3966
    %v5114 = vunpack.c.l.b16 %v3967
    %v5115 = vunpack.c.h.b16 %v3967
    %v5116 = vunpack.c.l.b16 %v3968
    %v5117 = vunpack.c.h.b16 %v3968
    %v5118 = vunpack.c.l.b16 %v3969
    %v5119 = vunpack.c.h.b16 %v3969
    %v5120 = vunpack.c.l.b16 %v3970
    %v5121 = vunpack.c.h.b16 %v3970
    %v5122 = vunpack.c.l.b16 %v3971
    %v5123 = vunpack.c.h.b16 %v3971
    %v5124 = vunpack.c.l.b16 %v3972
    %v5125 = vunpack.c.h.b16 %v3972
    %v5126 = vunpack.c.l.b16 %v3973
    %v5127 = vunpack.c.h.b16 %v3973
    %v5128 = vunpack.c.l.b16 %v3974
    %v5129 = vunpack.c.h.b16 %v3974
    %v5130 = vunpack.c.l.b16 %v3975
    %v5131 = vunpack.c.h.b16 %v3975
    %v5132 = vunpack.c.l.b16 %v3976
    %v5133 = vunpack.c.h.b16 %v3976
    %v5134 = vunpack.c.l.b16 %v3977
    %v5135 = vunpack.c.h.b16 %v3977
    %v5136 = vunpack.c.l.b16 %v3978
    %v5137 = vunpack.c.h.b16 %v3978
    %v5138 = vunpack.c.l.b16 %v3979
    %v5139 = vunpack.c.h.b16 %v3979
    %v5140 = vunpack.c.l.b16 %v3980
    %v5141 = vunpack.c.h.b16 %v3980
    %v5142 = vunpack.c.l.b16 %v3981
    %v5143 = vunpack.c.h.b16 %v3981
    %v5144 = vunpack.c.l.b16 %v3982
    %v5145 = vunpack.c.h.b16 %v3982
    %v5146 = vunpack.c.l.b16 %v3983
    %v5147 = vunpack.c.h.b16 %v3983
    %v5148 = vunpack.c.l.b16 %v3984
    %v5149 = vunpack.c.h.b16 %v3984
    %v5150 = vunpack.c.l.b16 %v3985
    %v5151 = vunpack.c.h.b16 %v3985
    %v5152 = vunpack.c.l.b16 %v3986
    %v5153 = vunpack.c.h.b16 %v3986
    %v5154 = vunpack.c.l.b16 %v3987
    %v5155 = vunpack.c.h.b16 %v3987
    %v5156 = vunpack.c.l.b16 %v3988
    %v5157 = vunpack.c.h.b16 %v3988
    %v5158 = vunpack.c.l.b16 %v3989
    %v5159 = vunpack.c.h.b16 %v3989
    %v5160 = vunpack.c.l.b16 %v3990
    %v5161 = vunpack.c.h.b16 %v3990
    %v5162 = vunpack.c.l.b16 %v3991
    %v5163 = vunpack.c.h.b16 %v3991
    %v5164 = vunpack.c.l.b16 %v3992
    %v5165 = vunpack.c.h.b16 %v3992
    %v5166 = vunpack.c.l.b16 %v3993
    %v5167 = vunpack.c.h.b16 %v3993
    %v5168 = vunpack.c.l.b16 %v3994
    %v5169 = vunpack.c.h.b16 %v3994
    %v5170 = vunpack.c.l.b16 %v3995
    %v5171 = vunpack.c.h.b16 %v3995
    %v5172 = vunpack.c.l.b16 %v3996
    %v5173 = vunpack.c.h.b16 %v3996
    %v5174 = vunpack.c.l.b16 %v3997
    %v5175 = vunpack.c.h.b16 %v3997
    %v5176 = vunpack.c.l.b16 %v3998
    %v5177 = vunpack.c.h.b16 %v3998
    %v5178 = vunpack.c.l.b16 %v3999
    %v5179 = vunpack.c.h.b16 %v3999
    %v5180 = vunpack.c.l.b16 %v4000
    %v5181 = vunpack.c.h.b16 %v4000
    %v5182 = vunpack.c.l.b16 %v4001
    %v5183 = vunpack.c.h.b16 %v4001
    %v5184 = vunpack.c.l.b16 %v4002
    %v5185 = vunpack.c.h.b16 %v4002
    %v5186 = vunpack.c.l.b16 %v4003
    %v5187 = vunpack.c.h.b16 %v4003
    %v5188 = vunpack.c.l.b16 %v4004
    %v5189 = vunpack.c.h.b16 %v4004
    %v5190 = vunpack.c.l.b16 %v4005
    %v5191 = vunpack.c.h.b16 %v4005
    %v5192 = vunpack.c.l.b16 %v4006
    %v5193 = vunpack.c.h.b16 %v4006
    %v5194 = vunpack.c.l.b16 %v4007
    %v5195 = vunpack.c.h.b16 %v4007
    %v5196 = vunpack.c.l.b16 %v4008
    %v5197 = vunpack.c.h.b16 %v4008
    %v5198 = vunpack.c.l.b16 %v4009
    %v5199 = vunpack.c.h.b16 %v4009
    %v5200 = vunpack.c.l.b16 %v4010
    %v5201 = vunpack.c.h.b16 %v4010
    %v5202 = vunpack.c.l.b16 %v4011
    %v5203 = vunpack.c.h.b16 %v4011
    %v5204 = vunpack.c.l.b16 %v4012
    %v5205 = vunpack.c.h.b16 %v4012
    %v5206 = vunpack.c.l.b16 %v4013
    %v5207 = vunpack.c.h.b16 %v4013
    %v5208 = vunpack.c.l.b16 %v4014
    %v5209 = vunpack.c.h.b16 %v4014
    %v5210 = vunpack.c.l.b16 %v4015
    %v5211 = vunpack.c.h.b16 %v4015
    %v5212 = vunpack.c.l.b16 %v4016
    %v5213 = vunpack.c.h.b16 %v4016
    %v5214 = vunpack.c.l.b16 %v4017
    %v5215 = vunpack.c.h.b16 %v4017
    %v5216 = vunpack.c.l.b16 %v4018
    %v5217 = vunpack.c.h.b16 %v4018
    %v5218 = vunpack.c.l.b16 %v4019
    %v5219 = vunpack.c.h.b16 %v4019
    %v5220 = vunpack.c.l.b16 %v4020
    %v5221 = vunpack.c.h.b16 %v4020
    %v5222 = vunpack.c.l.b16 %v4021
    %v5223 = vunpack.c.h.b16 %v4021
    %v5224 = vunpack.c.l.b16 %v4022
    %v5225 = vunpack.c.h.b16 %v4022
    %v5226 = vunpack.c.l.b16 %v4023
    %v5227 = vunpack.c.h.b16 %v4023
    %v5228 = vunpack.c.l.b16 %v4024
    %v5229 = vunpack.c.h.b16 %v4024
    %v5230 = vunpack.c.l.b16 %v4025
    %v5231 = vunpack.c.h.b16 %v4025
    %v5232 = vunpack.c.l.b16 %v4026
    %v5233 = vunpack.c.h.b16 %v4026
    %v5234 = vunpack.c.l.b16 %v4027
    %v5235 = vunpack.c.h.b16 %v4027
    %v5236 = vunpack.c.l.b16 %v4028
    %v5237 = vunpack.c.h.b16 %v4028
    %v5238 = vunpack.c.l.b16 %v4029
    %v5239 = vunpack.c.h.b16 %v4029
    %v5240 = vunpack.c.l.b16 %v4030
    %v5241 = vunpack.c.h.b16 %v4030
    %v5242 = vunpack.c.l.b16 %v4031
    %v5243 = vunpack.c.h.b16 %v4031
    %v5244 = vunpack.c.l.b16 %v4032
    %v5245 = vunpack.c.h.b16 %v4032
    %v5246 = vunpack.c.l.b16 %v4033
    %v5247 = vunpack.c.h.b16 %v4033
    %v5248 = vunpack.c.l.b16 %v4034
    %v5249 = vunpack.c.h.b16 %v4034
    %v5250 = vunpack.c.l.b16 %v4035
    %v5251 = vunpack.c.h.b16 %v4035
    %v5252 = vunpack.c.l.b16 %v4036
    %v5253 = vunpack.c.h.b16 %v4036
    %v5254 = vunpack.c.l.b16 %v4037
    %v5255 = vunpack.c.h.b16 %v4037
    %v5256 = vunpack.c.l.b16 %v4038
    %v5257 = vunpack.c.h.b16 %v4038
    %v5258 = vunpack.c.l.b16 %v4039
    %v5259 = vunpack.c.h.b16 %v4039
    %v5260 = vunpack.c.l.b16 %v4040
    %v5261 = vunpack.c.h.b16 %v4040
    %v5262 = vunpack.c.l.b16 %v4041
    %v5263 = vunpack.c.h.b16 %v4041
    %v5264 = vunpack.c.l.b16 %v4042
    %v5265 = vunpack.c.h.b16 %v4042
    %v5266 = vunpack.c.l.b16 %v4043
    %v5267 = vunpack.c.h.b16 %v4043
    %v5268 = vunpack.c.l.b16 %v4044
    %v5269 = vunpack.c.h.b16 %v4044
    %v5270 = vunpack.c.l.b16 %v4045
    %v5271 = vunpack.c.h.b16 %v4045
    %v5272 = vunpack.c.l.b16 %v4046
    %v5273 = vunpack.c.h.b16 %v4046
    %v5274 = vunpack.c.l.b16 %v4047
    %v5275 = vunpack.c.h.b16 %v4047
    %v5276 = vunpack.c.l.b16 %v4048
    %v5277 = vunpack.c.h.b16 %v4048
    %v5278 = vunpack.c.l.b16 %v4049
    %v5279 = vunpack.c.h.b16 %v4049
    %v5280 = vunpack.c.l.b16 %v4050
    %v5281 = vunpack.c.h.b16 %v4050
    %v5282 = vunpack.c.l.b16 %v4051
    %v5283 = vunpack.c.h.b16 %v4051
    %v5284 = vunpack.c.l.b16 %v4052
    %v5285 = vunpack.c.h.b16 %v4052
    %v5286 = vunpack.c.l.b16 %v4053
    %v5287 = vunpack.c.h.b16 %v4053
    %v5288 = vunpack.c.l.b16 %v4054
    %v5289 = vunpack.c.h.b16 %v4054
    %v5290 = vunpack.c.l.b16 %v4055
    %v5291 = vunpack.c.h.b16 %v4055
    %v5292 = vunpack.c.l.b16 %v4056
    %v5293 = vunpack.c.h.b16 %v4056
    %v5294 = vunpack.c.l.b16 %v4057
    %v5295 = vunpack.c.h.b16 %v4057
    %v5296 = vunpack.c.l.b16 %v4058
    %v5297 = vunpack.c.h.b16 %v4058
    %v5298 = vunpack.c.l.b16 %v4059
    %v5299 = vunpack.c.h.b16 %v4059
    %v5300 = vunpack.c.l.b16 %v4060
    %v5301 = vunpack.c.h.b16 %v4060
    %v5302 = vunpack.c.l.b16 %v4061
    %v5303 = vunpack.c.h.b16 %v4061
    %v5304 = vunpack.c.l.b16 %v4062
    %v5305 = vunpack.c.h.b16 %v4062
    %v5306 = vunpack.c.l.b16 %v4063
    %v5307 = vunpack.c.h.b16 %v4063
    %v5308 = vunpack.c.l.b16 %v4064
    %v5309 = vunpack.c.h.b16 %v4064
    %v5310 = vunpack.c.l.b16 %v4065
    %v5311 = vunpack.c.h.b16 %v4065
    %v5312 = vunpack.c.l.b16 %v4066
    %v5313 = vunpack.c.h.b16 %v4066
    %v5314 = vunpack.c.l.b16 %v4067
    %v5315 = vunpack.c.h.b16 %v4067
    %v5316 = vunpack.c.l.b16 %v4068
    %v5317 = vunpack.c.h.b16 %v4068
    %v5318 = vunpack.c.l.b16 %v4069
    %v5319 = vunpack.c.h.b16 %v4069
    %v5320 = vunpack.c.l.b16 %v4070
    %v5321 = vunpack.c.h.b16 %v4070
    %v5322 = vunpack.c.l.b16 %v4071
    %v5323 = vunpack.c.h.b16 %v4071
    %v5324 = vunpack.c.l.b16 %v4072
    %v5325 = vunpack.c.h.b16 %v4072
    %v5326 = vunpack.c.l.b16 %v4073
    %v5327 = vunpack.c.h.b16 %v4073
    %v5328 = vunpack.c.l.b16 %v4074
    %v5329 = vunpack.c.h.b16 %v4074
    %v5330 = vunpack.c.l.b16 %v4075
    %v5331 = vunpack.c.h.b16 %v4075
    %v5332 = vunpack.c.l.b16 %v4076
    %v5333 = vunpack.c.h.b16 %v4076
    %v5334 = vunpack.c.l.b16 %v4077
    %v5335 = vunpack.c.h.b16 %v4077
    %v5336 = vunpack.c.l.b16 %v4078
    %v5337 = vunpack.c.h.b16 %v4078
    %v5338 = vunpack.c.l.b16 %v4079
    %v5339 = vunpack.c.h.b16 %v4079
    %v5340 = vunpack.c.l.b16 %v4080
    %v5341 = vunpack.c.h.b16 %v4080
    %v5342 = vunpack.c.l.b16 %v4081
    %v5343 = vunpack.c.h.b16 %v4081
    %v5344 = vunpack.c.l.b16 %v4082
    %v5345 = vunpack.c.h.b16 %v4082
    %v5346 = vunpack.c.l.b16 %v4083
    %v5347 = vunpack.c.h.b16 %v4083
    %v5348 = vunpack.c.l.b16 %v4084
    %v5349 = vunpack.c.h.b16 %v4084
    %v5350 = vunpack.c.l.b16 %v4085
    %v5351 = vunpack.c.h.b16 %v4085
    %v5352 = vunpack.c.l.b16 %v4086
    %v5353 = vunpack.c.h.b16 %v4086
    %v5354 = vunpack.c.l.b16 %v4087
    %v5355 = vunpack.c.h.b16 %v4087
    %v5356 = vunpack.c.l.b16 %v4088
    %v5357 = vunpack.c.h.b16 %v4088
    %v5358 = vunpack.c.l.b16 %v4089
    %v5359 = vunpack.c.h.b16 %v4089
    %v5360 = vunpack.c.l.b16 %v4090
    %v5361 = vunpack.c.h.b16 %v4090
    %v5362 = vunpack.c.l.b16 %v4091
    %v5363 = vunpack.c.h.b16 %v4091
    %v5364 = vunpack.c.l.b16 %v4092
    %v5365 = vunpack.c.h.b16 %v4092
    %v5366 = vunpack.c.l.b16 %v4093
    %v5367 = vunpack.c.h.b16 %v4093
    %v5368 = vunpack.c.l.b16 %v4094
    %v5369 = vunpack.c.h.b16 %v4094
    %v5370 = vunpack.c.l.b16 %v4095
    %v5371 = vunpack.c.h.b16 %v4095
    %v5372 = vunpack.c.l.b16 %v4096
    %v5373 = vunpack.c.h.b16 %v4096
    %v5374 = vunpack.c.l.b16 %v4097
    %v5375 = vunpack.c.h.b16 %v4097
    %v5376 = vunpack.c.l.b16 %v4098
    %v5377 = vunpack.c.h.b16 %v4098
    %v5378 = vunpack.c.l.b16 %v4099
    %v5379 = vunpack.c.h.b16 %v4099
    %v5380 = vunpack.c.l.b16 %v4100
    %v5381 = vunpack.c.h.b16 %v4100
    %v5382 = vunpack.c.l.b16 %v4101
    %v5383 = vunpack.c.h.b16 %v4101
    %v5384 = vunpack.c.l.b16 %v4102
    %v5385 = vunpack.c.h.b16 %v4102
    %v5386 = vunpack.c.l.b16 %v4103
    %v5387 = vunpack.c.h.b16 %v4103
    %v5388 = vunpack.c.l.b16 %v4104
    %v5389 = vunpack.c.h.b16 %v4104
    %v5390 = vunpack.c.l.b16 %v4105
    %v5391 = vunpack.c.h.b16 %v4105
    %v5392 = vunpack.c.l.b16 %v4106
    %v5393 = vunpack.c.h.b16 %v4106
    %v5394 = vunpack.c.l.b16 %v4107
    %v5395 = vunpack.c.h.b16 %v4107
    %v5396 = vunpack.c.l.b16 %v4108
    %v5397 = vunpack.c.h.b16 %v4108
    %v5398 = vunpack.c.l.b16 %v4109
    %v5399 = vunpack.c.h.b16 %v4109
    %v5400 = vunpack.c.l.b16 %v4110
    %v5401 = vunpack.c.h.b16 %v4110
    %v5402 = vunpack.c.l.b16 %v4111
    %v5403 = vunpack.c.h.b16 %v4111
    %v5404 = vunpack.c.l.b16 %v4112
    %v5405 = vunpack.c.h.b16 %v4112
    %v5406 = vunpack.c.l.b16 %v4113
    %v5407 = vunpack.c.h.b16 %v4113
    %v5408 = vunpack.c.l.b16 %v4114
    %v5409 = vunpack.c.h.b16 %v4114
    %v5410 = vunpack.c.l.b16 %v4115
    %v5411 = vunpack.c.h.b16 %v4115
    %v5412 = vunpack.c.l.b16 %v4116
    %v5413 = vunpack.c.h.b16 %v4116
    %v5414 = vunpack.c.l.b16 %v4117
    %v5415 = vunpack.c.h.b16 %v4117
    %v5416 = vunpack.c.l.b16 %v4118
    %v5417 = vunpack.c.h.b16 %v4118
    %v5418 = vunpack.c.l.b16 %v4119
    %v5419 = vunpack.c.h.b16 %v4119
    %v5420 = vunpack.c.l.b16 %v4120
    %v5421 = vunpack.c.h.b16 %v4120
    %v5422 = vunpack.c.l.b16 %v4121
    %v5423 = vunpack.c.h.b16 %v4121
    %v5424 = vunpack.c.l.b16 %v4122
    %v5425 = vunpack.c.h.b16 %v4122
    %v5426 = vunpack.c.l.b16 %v4123
    %v5427 = vunpack.c.h.b16 %v4123
    %v5428 = vunpack.c.l.b16 %v4124
    %v5429 = vunpack.c.h.b16 %v4124
    %v5430 = vunpack.c.l.b16 %v4125
    %v5431 = vunpack.c.h.b16 %v4125
    %v5432 = vunpack.c.l.b16 %v4126
    %v5433 = vunpack.c.h.b16 %v4126
    %v5434 = vunpack.c.l.b16 %v4127
    %v5435 = vunpack.c.h.b16 %v4127
    %v5436 = vunpack.c.l.b16 %v4128
    %v5437 = vunpack.c.h.b16 %v4128
    %v5438 = vunpack.c.l.b16 %v4129
    %v5439 = vunpack.c.h.b16 %v4129
    %v5440 = vunpack.c.l.b16 %v4130
    %v5441 = vunpack.c.h.b16 %v4130
    %v5442 = vunpack.c.l.b16 %v4131
    %v5443 = vunpack.c.h.b16 %v4131
    %v5444 = vunpack.c.l.b16 %v4132
    %v5445 = vunpack.c.h.b16 %v4132
    %v5446 = vunpack.c.l.b16 %v4133
    %v5447 = vunpack.c.h.b16 %v4133
    %v5448 = vunpack.c.l.b16 %v4134
    %v5449 = vunpack.c.h.b16 %v4134
    %v5450 = vunpack.c.l.b16 %v4135
    %v5451 = vunpack.c.h.b16 %v4135
    %v5452 = vunpack.c.l.b16 %v4136
    %v5453 = vunpack.c.h.b16 %v4136
    %v5454 = vunpack.c.l.b16 %v4137
    %v5455 = vunpack.c.h.b16 %v4137
    %v5456 = vunpack.c.l.b16 %v4138
    %v5457 = vunpack.c.h.b16 %v4138
    %v5458 = vunpack.c.l.b16 %v4139
    %v5459 = vunpack.c.h.b16 %v4139
    %v5460 = vunpack.c.l.b16 %v4140
    %v5461 = vunpack.c.h.b16 %v4140
    %v5462 = vunpack.c.l.b16 %v4141
    %v5463 = vunpack.c.h.b16 %v4141
    %v5464 = vunpack.c.l.b16 %v4142
    %v5465 = vunpack.c.h.b16 %v4142
    %v5466 = vunpack.c.l.b16 %v4143
    %v5467 = vunpack.c.h.b16 %v4143
    %v5468 = vunpack.c.l.b16 %v4144
    %v5469 = vunpack.c.h.b16 %v4144
    %v5470 = vunpack.c.l.b16 %v4145
    %v5471 = vunpack.c.h.b16 %v4145
    %v5472 = vunpack.c.l.b16 %v4146
    %v5473 = vunpack.c.h.b16 %v4146
    %v5474 = vunpack.c.l.b16 %v4147
    %v5475 = vunpack.c.h.b16 %v4147
    %v5476 = vunpack.c.l.b16 %v4148
    %v5477 = vunpack.c.h.b16 %v4148
    %v5478 = vunpack.c.l.b16 %v4149
    %v5479 = vunpack.c.h.b16 %v4149
    %v5480 = vunpack.c.l.b16 %v4150
    %v5481 = vunpack.c.h.b16 %v4150
    %v5482 = vunpack.c.l.b16 %v4151
    %v5483 = vunpack.c.h.b16 %v4151
    %v5484 = vunpack.c.l.b16 %v4152
    %v5485 = vunpack.c.h.b16 %v4152
    %v5486 = vunpack.c.l.b16 %v4153
    %v5487 = vunpack.c.h.b16 %v4153
    %v5488 = vunpack.c.l.b16 %v4154
    %v5489 = vunpack.c.h.b16 %v4154
    %v5490 = vunpack.c.l.b16 %v4155
    %v5491 = vunpack.c.h.b16 %v4155
    %v5492 = vunpack.c.l.b16 %v4156
    %v5493 = vunpack.c.h.b16 %v4156
    %v5494 = vunpack.c.l.b16 %v4157
    %v5495 = vunpack.c.h.b16 %v4157
    %v5496 = vunpack.c.l.b16 %v4158
    %v5497 = vunpack.c.h.b16 %v4158
    %v5498 = vunpack.c.l.b16 %v4159
    %v5499 = vunpack.c.h.b16 %v4159
    %v5500 = vunpack.c.l.b16 %v4160
    %v5501 = vunpack.c.h.b16 %v4160
    %v5502 = vunpack.c.l.b16 %v4161
    %v5503 = vunpack.c.h.b16 %v4161
    %v5504 = vunpack.c.l.b16 %v4162
    %v5505 = vunpack.c.h.b16 %v4162
    %v5506 = vunpack.c.l.b16 %v4163
    %v5507 = vunpack.c.h.b16 %v4163
    %v5508 = vunpack.c.l.b16 %v4164
    %v5509 = vunpack.c.h.b16 %v4164
    %v5510 = vunpack.c.l.b16 %v4165
    %v5511 = vunpack.c.h.b16 %v4165
    %v5512 = vunpack.c.l.b16 %v4166
    %v5513 = vunpack.c.h.b16 %v4166
    %v5514 = vunpack.c.l.b16 %v4167
    %v5515 = vunpack.c.h.b16 %v4167
    %v5516 = vunpack.c.l.b16 %v4168
    %v5517 = vunpack.c.h.b16 %v4168
    %v5518 = vunpack.c.l.b16 %v4169
    %v5519 = vunpack.c.h.b16 %v4169
    %v5520 = vunpack.c.l.b16 %v4170
    %v5521 = vunpack.c.h.b16 %v4170
    %v5522 = vunpack.c.l.b16 %v4171
    %v5523 = vunpack.c.h.b16 %v4171
    %v5524 = vunpack.c.l.b16 %v4172
    %v5525 = vunpack.c.h.b16 %v4172
    %v5526 = vunpack.c.l.b16 %v4173
    %v5527 = vunpack.c.h.b16 %v4173
    %v5528 = vunpack.c.l.b16 %v4174
    %v5529 = vunpack.c.h.b16 %v4174
    %v5530 = vunpack.c.l.b16 %v4175
    %v5531 = vunpack.c.h.b16 %v4175
    %v5532 = vunpack.c.l.b16 %v4176
    %v5533 = vunpack.c.h.b16 %v4176
    %v5534 = vunpack.c.l.b16 %v4177
    %v5535 = vunpack.c.h.b16 %v4177
    %v5536 = vunpack.c.l.b16 %v4178
    %v5537 = vunpack.c.h.b16 %v4178
    %v5538 = vunpack.c.l.b16 %v4179
    %v5539 = vunpack.c.h.b16 %v4179
    %v5540 = vunpack.c.l.b16 %v4180
    %v5541 = vunpack.c.h.b16 %v4180
    %v5542 = vunpack.c.l.b16 %v4181
    %v5543 = vunpack.c.h.b16 %v4181
    %v5544 = vunpack.c.l.b16 %v4182
    %v5545 = vunpack.c.h.b16 %v4182
    %v5546 = vunpack.c.l.b16 %v4183
    %v5547 = vunpack.c.h.b16 %v4183
    %v5548 = vunpack.c.l.b16 %v4184
    %v5549 = vunpack.c.h.b16 %v4184
    %v5550 = vunpack.c.l.b16 %v4185
    %v5551 = vunpack.c.h.b16 %v4185
    %v5552 = vunpack.c.l.b16 %v4186
    %v5553 = vunpack.c.h.b16 %v4186
    %v5554 = vunpack.c.l.b16 %v4187
    %v5555 = vunpack.c.h.b16 %v4187
    %v5556 = vunpack.c.l.b16 %v4188
    %v5557 = vunpack.c.h.b16 %v4188
    %v5558 = vunpack.c.l.b16 %v4189
    %v5559 = vunpack.c.h.b16 %v4189
    %v5560 = vunpack.c.l.b16 %v4190
    %v5561 = vunpack.c.h.b16 %v4190
    %v5562 = vunpack.c.l.b16 %v4191
    %v5563 = vunpack.c.h.b16 %v4191
    %v5564 = vunpack.c.l.b16 %v4192
    %v5565 = vunpack.c.h.b16 %v4192
    %v5566 = vunpack.c.l.b16 %v4193
    %v5567 = vunpack.c.h.b16 %v4193
    %v5568 = vunpack.c.l.b16 %v4194
    %v5569 = vunpack.c.h.b16 %v4194
    %v5570 = vunpack.c.l.b16 %v4195
    %v5571 = vunpack.c.h.b16 %v4195
    %v5572 = vunpack.c.l.b16 %v4196
    %v5573 = vunpack.c.h.b16 %v4196
    %v5574 = vunpack.c.l.b16 %v4197
    %v5575 = vunpack.c.h.b16 %v4197
    %v5576 = vunpack.c.l.b16 %v4198
    %v5577 = vunpack.c.h.b16 %v4198
    %v5578 = vunpack.c.l.b16 %v4199
    %v5579 = vunpack.c.h.b16 %v4199
    %v5580 = vunpack.c.l.b16 %v4200
    %v5581 = vunpack.c.h.b16 %v4200
    %v5582 = vunpack.c.l.b16 %v4201
    %v5583 = vunpack.c.h.b16 %v4201
    %v5584 = vunpack.c.l.b16 %v4202
    %v5585 = vunpack.c.h.b16 %v4202
    %v5586 = vunpack.c.l.b16 %v4203
    %v5587 = vunpack.c.h.b16 %v4203
    %v5588 = vunpack.c.l.b16 %v4204
    %v5589 = vunpack.c.h.b16 %v4204
    %v5590 = vunpack.c.l.b16 %v4205
    %v5591 = vunpack.c.h.b16 %v4205
    %v5592 = vunpack.c.l.b16 %v4206
    %v5593 = vunpack.c.h.b16 %v4206
    %v5594 = vunpack.c.l.b16 %v4207
    %v5595 = vunpack.c.h.b16 %v4207
    %v5596 = vunpack.c.l.b16 %v4208
    %v5597 = vunpack.c.h.b16 %v4208
    %v5598 = vunpack.c.l.b16 %v4209
    %v5599 = vunpack.c.h.b16 %v4209
    %v5600 = vunpack.c.l.b16 %v4210
    %v5601 = vunpack.c.h.b16 %v4210
    %v5602 = vunpack.c.l.b16 %v4211
    %v5603 = vunpack.c.h.b16 %v4211
    %v5604 = vunpack.c.l.b16 %v4212
    %v5605 = vunpack.c.h.b16 %v4212
    %v5606 = vunpack.c.l.b16 %v4213
    %v5607 = vunpack.c.h.b16 %v4213
    %v5608 = vunpack.c.l.b16 %v4214
    %v5609 = vunpack.c.h.b16 %v4214
    %v5610 = vunpack.c.l.b16 %v4215
    %v5611 = vunpack.c.h.b16 %v4215
    %v5612 = vunpack.c.l.b16 %v4216
    %v5613 = vunpack.c.h.b16 %v4216
    %v5614 = vunpack.c.l.b16 %v4217
    %v5615 = vunpack.c.h.b16 %v4217
    %v5616 = vunpack.c.l.b16 %v4218
    %v5617 = vunpack.c.h.b16 %v4218
    %v5618 = vunpack.c.l.b16 %v4219
    %v5619 = vunpack.c.h.b16 %v4219
    %v5620 = vunpack.c.l.b16 %v4220
    %v5621 = vunpack.c.h.b16 %v4220
    %v5622 = vunpack.c.l.b16 %v4221
    %v5623 = vunpack.c.h.b16 %v4221
    %v5624 = vunpack.c.l.b16 %v4222
    %v5625 = vunpack.c.h.b16 %v4222
    %v5626 = vunpack.c.l.b16 %v4223
    %v5627 = vunpack.c.h.b16 %v4223
    %v5628 = vunpack.c.l.b16 %v4224
    %v5629 = vunpack.c.h.b16 %v4224
    %v5630 = vunpack.c.l.b16 %v4225
    %v5631 = vunpack.c.h.b16 %v4225
    %v5632 = vunpack.c.l.b16 %v4226
    %v5633 = vunpack.c.h.b16 %v4226
    %v5634 = vunpack.c.l.b16 %v4227
    %v5635 = vunpack.c.h.b16 %v4227
    %v5636 = vunpack.c.l.b16 %v4228
    %v5637 = vunpack.c.h.b16 %v4228
    %v5638 = vunpack.c.l.b16 %v4229
    %v5639 = vunpack.c.h.b16 %v4229
    %v5640 = vunpack.c.l.b16 %v4230
    %v5641 = vunpack.c.h.b16 %v4230
    %v5642 = vunpack.c.l.b16 %v4231
    %v5643 = vunpack.c.h.b16 %v4231
    %v5644 = vunpack.c.l.b16 %v4232
    %v5645 = vunpack.c.h.b16 %v4232
    %v5646 = vunpack.c.l.b16 %v4233
    %v5647 = vunpack.c.h.b16 %v4233
    %v5648 = vunpack.c.l.b16 %v4234
    %v5649 = vunpack.c.h.b16 %v4234
    %v5650 = vunpack.c.l.b16 %v4235
    %v5651 = vunpack.c.h.b16 %v4235
    %v5652 = vunpack.c.l.b16 %v4236
    %v5653 = vunpack.c.h.b16 %v4236
    %v5654 = vunpack.c.l.b16 %v4237
    %v5655 = vunpack.c.h.b16 %v4237
    %v5656 = vunpack.c.l.b16 %v4238
    %v5657 = vunpack.c.h.b16 %v4238
    %v5658 = vunpack.c.l.b16 %v4239
    %v5659 = vunpack.c.h.b16 %v4239
    %v5660 = vunpack.c.l.b16 %v4240
    %v5661 = vunpack.c.h.b16 %v4240
    %v5662 = vunpack.c.l.b16 %v4241
    %v5663 = vunpack.c.h.b16 %v4241
    %v5664 = vunpack.c.l.b16 %v4242
    %v5665 = vunpack.c.h.b16 %v4242
    %v5666 = vunpack.c.l.b16 %v4243
    %v5667 = vunpack.c.h.b16 %v4243
    %v5668 = vunpack.c.l.b16 %v4244
    %v5669 = vunpack.c.h.b16 %v4244
    %v5670 = vunpack.c.l.b16 %v4245
    %v5671 = vunpack.c.h.b16 %v4245
    %v5672 = vunpack.c.l.b16 %v4246
    %v5673 = vunpack.c.h.b16 %v4246
    %v5674 = vunpack.c.l.b16 %v4247
    %v5675 = vunpack.c.h.b16 %v4247
    %v5676 = vunpack.c.l.b16 %v4248
    %v5677 = vunpack.c.h.b16 %v4248
    %v5678 = vunpack.c.l.b16 %v4249
    %v5679 = vunpack.c.h.b16 %v4249
    %v5680 = vunpack.c.l.b16 %v4250
    %v5681 = vunpack.c.h.b16 %v4250
    %v5682 = vunpack.c.l.b16 %v4251
    %v5683 = vunpack.c.h.b16 %v4251
    %v5684 = vunpack.c.l.b16 %v4252
    %v5685 = vunpack.c.h.b16 %v4252
    %v5686 = vunpack.c.l.b16 %v4253
    %v5687 = vunpack.c.h.b16 %v4253
    %v5688 = vunpack.c.l.b16 %v4254
    %v5689 = vunpack.c.h.b16 %v4254
    %v5690 = vunpack.c.l.b16 %v4255
    %v5691 = vunpack.c.h.b16 %v4255
    %v5692 = vunpack.c.l.b16 %v4256
    %v5693 = vunpack.c.h.b16 %v4256
    %v5694 = vunpack.c.l.b16 %v4257
    %v5695 = vunpack.c.h.b16 %v4257
    %v5696 = vunpack.c.l.b16 %v4258
    %v5697 = vunpack.c.h.b16 %v4258
    %v5698 = vunpack.c.l.b16 %v4259
    %v5699 = vunpack.c.h.b16 %v4259
    %v5700 = vunpack.c.l.b16 %v4260
    %v5701 = vunpack.c.h.b16 %v4260
    %v5702 = vunpack.c.l.b16 %v4261
    %v5703 = vunpack.c.h.b16 %v4261
    %v5704 = vunpack.c.l.b16 %v4262
    %v5705 = vunpack.c.h.b16 %v4262
    %v5706 = vunpack.c.l.b16 %v4263
    %v5707 = vunpack.c.h.b16 %v4263
    %v5708 = vunpack.c.l.b16 %v4264
    %v5709 = vunpack.c.h.b16 %v4264
    %v5710 = vunpack.c.l.b16 %v4265
    %v5711 = vunpack.c.h.b16 %v4265
    %v5712 = vunpack.c.l.b16 %v4266
    %v5713 = vunpack.c.h.b16 %v4266
    %v5714 = vunpack.c.l.b16 %v4267
    %v5715 = vunpack.c.h.b16 %v4267
    %v5716 = vunpack.c.l.b16 %v4268
    %v5717 = vunpack.c.h.b16 %v4268
    %v5718 = vunpack.c.l.b16 %v4269
    %v5719 = vunpack.c.h.b16 %v4269
    %v5720 = vunpack.c.l.b16 %v4270
    %v5721 = vunpack.c.h.b16 %v4270
    %v5722 = vunpack.c.l.b16 %v4271
    %v5723 = vunpack.c.h.b16 %v4271
    %v5724 = vunpack.c.l.b16 %v4272
    %v5725 = vunpack.c.h.b16 %v4272
    %v5726 = vunpack.c.l.b16 %v4273
    %v5727 = vunpack.c.h.b16 %v4273
    %v5728 = vunpack.c.l.b16 %v4274
    %v5729 = vunpack.c.h.b16 %v4274
    %v5730 = vunpack.c.l.b16 %v4275
    %v5731 = vunpack.c.h.b16 %v4275
    %v5732 = vunpack.c.l.b16 %v4276
    %v5733 = vunpack.c.h.b16 %v4276
    %v5734 = vunpack.c.l.b16 %v4277
    %v5735 = vunpack.c.h.b16 %v4277
    %v5736 = vunpack.c.l.b16 %v4278
    %v5737 = vunpack.c.h.b16 %v4278
    %v5738 = vunpack.c.l.b16 %v4279
    %v5739 = vunpack.c.h.b16 %v4279
    %v5740 = vunpack.c.l.b16 %v4280
    %v5741 = vunpack.c.h.b16 %v4280
    %v5742 = vunpack.c.l.b16 %v4281
    %v5743 = vunpack.c.h.b16 %v4281
    %v5744 = vunpack.c.l.b16 %v4282
    %v5745 = vunpack.c.h.b16 %v4282
    %v5746 = vunpack.c.l.b16 %v4283
    %v5747 = vunpack.c.h.b16 %v4283
    %v5748 = vunpack.c.l.b16 %v4284
    %v5749 = vunpack.c.h.b16 %v4284
    %v5750 = vunpack.c.l.b16 %v4285
    %v5751 = vunpack.c.h.b16 %v4285
    %v5752 = vunpack.c.l.b16 %v4286
    %v5753 = vunpack.c.h.b16 %v4286
    %v5754 = vunpack.c.l.b16 %v4287
    %v5755 = vunpack.c.h.b16 %v4287
    %v5756 = vunpack.c.l.b16 %v4288
    %v5757 = vunpack.c.h.b16 %v4288
    %v5758 = vunpack.c.l.b16 %v4289
    %v5759 = vunpack.c.h.b16 %v4289
    %v5760 = vunpack.c.l.b16 %v4290
    %v5761 = vunpack.c.h.b16 %v4290
    %v5762 = vunpack.c.l.b16 %v4291
    %v5763 = vunpack.c.h.b16 %v4291
    %v5764 = vunpack.c.l.b16 %v4292
    %v5765 = vunpack.c.h.b16 %v4292
    %v5766 = vunpack.c.l.b16 %v4293
    %v5767 = vunpack.c.h.b16 %v4293
    %v5768 = vunpack.c.l.b16 %v4294
    %v5769 = vunpack.c.h.b16 %v4294
    %v5770 = vunpack.c.l.b16 %v4295
    %v5771 = vunpack.c.h.b16 %v4295
    %v5772 = vunpack.c.l.b16 %v4296
    %v5773 = vunpack.c.h.b16 %v4296
    %v5774 = vunpack.c.l.b16 %v4297
    %v5775 = vunpack.c.h.b16 %v4297
    %v5776 = vunpack.c.l.b16 %v4298
    %v5777 = vunpack.c.h.b16 %v4298
    %v5778 = vunpack.c.l.b16 %v4299
    %v5779 = vunpack.c.h.b16 %v4299
    %v5780 = vunpack.c.l.b16 %v4300
    %v5781 = vunpack.c.h.b16 %v4300
    %v5782 = vunpack.c.l.b16 %v4301
    %v5783 = vunpack.c.h.b16 %v4301
    %v5784 = vunpack.c.l.b16 %v4302
    %v5785 = vunpack.c.h.b16 %v4302
    %v5786 = vunpack.c.l.b16 %v4303
    %v5787 = vunpack.c.h.b16 %v4303
    %v5788 = vunpack.c.l.b16 %v4304
    %v5789 = vunpack.c.h.b16 %v4304
    %v5790 = vunpack.c.l.b16 %v4305
    %v5791 = vunpack.c.h.b16 %v4305
    %v5792 = vunpack.c.l.b16 %v4306
    %v5793 = vunpack.c.h.b16 %v4306
    %v5794 = vunpack.c.l.b16 %v4307
    %v5795 = vunpack.c.h.b16 %v4307
    %v5796 = vunpack.c.l.b16 %v4308
    %v5797 = vunpack.c.h.b16 %v4308
    %v5798 = vunpack.c.l.b16 %v4309
    %v5799 = vunpack.c.h.b16 %v4309
    %v5800 = vunpack.c.l.b16 %v4310
    %v5801 = vunpack.c.h.b16 %v4310
    %v5802 = vunpack.c.l.b16 %v4311
    %v5803 = vunpack.c.h.b16 %v4311
    %v5804 = vunpack.c.l.b16 %v4312
    %v5805 = vunpack.c.h.b16 %v4312
    %v5806 = vunpack.c.l.b16 %v4313
    %v5807 = vunpack.c.h.b16 %v4313
    %v5808 = vunpack.c.l.b16 %v4314
    %v5809 = vunpack.c.h.b16 %v4314
    %v5810 = vunpack.c.l.b16 %v4315
    %v5811 = vunpack.c.h.b16 %v4315
    %v5812 = vunpack.c.l.b16 %v4316
    %v5813 = vunpack.c.h.b16 %v4316
    %v5814 = vunpack.c.l.b16 %v4317
    %v5815 = vunpack.c.h.b16 %v4317
    %v5816 = vunpack.c.l.b16 %v4318
    %v5817 = vunpack.c.h.b16 %v4318
    %v5818 = vunpack.c.l.b16 %v4319
    %v5819 = vunpack.c.h.b16 %v4319
    %v5820 = vunpack.c.l.b16 %v4320
    %v5821 = vunpack.c.h.b16 %v4320
    %v5822 = vunpack.c.l.b16 %v4321
    %v5823 = vunpack.c.h.b16 %v4321
    %v5824 = vunpack.c.l.b16 %v4322
    %v5825 = vunpack.c.h.b16 %v4322
    %v5826 = vunpack.c.l.b16 %v4323
    %v5827 = vunpack.c.h.b16 %v4323
    %v5828 = vunpack.c.l.b16 %v4324
    %v5829 = vunpack.c.h.b16 %v4324
    %v5830 = vunpack.c.l.b16 %v4325
    %v5831 = vunpack.c.h.b16 %v4325
    %v5832 = vunpack.c.l.b16 %v4326
    %v5833 = vunpack.c.h.b16 %v4326
    %v5834 = vunpack.c.l.b16 %v4327
    %v5835 = vunpack.c.h.b16 %v4327
    %v5836 = vunpack.c.l.b16 %v4328
    %v5837 = vunpack.c.h.b16 %v4328
    %v5838 = vunpack.c.l.b16 %v4329
    %v5839 = vunpack.c.h.b16 %v4329
    %v5840 = vunpack.c.l.b16 %v4330
    %v5841 = vunpack.c.h.b16 %v4330
    %v5842 = vunpack.c.l.b16 %v4331
    %v5843 = vunpack.c.h.b16 %v4331
    %v5844 = vunpack.c.l.b16 %v4332
    %v5845 = vunpack.c.h.b16 %v4332
    %v5846 = vunpack.c.l.b16 %v4333
    %v5847 = vunpack.c.h.b16 %v4333
    %v5848 = vunpack.c.l.b16 %v4334
    %v5849 = vunpack.c.h.b16 %v4334
    %v5850 = vunpack.c.l.b16 %v4335
    %v5851 = vunpack.c.h.b16 %v4335
    %v5852 = vunpack.c.l.b16 %v4336
    %v5853 = vunpack.c.h.b16 %v4336
    %v5854 = vunpack.c.l.b16 %v4337
    %v5855 = vunpack.c.h.b16 %v4337
    %v5856 = vunpack.c.l.b16 %v4338
    %v5857 = vunpack.c.h.b16 %v4338
    %v5858 = vunpack.c.l.b16 %v4339
    %v5859 = vunpack.c.h.b16 %v4339
    %v5860 = vunpack.c.l.b16 %v4340
    %v5861 = vunpack.c.h.b16 %v4340
    %v5862 = vunpack.c.l.b16 %v4341
    %v5863 = vunpack.c.h.b16 %v4341
    %v5864 = vunpack.c.l.b16 %v4342
    %v5865 = vunpack.c.h.b16 %v4342
    %v5866 = vunpack.c.l.b16 %v4343
    %v5867 = vunpack.c.h.b16 %v4343
    %v5868 = vunpack.c.l.b16 %v4344
    %v5869 = vunpack.c.h.b16 %v4344
    %v5870 = vunpack.c.l.b16 %v4345
    %v5871 = vunpack.c.h.b16 %v4345
    %v5872 = vunpack.c.l.b16 %v4346
    %v5873 = vunpack.c.h.b16 %v4346
    %v5874 = vunpack.c.l.b16 %v4347
    %v5875 = vunpack.c.h.b16 %v4347
    %v5876 = vunpack.c.l.b16 %v4348
    %v5877 = vunpack.c.h.b16 %v4348
    %v5878 = vunpack.c.l.b16 %v4349
    %v5879 = vunpack.c.h.b16 %v4349
    %v5880 = vunpack.c.l.b16 %v4350
    %v5881 = vunpack.c.h.b16 %v4350
    %v5882 = vunpack.c.l.b16 %v4351
    %v5883 = vunpack.c.h.b16 %v4351
    %v5884 = vunpack.c.l.b16 %v4352
    %v5885 = vunpack.c.h.b16 %v4352
    %v5886 = vunpack.c.l.b16 %v4353
    %v5887 = vunpack.c.h.b16 %v4353
    %v5888 = vunpack.c.l.b16 %v4354
    %v5889 = vunpack.c.h.b16 %v4354
    %v5890 = vunpack.c.l.b16 %v4355
    %v5891 = vunpack.c.h.b16 %v4355
    %v5892 = vunpack.c.l.b16 %v4356
    %v5893 = vunpack.c.h.b16 %v4356
    %v5894 = vunpack.c.l.b16 %v4357
    %v5895 = vunpack.c.h.b16 %v4357
    %v5896 = vunpack.c.l.b16 %v4358
    %v5897 = vunpack.c.h.b16 %v4358
    %v5898 = vunpack.c.l.b16 %v4359
    %v5899 = vunpack.c.h.b16 %v4359
    %v5900 = vunpack.c.l.b16 %v4360
    %v5901 = vunpack.c.h.b16 %v4360
    %v5902 = vunpack.c.l.b16 %v4361
    %v5903 = vunpack.c.h.b16 %v4361
    %v5904 = vunpack.c.l.b16 %v4362
    %v5905 = vunpack.c.h.b16 %v4362
    %v5906 = vunpack.c.l.b16 %v4363
    %v5907 = vunpack.c.h.b16 %v4363
    %v5908 = vunpack.c.l.b16 %v4364
    %v5909 = vunpack.c.h.b16 %v4364
    %v5910 = vunpack.c.l.b16 %v4365
    %v5911 = vunpack.c.h.b16 %v4365
    %v5912 = vunpack.c.l.b16 %v4366
    %v5913 = vunpack.c.h.b16 %v4366
    %v5914 = vunpack.c.l.b16 %v4367
    %v5915 = vunpack.c.h.b16 %v4367
    %v5916 = vunpack.c.l.b16 %v4368
    %v5917 = vunpack.c.h.b16 %v4368
    %v5918 = vunpack.c.l.b16 %v4369
    %v5919 = vunpack.c.h.b16 %v4369
    %v5920 = vunpack.c.l.b16 %v4370
    %v5921 = vunpack.c.h.b16 %v4370
    %v5922 = vunpack.c.l.b16 %v4371
    %v5923 = vunpack.c.h.b16 %v4371
    %v5924 = vunpack.c.l.b16 %v4372
    %v5925 = vunpack.c.h.b16 %v4372
    %v5926 = vunpack.c.l.b16 %v4373
    %v5927 = vunpack.c.h.b16 %v4373
    %v5928 = vunpack.c.l.b16 %v4374
    %v5929 = vunpack.c.h.b16 %v4374
    %v5930 = vunpack.c.l.b16 %v4375
    %v5931 = vunpack.c.h.b16 %v4375
    %v5932 = vunpack.c.l.b16 %v4376
    %v5933 = vunpack.c.h.b16 %v4376
    %v5934 = vunpack.c.l.b16 %v4377
    %v5935 = vunpack.c.h.b16 %v4377
    %v5936 = vunpack.c.l.b16 %v4378
    %v5937 = vunpack.c.h.b16 %v4378
    %v5938 = vunpack.c.l.b16 %v4379
    %v5939 = vunpack.c.h.b16 %v4379
    %v5940 = vunpack.c.l.b16 %v4380
    %v5941 = vunpack.c.h.b16 %v4380
    %v5942 = vunpack.c.l.b16 %v4381
    %v5943 = vunpack.c.h.b16 %v4381
    %v5944 = vunpack.c.l.b16 %v4382
    %v5945 = vunpack.c.h.b16 %v4382
    %v5946 = vunpack.c.l.b16 %v4383
    %v5947 = vunpack.c.h.b16 %v4383
    %v5948 = vunpack.c.l.b16 %v4384
    %v5949 = vunpack.c.h.b16 %v4384
    %v5950 = vunpack.c.l.b16 %v4385
    %v5951 = vunpack.c.h.b16 %v4385
    %v5952 = vunpack.c.l.b16 %v4386
    %v5953 = vunpack.c.h.b16 %v4386
    %v5954 = vunpack.c.l.b16 %v4387
    %v5955 = vunpack.c.h.b16 %v4387
    %v5956 = vunpack.c.l.b16 %v4388
    %v5957 = vunpack.c.h.b16 %v4388
    %v5958 = vunpack.c.l.b16 %v4389
    %v5959 = vunpack.c.h.b16 %v4389
    %v5960 = vunpack.c.l.b16 %v4390
    %v5961 = vunpack.c.h.b16 %v4390
    %v5962 = vunpack.c.l.b16 %v4391
    %v5963 = vunpack.c.h.b16 %v4391
    %v5964 = vunpack.c.l.b16 %v4392
    %v5965 = vunpack.c.h.b16 %v4392
    %v5966 = vunpack.c.l.b16 %v4393
    %v5967 = vunpack.c.h.b16 %v4393
    %v5968 = vunpack.c.l.b16 %v4394
    %v5969 = vunpack.c.h.b16 %v4394
    %v5970 = vunpack.c.l.b16 %v4395
    %v5971 = vunpack.c.h.b16 %v4395
    %v5972 = vunpack.c.l.b16 %v4396
    %v5973 = vunpack.c.h.b16 %v4396
    %v5974 = vunpack.c.l.b16 %v4397
    %v5975 = vunpack.c.h.b16 %v4397
    %v5976 = vunpack.c.l.b16 %v4398
    %v5977 = vunpack.c.h.b16 %v4398
    %v5978 = vunpack.c.l.b16 %v4399
    %v5979 = vunpack.c.h.b16 %v4399
    %v5980 = vunpack.c.l.b16 %v4400
    %v5981 = vunpack.c.h.b16 %v4400
    %v5982 = vunpack.c.l.b16 %v4401
    %v5983 = vunpack.c.h.b16 %v4401
    %v5984 = vunpack.c.l.b16 %v4402
    %v5985 = vunpack.c.h.b16 %v4402
    %v5986 = vunpack.c.l.b16 %v4403
    %v5987 = vunpack.c.h.b16 %v4403
    %v5988 = vunpack.c.l.b16 %v4404
    %v5989 = vunpack.c.h.b16 %v4404
    %v5990 = vunpack.c.l.b16 %v4405
    %v5991 = vunpack.c.h.b16 %v4405
    %v5992 = vunpack.c.l.b16 %v4406
    %v5993 = vunpack.c.h.b16 %v4406
    %v5994 = vunpack.c.l.b16 %v4407
    %v5995 = vunpack.c.h.b16 %v4407
    %v5996 = vunpack.c.l.b16 %v4408
    %v5997 = vunpack.c.h.b16 %v4408
    %v5998 = vunpack.c.l.b16 %v4409
    %v5999 = vunpack.c.h.b16 %v4409
    %v6000 = vunpack.c.l.b16 %v4410
    %v6001 = vunpack.c.h.b16 %v4410
    %v6002 = vunpack.c.l.b16 %v4411
    %v6003 = vunpack.c.h.b16 %v4411
    %v6004 = vunpack.c.l.b16 %v4412
    %v6005 = vunpack.c.h.b16 %v4412
    %v6006 = vunpack.c.l.b16 %v4413
    %v6007 = vunpack.c.h.b16 %v4413
    %v6008 = vunpack.c.l.b16 %v4414
    %v6009 = vunpack.c.h.b16 %v4414
    %v6010 = vunpack.c.l.b16 %v4415
    %v6011 = vunpack.c.h.b16 %v4415
    %v6012 = vunpack.c.l.b16 %v4416
    %v6013 = vunpack.c.h.b16 %v4416
    %v6014 = vunpack.c.l.b16 %v4417
    %v6015 = vunpack.c.h.b16 %v4417
    %v6016 = vunpack.c.l.b16 %v4418
    %v6017 = vunpack.c.h.b16 %v4418
    %v6018 = vunpack.c.l.b16 %v4419
    %v6019 = vunpack.c.h.b16 %v4419
    %v6020 = vunpack.c.l.b16 %v4420
    %v6021 = vunpack.c.h.b16 %v4420
    %v6022 = vunpack.c.l.b16 %v4421
    %v6023 = vunpack.c.h.b16 %v4421
    %v6024 = vunpack.c.l.b16 %v4422
    %v6025 = vunpack.c.h.b16 %v4422
    %v6026 = vunpack.c.l.b16 %v4423
    %v6027 = vunpack.c.h.b16 %v4423
    %v6028 = vunpack.c.l.b16 %v4424
    %v6029 = vunpack.c.h.b16 %v4424
    %v6030 = vunpack.c.l.b16 %v4425
    %v6031 = vunpack.c.h.b16 %v4425
    %v6032 = vunpack.c.l.b16 %v4426
    %v6033 = vunpack.c.h.b16 %v4426
    %v6034 = vunpack.c.l.b16 %v4427
    %v6035 = vunpack.c.h.b16 %v4427
    %v6036 = vunpack.c.l.b16 %v4428
    %v6037 = vunpack.c.h.b16 %v4428
    %v6038 = vunpack.c.l.b16 %v4429
    %v6039 = vunpack.c.h.b16 %v4429
    %v6040 = vunpack.c.l.b16 %v4430
    %v6041 = vunpack.c.h.b16 %v4430
    %v6042 = vunpack.c.l.b16 %v4431
    %v6043 = vunpack.c.h.b16 %v4431
    %v6044 = vunpack.c.l.b16 %v4432
    %v6045 = vunpack.c.h.b16 %v4432
    %v6046 = vunpack.c.l.b16 %v4433
    %v6047 = vunpack.c.h.b16 %v4433
    %v6048 = vunpack.c.l.b16 %v4434
    %v6049 = vunpack.c.h.b16 %v4434
    %v6050 = vunpack.c.l.b16 %v4435
    %v6051 = vunpack.c.h.b16 %v4435
    %v6052 = vunpack.c.l.b16 %v4436
    %v6053 = vunpack.c.h.b16 %v4436
    %v6054 = vunpack.c.l.b16 %v4437
    %v6055 = vunpack.c.h.b16 %v4437
    %v6056 = vunpack.c.l.b16 %v4438
    %v6057 = vunpack.c.h.b16 %v4438
    %v6058 = vunpack.c.l.b16 %v4439
    %v6059 = vunpack.c.h.b16 %v4439
    %v6060 = vunpack.c.l.b16 %v4440
    %v6061 = vunpack.c.h.b16 %v4440
    %v6062 = vunpack.c.l.b16 %v4441
    %v6063 = vunpack.c.h.b16 %v4441
    %v6064 = vunpack.c.l.b16 %v4442
    %v6065 = vunpack.c.h.b16 %v4442
    %v6066 = vunpack.c.l.b16 %v4443
    %v6067 = vunpack.c.h.b16 %v4443
    %v6068 = vunpack.c.l.b16 %v4444
    %v6069 = vunpack.c.h.b16 %v4444
    %v6070 = vunpack.c.l.b16 %v4445
    %v6071 = vunpack.c.h.b16 %v4445
    %v6072 = vunpack.c.l.b16 %v4446
    %v6073 = vunpack.c.h.b16 %v4446
    %v6074 = vunpack.c.l.b16 %v4447
    %v6075 = vunpack.c.h.b16 %v4447
    %v6076 = vunpack.c.l.b16 %v4448
    %v6077 = vunpack.c.h.b16 %v4448
    %v6078 = vunpack.c.l.b16 %v4449
    %v6079 = vunpack.c.h.b16 %v4449
    %v6080 = vunpack.c.l.b16 %v4450
    %v6081 = vunpack.c.h.b16 %v4450
    %v6082 = vunpack.c.l.b16 %v4451
    %v6083 = vunpack.c.h.b16 %v4451
    %v6084 = vunpack.c.l.b16 %v4452
    %v6085 = vunpack.c.h.b16 %v4452
    %v6086 = vunpack.c.l.b16 %v4453
    %v6087 = vunpack.c.h.b16 %v4453
    %v6088 = vunpack.c.l.b16 %v4454
    %v6089 = vunpack.c.h.b16 %v4454
    %v6090 = vpack.c.b16 %v5082, %v5066
    %v6091 = vpack.c.b16 %v5083, %v5067
    %v6092 = vpack.c.b16 %v5084, %v5068
    %v6093 = vpack.c.b16 %v5085, %v5069
    %v6094 = vpack.c.b16 %v5086, %v5070
    %v6095 = vpack.c.b16 %v5087, %v5071
    %v6096 = vpack.c.b16 %v5088, %v5072
    %v6097 = vpack.c.b16 %v5089, %v5073
    %v6098 = vpack.c.b16 %v5090, %v5074
    %v6099 = vpack.c.b16 %v5091, %v5075
    %v6100 = vpack.c.b16 %v5092, %v5076
    %v6101 = vpack.c.b16 %v5093, %v5077
    %v6102 = vpack.c.b16 %v5094, %v5078
    %v6103 = vpack.c.b16 %v5095, %v5079
    %v6104 = vpack.c.b16 %v5096, %v5080
    %v6105 = vpack.c.b16 %v5097, %v5081
    %v6106 = vpack.c.b16 %v5114, %v5098
    %v6107 = vpack.c.b16 %v5115, %v5099
    %v6108 = vpack.c.b16 %v5116, %v5100
    %v6109 = vpack.c.b16 %v5117, %v5101
    %v6110 = vpack.c.b16 %v5118, %v5102
    %v6111 = vpack.c.b16 %v5119, %v5103
    %v6112 = vpack.c.b16 %v5120, %v5104
    %v6113 = vpack.c.b16 %v5121, %v5105
    %v6114 = vpack.c.b16 %v5122, %v5106
    %v6115 = vpack.c.b16 %v5123, %v5107
    %v6116 = vpack.c.b16 %v5124, %v5108
    %v6117 = vpack.c.b16 %v5125, %v5109
    %v6118 = vpack.c.b16 %v5126, %v5110
    %v6119 = vpack.c.b16 %v5127, %v5111
    %v6120 = vpack.c.b16 %v5128, %v5112
    %v6121 = vpack.c.b16 %v5129, %v5113
    %v6122 = vpack.c.b16 %v5146, %v5130
    %v6123 = vpack.c.b16 %v5147, %v5131
    %v6124 = vpack.c.b16 %v5148, %v5132
    %v6125 = vpack.c.b16 %v5149, %v5133
    %v6126 = vpack.c.b16 %v5150, %v5134
    %v6127 = vpack.c.b16 %v5151, %v5135
    %v6128 = vpack.c.b16 %v5152, %v5136
    %v6129 = vpack.c.b16 %v5153, %v5137
    %v6130 = vpack.c.b16 %v5154, %v5138
    %v6131 = vpack.c.b16 %v5155, %v5139
    %v6132 = vpack.c.b16 %v5156, %v5140
    %v6133 = vpack.c.b16 %v5157, %v5141
    %v6134 = vpack.c.b16 %v5158, %v5142
    %v6135 = vpack.c.b16 %v5159, %v5143
    %v6136 = vpack.c.b16 %v5160, %v5144
    %v6137 = vpack.c.b16 %v5161, %v5145
    %v6138 = vpack.c.b16 %v5178, %v5162
    %v6139 = vpack.c.b16 %v5179, %v5163
    %v6140 = vpack.c.b16 %v5180, %v5164
    %v6141 = vpack.c.b16 %v5181, %v5165
    %v6142 = vpack.c.b16 %v5182, %v5166
    %v6143 = vpack.c.b16 %v5183, %v5167
    %v6144 = vpack.c.b16 %v5184, %v5168
    %v6145 = vpack.c.b16 %v5185, %v5169
    %v6146 = vpack.c.b16 %v5186, %v5170
    %v6147 = vpack.c.b16 %v5187, %v5171
    %v6148 = vpack.c.b16 %v5188, %v5172
    %v6149 = vpack.c.b16 %v5189, %v5173
    %v6150 = vpack.c.b16 %v5190, %v5174
    %v6151 = vpack.c.b16 %v5191, %v5175
    %v6152 = vpack.c.b16 %v5192, %v5176
    %v6153 = vpack.c.b16 %v5193, %v5177
    %v6154 = vpack.c.b16 %v5210, %v5194
    %v6155 = vpack.c.b16 %v5211, %v5195
    %v6156 = vpack.c.b16 %v5212, %v5196
    %v6157 = vpack.c.b16 %v5213, %v5197
    %v6158 = vpack.c.b16 %v5214, %v5198
    %v6159 = vpack.c.b16 %v5215, %v5199
    %v6160 = vpack.c.b16 %v5216, %v5200
    %v6161 = vpack.c.b16 %v5217, %v5201
    %v6162 = vpack.c.b16 %v5218, %v5202
    %v6163 = vpack.c.b16 %v5219, %v5203
    %v6164 = vpack.c.b16 %v5220, %v5204
    %v6165 = vpack.c.b16 %v5221, %v5205
    %v6166 = vpack.c.b16 %v5222, %v5206
    %v6167 = vpack.c.b16 %v5223, %v5207
    %v6168 = vpack.c.b16 %v5224, %v5208
    %v6169 = vpack.c.b16 %v5225, %v5209
    %v6170 = vpack.c.b16 %v5242, %v5226
    %v6171 = vpack.c.b16 %v5243, %v5227
    %v6172 = vpack.c.b16 %v5244, %v5228
    %v6173 = vpack.c.b16 %v5245, %v5229
    %v6174 = vpack.c.b16 %v5246, %v5230
    %v6175 = vpack.c.b16 %v5247, %v5231
    %v6176 = vpack.c.b16 %v5248, %v5232
    %v6177 = vpack.c.b16 %v5249, %v5233
    %v6178 = vpack.c.b16 %v5250, %v5234
    %v6179 = vpack.c.b16 %v5251, %v5235
    %v6180 = vpack.c.b16 %v5252, %v5236
    %v6181 = vpack.c.b16 %v5253, %v5237
    %v6182 = vpack.c.b16 %v5254, %v5238
    %v6183 = vpack.c.b16 %v5255, %v5239
    %v6184 = vpack.c.b16 %v5256, %v5240
    %v6185 = vpack.c.b16 %v5257, %v5241
    %v6186 = vpack.c.b16 %v5274, %v5258
    %v6187 = vpack.c.b16 %v5275, %v5259
    %v6188 = vpack.c.b16 %v5276, %v5260
    %v6189 = vpack.c.b16 %v5277, %v5261
    %v6190 = vpack.c.b16 %v5278, %v5262
    %v6191 = vpack.c.b16 %v5279, %v5263
    %v6192 = vpack.c.b16 %v5280, %v5264
    %v6193 = vpack.c.b16 %v5281, %v5265
    %v6194 = vpack.c.b16 %v5282, %v5266
    %v6195 = vpack.c.b16 %v5283, %v5267
    %v6196 = vpack.c.b16 %v5284, %v5268
    %v6197 = vpack.c.b16 %v5285, %v5269
    %v6198 = vpack.c.b16 %v5286, %v5270
    %v6199 = vpack.c.b16 %v5287, %v5271
    %v6200 = vpack.c.b16 %v5288, %v5272
    %v6201 = vpack.c.b16 %v5289, %v5273
    %v6202 = vpack.c.b16 %v5306, %v5290
    %v6203 = vpack.c.b16 %v5307, %v5291
    %v6204 = vpack.c.b16 %v5308, %v5292
    %v6205 = vpack.c.b16 %v5309, %v5293
    %v6206 = vpack.c.b16 %v5310, %v5294
    %v6207 = vpack.c.b16 %v5311, %v5295
    %v6208 = vpack.c.b16 %v5312, %v5296
    %v6209 = vpack.c.b16 %v5313, %v5297
    %v6210 = vpack.c.b16 %v5314, %v5298
    %v6211 = vpack.c.b16 %v5315, %v5299
    %v6212 = vpack.c.b16 %v5316, %v5300
    %v6213 = vpack.c.b16 %v5317, %v5301
    %v6214 = vpack.c.b16 %v5318, %v5302
    %v6215 = vpack.c.b16 %v5319, %v5303
    %v6216 = vpack.c.b16 %v5320, %v5304
    %v6217 = vpack.c.b16 %v5321, %v5305
    %v6218 = vpack.c.b16 %v5338, %v5322
    %v6219 = vpack.c.b16 %v5339, %v5323
    %v6220 = vpack.c.b16 %v5340, %v5324
    %v6221 = vpack.c.b16 %v5341, %v5325
    %v6222 = vpack.c.b16 %v5342, %v5326
    %v6223 = vpack.c.b16 %v5343, %v5327
    %v6224 = vpack.c.b16 %v5344, %v5328
    %v6225 = vpack.c.b16 %v5345, %v5329
    %v6226 = vpack.c.b16 %v5346, %v5330
    %v6227 = vpack.c.b16 %v5347, %v5331
    %v6228 = vpack.c.b16 %v5348, %v5332
    %v6229 = vpack.c.b16 %v5349, %v5333
    %v6230 = vpack.c.b16 %v5350, %v5334
    %v6231 = vpack.c.b16 %v5351, %v5335
    %v6232 = vpack.c.b16 %v5352, %v5336
    %v6233 = vpack.c.b16 %v5353, %v5337
    %v6234 = vpack.c.b16 %v5370, %v5354
    %v6235 = vpack.c.b16 %v5371, %v5355
    %v6236 = vpack.c.b16 %v5372, %v5356
    %v6237 = vpack.c.b16 %v5373, %v5357
    %v6238 = vpack.c.b16 %v5374, %v5358
    %v6239 = vpack.c.b16 %v5375, %v5359
    %v6240 = vpack.c.b16 %v5376, %v5360
    %v6241 = vpack.c.b16 %v5377, %v5361
    %v6242 = vpack.c.b16 %v5378, %v5362
    %v6243 = vpack.c.b16 %v5379, %v5363
    %v6244 = vpack.c.b16 %v5380, %v5364
    %v6245 = vpack.c.b16 %v5381, %v5365
    %v6246 = vpack.c.b16 %v5382, %v5366
    %v6247 = vpack.c.b16 %v5383, %v5367
    %v6248 = vpack.c.b16 %v5384, %v5368
    %v6249 = vpack.c.b16 %v5385, %v5369
    %v6250 = vpack.c.b16 %v5402, %v5386
    %v6251 = vpack.c.b16 %v5403, %v5387
    %v6252 = vpack.c.b16 %v5404, %v5388
    %v6253 = vpack.c.b16 %v5405, %v5389
    %v6254 = vpack.c.b16 %v5406, %v5390
    %v6255 = vpack.c.b16 %v5407, %v5391
    %v6256 = vpack.c.b16 %v5408, %v5392
    %v6257 = vpack.c.b16 %v5409, %v5393
    %v6258 = vpack.c.b16 %v5410, %v5394
    %v6259 = vpack.c.b16 %v5411, %v5395
    %v6260 = vpack.c.b16 %v5412, %v5396
    %v6261 = vpack.c.b16 %v5413, %v5397
    %v6262 = vpack.c.b16 %v5414, %v5398
    %v6263 = vpack.c.b16 %v5415, %v5399
    %v6264 = vpack.c.b16 %v5416, %v5400
    %v6265 = vpack.c.b16 %v5417, %v5401
    %v6266 = vpack.c.b16 %v5434, %v5418
    %v6267 = vpack.c.b16 %v5435, %v5419
    %v6268 = vpack.c.b16 %v5436, %v5420
    %v6269 = vpack.c.b16 %v5437, %v5421
    %v6270 = vpack.c.b16 %v5438, %v5422
    %v6271 = vpack.c.b16 %v5439, %v5423
    %v6272 = vpack.c.b16 %v5440, %v5424
    %v6273 = vpack.c.b16 %v5441, %v5425
    %v6274 = vpack.c.b16 %v5442, %v5426
    %v6275 = vpack.c.b16 %v5443, %v5427
    %v6276 = vpack.c.b16 %v5444, %v5428
    %v6277 = vpack.c.b16 %v5445, %v5429
    %v6278 = vpack.c.b16 %v5446, %v5430
    %v6279 = vpack.c.b16 %v5447, %v5431
    %v6280 = vpack.c.b16 %v5448, %v5432
    %v6281 = vpack.c.b16 %v5449, %v5433
    %v6282 = vpack.c.b16 %v5466, %v5450
    %v6283 = vpack.c.b16 %v5467, %v5451
    %v6284 = vpack.c.b16 %v5468, %v5452
    %v6285 = vpack.c.b16 %v5469, %v5453
    %v6286 = vpack.c.b16 %v5470, %v5454
    %v6287 = vpack.c.b16 %v5471, %v5455
    %v6288 = vpack.c.b16 %v5472, %v5456
    %v6289 = vpack.c.b16 %v5473, %v5457
    %v6290 = vpack.c.b16 %v5474, %v5458
    %v6291 = vpack.c.b16 %v5475, %v5459
    %v6292 = vpack.c.b16 %v5476, %v5460
    %v6293 = vpack.c.b16 %v5477, %v5461
    %v6294 = vpack.c.b16 %v5478, %v5462
    %v6295 = vpack.c.b16 %v5479, %v5463
    %v6296 = vpack.c.b16 %v5480, %v5464
    %v6297 = vpack.c.b16 %v5481, %v5465
    %v6298 = vpack.c.b16 %v5498, %v5482
    %v6299 = vpack.c.b16 %v5499, %v5483
    %v6300 = vpack.c.b16 %v5500, %v5484
    %v6301 = vpack.c.b16 %v5501, %v5485
    %v6302 = vpack.c.b16 %v5502, %v5486
    %v6303 = vpack.c.b16 %v5503, %v5487
    %v6304 = vpack.c.b16 %v5504, %v5488
    %v6305 = vpack.c.b16 %v5505, %v5489
    %v6306 = vpack.c.b16 %v5506, %v5490
    %v6307 = vpack.c.b16 %v5507, %v5491
    %v6308 = vpack.c.b16 %v5508, %v5492
    %v6309 = vpack.c.b16 %v5509, %v5493
    %v6310 = vpack.c.b16 %v5510, %v5494
    %v6311 = vpack.c.b16 %v5511, %v5495
    %v6312 = vpack.c.b16 %v5512, %v5496
    %v6313 = vpack.c.b16 %v5513, %v5497
    %v6314 = vpack.c.b16 %v5530, %v5514
    %v6315 = vpack.c.b16 %v5531, %v5515
    %v6316 = vpack.c.b16 %v5532, %v5516
    %v6317 = vpack.c.b16 %v5533, %v5517
    %v6318 = vpack.c.b16 %v5534, %v5518
    %v6319 = vpack.c.b16 %v5535, %v5519
    %v6320 = vpack.c.b16 %v5536, %v5520
    %v6321 = vpack.c.b16 %v5537, %v5521
    %v6322 = vpack.c.b16 %v5538, %v5522
    %v6323 = vpack.c.b16 %v5539, %v5523
    %v6324 = vpack.c.b16 %v5540, %v5524
    %v6325 = vpack.c.b16 %v5541, %v5525
    %v6326 = vpack.c.b16 %v5542, %v5526
    %v6327 = vpack.c.b16 %v5543, %v5527
    %v6328 = vpack.c.b16 %v5544, %v5528
    %v6329 = vpack.c.b16 %v5545, %v5529
    %v6330 = vpack.c.b16 %v5562, %v5546
    %v6331 = vpack.c.b16 %v5563, %v5547
    %v6332 = vpack.c.b16 %v5564, %v5548
    %v6333 = vpack.c.b16 %v5565, %v5549
    %v6334 = vpack.c.b16 %v5566, %v5550
    %v6335 = vpack.c.b16 %v5567, %v5551
    %v6336 = vpack.c.b16 %v5568, %v5552
    %v6337 = vpack.c.b16 %v5569, %v5553
    %v6338 = vpack.c.b16 %v5570, %v5554
    %v6339 = vpack.c.b16 %v5571, %v5555
    %v6340 = vpack.c.b16 %v5572, %v5556
    %v6341 = vpack.c.b16 %v5573, %v5557
    %v6342 = vpack.c.b16 %v5574, %v5558
    %v6343 = vpack.c.b16 %v5575, %v5559
    %v6344 = vpack.c.b16 %v5576, %v5560
    %v6345 = vpack.c.b16 %v5577, %v5561
    %v6346 = vpack.c.b16 %v5594, %v5578
    %v6347 = vpack.c.b16 %v5595, %v5579
    %v6348 = vpack.c.b16 %v5596, %v5580
    %v6349 = vpack.c.b16 %v5597, %v5581
    %v6350 = vpack.c.b16 %v5598, %v5582
    %v6351 = vpack.c.b16 %v5599, %v5583
    %v6352 = vpack.c.b16 %v5600, %v5584
    %v6353 = vpack.c.b16 %v5601, %v5585
    %v6354 = vpack.c.b16 %v5602, %v5586
    %v6355 = vpack.c.b16 %v5603, %v5587
    %v6356 = vpack.c.b16 %v5604, %v5588
    %v6357 = vpack.c.b16 %v5605, %v5589
    %v6358 = vpack.c.b16 %v5606, %v5590
    %v6359 = vpack.c.b16 %v5607, %v5591
    %v6360 = vpack.c.b16 %v5608, %v5592
    %v6361 = vpack.c.b16 %v5609, %v5593
    %v6362 = vpack.c.b16 %v5626, %v5610
    %v6363 = vpack.c.b16 %v5627, %v5611
    %v6364 = vpack.c.b16 %v5628, %v5612
    %v6365 = vpack.c.b16 %v5629, %v5613
    %v6366 = vpack.c.b16 %v5630, %v5614
    %v6367 = vpack.c.b16 %v5631, %v5615
    %v6368 = vpack.c.b16 %v5632, %v5616
    %v6369 = vpack.c.b16 %v5633, %v5617
    %v6370 = vpack.c.b16 %v5634, %v5618
    %v6371 = vpack.c.b16 %v5635, %v5619
    %v6372 = vpack.c.b16 %v5636, %v5620
    %v6373 = vpack.c.b16 %v5637, %v5621
    %v6374 = vpack.c.b16 %v5638, %v5622
    %v6375 = vpack.c.b16 %v5639, %v5623
    %v6376 = vpack.c.b16 %v5640, %v5624
    %v6377 = vpack.c.b16 %v5641, %v5625
    %v6378 = vpack.c.b16 %v5658, %v5642
    %v6379 = vpack.c.b16 %v5659, %v5643
    %v6380 = vpack.c.b16 %v5660, %v5644
    %v6381 = vpack.c.b16 %v5661, %v5645
    %v6382 = vpack.c.b16 %v5662, %v5646
    %v6383 = vpack.c.b16 %v5663, %v5647
    %v6384 = vpack.c.b16 %v5664, %v5648
    %v6385 = vpack.c.b16 %v5665, %v5649
    %v6386 = vpack.c.b16 %v5666, %v5650
    %v6387 = vpack.c.b16 %v5667, %v5651
    %v6388 = vpack.c.b16 %v5668, %v5652
    %v6389 = vpack.c.b16 %v5669, %v5653
    %v6390 = vpack.c.b16 %v5670, %v5654
    %v6391 = vpack.c.b16 %v5671, %v5655
    %v6392 = vpack.c.b16 %v5672, %v5656
    %v6393 = vpack.c.b16 %v5673, %v5657
    %v6394 = vpack.c.b16 %v5690, %v5674
    %v6395 = vpack.c.b16 %v5691, %v5675
    %v6396 = vpack.c.b16 %v5692, %v5676
    %v6397 = vpack.c.b16 %v5693, %v5677
    %v6398 = vpack.c.b16 %v5694, %v5678
    %v6399 = vpack.c.b16 %v5695, %v5679
    %v6400 = vpack.c.b16 %v5696, %v5680
    %v6401 = vpack.c.b16 %v5697, %v5681
    %v6402 = vpack.c.b16 %v5698, %v5682
    %v6403 = vpack.c.b16 %v5699, %v5683
    %v6404 = vpack.c.b16 %v5700, %v5684
    %v6405 = vpack.c.b16 %v5701, %v5685
    %v6406 = vpack.c.b16 %v5702, %v5686
    %v6407 = vpack.c.b16 %v5703, %v5687
    %v6408 = vpack.c.b16 %v5704, %v5688
    %v6409 = vpack.c.b16 %v5705, %v5689
    %v6410 = vpack.c.b16 %v5722, %v5706
    %v6411 = vpack.c.b16 %v5723, %v5707
    %v6412 = vpack.c.b16 %v5724, %v5708
    %v6413 = vpack.c.b16 %v5725, %v5709
    %v6414 = vpack.c.b16 %v5726, %v5710
    %v6415 = vpack.c.b16 %v5727, %v5711
    %v6416 = vpack.c.b16 %v5728, %v5712
    %v6417 = vpack.c.b16 %v5729, %v5713
    %v6418 = vpack.c.b16 %v5730, %v5714
    %v6419 = vpack.c.b16 %v5731, %v5715
    %v6420 = vpack.c.b16 %v5732, %v5716
    %v6421 = vpack.c.b16 %v5733, %v5717
    %v6422 = vpack.c.b16 %v5734, %v5718
    %v6423 = vpack.c.b16 %v5735, %v5719
    %v6424 = vpack.c.b16 %v5736, %v5720
    %v6425 = vpack.c.b16 %v5737, %v5721
    %v6426 = vpack.c.b16 %v5754, %v5738
    %v6427 = vpack.c.b16 %v5755, %v5739
    %v6428 = vpack.c.b16 %v5756, %v5740
    %v6429 = vpack.c.b16 %v5757, %v5741
    %v6430 = vpack.c.b16 %v5758, %v5742
    %v6431 = vpack.c.b16 %v5759, %v5743
    %v6432 = vpack.c.b16 %v5760, %v5744
    %v6433 = vpack.c.b16 %v5761, %v5745
    %v6434 = vpack.c.b16 %v5762, %v5746
    %v6435 = vpack.c.b16 %v5763, %v5747
    %v6436 = vpack.c.b16 %v5764, %v5748
    %v6437 = vpack.c.b16 %v5765, %v5749
    %v6438 = vpack.c.b16 %v5766, %v5750
    %v6439 = vpack.c.b16 %v5767, %v5751
    %v6440 = vpack.c.b16 %v5768, %v5752
    %v6441 = vpack.c.b16 %v5769, %v5753
    %v6442 = vpack.c.b16 %v5786, %v5770
    %v6443 = vpack.c.b16 %v5787, %v5771
    %v6444 = vpack.c.b16 %v5788, %v5772
    %v6445 = vpack.c.b16 %v5789, %v5773
    %v6446 = vpack.c.b16 %v5790, %v5774
    %v6447 = vpack.c.b16 %v5791, %v5775
    %v6448 = vpack.c.b16 %v5792, %v5776
    %v6449 = vpack.c.b16 %v5793, %v5777
    %v6450 = vpack.c.b16 %v5794, %v5778
    %v6451 = vpack.c.b16 %v5795, %v5779
    %v6452 = vpack.c.b16 %v5796, %v5780
    %v6453 = vpack.c.b16 %v5797, %v5781
    %v6454 = vpack.c.b16 %v5798, %v5782
    %v6455 = vpack.c.b16 %v5799, %v5783
    %v6456 = vpack.c.b16 %v5800, %v5784
    %v6457 = vpack.c.b16 %v5801, %v5785
    %v6458 = vpack.c.b16 %v5818, %v5802
    %v6459 = vpack.c.b16 %v5819, %v5803
    %v6460 = vpack.c.b16 %v5820, %v5804
    %v6461 = vpack.c.b16 %v5821, %v5805
    %v6462 = vpack.c.b16 %v5822, %v5806
    %v6463 = vpack.c.b16 %v5823, %v5807
    %v6464 = vpack.c.b16 %v5824, %v5808
    %v6465 = vpack.c.b16 %v5825, %v5809
    %v6466 = vpack.c.b16 %v5826, %v5810
    %v6467 = vpack.c.b16 %v5827, %v5811
    %v6468 = vpack.c.b16 %v5828, %v5812
    %v6469 = vpack.c.b16 %v5829, %v5813
    %v6470 = vpack.c.b16 %v5830, %v5814
    %v6471 = vpack.c.b16 %v5831, %v5815
    %v6472 = vpack.c.b16 %v5832, %v5816
    %v6473 = vpack.c.b16 %v5833, %v5817
    %v6474 = vpack.c.b16 %v5850, %v5834
    %v6475 = vpack.c.b16 %v5851, %v5835
    %v6476 = vpack.c.b16 %v5852, %v5836
    %v6477 = vpack.c.b16 %v5853, %v5837
    %v6478 = vpack.c.b16 %v5854, %v5838
    %v6479 = vpack.c.b16 %v5855, %v5839
    %v6480 = vpack.c.b16 %v5856, %v5840
    %v6481 = vpack.c.b16 %v5857, %v5841
    %v6482 = vpack.c.b16 %v5858, %v5842
    %v6483 = vpack.c.b16 %v5859, %v5843
    %v6484 = vpack.c.b16 %v5860, %v5844
    %v6485 = vpack.c.b16 %v5861, %v5845
    %v6486 = vpack.c.b16 %v5862, %v5846
    %v6487 = vpack.c.b16 %v5863, %v5847
    %v6488 = vpack.c.b16 %v5864, %v5848
    %v6489 = vpack.c.b16 %v5865, %v5849
    %v6490 = vpack.c.b16 %v5882, %v5866
    %v6491 = vpack.c.b16 %v5883, %v5867
    %v6492 = vpack.c.b16 %v5884, %v5868
    %v6493 = vpack.c.b16 %v5885, %v5869
    %v6494 = vpack.c.b16 %v5886, %v5870
    %v6495 = vpack.c.b16 %v5887, %v5871
    %v6496 = vpack.c.b16 %v5888, %v5872
    %v6497 = vpack.c.b16 %v5889, %v5873
    %v6498 = vpack.c.b16 %v5890, %v5874
    %v6499 = vpack.c.b16 %v5891, %v5875
    %v6500 = vpack.c.b16 %v5892, %v5876
    %v6501 = vpack.c.b16 %v5893, %v5877
    %v6502 = vpack.c.b16 %v5894, %v5878
    %v6503 = vpack.c.b16 %v5895, %v5879
    %v6504 = vpack.c.b16 %v5896, %v5880
    %v6505 = vpack.c.b16 %v5897, %v5881
    %v6506 = vpack.c.b16 %v5914, %v5898
    %v6507 = vpack.c.b16 %v5915, %v5899
    %v6508 = vpack.c.b16 %v5916, %v5900
    %v6509 = vpack.c.b16 %v5917, %v5901
    %v6510 = vpack.c.b16 %v5918, %v5902
    %v6511 = vpack.c.b16 %v5919, %v5903
    %v6512 = vpack.c.b16 %v5920, %v5904
    %v6513 = vpack.c.b16 %v5921, %v5905
    %v6514 = vpack.c.b16 %v5922, %v5906
    %v6515 = vpack.c.b16 %v5923, %v5907
    %v6516 = vpack.c.b16 %v5924, %v5908
    %v6517 = vpack.c.b16 %v5925, %v5909
    %v6518 = vpack.c.b16 %v5926, %v5910
    %v6519 = vpack.c.b16 %v5927, %v5911
    %v6520 = vpack.c.b16 %v5928, %v5912
    %v6521 = vpack.c.b16 %v5929, %v5913
    %v6522 = vpack.c.b16 %v5946, %v5930
    %v6523 = vpack.c.b16 %v5947, %v5931
    %v6524 = vpack.c.b16 %v5948, %v5932
    %v6525 = vpack.c.b16 %v5949, %v5933
    %v6526 = vpack.c.b16 %v5950, %v5934
    %v6527 = vpack.c.b16 %v5951, %v5935
    %v6528 = vpack.c.b16 %v5952, %v5936
    %v6529 = vpack.c.b16 %v5953, %v5937
    %v6530 = vpack.c.b16 %v5954, %v5938
    %v6531 = vpack.c.b16 %v5955, %v5939
    %v6532 = vpack.c.b16 %v5956, %v5940
    %v6533 = vpack.c.b16 %v5957, %v5941
    %v6534 = vpack.c.b16 %v5958, %v5942
    %v6535 = vpack.c.b16 %v5959, %v5943
    %v6536 = vpack.c.b16 %v5960, %v5944
    %v6537 = vpack.c.b16 %v5961, %v5945
    %v6538 = vpack.c.b16 %v5978, %v5962
    %v6539 = vpack.c.b16 %v5979, %v5963
    %v6540 = vpack.c.b16 %v5980, %v5964
    %v6541 = vpack.c.b16 %v5981, %v5965
    %v6542 = vpack.c.b16 %v5982, %v5966
    %v6543 = vpack.c.b16 %v5983, %v5967
    %v6544 = vpack.c.b16 %v5984, %v5968
    %v6545 = vpack.c.b16 %v5985, %v5969
    %v6546 = vpack.c.b16 %v5986, %v5970
    %v6547 = vpack.c.b16 %v5987, %v5971
    %v6548 = vpack.c.b16 %v5988, %v5972
    %v6549 = vpack.c.b16 %v5989, %v5973
    %v6550 = vpack.c.b16 %v5990, %v5974
    %v6551 = vpack.c.b16 %v5991, %v5975
    %v6552 = vpack.c.b16 %v5992, %v5976
    %v6553 = vpack.c.b16 %v5993, %v5977
    %v6554 = vpack.c.b16 %v6010, %v5994
    %v6555 = vpack.c.b16 %v6011, %v5995
    %v6556 = vpack.c.b16 %v6012, %v5996
    %v6557 = vpack.c.b16 %v6013, %v5997
    %v6558 = vpack.c.b16 %v6014, %v5998
    %v6559 = vpack.c.b16 %v6015, %v5999
    %v6560 = vpack.c.b16 %v6016, %v6000
    %v6561 = vpack.c.b16 %v6017, %v6001
    %v6562 = vpack.c.b16 %v6018, %v6002
    %v6563 = vpack.c.b16 %v6019, %v6003
    %v6564 = vpack.c.b16 %v6020, %v6004
    %v6565 = vpack.c.b16 %v6021, %v6005
    %v6566 = vpack.c.b16 %v6022, %v6006
    %v6567 = vpack.c.b16 %v6023, %v6007
    %v6568 = vpack.c.b16 %v6024, %v6008
    %v6569 = vpack.c.b16 %v6025, %v6009
    %v6570 = vpack.c.b16 %v6042, %v6026
    %v6571 = vpack.c.b16 %v6043, %v6027
    %v6572 = vpack.c.b16 %v6044, %v6028
    %v6573 = vpack.c.b16 %v6045, %v6029
    %v6574 = vpack.c.b16 %v6046, %v6030
    %v6575 = vpack.c.b16 %v6047, %v6031
    %v6576 = vpack.c.b16 %v6048, %v6032
    %v6577 = vpack.c.b16 %v6049, %v6033
    %v6578 = vpack.c.b16 %v6050, %v6034
    %v6579 = vpack.c.b16 %v6051, %v6035
    %v6580 = vpack.c.b16 %v6052, %v6036
    %v6581 = vpack.c.b16 %v6053, %v6037
    %v6582 = vpack.c.b16 %v6054, %v6038
    %v6583 = vpack.c.b16 %v6055, %v6039
    %v6584 = vpack.c.b16 %v6056, %v6040
    %v6585 = vpack.c.b16 %v6057, %v6041
    %v6586 = vpack.c.b16 %v6074, %v6058
    %v6587 = vpack.c.b16 %v6075, %v6059
    %v6588 = vpack.c.b16 %v6076, %v6060
    %v6589 = vpack.c.b16 %v6077, %v6061
    %v6590 = vpack.c.b16 %v6078, %v6062
    %v6591 = vpack.c.b16 %v6079, %v6063
    %v6592 = vpack.c.b16 %v6080, %v6064
    %v6593 = vpack.c.b16 %v6081, %v6065
    %v6594 = vpack.c.b16 %v6082, %v6066
    %v6595 = vpack.c.b16 %v6083, %v6067
    %v6596 = vpack.c.b16 %v6084, %v6068
    %v6597 = vpack.c.b16 %v6085, %v6069
    %v6598 = vpack.c.b16 %v6086, %v6070
    %v6599 = vpack.c.b16 %v6087, %v6071
    %v6600 = vpack.c.b16 %v6088, %v6072
    %v6601 = vpack.c.b16 %v6089, %v6073
    %7114 = vmatprep.subr.bf16.mxu0 %v6091
    %7115 = vmatpush1.bf16.msra.mxu0 %v6090
    %7116 = vmatprep.subr.bf16.mxu0 %v6107
    %7117 = vmatpush1.bf16.msra.mxu0 %v6106
    %7118 = vmatprep.subr.bf16.mxu0 %v6123
    %7119 = vmatpush1.bf16.msra.mxu0 %v6122
    %7120 = vmatprep.subr.bf16.mxu0 %v6139
    %7121 = vmatpush1.bf16.msra.mxu0 %v6138
    %7122 = vmatprep.subr.bf16.mxu0 %v6155
    %7123 = vmatpush1.bf16.msra.mxu0 %v6154
    %7124 = vmatprep.subr.bf16.mxu0 %v6171
    %7125 = vmatpush1.bf16.msra.mxu0 %v6170
    %7126 = vmatprep.subr.bf16.mxu0 %v6187
    %7127 = vmatpush1.bf16.msra.mxu0 %v6186
    %7128 = vmatprep.subr.bf16.mxu0 %v6203
    %7129 = vmatpush1.bf16.msra.mxu0 %v6202
    %7130 = vmatprep.subr.bf16.mxu0 %v6219
    %7131 = vmatpush1.bf16.msra.mxu0 %v6218
    %7132 = vmatprep.subr.bf16.mxu0 %v6235
    %7133 = vmatpush1.bf16.msra.mxu0 %v6234
    %7134 = vmatprep.subr.bf16.mxu0 %v6251
    %7135 = vmatpush1.bf16.msra.mxu0 %v6250
    %7136 = vmatprep.subr.bf16.mxu0 %v6267
    %7137 = vmatpush1.bf16.msra.mxu0 %v6266
    %7138 = vmatprep.subr.bf16.mxu0 %v6283
    %7139 = vmatpush1.bf16.msra.mxu0 %v6282
    %7140 = vmatprep.subr.bf16.mxu0 %v6299
    %7141 = vmatpush1.bf16.msra.mxu0 %v6298
    %7142 = vmatprep.subr.bf16.mxu0 %v6315
    %7143 = vmatpush1.bf16.msra.mxu0 %v6314
    %7144 = vmatprep.subr.bf16.mxu0 %v6331
    %7145 = vmatpush1.bf16.msra.mxu0 %v6330
    %7146 = vmatprep.mubr.bf16.mxu0 %v4547
    %7147 = vmatmul.mubr.bf16.gmra.mrb[0].mxu0 %v4546
    %v7148 = vpop.f32.mrb[0].mxu0
    %v7149 = vadd.f32 %v4463, %v7148
    %v7150 = vpop.f32.mrb[0].mxu0
    %v7151 = vadd.f32 %v4467, %v7150
    %v7152 = vpop.f32.mrb[0].mxu0
    %v7153 = vpop.f32.mrb[0].mxu0
    %7154 = vdwg.mxu0
    %7155 = vmatprep.subr.bf16.mxu0 %v6347
    %7156 = vmatpush1.bf16.msra.mxu0 %v6346
    %7157 = vmatprep.subr.bf16.mxu0 %v6363
    %7158 = vmatpush1.bf16.msra.mxu0 %v6362
    %7159 = vmatprep.subr.bf16.mxu0 %v6379
    %7160 = vmatpush1.bf16.msra.mxu0 %v6378
    %7161 = vmatprep.subr.bf16.mxu0 %v6395
    %7162 = vmatpush1.bf16.msra.mxu0 %v6394
    %7163 = vmatprep.subr.bf16.mxu0 %v6411
    %7164 = vmatpush1.bf16.msra.mxu0 %v6410
    %7165 = vmatprep.subr.bf16.mxu0 %v6427
    %7166 = vmatpush1.bf16.msra.mxu0 %v6426
    %7167 = vmatprep.subr.bf16.mxu0 %v6443
    %7168 = vmatpush1.bf16.msra.mxu0 %v6442
    %7169 = vmatprep.subr.bf16.mxu0 %v6459
    %7170 = vmatpush1.bf16.msra.mxu0 %v6458
    %7171 = vmatprep.subr.bf16.mxu0 %v6475
    %7172 = vmatpush1.bf16.msra.mxu0 %v6474
    %7173 = vmatprep.subr.bf16.mxu0 %v6491
    %7174 = vmatpush1.bf16.msra.mxu0 %v6490
    %7175 = vmatprep.subr.bf16.mxu0 %v6507
    %7176 = vmatpush1.bf16.msra.mxu0 %v6506
    %7177 = vmatprep.subr.bf16.mxu0 %v6523
    %7178 = vmatpush1.bf16.msra.mxu0 %v6522
    %7179 = vmatprep.subr.bf16.mxu0 %v6539
    %7180 = vmatpush1.bf16.msra.mxu0 %v6538
    %7181 = vmatprep.subr.bf16.mxu0 %v6555
    %7182 = vmatpush1.bf16.msra.mxu0 %v6554
    %7183 = vmatprep.subr.bf16.mxu0 %v6571
    %7184 = vmatpush1.bf16.msra.mxu0 %v6570
    %7185 = vmatprep.subr.bf16.mxu0 %v6587
    %7186 = vmatpush1.bf16.msra.mxu0 %v6586
    %7187 = vmatprep.mubr.bf16.mxu0 %v4549
    %7188 = vmatmul.mubr.bf16.gmra.mrb[0].mxu0 %v4548
    %v7189 = vpop.f32.mrb[0].mxu0
    %v7190 = vadd.f32 %v7149, %v7189
    %v7191 = vpop.f32.mrb[0].mxu0
    %v7192 = vadd.f32 %v7151, %v7191
    %v7193 = vpop.f32.mrb[0].mxu0
    %v7194 = vpop.f32.mrb[0].mxu0
    %7195 = vdwg.mxu0
    %7196 = vmatprep.subr.bf16.mxu0 %v6093
    %7197 = vmatpush1.bf16.msra.mxu0 %v6092
    %7198 = vmatprep.subr.bf16.mxu0 %v6109
    %7199 = vmatpush1.bf16.msra.mxu0 %v6108
    %7200 = vmatprep.subr.bf16.mxu0 %v6125
    %7201 = vmatpush1.bf16.msra.mxu0 %v6124
    %7202 = vmatprep.subr.bf16.mxu0 %v6141
    %7203 = vmatpush1.bf16.msra.mxu0 %v6140
    %7204 = vmatprep.subr.bf16.mxu0 %v6157
    %7205 = vmatpush1.bf16.msra.mxu0 %v6156
    %7206 = vmatprep.subr.bf16.mxu0 %v6173
    %7207 = vmatpush1.bf16.msra.mxu0 %v6172
    %7208 = vmatprep.subr.bf16.mxu0 %v6189
    %7209 = vmatpush1.bf16.msra.mxu0 %v6188
    %7210 = vmatprep.subr.bf16.mxu0 %v6205
    %7211 = vmatpush1.bf16.msra.mxu0 %v6204
    %7212 = vmatprep.subr.bf16.mxu0 %v6221
    %7213 = vmatpush1.bf16.msra.mxu0 %v6220
    %7214 = vmatprep.subr.bf16.mxu0 %v6237
    %7215 = vmatpush1.bf16.msra.mxu0 %v6236
    %7216 = vmatprep.subr.bf16.mxu0 %v6253
    %7217 = vmatpush1.bf16.msra.mxu0 %v6252
    %7218 = vmatprep.subr.bf16.mxu0 %v6269
    %7219 = vmatpush1.bf16.msra.mxu0 %v6268
    %7220 = vmatprep.subr.bf16.mxu0 %v6285
    %7221 = vmatpush1.bf16.msra.mxu0 %v6284
    %7222 = vmatprep.subr.bf16.mxu0 %v6301
    %7223 = vmatpush1.bf16.msra.mxu0 %v6300
    %7224 = vmatprep.subr.bf16.mxu0 %v6317
    %7225 = vmatpush1.bf16.msra.mxu0 %v6316
    %7226 = vmatprep.subr.bf16.mxu0 %v6333
    %7227 = vmatpush1.bf16.msra.mxu0 %v6332
    %7228 = vmatprep.mubr.bf16.mxu0 %v4547
    %7229 = vmatmul.mubr.bf16.gmra.mrb[0].mxu0 %v4546
    %v7230 = vpop.f32.mrb[0].mxu0
    %v7231 = vadd.f32 %v4471, %v7230
    %v7232 = vpop.f32.mrb[0].mxu0
    %v7233 = vadd.f32 %v4475, %v7232
    %v7234 = vpop.f32.mrb[0].mxu0
    %v7235 = vpop.f32.mrb[0].mxu0
    %7236 = vdwg.mxu0
    %7237 = vmatprep.subr.bf16.mxu0 %v6349
    %7238 = vmatpush1.bf16.msra.mxu0 %v6348
    %7239 = vmatprep.subr.bf16.mxu0 %v6365
    %7240 = vmatpush1.bf16.msra.mxu0 %v6364
    %7241 = vmatprep.subr.bf16.mxu0 %v6381
    %7242 = vmatpush1.bf16.msra.mxu0 %v6380
    %7243 = vmatprep.subr.bf16.mxu0 %v6397
    %7244 = vmatpush1.bf16.msra.mxu0 %v6396
    %7245 = vmatprep.subr.bf16.mxu0 %v6413
    %7246 = vmatpush1.bf16.msra.mxu0 %v6412
    %7247 = vmatprep.subr.bf16.mxu0 %v6429
    %7248 = vmatpush1.bf16.msra.mxu0 %v6428
    %7249 = vmatprep.subr.bf16.mxu0 %v6445
    %7250 = vmatpush1.bf16.msra.mxu0 %v6444
    %7251 = vmatprep.subr.bf16.mxu0 %v6461
    %7252 = vmatpush1.bf16.msra.mxu0 %v6460
    %7253 = vmatprep.subr.bf16.mxu0 %v6477
    %7254 = vmatpush1.bf16.msra.mxu0 %v6476
    %7255 = vmatprep.subr.bf16.mxu0 %v6493
    %7256 = vmatpush1.bf16.msra.mxu0 %v6492
    %7257 = vmatprep.subr.bf16.mxu0 %v6509
    %7258 = vmatpush1.bf16.msra.mxu0 %v6508
    %7259 = vmatprep.subr.bf16.mxu0 %v6525
    %7260 = vmatpush1.bf16.msra.mxu0 %v6524
    %7261 = vmatprep.subr.bf16.mxu0 %v6541
    %7262 = vmatpush1.bf16.msra.mxu0 %v6540
    %7263 = vmatprep.subr.bf16.mxu0 %v6557
    %7264 = vmatpush1.bf16.msra.mxu0 %v6556
    %7265 = vmatprep.subr.bf16.mxu0 %v6573
    %7266 = vmatpush1.bf16.msra.mxu0 %v6572
    %7267 = vmatprep.subr.bf16.mxu0 %v6589
    %7268 = vmatpush1.bf16.msra.mxu0 %v6588
    %7269 = vmatprep.mubr.bf16.mxu0 %v4549
    %7270 = vmatmul.mubr.bf16.gmra.mrb[0].mxu0 %v4548
    %v7271 = vpop.f32.mrb[0].mxu0
    %v7272 = vadd.f32 %v7231, %v7271
    %v7273 = vpop.f32.mrb[0].mxu0
    %v7274 = vadd.f32 %v7233, %v7273
    %v7275 = vpop.f32.mrb[0].mxu0
    %v7276 = vpop.f32.mrb[0].mxu0
    %7277 = vdwg.mxu0
    %7278 = vmatprep.subr.bf16.mxu0 %v6095
    %7279 = vmatpush1.bf16.msra.mxu0 %v6094
    %7280 = vmatprep.subr.bf16.mxu0 %v6111
    %7281 = vmatpush1.bf16.msra.mxu0 %v6110
    %7282 = vmatprep.subr.bf16.mxu0 %v6127
    %7283 = vmatpush1.bf16.msra.mxu0 %v6126
    %7284 = vmatprep.subr.bf16.mxu0 %v6143
    %7285 = vmatpush1.bf16.msra.mxu0 %v6142
    %7286 = vmatprep.subr.bf16.mxu0 %v6159
    %7287 = vmatpush1.bf16.msra.mxu0 %v6158
    %7288 = vmatprep.subr.bf16.mxu0 %v6175
    %7289 = vmatpush1.bf16.msra.mxu0 %v6174
    %7290 = vmatprep.subr.bf16.mxu0 %v6191
    %7291 = vmatpush1.bf16.msra.mxu0 %v6190
    %7292 = vmatprep.subr.bf16.mxu0 %v6207
    %7293 = vmatpush1.bf16.msra.mxu0 %v6206
    %7294 = vmatprep.subr.bf16.mxu0 %v6223
    %7295 = vmatpush1.bf16.msra.mxu0 %v6222
    %7296 = vmatprep.subr.bf16.mxu0 %v6239
    %7297 = vmatpush1.bf16.msra.mxu0 %v6238
    %7298 = vmatprep.subr.bf16.mxu0 %v6255
    %7299 = vmatpush1.bf16.msra.mxu0 %v6254
    %7300 = vmatprep.subr.bf16.mxu0 %v6271
    %7301 = vmatpush1.bf16.msra.mxu0 %v6270
    %7302 = vmatprep.subr.bf16.mxu0 %v6287
    %7303 = vmatpush1.bf16.msra.mxu0 %v6286
    %7304 = vmatprep.subr.bf16.mxu0 %v6303
    %7305 = vmatpush1.bf16.msra.mxu0 %v6302
    %7306 = vmatprep.subr.bf16.mxu0 %v6319
    %7307 = vmatpush1.bf16.msra.mxu0 %v6318
    %7308 = vmatprep.subr.bf16.mxu0 %v6335
    %7309 = vmatpush1.bf16.msra.mxu0 %v6334
    %7310 = vmatprep.mubr.bf16.mxu0 %v4547
    %7311 = vmatmul.mubr.bf16.gmra.mrb[0].mxu0 %v4546
    %v7312 = vpop.f32.mrb[0].mxu0
    %v7313 = vadd.f32 %v4479, %v7312
    %v7314 = vpop.f32.mrb[0].mxu0
    %v7315 = vadd.f32 %v4483, %v7314
    %v7316 = vpop.f32.mrb[0].mxu0
    %v7317 = vpop.f32.mrb[0].mxu0
    %7318 = vdwg.mxu0
    %7319 = vmatprep.subr.bf16.mxu0 %v6351
    %7320 = vmatpush1.bf16.msra.mxu0 %v6350
    %7321 = vmatprep.subr.bf16.mxu0 %v6367
    %7322 = vmatpush1.bf16.msra.mxu0 %v6366
    %7323 = vmatprep.subr.bf16.mxu0 %v6383
    %7324 = vmatpush1.bf16.msra.mxu0 %v6382
    %7325 = vmatprep.subr.bf16.mxu0 %v6399
    %7326 = vmatpush1.bf16.msra.mxu0 %v6398
    %7327 = vmatprep.subr.bf16.mxu0 %v6415
    %7328 = vmatpush1.bf16.msra.mxu0 %v6414
    %7329 = vmatprep.subr.bf16.mxu0 %v6431
    %7330 = vmatpush1.bf16.msra.mxu0 %v6430
    %7331 = vmatprep.subr.bf16.mxu0 %v6447
    %7332 = vmatpush1.bf16.msra.mxu0 %v6446
    %7333 = vmatprep.subr.bf16.mxu0 %v6463
    %7334 = vmatpush1.bf16.msra.mxu0 %v6462
    %7335 = vmatprep.subr.bf16.mxu0 %v6479
    %7336 = vmatpush1.bf16.msra.mxu0 %v6478
    %7337 = vmatprep.subr.bf16.mxu0 %v6495
    %7338 = vmatpush1.bf16.msra.mxu0 %v6494
    %7339 = vmatprep.subr.bf16.mxu0 %v6511
    %7340 = vmatpush1.bf16.msra.mxu0 %v6510
    %7341 = vmatprep.subr.bf16.mxu0 %v6527
    %7342 = vmatpush1.bf16.msra.mxu0 %v6526
    %7343 = vmatprep.subr.bf16.mxu0 %v6543
    %7344 = vmatpush1.bf16.msra.mxu0 %v6542
    %7345 = vmatprep.subr.bf16.mxu0 %v6559
    %7346 = vmatpush1.bf16.msra.mxu0 %v6558
    %7347 = vmatprep.subr.bf16.mxu0 %v6575
    %7348 = vmatpush1.bf16.msra.mxu0 %v6574
    %7349 = vmatprep.subr.bf16.mxu0 %v6591
    %7350 = vmatpush1.bf16.msra.mxu0 %v6590
    %7351 = vmatprep.mubr.bf16.mxu0 %v4549
    %7352 = vmatmul.mubr.bf16.gmra.mrb[0].mxu0 %v4548
    %v7353 = vpop.f32.mrb[0].mxu0
    %v7354 = vadd.f32 %v7313, %v7353
    %v7355 = vpop.f32.mrb[0].mxu0
    %v7356 = vadd.f32 %v7315, %v7355
    %v7357 = vpop.f32.mrb[0].mxu0
    %v7358 = vpop.f32.mrb[0].mxu0
    %7359 = vdwg.mxu0
    %7360 = vmatprep.subr.bf16.mxu0 %v6097
    %7361 = vmatpush1.bf16.msra.mxu0 %v6096
    %7362 = vmatprep.subr.bf16.mxu0 %v6113
    %7363 = vmatpush1.bf16.msra.mxu0 %v6112
    %7364 = vmatprep.subr.bf16.mxu0 %v6129
    %7365 = vmatpush1.bf16.msra.mxu0 %v6128
    %7366 = vmatprep.subr.bf16.mxu0 %v6145
    %7367 = vmatpush1.bf16.msra.mxu0 %v6144
    %7368 = vmatprep.subr.bf16.mxu0 %v6161
    %7369 = vmatpush1.bf16.msra.mxu0 %v6160
    %7370 = vmatprep.subr.bf16.mxu0 %v6177
    %7371 = vmatpush1.bf16.msra.mxu0 %v6176
    %7372 = vmatprep.subr.bf16.mxu0 %v6193
    %7373 = vmatpush1.bf16.msra.mxu0 %v6192
    %7374 = vmatprep.subr.bf16.mxu0 %v6209
    %7375 = vmatpush1.bf16.msra.mxu0 %v6208
    %7376 = vmatprep.subr.bf16.mxu0 %v6225
    %7377 = vmatpush1.bf16.msra.mxu0 %v6224
    %7378 = vmatprep.subr.bf16.mxu0 %v6241
    %7379 = vmatpush1.bf16.msra.mxu0 %v6240
    %7380 = vmatprep.subr.bf16.mxu0 %v6257
    %7381 = vmatpush1.bf16.msra.mxu0 %v6256
    %7382 = vmatprep.subr.bf16.mxu0 %v6273
    %7383 = vmatpush1.bf16.msra.mxu0 %v6272
    %7384 = vmatprep.subr.bf16.mxu0 %v6289
    %7385 = vmatpush1.bf16.msra.mxu0 %v6288
    %7386 = vmatprep.subr.bf16.mxu0 %v6305
    %7387 = vmatpush1.bf16.msra.mxu0 %v6304
    %7388 = vmatprep.subr.bf16.mxu0 %v6321
    %7389 = vmatpush1.bf16.msra.mxu0 %v6320
    %7390 = vmatprep.subr.bf16.mxu0 %v6337
    %7391 = vmatpush1.bf16.msra.mxu0 %v6336
    %7392 = vmatprep.mubr.bf16.mxu0 %v4547
    %7393 = vmatmul.mubr.bf16.gmra.mrb[0].mxu0 %v4546
    %v7394 = vpop.f32.mrb[0].mxu0
    %v7395 = vadd.f32 %v4487, %v7394
    %v7396 = vpop.f32.mrb[0].mxu0
    %v7397 = vadd.f32 %v4491, %v7396
    %v7398 = vpop.f32.mrb[0].mxu0
    %v7399 = vpop.f32.mrb[0].mxu0
    %7400 = vdwg.mxu0
    %7401 = vmatprep.subr.bf16.mxu0 %v6353
    %7402 = vmatpush1.bf16.msra.mxu0 %v6352
    %7403 = vmatprep.subr.bf16.mxu0 %v6369
    %7404 = vmatpush1.bf16.msra.mxu0 %v6368
    %7405 = vmatprep.subr.bf16.mxu0 %v6385
    %7406 = vmatpush1.bf16.msra.mxu0 %v6384
    %7407 = vmatprep.subr.bf16.mxu0 %v6401
    %7408 = vmatpush1.bf16.msra.mxu0 %v6400
    %7409 = vmatprep.subr.bf16.mxu0 %v6417
    %7410 = vmatpush1.bf16.msra.mxu0 %v6416
    %7411 = vmatprep.subr.bf16.mxu0 %v6433
    %7412 = vmatpush1.bf16.msra.mxu0 %v6432
    %7413 = vmatprep.subr.bf16.mxu0 %v6449
    %7414 = vmatpush1.bf16.msra.mxu0 %v6448
    %7415 = vmatprep.subr.bf16.mxu0 %v6465
    %7416 = vmatpush1.bf16.msra.mxu0 %v6464
    %7417 = vmatprep.subr.bf16.mxu0 %v6481
    %7418 = vmatpush1.bf16.msra.mxu0 %v6480
    %7419 = vmatprep.subr.bf16.mxu0 %v6497
    %7420 = vmatpush1.bf16.msra.mxu0 %v6496
    %7421 = vmatprep.subr.bf16.mxu0 %v6513
    %7422 = vmatpush1.bf16.msra.mxu0 %v6512
    %7423 = vmatprep.subr.bf16.mxu0 %v6529
    %7424 = vmatpush1.bf16.msra.mxu0 %v6528
    %7425 = vmatprep.subr.bf16.mxu0 %v6545
    %7426 = vmatpush1.bf16.msra.mxu0 %v6544
    %7427 = vmatprep.subr.bf16.mxu0 %v6561
    %7428 = vmatpush1.bf16.msra.mxu0 %v6560
    %7429 = vmatprep.subr.bf16.mxu0 %v6577
    %7430 = vmatpush1.bf16.msra.mxu0 %v6576
    %7431 = vmatprep.subr.bf16.mxu0 %v6593
    %7432 = vmatpush1.bf16.msra.mxu0 %v6592
    %7433 = vmatprep.mubr.bf16.mxu0 %v4549
    %7434 = vmatmul.mubr.bf16.gmra.mrb[0].mxu0 %v4548
    %v7435 = vpop.f32.mrb[0].mxu0
    %v7436 = vadd.f32 %v7395, %v7435
    %v7437 = vpop.f32.mrb[0].mxu0
    %v7438 = vadd.f32 %v7397, %v7437
    %v7439 = vpop.f32.mrb[0].mxu0
    %v7440 = vpop.f32.mrb[0].mxu0
    %7441 = vdwg.mxu0
    %7442 = vmatprep.subr.bf16.mxu0 %v6099
    %7443 = vmatpush1.bf16.msra.mxu0 %v6098
    %7444 = vmatprep.subr.bf16.mxu0 %v6115
    %7445 = vmatpush1.bf16.msra.mxu0 %v6114
    %7446 = vmatprep.subr.bf16.mxu0 %v6131
    %7447 = vmatpush1.bf16.msra.mxu0 %v6130
    %7448 = vmatprep.subr.bf16.mxu0 %v6147
    %7449 = vmatpush1.bf16.msra.mxu0 %v6146
    %7450 = vmatprep.subr.bf16.mxu0 %v6163
    %7451 = vmatpush1.bf16.msra.mxu0 %v6162
    %7452 = vmatprep.subr.bf16.mxu0 %v6179
    %7453 = vmatpush1.bf16.msra.mxu0 %v6178
    %7454 = vmatprep.subr.bf16.mxu0 %v6195
    %7455 = vmatpush1.bf16.msra.mxu0 %v6194
    %7456 = vmatprep.subr.bf16.mxu0 %v6211
    %7457 = vmatpush1.bf16.msra.mxu0 %v6210
    %7458 = vmatprep.subr.bf16.mxu0 %v6227
    %7459 = vmatpush1.bf16.msra.mxu0 %v6226
    %7460 = vmatprep.subr.bf16.mxu0 %v6243
    %7461 = vmatpush1.bf16.msra.mxu0 %v6242
    %7462 = vmatprep.subr.bf16.mxu0 %v6259
    %7463 = vmatpush1.bf16.msra.mxu0 %v6258
    %7464 = vmatprep.subr.bf16.mxu0 %v6275
    %7465 = vmatpush1.bf16.msra.mxu0 %v6274
    %7466 = vmatprep.subr.bf16.mxu0 %v6291
    %7467 = vmatpush1.bf16.msra.mxu0 %v6290
    %7468 = vmatprep.subr.bf16.mxu0 %v6307
    %7469 = vmatpush1.bf16.msra.mxu0 %v6306
    %7470 = vmatprep.subr.bf16.mxu0 %v6323
    %7471 = vmatpush1.bf16.msra.mxu0 %v6322
    %7472 = vmatprep.subr.bf16.mxu0 %v6339
    %7473 = vmatpush1.bf16.msra.mxu0 %v6338
    %7474 = vmatprep.mubr.bf16.mxu0 %v4547
    %7475 = vmatmul.mubr.bf16.gmra.mrb[0].mxu0 %v4546
    %v7476 = vpop.f32.mrb[0].mxu0
    %v7477 = vadd.f32 %v4495, %v7476
    %v7478 = vpop.f32.mrb[0].mxu0
    %v7479 = vadd.f32 %v4499, %v7478
    %v7480 = vpop.f32.mrb[0].mxu0
    %v7481 = vpop.f32.mrb[0].mxu0
    %7482 = vdwg.mxu0
    %7483 = vmatprep.subr.bf16.mxu0 %v6355
    %7484 = vmatpush1.bf16.msra.mxu0 %v6354
    %7485 = vmatprep.subr.bf16.mxu0 %v6371
    %7486 = vmatpush1.bf16.msra.mxu0 %v6370
    %7487 = vmatprep.subr.bf16.mxu0 %v6387
    %7488 = vmatpush1.bf16.msra.mxu0 %v6386
    %7489 = vmatprep.subr.bf16.mxu0 %v6403
    %7490 = vmatpush1.bf16.msra.mxu0 %v6402
    %7491 = vmatprep.subr.bf16.mxu0 %v6419
    %7492 = vmatpush1.bf16.msra.mxu0 %v6418
    %7493 = vmatprep.subr.bf16.mxu0 %v6435
    %7494 = vmatpush1.bf16.msra.mxu0 %v6434
    %7495 = vmatprep.subr.bf16.mxu0 %v6451
    %7496 = vmatpush1.bf16.msra.mxu0 %v6450
    %7497 = vmatprep.subr.bf16.mxu0 %v6467
    %7498 = vmatpush1.bf16.msra.mxu0 %v6466
    %7499 = vmatprep.subr.bf16.mxu0 %v6483
    %7500 = vmatpush1.bf16.msra.mxu0 %v6482
    %7501 = vmatprep.subr.bf16.mxu0 %v6499
    %7502 = vmatpush1.bf16.msra.mxu0 %v6498
    %7503 = vmatprep.subr.bf16.mxu0 %v6515
    %7504 = vmatpush1.bf16.msra.mxu0 %v6514
    %7505 = vmatprep.subr.bf16.mxu0 %v6531
    %7506 = vmatpush1.bf16.msra.mxu0 %v6530
    %7507 = vmatprep.subr.bf16.mxu0 %v6547
    %7508 = vmatpush1.bf16.msra.mxu0 %v6546
    %7509 = vmatprep.subr.bf16.mxu0 %v6563
    %7510 = vmatpush1.bf16.msra.mxu0 %v6562
    %7511 = vmatprep.subr.bf16.mxu0 %v6579
    %7512 = vmatpush1.bf16.msra.mxu0 %v6578
    %7513 = vmatprep.subr.bf16.mxu0 %v6595
    %7514 = vmatpush1.bf16.msra.mxu0 %v6594
    %7515 = vmatprep.mubr.bf16.mxu0 %v4549
    %7516 = vmatmul.mubr.bf16.gmra.mrb[0].mxu0 %v4548
    %v7517 = vpop.f32.mrb[0].mxu0
    %v7518 = vadd.f32 %v7477, %v7517
    %v7519 = vpop.f32.mrb[0].mxu0
    %v7520 = vadd.f32 %v7479, %v7519
    %v7521 = vpop.f32.mrb[0].mxu0
    %v7522 = vpop.f32.mrb[0].mxu0
    %7523 = vdwg.mxu0
    %7524 = vmatprep.subr.bf16.mxu0 %v6101
    %7525 = vmatpush1.bf16.msra.mxu0 %v6100
    %7526 = vmatprep.subr.bf16.mxu0 %v6117
    %7527 = vmatpush1.bf16.msra.mxu0 %v6116
    %7528 = vmatprep.subr.bf16.mxu0 %v6133
    %7529 = vmatpush1.bf16.msra.mxu0 %v6132
    %7530 = vmatprep.subr.bf16.mxu0 %v6149
    %7531 = vmatpush1.bf16.msra.mxu0 %v6148
    %7532 = vmatprep.subr.bf16.mxu0 %v6165
    %7533 = vmatpush1.bf16.msra.mxu0 %v6164
    %7534 = vmatprep.subr.bf16.mxu0 %v6181
    %7535 = vmatpush1.bf16.msra.mxu0 %v6180
    %7536 = vmatprep.subr.bf16.mxu0 %v6197
    %7537 = vmatpush1.bf16.msra.mxu0 %v6196
    %7538 = vmatprep.subr.bf16.mxu0 %v6213
    %7539 = vmatpush1.bf16.msra.mxu0 %v6212
    %7540 = vmatprep.subr.bf16.mxu0 %v6229
    %7541 = vmatpush1.bf16.msra.mxu0 %v6228
    %7542 = vmatprep.subr.bf16.mxu0 %v6245
    %7543 = vmatpush1.bf16.msra.mxu0 %v6244
    %7544 = vmatprep.subr.bf16.mxu0 %v6261
    %7545 = vmatpush1.bf16.msra.mxu0 %v6260
    %7546 = vmatprep.subr.bf16.mxu0 %v6277
    %7547 = vmatpush1.bf16.msra.mxu0 %v6276
    %7548 = vmatprep.subr.bf16.mxu0 %v6293
    %7549 = vmatpush1.bf16.msra.mxu0 %v6292
    %7550 = vmatprep.subr.bf16.mxu0 %v6309
    %7551 = vmatpush1.bf16.msra.mxu0 %v6308
    %7552 = vmatprep.subr.bf16.mxu0 %v6325
    %7553 = vmatpush1.bf16.msra.mxu0 %v6324
    %7554 = vmatprep.subr.bf16.mxu0 %v6341
    %7555 = vmatpush1.bf16.msra.mxu0 %v6340
    %7556 = vmatprep.mubr.bf16.mxu0 %v4547
    %7557 = vmatmul.mubr.bf16.gmra.mrb[0].mxu0 %v4546
    %v7558 = vpop.f32.mrb[0].mxu0
    %v7559 = vadd.f32 %v4503, %v7558
    %v7560 = vpop.f32.mrb[0].mxu0
    %v7561 = vadd.f32 %v4507, %v7560
    %v7562 = vpop.f32.mrb[0].mxu0
    %v7563 = vpop.f32.mrb[0].mxu0
    %7564 = vdwg.mxu0
    %7565 = vmatprep.subr.bf16.mxu0 %v6357
    %7566 = vmatpush1.bf16.msra.mxu0 %v6356
    %7567 = vmatprep.subr.bf16.mxu0 %v6373
    %7568 = vmatpush1.bf16.msra.mxu0 %v6372
    %7569 = vmatprep.subr.bf16.mxu0 %v6389
    %7570 = vmatpush1.bf16.msra.mxu0 %v6388
    %7571 = vmatprep.subr.bf16.mxu0 %v6405
    %7572 = vmatpush1.bf16.msra.mxu0 %v6404
    %7573 = vmatprep.subr.bf16.mxu0 %v6421
    %7574 = vmatpush1.bf16.msra.mxu0 %v6420
    %7575 = vmatprep.subr.bf16.mxu0 %v6437
    %7576 = vmatpush1.bf16.msra.mxu0 %v6436
    %7577 = vmatprep.subr.bf16.mxu0 %v6453
    %7578 = vmatpush1.bf16.msra.mxu0 %v6452
    %7579 = vmatprep.subr.bf16.mxu0 %v6469
    %7580 = vmatpush1.bf16.msra.mxu0 %v6468
    %7581 = vmatprep.subr.bf16.mxu0 %v6485
    %7582 = vmatpush1.bf16.msra.mxu0 %v6484
    %7583 = vmatprep.subr.bf16.mxu0 %v6501
    %7584 = vmatpush1.bf16.msra.mxu0 %v6500
    %7585 = vmatprep.subr.bf16.mxu0 %v6517
    %7586 = vmatpush1.bf16.msra.mxu0 %v6516
    %7587 = vmatprep.subr.bf16.mxu0 %v6533
    %7588 = vmatpush1.bf16.msra.mxu0 %v6532
    %7589 = vmatprep.subr.bf16.mxu0 %v6549
    %7590 = vmatpush1.bf16.msra.mxu0 %v6548
    %7591 = vmatprep.subr.bf16.mxu0 %v6565
    %7592 = vmatpush1.bf16.msra.mxu0 %v6564
    %7593 = vmatprep.subr.bf16.mxu0 %v6581
    %7594 = vmatpush1.bf16.msra.mxu0 %v6580
    %7595 = vmatprep.subr.bf16.mxu0 %v6597
    %7596 = vmatpush1.bf16.msra.mxu0 %v6596
    %7597 = vmatprep.mubr.bf16.mxu0 %v4549
    %7598 = vmatmul.mubr.bf16.gmra.mrb[0].mxu0 %v4548
    %v7599 = vpop.f32.mrb[0].mxu0
    %v7600 = vadd.f32 %v7559, %v7599
    %v7601 = vpop.f32.mrb[0].mxu0
    %v7602 = vadd.f32 %v7561, %v7601
    %v7603 = vpop.f32.mrb[0].mxu0
    %v7604 = vpop.f32.mrb[0].mxu0
    %7605 = vdwg.mxu0
    %7606 = vmatprep.subr.bf16.mxu0 %v6103
    %7607 = vmatpush1.bf16.msra.mxu0 %v6102
    %7608 = vmatprep.subr.bf16.mxu0 %v6119
    %7609 = vmatpush1.bf16.msra.mxu0 %v6118
    %7610 = vmatprep.subr.bf16.mxu0 %v6135
    %7611 = vmatpush1.bf16.msra.mxu0 %v6134
    %7612 = vmatprep.subr.bf16.mxu0 %v6151
    %7613 = vmatpush1.bf16.msra.mxu0 %v6150
    %7614 = vmatprep.subr.bf16.mxu0 %v6167
    %7615 = vmatpush1.bf16.msra.mxu0 %v6166
    %7616 = vmatprep.subr.bf16.mxu0 %v6183
    %7617 = vmatpush1.bf16.msra.mxu0 %v6182
    %7618 = vmatprep.subr.bf16.mxu0 %v6199
    %7619 = vmatpush1.bf16.msra.mxu0 %v6198
    %7620 = vmatprep.subr.bf16.mxu0 %v6215
    %7621 = vmatpush1.bf16.msra.mxu0 %v6214
    %7622 = vmatprep.subr.bf16.mxu0 %v6231
    %7623 = vmatpush1.bf16.msra.mxu0 %v6230
    %7624 = vmatprep.subr.bf16.mxu0 %v6247
    %7625 = vmatpush1.bf16.msra.mxu0 %v6246
    %7626 = vmatprep.subr.bf16.mxu0 %v6263
    %7627 = vmatpush1.bf16.msra.mxu0 %v6262
    %7628 = vmatprep.subr.bf16.mxu0 %v6279
    %7629 = vmatpush1.bf16.msra.mxu0 %v6278
    %7630 = vmatprep.subr.bf16.mxu0 %v6295
    %7631 = vmatpush1.bf16.msra.mxu0 %v6294
    %7632 = vmatprep.subr.bf16.mxu0 %v6311
    %7633 = vmatpush1.bf16.msra.mxu0 %v6310
    %7634 = vmatprep.subr.bf16.mxu0 %v6327
    %7635 = vmatpush1.bf16.msra.mxu0 %v6326
    %7636 = vmatprep.subr.bf16.mxu0 %v6343
    %7637 = vmatpush1.bf16.msra.mxu0 %v6342
    %7638 = vmatprep.mubr.bf16.mxu0 %v4547
    %7639 = vmatmul.mubr.bf16.gmra.mrb[0].mxu0 %v4546
    %v7640 = vpop.f32.mrb[0].mxu0
    %v7641 = vadd.f32 %v4511, %v7640
    %v7642 = vpop.f32.mrb[0].mxu0
    %v7643 = vadd.f32 %v4515, %v7642
    %v7644 = vpop.f32.mrb[0].mxu0
    %v7645 = vpop.f32.mrb[0].mxu0
    %7646 = vdwg.mxu0
    %7647 = vmatprep.subr.bf16.mxu0 %v6359
    %7648 = vmatpush1.bf16.msra.mxu0 %v6358
    %7649 = vmatprep.subr.bf16.mxu0 %v6375
    %7650 = vmatpush1.bf16.msra.mxu0 %v6374
    %7651 = vmatprep.subr.bf16.mxu0 %v6391
    %7652 = vmatpush1.bf16.msra.mxu0 %v6390
    %7653 = vmatprep.subr.bf16.mxu0 %v6407
    %7654 = vmatpush1.bf16.msra.mxu0 %v6406
    %7655 = vmatprep.subr.bf16.mxu0 %v6423
    %7656 = vmatpush1.bf16.msra.mxu0 %v6422
    %7657 = vmatprep.subr.bf16.mxu0 %v6439
    %7658 = vmatpush1.bf16.msra.mxu0 %v6438
    %7659 = vmatprep.subr.bf16.mxu0 %v6455
    %7660 = vmatpush1.bf16.msra.mxu0 %v6454
    %7661 = vmatprep.subr.bf16.mxu0 %v6471
    %7662 = vmatpush1.bf16.msra.mxu0 %v6470
    %7663 = vmatprep.subr.bf16.mxu0 %v6487
    %7664 = vmatpush1.bf16.msra.mxu0 %v6486
    %7665 = vmatprep.subr.bf16.mxu0 %v6503
    %7666 = vmatpush1.bf16.msra.mxu0 %v6502
    %7667 = vmatprep.subr.bf16.mxu0 %v6519
    %7668 = vmatpush1.bf16.msra.mxu0 %v6518
    %7669 = vmatprep.subr.bf16.mxu0 %v6535
    %7670 = vmatpush1.bf16.msra.mxu0 %v6534
    %7671 = vmatprep.subr.bf16.mxu0 %v6551
    %7672 = vmatpush1.bf16.msra.mxu0 %v6550
    %7673 = vmatprep.subr.bf16.mxu0 %v6567
    %7674 = vmatpush1.bf16.msra.mxu0 %v6566
    %7675 = vmatprep.subr.bf16.mxu0 %v6583
    %7676 = vmatpush1.bf16.msra.mxu0 %v6582
    %7677 = vmatprep.subr.bf16.mxu0 %v6599
    %7678 = vmatpush1.bf16.msra.mxu0 %v6598
    %7679 = vmatprep.mubr.bf16.mxu0 %v4549
    %7680 = vmatmul.mubr.bf16.gmra.mrb[0].mxu0 %v4548
    %v7681 = vpop.f32.mrb[0].mxu0
    %v7682 = vadd.f32 %v7641, %v7681
    %v7683 = vpop.f32.mrb[0].mxu0
    %v7684 = vadd.f32 %v7643, %v7683
    %v7685 = vpop.f32.mrb[0].mxu0
    %v7686 = vpop.f32.mrb[0].mxu0
    %7687 = vdwg.mxu0
    %7688 = vmatprep.subr.bf16.mxu0 %v6105
    %7689 = vmatpush1.bf16.msra.mxu0 %v6104
    %7690 = vmatprep.subr.bf16.mxu0 %v6121
    %7691 = vmatpush1.bf16.msra.mxu0 %v6120
    %7692 = vmatprep.subr.bf16.mxu0 %v6137
    %7693 = vmatpush1.bf16.msra.mxu0 %v6136
    %7694 = vmatprep.subr.bf16.mxu0 %v6153
    %7695 = vmatpush1.bf16.msra.mxu0 %v6152
    %7696 = vmatprep.subr.bf16.mxu0 %v6169
    %7697 = vmatpush1.bf16.msra.mxu0 %v6168
    %7698 = vmatprep.subr.bf16.mxu0 %v6185
    %7699 = vmatpush1.bf16.msra.mxu0 %v6184
    %7700 = vmatprep.subr.bf16.mxu0 %v6201
    %7701 = vmatpush1.bf16.msra.mxu0 %v6200
    %7702 = vmatprep.subr.bf16.mxu0 %v6217
    %7703 = vmatpush1.bf16.msra.mxu0 %v6216
    %7704 = vmatprep.subr.bf16.mxu0 %v6233
    %7705 = vmatpush1.bf16.msra.mxu0 %v6232
    %7706 = vmatprep.subr.bf16.mxu0 %v6249
    %7707 = vmatpush1.bf16.msra.mxu0 %v6248
    %7708 = vmatprep.subr.bf16.mxu0 %v6265
    %7709 = vmatpush1.bf16.msra.mxu0 %v6264
    %7710 = vmatprep.subr.bf16.mxu0 %v6281
    %7711 = vmatpush1.bf16.msra.mxu0 %v6280
    %7712 = vmatprep.subr.bf16.mxu0 %v6297
    %7713 = vmatpush1.bf16.msra.mxu0 %v6296
    %7714 = vmatprep.subr.bf16.mxu0 %v6313
    %7715 = vmatpush1.bf16.msra.mxu0 %v6312
    %7716 = vmatprep.subr.bf16.mxu0 %v6329
    %7717 = vmatpush1.bf16.msra.mxu0 %v6328
    %7718 = vmatprep.subr.bf16.mxu0 %v6345
    %7719 = vmatpush1.bf16.msra.mxu0 %v6344
    %7720 = vmatprep.mubr.bf16.mxu0 %v4547
    %7721 = vmatmul.mubr.bf16.gmra.mrb[0].mxu0 %v4546
    %v7722 = vpop.f32.mrb[0].mxu0
    %v7723 = vadd.f32 %v4519, %v7722
    %v7724 = vpop.f32.mrb[0].mxu0
    %v7725 = vadd.f32 %v4523, %v7724
    %v7726 = vpop.f32.mrb[0].mxu0
    %v7727 = vpop.f32.mrb[0].mxu0
    %7728 = vdwg.mxu0
    %7729 = vmatprep.subr.bf16.mxu0 %v6361
    %7730 = vmatpush1.bf16.msra.mxu0 %v6360
    %7731 = vmatprep.subr.bf16.mxu0 %v6377
    %7732 = vmatpush1.bf16.msra.mxu0 %v6376
    %7733 = vmatprep.subr.bf16.mxu0 %v6393
    %7734 = vmatpush1.bf16.msra.mxu0 %v6392
    %7735 = vmatprep.subr.bf16.mxu0 %v6409
    %7736 = vmatpush1.bf16.msra.mxu0 %v6408
    %7737 = vmatprep.subr.bf16.mxu0 %v6425
    %7738 = vmatpush1.bf16.msra.mxu0 %v6424
    %7739 = vmatprep.subr.bf16.mxu0 %v6441
    %7740 = vmatpush1.bf16.msra.mxu0 %v6440
    %7741 = vmatprep.subr.bf16.mxu0 %v6457
    %7742 = vmatpush1.bf16.msra.mxu0 %v6456
    %7743 = vmatprep.subr.bf16.mxu0 %v6473
    %7744 = vmatpush1.bf16.msra.mxu0 %v6472
    %7745 = vmatprep.subr.bf16.mxu0 %v6489
    %7746 = vmatpush1.bf16.msra.mxu0 %v6488
    %7747 = vmatprep.subr.bf16.mxu0 %v6505
    %7748 = vmatpush1.bf16.msra.mxu0 %v6504
    %7749 = vmatprep.subr.bf16.mxu0 %v6521
    %7750 = vmatpush1.bf16.msra.mxu0 %v6520
    %7751 = vmatprep.subr.bf16.mxu0 %v6537
    %7752 = vmatpush1.bf16.msra.mxu0 %v6536
    %7753 = vmatprep.subr.bf16.mxu0 %v6553
    %7754 = vmatpush1.bf16.msra.mxu0 %v6552
    %7755 = vmatprep.subr.bf16.mxu0 %v6569
    %7756 = vmatpush1.bf16.msra.mxu0 %v6568
    %7757 = vmatprep.subr.bf16.mxu0 %v6585
    %7758 = vmatpush1.bf16.msra.mxu0 %v6584
    %7759 = vmatprep.subr.bf16.mxu0 %v6601
    %7760 = vmatpush1.bf16.msra.mxu0 %v6600
    %7761 = vmatprep.mubr.bf16.mxu0 %v4549
    %7762 = vmatmul.mubr.bf16.gmra.mrb[0].mxu0 %v4548
    %v7763 = vpop.f32.mrb[0].mxu0
    %v7764 = vadd.f32 %v7723, %v7763
    %v7765 = vpop.f32.mrb[0].mxu0
    %v7766 = vadd.f32 %v7725, %v7765
    %v7767 = vpop.f32.mrb[0].mxu0
    %v7768 = vpop.f32.mrb[0].mxu0
    %7769 = vdwg.mxu0
    %v7770 = vmax.f32 %v7190, 0.0
    %v7771 = vmax.f32 %v7192, 0.0
    %v7772 = vmax.f32 %v7272, 0.0
    %v7773 = vmax.f32 %v7274, 0.0
    %v7774 = vmax.f32 %v7354, 0.0
    %v7775 = vmax.f32 %v7356, 0.0
    %v7776 = vmax.f32 %v7436, 0.0
    %v7777 = vmax.f32 %v7438, 0.0
    %v7778 = vmax.f32 %v7518, 0.0
    %v7779 = vmax.f32 %v7520, 0.0
    %v7780 = vmax.f32 %v7600, 0.0
    %v7781 = vmax.f32 %v7602, 0.0
    %v7782 = vmax.f32 %v7682, 0.0
    %v7783 = vmax.f32 %v7684, 0.0
    %v7784 = vmax.f32 %v7764, 0.0
    %v7785 = vmax.f32 %v7766, 0.0
    %s7786 = scalar_lea.vmem %s7, 128
    %7787 = vst [vmem:[%s7786] sm:$0xff] %v7770
    %7788 = vst [vmem:[%s7786 + $0x8] sm:$0xff] %v7771
    %7789 = vst [vmem:[%s7786 + $0x10] sm:$0xff] %v7772
    %7790 = vst [vmem:[%s7786 + $0x18] sm:$0xff] %v7773
    %7791 = vst [vmem:[%s7786 + $0x20] sm:$0xff] %v7774
    %7792 = vst [vmem:[%s7786 + $0x28] sm:$0xff] %v7775
    %7793 = vst [vmem:[%s7786 + $0x30] sm:$0xff] %v7776
    %7794 = vst [vmem:[%s7786 + $0x38] sm:$0xff] %v7777
    %7795 = vst [vmem:[%s7786 + $0x40] sm:$0xff] %v7778
    %7796 = vst [vmem:[%s7786 + $0x48] sm:$0xff] %v7779
    %7797 = vst [vmem:[%s7786 + $0x50] sm:$0xff] %v7780
    %7798 = vst [vmem:[%s7786 + $0x58] sm:$0xff] %v7781
    %7799 = vst [vmem:[%s7786 + $0x60] sm:$0xff] %v7782
    %7800 = vst [vmem:[%s7786 + $0x68] sm:$0xff] %v7783
    %7801 = vst [vmem:[%s7786 + $0x70] sm:$0xff] %v7784
    %7802 = vst [vmem:[%s7786 + $0x78] sm:$0xff] %v7785
    %v7803 = vld [vmem:[%s2] sm:$0xff]
    %v7804 = vld [vmem:[#allocation6] sm:$0xff]
    %v7805 = vld [vmem:[#allocation6 + $0x8] sm:$0xff]
    %v7806 = vld [vmem:[#allocation6 + $0x10] sm:$0xff]
    %v7807 = vld [vmem:[#allocation6 + $0x18] sm:$0xff]
    %v7808 = vld [vmem:[#allocation6 + $0x20] sm:$0xff]
    %v7809 = vld [vmem:[#allocation6 + $0x28] sm:$0xff]
    %v7810 = vld [vmem:[#allocation6 + $0x30] sm:$0xff]
    %v7811 = vld [vmem:[#allocation6 + $0x38] sm:$0xff]
    %v7812 = vld [vmem:[#allocation6 + $0x40] sm:$0xff]
    %v7813 = vld [vmem:[#allocation6 + $0x48] sm:$0xff]
    %v7814 = vld [vmem:[#allocation6 + $0x50] sm:$0xff]
    %v7815 = vld [vmem:[#allocation6 + $0x58] sm:$0xff]
    %v7816 = vld [vmem:[#allocation6 + $0x60] sm:$0xff]
    %v7817 = vld [vmem:[#allocation6 + $0x68] sm:$0xff]
    %v7818 = vld [vmem:[#allocation6 + $0x70] sm:$0xff]
    %v7819 = vld [vmem:[#allocation6 + $0x78] sm:$0xff]
    %v7820 = vld [vmem:[#allocation6 + $0x80] sm:$0xff]
    %v7821 = vld [vmem:[#allocation6 + $0x88] sm:$0xff]
    %v7822 = vld [vmem:[#allocation6 + $0x90] sm:$0xff]
    %v7823 = vld [vmem:[#allocation6 + $0x98] sm:$0xff]
    %v7824 = vld [vmem:[#allocation6 + $0xa0] sm:$0xff]
    %v7825 = vld [vmem:[#allocation6 + $0xa8] sm:$0xff]
    %v7826 = vld [vmem:[#allocation6 + $0xb0] sm:$0xff]
    %v7827 = vld [vmem:[#allocation6 + $0xb8] sm:$0xff]
    %v7828 = vld [vmem:[#allocation6 + $0xc0] sm:$0xff]
    %v7829 = vld [vmem:[#allocation6 + $0xc8] sm:$0xff]
    %v7830 = vld [vmem:[#allocation6 + $0xd0] sm:$0xff]
    %v7831 = vld [vmem:[#allocation6 + $0xd8] sm:$0xff]
    %v7832 = vld [vmem:[#allocation6 + $0xe0] sm:$0xff]
    %v7833 = vld [vmem:[#allocation6 + $0xe8] sm:$0xff]
    %v7834 = vld [vmem:[#allocation6 + $0xf0] sm:$0xff]
    %v7835 = vld [vmem:[#allocation6 + $0xf8] sm:$0xff]
    %v7836 = vld [vmem:[#allocation6 + $0x100] sm:$0xff]
    %v7837 = vld [vmem:[#allocation6 + $0x108] sm:$0xff]
    %v7838 = vld [vmem:[#allocation6 + $0x110] sm:$0xff]
    %v7839 = vld [vmem:[#allocation6 + $0x118] sm:$0xff]
    %v7840 = vld [vmem:[#allocation6 + $0x120] sm:$0xff]
    %v7841 = vld [vmem:[#allocation6 + $0x128] sm:$0xff]
    %v7842 = vld [vmem:[#allocation6 + $0x130] sm:$0xff]
    %v7843 = vld [vmem:[#allocation6 + $0x138] sm:$0xff]
    %v7844 = vld [vmem:[#allocation6 + $0x140] sm:$0xff]
    %v7845 = vld [vmem:[#allocation6 + $0x148] sm:$0xff]
    %v7846 = vld [vmem:[#allocation6 + $0x150] sm:$0xff]
    %v7847 = vld [vmem:[#allocation6 + $0x158] sm:$0xff]
    %v7848 = vld [vmem:[#allocation6 + $0x160] sm:$0xff]
    %v7849 = vld [vmem:[#allocation6 + $0x168] sm:$0xff]
    %v7850 = vld [vmem:[#allocation6 + $0x170] sm:$0xff]
    %v7851 = vld [vmem:[#allocation6 + $0x178] sm:$0xff]
    %v7852 = vld [vmem:[#allocation6 + $0x180] sm:$0xff]
    %v7853 = vld [vmem:[#allocation6 + $0x188] sm:$0xff]
    %v7854 = vld [vmem:[#allocation6 + $0x190] sm:$0xff]
    %v7855 = vld [vmem:[#allocation6 + $0x198] sm:$0xff]
    %v7856 = vld [vmem:[#allocation6 + $0x1a0] sm:$0xff]
    %v7857 = vld [vmem:[#allocation6 + $0x1a8] sm:$0xff]
    %v7858 = vld [vmem:[#allocation6 + $0x1b0] sm:$0xff]
    %v7859 = vld [vmem:[#allocation6 + $0x1b8] sm:$0xff]
    %v7860 = vld [vmem:[#allocation6 + $0x1c0] sm:$0xff]
    %v7861 = vld [vmem:[#allocation6 + $0x1c8] sm:$0xff]
    %v7862 = vld [vmem:[#allocation6 + $0x1d0] sm:$0xff]
    %v7863 = vld [vmem:[#allocation6 + $0x1d8] sm:$0xff]
    %v7864 = vld [vmem:[#allocation6 + $0x1e0] sm:$0xff]
    %v7865 = vld [vmem:[#allocation6 + $0x1e8] sm:$0xff]
    %v7866 = vld [vmem:[#allocation6 + $0x1f0] sm:$0xff]
    %v7867 = vld [vmem:[#allocation6 + $0x1f8] sm:$0xff]
    %v7868 = vld [vmem:[#allocation6 + $0x200] sm:$0xff]
    %v7869 = vld [vmem:[#allocation6 + $0x208] sm:$0xff]
    %v7870 = vld [vmem:[#allocation6 + $0x210] sm:$0xff]
    %v7871 = vld [vmem:[#allocation6 + $0x218] sm:$0xff]
    %v7872 = vld [vmem:[#allocation6 + $0x220] sm:$0xff]
    %v7873 = vld [vmem:[#allocation6 + $0x228] sm:$0xff]
    %v7874 = vld [vmem:[#allocation6 + $0x230] sm:$0xff]
    %v7875 = vld [vmem:[#allocation6 + $0x238] sm:$0xff]
    %v7876 = vld [vmem:[#allocation6 + $0x240] sm:$0xff]
    %v7877 = vld [vmem:[#allocation6 + $0x248] sm:$0xff]
    %v7878 = vld [vmem:[#allocation6 + $0x250] sm:$0xff]
    %v7879 = vld [vmem:[#allocation6 + $0x258] sm:$0xff]
    %v7880 = vld [vmem:[#allocation6 + $0x260] sm:$0xff]
    %v7881 = vld [vmem:[#allocation6 + $0x268] sm:$0xff]
    %v7882 = vld [vmem:[#allocation6 + $0x270] sm:$0xff]
    %v7883 = vld [vmem:[#allocation6 + $0x278] sm:$0xff]
    %v7884 = vld [vmem:[#allocation6 + $0x280] sm:$0xff]
    %v7885 = vld [vmem:[#allocation6 + $0x288] sm:$0xff]
    %v7886 = vld [vmem:[#allocation6 + $0x290] sm:$0xff]
    %v7887 = vld [vmem:[#allocation6 + $0x298] sm:$0xff]
    %v7888 = vld [vmem:[#allocation6 + $0x2a0] sm:$0xff]
    %v7889 = vld [vmem:[#allocation6 + $0x2a8] sm:$0xff]
    %v7890 = vld [vmem:[#allocation6 + $0x2b0] sm:$0xff]
    %v7891 = vld [vmem:[#allocation6 + $0x2b8] sm:$0xff]
    %v7892 = vld [vmem:[#allocation6 + $0x2c0] sm:$0xff]
    %v7893 = vld [vmem:[#allocation6 + $0x2c8] sm:$0xff]
    %v7894 = vld [vmem:[#allocation6 + $0x2d0] sm:$0xff]
    %v7895 = vld [vmem:[#allocation6 + $0x2d8] sm:$0xff]
    %v7896 = vld [vmem:[#allocation6 + $0x2e0] sm:$0xff]
    %v7897 = vld [vmem:[#allocation6 + $0x2e8] sm:$0xff]
    %v7898 = vld [vmem:[#allocation6 + $0x2f0] sm:$0xff]
    %v7899 = vld [vmem:[#allocation6 + $0x2f8] sm:$0xff]
    %v7900 = vld [vmem:[#allocation6 + $0x300] sm:$0xff]
    %v7901 = vld [vmem:[#allocation6 + $0x308] sm:$0xff]
    %v7902 = vld [vmem:[#allocation6 + $0x310] sm:$0xff]
    %v7903 = vld [vmem:[#allocation6 + $0x318] sm:$0xff]
    %v7904 = vld [vmem:[#allocation6 + $0x320] sm:$0xff]
    %v7905 = vld [vmem:[#allocation6 + $0x328] sm:$0xff]
    %v7906 = vld [vmem:[#allocation6 + $0x330] sm:$0xff]
    %v7907 = vld [vmem:[#allocation6 + $0x338] sm:$0xff]
    %v7908 = vld [vmem:[#allocation6 + $0x340] sm:$0xff]
    %v7909 = vld [vmem:[#allocation6 + $0x348] sm:$0xff]
    %v7910 = vld [vmem:[#allocation6 + $0x350] sm:$0xff]
    %v7911 = vld [vmem:[#allocation6 + $0x358] sm:$0xff]
    %v7912 = vld [vmem:[#allocation6 + $0x360] sm:$0xff]
    %v7913 = vld [vmem:[#allocation6 + $0x368] sm:$0xff]
    %v7914 = vld [vmem:[#allocation6 + $0x370] sm:$0xff]
    %v7915 = vld [vmem:[#allocation6 + $0x378] sm:$0xff]
    %v7916 = vld [vmem:[#allocation6 + $0x380] sm:$0xff]
    %v7917 = vld [vmem:[#allocation6 + $0x388] sm:$0xff]
    %v7918 = vld [vmem:[#allocation6 + $0x390] sm:$0xff]
    %v7919 = vld [vmem:[#allocation6 + $0x398] sm:$0xff]
    %v7920 = vld [vmem:[#allocation6 + $0x3a0] sm:$0xff]
    %v7921 = vld [vmem:[#allocation6 + $0x3a8] sm:$0xff]
    %v7922 = vld [vmem:[#allocation6 + $0x3b0] sm:$0xff]
    %v7923 = vld [vmem:[#allocation6 + $0x3b8] sm:$0xff]
    %v7924 = vld [vmem:[#allocation6 + $0x3c0] sm:$0xff]
    %v7925 = vld [vmem:[#allocation6 + $0x3c8] sm:$0xff]
    %v7926 = vld [vmem:[#allocation6 + $0x3d0] sm:$0xff]
    %v7927 = vld [vmem:[#allocation6 + $0x3d8] sm:$0xff]
    %v7928 = vld [vmem:[#allocation6 + $0x3e0] sm:$0xff]
    %v7929 = vld [vmem:[#allocation6 + $0x3e8] sm:$0xff]
    %v7930 = vld [vmem:[#allocation6 + $0x3f0] sm:$0xff]
    %v7931 = vld [vmem:[#allocation6 + $0x3f8] sm:$0xff]
    %v7932 = vld [vmem:[#allocation6 + $0x400] sm:$0xff]
    %v7933 = vld [vmem:[#allocation6 + $0x408] sm:$0xff]
    %v7934 = vld [vmem:[#allocation6 + $0x410] sm:$0xff]
    %v7935 = vld [vmem:[#allocation6 + $0x418] sm:$0xff]
    %v7936 = vld [vmem:[#allocation6 + $0x420] sm:$0xff]
    %v7937 = vld [vmem:[#allocation6 + $0x428] sm:$0xff]
    %v7938 = vld [vmem:[#allocation6 + $0x430] sm:$0xff]
    %v7939 = vld [vmem:[#allocation6 + $0x438] sm:$0xff]
    %v7940 = vld [vmem:[#allocation6 + $0x440] sm:$0xff]
    %v7941 = vld [vmem:[#allocation6 + $0x448] sm:$0xff]
    %v7942 = vld [vmem:[#allocation6 + $0x450] sm:$0xff]
    %v7943 = vld [vmem:[#allocation6 + $0x458] sm:$0xff]
    %v7944 = vld [vmem:[#allocation6 + $0x460] sm:$0xff]
    %v7945 = vld [vmem:[#allocation6 + $0x468] sm:$0xff]
    %v7946 = vld [vmem:[#allocation6 + $0x470] sm:$0xff]
    %v7947 = vld [vmem:[#allocation6 + $0x478] sm:$0xff]
    %v7948 = vld [vmem:[#allocation6 + $0x480] sm:$0xff]
    %v7949 = vld [vmem:[#allocation6 + $0x488] sm:$0xff]
    %v7950 = vld [vmem:[#allocation6 + $0x490] sm:$0xff]
    %v7951 = vld [vmem:[#allocation6 + $0x498] sm:$0xff]
    %v7952 = vld [vmem:[#allocation6 + $0x4a0] sm:$0xff]
    %v7953 = vld [vmem:[#allocation6 + $0x4a8] sm:$0xff]
    %v7954 = vld [vmem:[#allocation6 + $0x4b0] sm:$0xff]
    %v7955 = vld [vmem:[#allocation6 + $0x4b8] sm:$0xff]
    %v7956 = vld [vmem:[#allocation6 + $0x4c0] sm:$0xff]
    %v7957 = vld [vmem:[#allocation6 + $0x4c8] sm:$0xff]
    %v7958 = vld [vmem:[#allocation6 + $0x4d0] sm:$0xff]
    %v7959 = vld [vmem:[#allocation6 + $0x4d8] sm:$0xff]
    %v7960 = vld [vmem:[#allocation6 + $0x4e0] sm:$0xff]
    %v7961 = vld [vmem:[#allocation6 + $0x4e8] sm:$0xff]
    %v7962 = vld [vmem:[#allocation6 + $0x4f0] sm:$0xff]
    %v7963 = vld [vmem:[#allocation6 + $0x4f8] sm:$0xff]
    %v7964 = vld [vmem:[#allocation6 + $0x500] sm:$0xff]
    %v7965 = vld [vmem:[#allocation6 + $0x508] sm:$0xff]
    %v7966 = vld [vmem:[#allocation6 + $0x510] sm:$0xff]
    %v7967 = vld [vmem:[#allocation6 + $0x518] sm:$0xff]
    %v7968 = vld [vmem:[#allocation6 + $0x520] sm:$0xff]
    %v7969 = vld [vmem:[#allocation6 + $0x528] sm:$0xff]
    %v7970 = vld [vmem:[#allocation6 + $0x530] sm:$0xff]
    %v7971 = vld [vmem:[#allocation6 + $0x538] sm:$0xff]
    %v7972 = vld [vmem:[#allocation6 + $0x540] sm:$0xff]
    %v7973 = vld [vmem:[#allocation6 + $0x548] sm:$0xff]
    %v7974 = vld [vmem:[#allocation6 + $0x550] sm:$0xff]
    %v7975 = vld [vmem:[#allocation6 + $0x558] sm:$0xff]
    %v7976 = vld [vmem:[#allocation6 + $0x560] sm:$0xff]
    %v7977 = vld [vmem:[#allocation6 + $0x568] sm:$0xff]
    %v7978 = vld [vmem:[#allocation6 + $0x570] sm:$0xff]
    %v7979 = vld [vmem:[#allocation6 + $0x578] sm:$0xff]
    %v7980 = vld [vmem:[#allocation6 + $0x580] sm:$0xff]
    %v7981 = vld [vmem:[#allocation6 + $0x588] sm:$0xff]
    %v7982 = vld [vmem:[#allocation6 + $0x590] sm:$0xff]
    %v7983 = vld [vmem:[#allocation6 + $0x598] sm:$0xff]
    %v7984 = vld [vmem:[#allocation6 + $0x5a0] sm:$0xff]
    %v7985 = vld [vmem:[#allocation6 + $0x5a8] sm:$0xff]
    %v7986 = vld [vmem:[#allocation6 + $0x5b0] sm:$0xff]
    %v7987 = vld [vmem:[#allocation6 + $0x5b8] sm:$0xff]
    %v7988 = vld [vmem:[#allocation6 + $0x5c0] sm:$0xff]
    %v7989 = vld [vmem:[#allocation6 + $0x5c8] sm:$0xff]
    %v7990 = vld [vmem:[#allocation6 + $0x5d0] sm:$0xff]
    %v7991 = vld [vmem:[#allocation6 + $0x5d8] sm:$0xff]
    %v7992 = vld [vmem:[#allocation6 + $0x5e0] sm:$0xff]
    %v7993 = vld [vmem:[#allocation6 + $0x5e8] sm:$0xff]
    %v7994 = vld [vmem:[#allocation6 + $0x5f0] sm:$0xff]
    %v7995 = vld [vmem:[#allocation6 + $0x5f8] sm:$0xff]
    %v7996 = vld [vmem:[#allocation6 + $0x600] sm:$0xff]
    %v7997 = vld [vmem:[#allocation6 + $0x608] sm:$0xff]
    %v7998 = vld [vmem:[#allocation6 + $0x610] sm:$0xff]
    %v7999 = vld [vmem:[#allocation6 + $0x618] sm:$0xff]
    %v8000 = vld [vmem:[#allocation6 + $0x620] sm:$0xff]
    %v8001 = vld [vmem:[#allocation6 + $0x628] sm:$0xff]
    %v8002 = vld [vmem:[#allocation6 + $0x630] sm:$0xff]
    %v8003 = vld [vmem:[#allocation6 + $0x638] sm:$0xff]
    %v8004 = vld [vmem:[#allocation6 + $0x640] sm:$0xff]
    %v8005 = vld [vmem:[#allocation6 + $0x648] sm:$0xff]
    %v8006 = vld [vmem:[#allocation6 + $0x650] sm:$0xff]
    %v8007 = vld [vmem:[#allocation6 + $0x658] sm:$0xff]
    %v8008 = vld [vmem:[#allocation6 + $0x660] sm:$0xff]
    %v8009 = vld [vmem:[#allocation6 + $0x668] sm:$0xff]
    %v8010 = vld [vmem:[#allocation6 + $0x670] sm:$0xff]
    %v8011 = vld [vmem:[#allocation6 + $0x678] sm:$0xff]
    %v8012 = vld [vmem:[#allocation6 + $0x680] sm:$0xff]
    %v8013 = vld [vmem:[#allocation6 + $0x688] sm:$0xff]
    %v8014 = vld [vmem:[#allocation6 + $0x690] sm:$0xff]
    %v8015 = vld [vmem:[#allocation6 + $0x698] sm:$0xff]
    %v8016 = vld [vmem:[#allocation6 + $0x6a0] sm:$0xff]
    %v8017 = vld [vmem:[#allocation6 + $0x6a8] sm:$0xff]
    %v8018 = vld [vmem:[#allocation6 + $0x6b0] sm:$0xff]
    %v8019 = vld [vmem:[#allocation6 + $0x6b8] sm:$0xff]
    %v8020 = vld [vmem:[#allocation6 + $0x6c0] sm:$0xff]
    %v8021 = vld [vmem:[#allocation6 + $0x6c8] sm:$0xff]
    %v8022 = vld [vmem:[#allocation6 + $0x6d0] sm:$0xff]
    %v8023 = vld [vmem:[#allocation6 + $0x6d8] sm:$0xff]
    %v8024 = vld [vmem:[#allocation6 + $0x6e0] sm:$0xff]
    %v8025 = vld [vmem:[#allocation6 + $0x6e8] sm:$0xff]
    %v8026 = vld [vmem:[#allocation6 + $0x6f0] sm:$0xff]
    %v8027 = vld [vmem:[#allocation6 + $0x6f8] sm:$0xff]
    %v8028 = vld [vmem:[#allocation6 + $0x700] sm:$0xff]
    %v8029 = vld [vmem:[#allocation6 + $0x708] sm:$0xff]
    %v8030 = vld [vmem:[#allocation6 + $0x710] sm:$0xff]
    %v8031 = vld [vmem:[#allocation6 + $0x718] sm:$0xff]
    %v8032 = vld [vmem:[#allocation6 + $0x720] sm:$0xff]
    %v8033 = vld [vmem:[#allocation6 + $0x728] sm:$0xff]
    %v8034 = vld [vmem:[#allocation6 + $0x730] sm:$0xff]
    %v8035 = vld [vmem:[#allocation6 + $0x738] sm:$0xff]
    %v8036 = vld [vmem:[#allocation6 + $0x740] sm:$0xff]
    %v8037 = vld [vmem:[#allocation6 + $0x748] sm:$0xff]
    %v8038 = vld [vmem:[#allocation6 + $0x750] sm:$0xff]
    %v8039 = vld [vmem:[#allocation6 + $0x758] sm:$0xff]
    %v8040 = vld [vmem:[#allocation6 + $0x760] sm:$0xff]
    %v8041 = vld [vmem:[#allocation6 + $0x768] sm:$0xff]
    %v8042 = vld [vmem:[#allocation6 + $0x770] sm:$0xff]
    %v8043 = vld [vmem:[#allocation6 + $0x778] sm:$0xff]
    %v8044 = vld [vmem:[#allocation6 + $0x780] sm:$0xff]
    %v8045 = vld [vmem:[#allocation6 + $0x788] sm:$0xff]
    %v8046 = vld [vmem:[#allocation6 + $0x790] sm:$0xff]
    %v8047 = vld [vmem:[#allocation6 + $0x798] sm:$0xff]
    %v8048 = vld [vmem:[#allocation6 + $0x7a0] sm:$0xff]
    %v8049 = vld [vmem:[#allocation6 + $0x7a8] sm:$0xff]
    %v8050 = vld [vmem:[#allocation6 + $0x7b0] sm:$0xff]
    %v8051 = vld [vmem:[#allocation6 + $0x7b8] sm:$0xff]
    %v8052 = vld [vmem:[#allocation6 + $0x7c0] sm:$0xff]
    %v8053 = vld [vmem:[#allocation6 + $0x7c8] sm:$0xff]
    %v8054 = vld [vmem:[#allocation6 + $0x7d0] sm:$0xff]
    %v8055 = vld [vmem:[#allocation6 + $0x7d8] sm:$0xff]
    %v8056 = vld [vmem:[#allocation6 + $0x7e0] sm:$0xff]
    %v8057 = vld [vmem:[#allocation6 + $0x7e8] sm:$0xff]
    %v8058 = vld [vmem:[#allocation6 + $0x7f0] sm:$0xff]
    %v8059 = vld [vmem:[#allocation6 + $0x7f8] sm:$0xff]
    %s8060 = scalar_lea.vmem [#allocation7], 32
    %v8061 = vld [vmem:[%s8060] sm:$0xff]
    %v8062 = vld [vmem:[%s8060 + $0x8] sm:$0xff]
    %v8065 = vlaneseq
    %v8066 = vshrl.u32 %v8065, 7
    %v8067 = vsub.s32 0, %v8066
    %v8068 = vrot.slane %v8061, %v8067
    %v8069 = vlaneseq
    %v8070 = vshrl.u32 %v8069, 7
    %v8071 = vsub.s32 1, %v8070
    %v8072 = vrot.slane %v8061, %v8071
    %v8073 = vlaneseq
    %v8074 = vshrl.u32 %v8073, 7
    %v8075 = vsub.s32 2, %v8074
    %v8076 = vrot.slane %v8061, %v8075
    %v8077 = vlaneseq
    %v8078 = vshrl.u32 %v8077, 7
    %v8079 = vsub.s32 3, %v8078
    %v8080 = vrot.slane %v8061, %v8079
    %v8081 = vlaneseq
    %v8082 = vshrl.u32 %v8081, 7
    %v8083 = vsub.s32 4, %v8082
    %v8084 = vrot.slane %v8061, %v8083
    %v8085 = vlaneseq
    %v8086 = vshrl.u32 %v8085, 7
    %v8087 = vsub.s32 5, %v8086
    %v8088 = vrot.slane %v8061, %v8087
    %v8089 = vlaneseq
    %v8090 = vshrl.u32 %v8089, 7
    %v8091 = vsub.s32 6, %v8090
    %v8092 = vrot.slane %v8061, %v8091
    %v8093 = vlaneseq
    %v8094 = vshrl.u32 %v8093, 7
    %v8095 = vsub.s32 7, %v8094
    %v8096 = vrot.slane %v8061, %v8095
    %v8097 = vlaneseq
    %v8098 = vshrl.u32 %v8097, 7
    %v8099 = vsub.s32 0, %v8098
    %v8100 = vrot.slane %v8062, %v8099
    %v8101 = vlaneseq
    %v8102 = vshrl.u32 %v8101, 7
    %v8103 = vsub.s32 1, %v8102
    %v8104 = vrot.slane %v8062, %v8103
    %v8105 = vlaneseq
    %v8106 = vshrl.u32 %v8105, 7
    %v8107 = vsub.s32 2, %v8106
    %v8108 = vrot.slane %v8062, %v8107
    %v8109 = vlaneseq
    %v8110 = vshrl.u32 %v8109, 7
    %v8111 = vsub.s32 3, %v8110
    %v8112 = vrot.slane %v8062, %v8111
    %v8113 = vlaneseq
    %v8114 = vshrl.u32 %v8113, 7
    %v8115 = vsub.s32 4, %v8114
    %v8116 = vrot.slane %v8062, %v8115
    %v8117 = vlaneseq
    %v8118 = vshrl.u32 %v8117, 7
    %v8119 = vsub.s32 5, %v8118
    %v8120 = vrot.slane %v8062, %v8119
    %v8121 = vlaneseq
    %v8122 = vshrl.u32 %v8121, 7
    %v8123 = vsub.s32 6, %v8122
    %v8124 = vrot.slane %v8062, %v8123
    %v8125 = vlaneseq
    %v8126 = vshrl.u32 %v8125, 7
    %v8127 = vsub.s32 7, %v8126
    %v8128 = vrot.slane %v8062, %v8127
    %v8146 = vunpack.c.l.b16 %v7803
    %v8147 = vunpack.c.h.b16 %v7803
    %v8148 = vpack.c.b16 %v8146, %v8146
    %v8149 = vpack.c.b16 %v8147, %v8147
    %v8408 = vunpack.c.l.b16 %v7804
    %v8409 = vunpack.c.h.b16 %v7804
    %v8410 = vunpack.c.l.b16 %v7805
    %v8411 = vunpack.c.h.b16 %v7805
    %v8412 = vunpack.c.l.b16 %v7806
    %v8413 = vunpack.c.h.b16 %v7806
    %v8414 = vunpack.c.l.b16 %v7807
    %v8415 = vunpack.c.h.b16 %v7807
    %v8416 = vunpack.c.l.b16 %v7808
    %v8417 = vunpack.c.h.b16 %v7808
    %v8418 = vunpack.c.l.b16 %v7809
    %v8419 = vunpack.c.h.b16 %v7809
    %v8420 = vunpack.c.l.b16 %v7810
    %v8421 = vunpack.c.h.b16 %v7810
    %v8422 = vunpack.c.l.b16 %v7811
    %v8423 = vunpack.c.h.b16 %v7811
    %v8424 = vunpack.c.l.b16 %v7812
    %v8425 = vunpack.c.h.b16 %v7812
    %v8426 = vunpack.c.l.b16 %v7813
    %v8427 = vunpack.c.h.b16 %v7813
    %v8428 = vunpack.c.l.b16 %v7814
    %v8429 = vunpack.c.h.b16 %v7814
    %v8430 = vunpack.c.l.b16 %v7815
    %v8431 = vunpack.c.h.b16 %v7815
    %v8432 = vunpack.c.l.b16 %v7816
    %v8433 = vunpack.c.h.b16 %v7816
    %v8434 = vunpack.c.l.b16 %v7817
    %v8435 = vunpack.c.h.b16 %v7817
    %v8436 = vunpack.c.l.b16 %v7818
    %v8437 = vunpack.c.h.b16 %v7818
    %v8438 = vunpack.c.l.b16 %v7819
    %v8439 = vunpack.c.h.b16 %v7819
    %v8440 = vunpack.c.l.b16 %v7820
    %v8441 = vunpack.c.h.b16 %v7820
    %v8442 = vunpack.c.l.b16 %v7821
    %v8443 = vunpack.c.h.b16 %v7821
    %v8444 = vunpack.c.l.b16 %v7822
    %v8445 = vunpack.c.h.b16 %v7822
    %v8446 = vunpack.c.l.b16 %v7823
    %v8447 = vunpack.c.h.b16 %v7823
    %v8448 = vunpack.c.l.b16 %v7824
    %v8449 = vunpack.c.h.b16 %v7824
    %v8450 = vunpack.c.l.b16 %v7825
    %v8451 = vunpack.c.h.b16 %v7825
    %v8452 = vunpack.c.l.b16 %v7826
    %v8453 = vunpack.c.h.b16 %v7826
    %v8454 = vunpack.c.l.b16 %v7827
    %v8455 = vunpack.c.h.b16 %v7827
    %v8456 = vunpack.c.l.b16 %v7828
    %v8457 = vunpack.c.h.b16 %v7828
    %v8458 = vunpack.c.l.b16 %v7829
    %v8459 = vunpack.c.h.b16 %v7829
    %v8460 = vunpack.c.l.b16 %v7830
    %v8461 = vunpack.c.h.b16 %v7830
    %v8462 = vunpack.c.l.b16 %v7831
    %v8463 = vunpack.c.h.b16 %v7831
    %v8464 = vunpack.c.l.b16 %v7832
    %v8465 = vunpack.c.h.b16 %v7832
    %v8466 = vunpack.c.l.b16 %v7833
    %v8467 = vunpack.c.h.b16 %v7833
    %v8468 = vunpack.c.l.b16 %v7834
    %v8469 = vunpack.c.h.b16 %v7834
    %v8470 = vunpack.c.l.b16 %v7835
    %v8471 = vunpack.c.h.b16 %v7835
    %v8472 = vunpack.c.l.b16 %v7836
    %v8473 = vunpack.c.h.b16 %v7836
    %v8474 = vunpack.c.l.b16 %v7837
    %v8475 = vunpack.c.h.b16 %v7837
    %v8476 = vunpack.c.l.b16 %v7838
    %v8477 = vunpack.c.h.b16 %v7838
    %v8478 = vunpack.c.l.b16 %v7839
    %v8479 = vunpack.c.h.b16 %v7839
    %v8480 = vunpack.c.l.b16 %v7840
    %v8481 = vunpack.c.h.b16 %v7840
    %v8482 = vunpack.c.l.b16 %v7841
    %v8483 = vunpack.c.h.b16 %v7841
    %v8484 = vunpack.c.l.b16 %v7842
    %v8485 = vunpack.c.h.b16 %v7842
    %v8486 = vunpack.c.l.b16 %v7843
    %v8487 = vunpack.c.h.b16 %v7843
    %v8488 = vunpack.c.l.b16 %v7844
    %v8489 = vunpack.c.h.b16 %v7844
    %v8490 = vunpack.c.l.b16 %v7845
    %v8491 = vunpack.c.h.b16 %v7845
    %v8492 = vunpack.c.l.b16 %v7846
    %v8493 = vunpack.c.h.b16 %v7846
    %v8494 = vunpack.c.l.b16 %v7847
    %v8495 = vunpack.c.h.b16 %v7847
    %v8496 = vunpack.c.l.b16 %v7848
    %v8497 = vunpack.c.h.b16 %v7848
    %v8498 = vunpack.c.l.b16 %v7849
    %v8499 = vunpack.c.h.b16 %v7849
    %v8500 = vunpack.c.l.b16 %v7850
    %v8501 = vunpack.c.h.b16 %v7850
    %v8502 = vunpack.c.l.b16 %v7851
    %v8503 = vunpack.c.h.b16 %v7851
    %v8504 = vunpack.c.l.b16 %v7852
    %v8505 = vunpack.c.h.b16 %v7852
    %v8506 = vunpack.c.l.b16 %v7853
    %v8507 = vunpack.c.h.b16 %v7853
    %v8508 = vunpack.c.l.b16 %v7854
    %v8509 = vunpack.c.h.b16 %v7854
    %v8510 = vunpack.c.l.b16 %v7855
    %v8511 = vunpack.c.h.b16 %v7855
    %v8512 = vunpack.c.l.b16 %v7856
    %v8513 = vunpack.c.h.b16 %v7856
    %v8514 = vunpack.c.l.b16 %v7857
    %v8515 = vunpack.c.h.b16 %v7857
    %v8516 = vunpack.c.l.b16 %v7858
    %v8517 = vunpack.c.h.b16 %v7858
    %v8518 = vunpack.c.l.b16 %v7859
    %v8519 = vunpack.c.h.b16 %v7859
    %v8520 = vunpack.c.l.b16 %v7860
    %v8521 = vunpack.c.h.b16 %v7860
    %v8522 = vunpack.c.l.b16 %v7861
    %v8523 = vunpack.c.h.b16 %v7861
    %v8524 = vunpack.c.l.b16 %v7862
    %v8525 = vunpack.c.h.b16 %v7862
    %v8526 = vunpack.c.l.b16 %v7863
    %v8527 = vunpack.c.h.b16 %v7863
    %v8528 = vunpack.c.l.b16 %v7864
    %v8529 = vunpack.c.h.b16 %v7864
    %v8530 = vunpack.c.l.b16 %v7865
    %v8531 = vunpack.c.h.b16 %v7865
    %v8532 = vunpack.c.l.b16 %v7866
    %v8533 = vunpack.c.h.b16 %v7866
    %v8534 = vunpack.c.l.b16 %v7867
    %v8535 = vunpack.c.h.b16 %v7867
    %v8536 = vunpack.c.l.b16 %v7868
    %v8537 = vunpack.c.h.b16 %v7868
    %v8538 = vunpack.c.l.b16 %v7869
    %v8539 = vunpack.c.h.b16 %v7869
    %v8540 = vunpack.c.l.b16 %v7870
    %v8541 = vunpack.c.h.b16 %v7870
    %v8542 = vunpack.c.l.b16 %v7871
    %v8543 = vunpack.c.h.b16 %v7871
    %v8544 = vunpack.c.l.b16 %v7872
    %v8545 = vunpack.c.h.b16 %v7872
    %v8546 = vunpack.c.l.b16 %v7873
    %v8547 = vunpack.c.h.b16 %v7873
    %v8548 = vunpack.c.l.b16 %v7874
    %v8549 = vunpack.c.h.b16 %v7874
    %v8550 = vunpack.c.l.b16 %v7875
    %v8551 = vunpack.c.h.b16 %v7875
    %v8552 = vunpack.c.l.b16 %v7876
    %v8553 = vunpack.c.h.b16 %v7876
    %v8554 = vunpack.c.l.b16 %v7877
    %v8555 = vunpack.c.h.b16 %v7877
    %v8556 = vunpack.c.l.b16 %v7878
    %v8557 = vunpack.c.h.b16 %v7878
    %v8558 = vunpack.c.l.b16 %v7879
    %v8559 = vunpack.c.h.b16 %v7879
    %v8560 = vunpack.c.l.b16 %v7880
    %v8561 = vunpack.c.h.b16 %v7880
    %v8562 = vunpack.c.l.b16 %v7881
    %v8563 = vunpack.c.h.b16 %v7881
    %v8564 = vunpack.c.l.b16 %v7882
    %v8565 = vunpack.c.h.b16 %v7882
    %v8566 = vunpack.c.l.b16 %v7883
    %v8567 = vunpack.c.h.b16 %v7883
    %v8568 = vunpack.c.l.b16 %v7884
    %v8569 = vunpack.c.h.b16 %v7884
    %v8570 = vunpack.c.l.b16 %v7885
    %v8571 = vunpack.c.h.b16 %v7885
    %v8572 = vunpack.c.l.b16 %v7886
    %v8573 = vunpack.c.h.b16 %v7886
    %v8574 = vunpack.c.l.b16 %v7887
    %v8575 = vunpack.c.h.b16 %v7887
    %v8576 = vunpack.c.l.b16 %v7888
    %v8577 = vunpack.c.h.b16 %v7888
    %v8578 = vunpack.c.l.b16 %v7889
    %v8579 = vunpack.c.h.b16 %v7889
    %v8580 = vunpack.c.l.b16 %v7890
    %v8581 = vunpack.c.h.b16 %v7890
    %v8582 = vunpack.c.l.b16 %v7891
    %v8583 = vunpack.c.h.b16 %v7891
    %v8584 = vunpack.c.l.b16 %v7892
    %v8585 = vunpack.c.h.b16 %v7892
    %v8586 = vunpack.c.l.b16 %v7893
    %v8587 = vunpack.c.h.b16 %v7893
    %v8588 = vunpack.c.l.b16 %v7894
    %v8589 = vunpack.c.h.b16 %v7894
    %v8590 = vunpack.c.l.b16 %v7895
    %v8591 = vunpack.c.h.b16 %v7895
    %v8592 = vunpack.c.l.b16 %v7896
    %v8593 = vunpack.c.h.b16 %v7896
    %v8594 = vunpack.c.l.b16 %v7897
    %v8595 = vunpack.c.h.b16 %v7897
    %v8596 = vunpack.c.l.b16 %v7898
    %v8597 = vunpack.c.h.b16 %v7898
    %v8598 = vunpack.c.l.b16 %v7899
    %v8599 = vunpack.c.h.b16 %v7899
    %v8600 = vunpack.c.l.b16 %v7900
    %v8601 = vunpack.c.h.b16 %v7900
    %v8602 = vunpack.c.l.b16 %v7901
    %v8603 = vunpack.c.h.b16 %v7901
    %v8604 = vunpack.c.l.b16 %v7902
    %v8605 = vunpack.c.h.b16 %v7902
    %v8606 = vunpack.c.l.b16 %v7903
    %v8607 = vunpack.c.h.b16 %v7903
    %v8608 = vunpack.c.l.b16 %v7904
    %v8609 = vunpack.c.h.b16 %v7904
    %v8610 = vunpack.c.l.b16 %v7905
    %v8611 = vunpack.c.h.b16 %v7905
    %v8612 = vunpack.c.l.b16 %v7906
    %v8613 = vunpack.c.h.b16 %v7906
    %v8614 = vunpack.c.l.b16 %v7907
    %v8615 = vunpack.c.h.b16 %v7907
    %v8616 = vunpack.c.l.b16 %v7908
    %v8617 = vunpack.c.h.b16 %v7908
    %v8618 = vunpack.c.l.b16 %v7909
    %v8619 = vunpack.c.h.b16 %v7909
    %v8620 = vunpack.c.l.b16 %v7910
    %v8621 = vunpack.c.h.b16 %v7910
    %v8622 = vunpack.c.l.b16 %v7911
    %v8623 = vunpack.c.h.b16 %v7911
    %v8624 = vunpack.c.l.b16 %v7912
    %v8625 = vunpack.c.h.b16 %v7912
    %v8626 = vunpack.c.l.b16 %v7913
    %v8627 = vunpack.c.h.b16 %v7913
    %v8628 = vunpack.c.l.b16 %v7914
    %v8629 = vunpack.c.h.b16 %v7914
    %v8630 = vunpack.c.l.b16 %v7915
    %v8631 = vunpack.c.h.b16 %v7915
    %v8632 = vunpack.c.l.b16 %v7916
    %v8633 = vunpack.c.h.b16 %v7916
    %v8634 = vunpack.c.l.b16 %v7917
    %v8635 = vunpack.c.h.b16 %v7917
    %v8636 = vunpack.c.l.b16 %v7918
    %v8637 = vunpack.c.h.b16 %v7918
    %v8638 = vunpack.c.l.b16 %v7919
    %v8639 = vunpack.c.h.b16 %v7919
    %v8640 = vunpack.c.l.b16 %v7920
    %v8641 = vunpack.c.h.b16 %v7920
    %v8642 = vunpack.c.l.b16 %v7921
    %v8643 = vunpack.c.h.b16 %v7921
    %v8644 = vunpack.c.l.b16 %v7922
    %v8645 = vunpack.c.h.b16 %v7922
    %v8646 = vunpack.c.l.b16 %v7923
    %v8647 = vunpack.c.h.b16 %v7923
    %v8648 = vunpack.c.l.b16 %v7924
    %v8649 = vunpack.c.h.b16 %v7924
    %v8650 = vunpack.c.l.b16 %v7925
    %v8651 = vunpack.c.h.b16 %v7925
    %v8652 = vunpack.c.l.b16 %v7926
    %v8653 = vunpack.c.h.b16 %v7926
    %v8654 = vunpack.c.l.b16 %v7927
    %v8655 = vunpack.c.h.b16 %v7927
    %v8656 = vunpack.c.l.b16 %v7928
    %v8657 = vunpack.c.h.b16 %v7928
    %v8658 = vunpack.c.l.b16 %v7929
    %v8659 = vunpack.c.h.b16 %v7929
    %v8660 = vunpack.c.l.b16 %v7930
    %v8661 = vunpack.c.h.b16 %v7930
    %v8662 = vunpack.c.l.b16 %v7931
    %v8663 = vunpack.c.h.b16 %v7931
    %v8664 = vunpack.c.l.b16 %v7932
    %v8665 = vunpack.c.h.b16 %v7932
    %v8666 = vunpack.c.l.b16 %v7933
    %v8667 = vunpack.c.h.b16 %v7933
    %v8668 = vunpack.c.l.b16 %v7934
    %v8669 = vunpack.c.h.b16 %v7934
    %v8670 = vunpack.c.l.b16 %v7935
    %v8671 = vunpack.c.h.b16 %v7935
    %v8672 = vunpack.c.l.b16 %v7936
    %v8673 = vunpack.c.h.b16 %v7936
    %v8674 = vunpack.c.l.b16 %v7937
    %v8675 = vunpack.c.h.b16 %v7937
    %v8676 = vunpack.c.l.b16 %v7938
    %v8677 = vunpack.c.h.b16 %v7938
    %v8678 = vunpack.c.l.b16 %v7939
    %v8679 = vunpack.c.h.b16 %v7939
    %v8680 = vunpack.c.l.b16 %v7940
    %v8681 = vunpack.c.h.b16 %v7940
    %v8682 = vunpack.c.l.b16 %v7941
    %v8683 = vunpack.c.h.b16 %v7941
    %v8684 = vunpack.c.l.b16 %v7942
    %v8685 = vunpack.c.h.b16 %v7942
    %v8686 = vunpack.c.l.b16 %v7943
    %v8687 = vunpack.c.h.b16 %v7943
    %v8688 = vunpack.c.l.b16 %v7944
    %v8689 = vunpack.c.h.b16 %v7944
    %v8690 = vunpack.c.l.b16 %v7945
    %v8691 = vunpack.c.h.b16 %v7945
    %v8692 = vunpack.c.l.b16 %v7946
    %v8693 = vunpack.c.h.b16 %v7946
    %v8694 = vunpack.c.l.b16 %v7947
    %v8695 = vunpack.c.h.b16 %v7947
    %v8696 = vunpack.c.l.b16 %v7948
    %v8697 = vunpack.c.h.b16 %v7948
    %v8698 = vunpack.c.l.b16 %v7949
    %v8699 = vunpack.c.h.b16 %v7949
    %v8700 = vunpack.c.l.b16 %v7950
    %v8701 = vunpack.c.h.b16 %v7950
    %v8702 = vunpack.c.l.b16 %v7951
    %v8703 = vunpack.c.h.b16 %v7951
    %v8704 = vunpack.c.l.b16 %v7952
    %v8705 = vunpack.c.h.b16 %v7952
    %v8706 = vunpack.c.l.b16 %v7953
    %v8707 = vunpack.c.h.b16 %v7953
    %v8708 = vunpack.c.l.b16 %v7954
    %v8709 = vunpack.c.h.b16 %v7954
    %v8710 = vunpack.c.l.b16 %v7955
    %v8711 = vunpack.c.h.b16 %v7955
    %v8712 = vunpack.c.l.b16 %v7956
    %v8713 = vunpack.c.h.b16 %v7956
    %v8714 = vunpack.c.l.b16 %v7957
    %v8715 = vunpack.c.h.b16 %v7957
    %v8716 = vunpack.c.l.b16 %v7958
    %v8717 = vunpack.c.h.b16 %v7958
    %v8718 = vunpack.c.l.b16 %v7959
    %v8719 = vunpack.c.h.b16 %v7959
    %v8720 = vunpack.c.l.b16 %v7960
    %v8721 = vunpack.c.h.b16 %v7960
    %v8722 = vunpack.c.l.b16 %v7961
    %v8723 = vunpack.c.h.b16 %v7961
    %v8724 = vunpack.c.l.b16 %v7962
    %v8725 = vunpack.c.h.b16 %v7962
    %v8726 = vunpack.c.l.b16 %v7963
    %v8727 = vunpack.c.h.b16 %v7963
    %v8728 = vunpack.c.l.b16 %v7964
    %v8729 = vunpack.c.h.b16 %v7964
    %v8730 = vunpack.c.l.b16 %v7965
    %v8731 = vunpack.c.h.b16 %v7965
    %v8732 = vunpack.c.l.b16 %v7966
    %v8733 = vunpack.c.h.b16 %v7966
    %v8734 = vunpack.c.l.b16 %v7967
    %v8735 = vunpack.c.h.b16 %v7967
    %v8736 = vunpack.c.l.b16 %v7968
    %v8737 = vunpack.c.h.b16 %v7968
    %v8738 = vunpack.c.l.b16 %v7969
    %v8739 = vunpack.c.h.b16 %v7969
    %v8740 = vunpack.c.l.b16 %v7970
    %v8741 = vunpack.c.h.b16 %v7970
    %v8742 = vunpack.c.l.b16 %v7971
    %v8743 = vunpack.c.h.b16 %v7971
    %v8744 = vunpack.c.l.b16 %v7972
    %v8745 = vunpack.c.h.b16 %v7972
    %v8746 = vunpack.c.l.b16 %v7973
    %v8747 = vunpack.c.h.b16 %v7973
    %v8748 = vunpack.c.l.b16 %v7974
    %v8749 = vunpack.c.h.b16 %v7974
    %v8750 = vunpack.c.l.b16 %v7975
    %v8751 = vunpack.c.h.b16 %v7975
    %v8752 = vunpack.c.l.b16 %v7976
    %v8753 = vunpack.c.h.b16 %v7976
    %v8754 = vunpack.c.l.b16 %v7977
    %v8755 = vunpack.c.h.b16 %v7977
    %v8756 = vunpack.c.l.b16 %v7978
    %v8757 = vunpack.c.h.b16 %v7978
    %v8758 = vunpack.c.l.b16 %v7979
    %v8759 = vunpack.c.h.b16 %v7979
    %v8760 = vunpack.c.l.b16 %v7980
    %v8761 = vunpack.c.h.b16 %v7980
    %v8762 = vunpack.c.l.b16 %v7981
    %v8763 = vunpack.c.h.b16 %v7981
    %v8764 = vunpack.c.l.b16 %v7982
    %v8765 = vunpack.c.h.b16 %v7982
    %v8766 = vunpack.c.l.b16 %v7983
    %v8767 = vunpack.c.h.b16 %v7983
    %v8768 = vunpack.c.l.b16 %v7984
    %v8769 = vunpack.c.h.b16 %v7984
    %v8770 = vunpack.c.l.b16 %v7985
    %v8771 = vunpack.c.h.b16 %v7985
    %v8772 = vunpack.c.l.b16 %v7986
    %v8773 = vunpack.c.h.b16 %v7986
    %v8774 = vunpack.c.l.b16 %v7987
    %v8775 = vunpack.c.h.b16 %v7987
    %v8776 = vunpack.c.l.b16 %v7988
    %v8777 = vunpack.c.h.b16 %v7988
    %v8778 = vunpack.c.l.b16 %v7989
    %v8779 = vunpack.c.h.b16 %v7989
    %v8780 = vunpack.c.l.b16 %v7990
    %v8781 = vunpack.c.h.b16 %v7990
    %v8782 = vunpack.c.l.b16 %v7991
    %v8783 = vunpack.c.h.b16 %v7991
    %v8784 = vunpack.c.l.b16 %v7992
    %v8785 = vunpack.c.h.b16 %v7992
    %v8786 = vunpack.c.l.b16 %v7993
    %v8787 = vunpack.c.h.b16 %v7993
    %v8788 = vunpack.c.l.b16 %v7994
    %v8789 = vunpack.c.h.b16 %v7994
    %v8790 = vunpack.c.l.b16 %v7995
    %v8791 = vunpack.c.h.b16 %v7995
    %v8792 = vunpack.c.l.b16 %v7996
    %v8793 = vunpack.c.h.b16 %v7996
    %v8794 = vunpack.c.l.b16 %v7997
    %v8795 = vunpack.c.h.b16 %v7997
    %v8796 = vunpack.c.l.b16 %v7998
    %v8797 = vunpack.c.h.b16 %v7998
    %v8798 = vunpack.c.l.b16 %v7999
    %v8799 = vunpack.c.h.b16 %v7999
    %v8800 = vunpack.c.l.b16 %v8000
    %v8801 = vunpack.c.h.b16 %v8000
    %v8802 = vunpack.c.l.b16 %v8001
    %v8803 = vunpack.c.h.b16 %v8001
    %v8804 = vunpack.c.l.b16 %v8002
    %v8805 = vunpack.c.h.b16 %v8002
    %v8806 = vunpack.c.l.b16 %v8003
    %v8807 = vunpack.c.h.b16 %v8003
    %v8808 = vunpack.c.l.b16 %v8004
    %v8809 = vunpack.c.h.b16 %v8004
    %v8810 = vunpack.c.l.b16 %v8005
    %v8811 = vunpack.c.h.b16 %v8005
    %v8812 = vunpack.c.l.b16 %v8006
    %v8813 = vunpack.c.h.b16 %v8006
    %v8814 = vunpack.c.l.b16 %v8007
    %v8815 = vunpack.c.h.b16 %v8007
    %v8816 = vunpack.c.l.b16 %v8008
    %v8817 = vunpack.c.h.b16 %v8008
    %v8818 = vunpack.c.l.b16 %v8009
    %v8819 = vunpack.c.h.b16 %v8009
    %v8820 = vunpack.c.l.b16 %v8010
    %v8821 = vunpack.c.h.b16 %v8010
    %v8822 = vunpack.c.l.b16 %v8011
    %v8823 = vunpack.c.h.b16 %v8011
    %v8824 = vunpack.c.l.b16 %v8012
    %v8825 = vunpack.c.h.b16 %v8012
    %v8826 = vunpack.c.l.b16 %v8013
    %v8827 = vunpack.c.h.b16 %v8013
    %v8828 = vunpack.c.l.b16 %v8014
    %v8829 = vunpack.c.h.b16 %v8014
    %v8830 = vunpack.c.l.b16 %v8015
    %v8831 = vunpack.c.h.b16 %v8015
    %v8832 = vunpack.c.l.b16 %v8016
    %v8833 = vunpack.c.h.b16 %v8016
    %v8834 = vunpack.c.l.b16 %v8017
    %v8835 = vunpack.c.h.b16 %v8017
    %v8836 = vunpack.c.l.b16 %v8018
    %v8837 = vunpack.c.h.b16 %v8018
    %v8838 = vunpack.c.l.b16 %v8019
    %v8839 = vunpack.c.h.b16 %v8019
    %v8840 = vunpack.c.l.b16 %v8020
    %v8841 = vunpack.c.h.b16 %v8020
    %v8842 = vunpack.c.l.b16 %v8021
    %v8843 = vunpack.c.h.b16 %v8021
    %v8844 = vunpack.c.l.b16 %v8022
    %v8845 = vunpack.c.h.b16 %v8022
    %v8846 = vunpack.c.l.b16 %v8023
    %v8847 = vunpack.c.h.b16 %v8023
    %v8848 = vunpack.c.l.b16 %v8024
    %v8849 = vunpack.c.h.b16 %v8024
    %v8850 = vunpack.c.l.b16 %v8025
    %v8851 = vunpack.c.h.b16 %v8025
    %v8852 = vunpack.c.l.b16 %v8026
    %v8853 = vunpack.c.h.b16 %v8026
    %v8854 = vunpack.c.l.b16 %v8027
    %v8855 = vunpack.c.h.b16 %v8027
    %v8856 = vunpack.c.l.b16 %v8028
    %v8857 = vunpack.c.h.b16 %v8028
    %v8858 = vunpack.c.l.b16 %v8029
    %v8859 = vunpack.c.h.b16 %v8029
    %v8860 = vunpack.c.l.b16 %v8030
    %v8861 = vunpack.c.h.b16 %v8030
    %v8862 = vunpack.c.l.b16 %v8031
    %v8863 = vunpack.c.h.b16 %v8031
    %v8864 = vunpack.c.l.b16 %v8032
    %v8865 = vunpack.c.h.b16 %v8032
    %v8866 = vunpack.c.l.b16 %v8033
    %v8867 = vunpack.c.h.b16 %v8033
    %v8868 = vunpack.c.l.b16 %v8034
    %v8869 = vunpack.c.h.b16 %v8034
    %v8870 = vunpack.c.l.b16 %v8035
    %v8871 = vunpack.c.h.b16 %v8035
    %v8872 = vunpack.c.l.b16 %v8036
    %v8873 = vunpack.c.h.b16 %v8036
    %v8874 = vunpack.c.l.b16 %v8037
    %v8875 = vunpack.c.h.b16 %v8037
    %v8876 = vunpack.c.l.b16 %v8038
    %v8877 = vunpack.c.h.b16 %v8038
    %v8878 = vunpack.c.l.b16 %v8039
    %v8879 = vunpack.c.h.b16 %v8039
    %v8880 = vunpack.c.l.b16 %v8040
    %v8881 = vunpack.c.h.b16 %v8040
    %v8882 = vunpack.c.l.b16 %v8041
    %v8883 = vunpack.c.h.b16 %v8041
    %v8884 = vunpack.c.l.b16 %v8042
    %v8885 = vunpack.c.h.b16 %v8042
    %v8886 = vunpack.c.l.b16 %v8043
    %v8887 = vunpack.c.h.b16 %v8043
    %v8888 = vunpack.c.l.b16 %v8044
    %v8889 = vunpack.c.h.b16 %v8044
    %v8890 = vunpack.c.l.b16 %v8045
    %v8891 = vunpack.c.h.b16 %v8045
    %v8892 = vunpack.c.l.b16 %v8046
    %v8893 = vunpack.c.h.b16 %v8046
    %v8894 = vunpack.c.l.b16 %v8047
    %v8895 = vunpack.c.h.b16 %v8047
    %v8896 = vunpack.c.l.b16 %v8048
    %v8897 = vunpack.c.h.b16 %v8048
    %v8898 = vunpack.c.l.b16 %v8049
    %v8899 = vunpack.c.h.b16 %v8049
    %v8900 = vunpack.c.l.b16 %v8050
    %v8901 = vunpack.c.h.b16 %v8050
    %v8902 = vunpack.c.l.b16 %v8051
    %v8903 = vunpack.c.h.b16 %v8051
    %v8904 = vunpack.c.l.b16 %v8052
    %v8905 = vunpack.c.h.b16 %v8052
    %v8906 = vunpack.c.l.b16 %v8053
    %v8907 = vunpack.c.h.b16 %v8053
    %v8908 = vunpack.c.l.b16 %v8054
    %v8909 = vunpack.c.h.b16 %v8054
    %v8910 = vunpack.c.l.b16 %v8055
    %v8911 = vunpack.c.h.b16 %v8055
    %v8912 = vunpack.c.l.b16 %v8056
    %v8913 = vunpack.c.h.b16 %v8056
    %v8914 = vunpack.c.l.b16 %v8057
    %v8915 = vunpack.c.h.b16 %v8057
    %v8916 = vunpack.c.l.b16 %v8058
    %v8917 = vunpack.c.h.b16 %v8058
    %v8918 = vunpack.c.l.b16 %v8059
    %v8919 = vunpack.c.h.b16 %v8059
    %v8920 = vpack.c.b16 %v8424, %v8408
    %v8921 = vpack.c.b16 %v8425, %v8409
    %v8922 = vpack.c.b16 %v8426, %v8410
    %v8923 = vpack.c.b16 %v8427, %v8411
    %v8924 = vpack.c.b16 %v8428, %v8412
    %v8925 = vpack.c.b16 %v8429, %v8413
    %v8926 = vpack.c.b16 %v8430, %v8414
    %v8927 = vpack.c.b16 %v8431, %v8415
    %v8928 = vpack.c.b16 %v8432, %v8416
    %v8929 = vpack.c.b16 %v8433, %v8417
    %v8930 = vpack.c.b16 %v8434, %v8418
    %v8931 = vpack.c.b16 %v8435, %v8419
    %v8932 = vpack.c.b16 %v8436, %v8420
    %v8933 = vpack.c.b16 %v8437, %v8421
    %v8934 = vpack.c.b16 %v8438, %v8422
    %v8935 = vpack.c.b16 %v8439, %v8423
    %v8936 = vpack.c.b16 %v8456, %v8440
    %v8937 = vpack.c.b16 %v8457, %v8441
    %v8938 = vpack.c.b16 %v8458, %v8442
    %v8939 = vpack.c.b16 %v8459, %v8443
    %v8940 = vpack.c.b16 %v8460, %v8444
    %v8941 = vpack.c.b16 %v8461, %v8445
    %v8942 = vpack.c.b16 %v8462, %v8446
    %v8943 = vpack.c.b16 %v8463, %v8447
    %v8944 = vpack.c.b16 %v8464, %v8448
    %v8945 = vpack.c.b16 %v8465, %v8449
    %v8946 = vpack.c.b16 %v8466, %v8450
    %v8947 = vpack.c.b16 %v8467, %v8451
    %v8948 = vpack.c.b16 %v8468, %v8452
    %v8949 = vpack.c.b16 %v8469, %v8453
    %v8950 = vpack.c.b16 %v8470, %v8454
    %v8951 = vpack.c.b16 %v8471, %v8455
    %v8952 = vpack.c.b16 %v8488, %v8472
    %v8953 = vpack.c.b16 %v8489, %v8473
    %v8954 = vpack.c.b16 %v8490, %v8474
    %v8955 = vpack.c.b16 %v8491, %v8475
    %v8956 = vpack.c.b16 %v8492, %v8476
    %v8957 = vpack.c.b16 %v8493, %v8477
    %v8958 = vpack.c.b16 %v8494, %v8478
    %v8959 = vpack.c.b16 %v8495, %v8479
    %v8960 = vpack.c.b16 %v8496, %v8480
    %v8961 = vpack.c.b16 %v8497, %v8481
    %v8962 = vpack.c.b16 %v8498, %v8482
    %v8963 = vpack.c.b16 %v8499, %v8483
    %v8964 = vpack.c.b16 %v8500, %v8484
    %v8965 = vpack.c.b16 %v8501, %v8485
    %v8966 = vpack.c.b16 %v8502, %v8486
    %v8967 = vpack.c.b16 %v8503, %v8487
    %v8968 = vpack.c.b16 %v8520, %v8504
    %v8969 = vpack.c.b16 %v8521, %v8505
    %v8970 = vpack.c.b16 %v8522, %v8506
    %v8971 = vpack.c.b16 %v8523, %v8507
    %v8972 = vpack.c.b16 %v8524, %v8508
    %v8973 = vpack.c.b16 %v8525, %v8509
    %v8974 = vpack.c.b16 %v8526, %v8510
    %v8975 = vpack.c.b16 %v8527, %v8511
    %v8976 = vpack.c.b16 %v8528, %v8512
    %v8977 = vpack.c.b16 %v8529, %v8513
    %v8978 = vpack.c.b16 %v8530, %v8514
    %v8979 = vpack.c.b16 %v8531, %v8515
    %v8980 = vpack.c.b16 %v8532, %v8516
    %v8981 = vpack.c.b16 %v8533, %v8517
    %v8982 = vpack.c.b16 %v8534, %v8518
    %v8983 = vpack.c.b16 %v8535, %v8519
    %v8984 = vpack.c.b16 %v8552, %v8536
    %v8985 = vpack.c.b16 %v8553, %v8537
    %v8986 = vpack.c.b16 %v8554, %v8538
    %v8987 = vpack.c.b16 %v8555, %v8539
    %v8988 = vpack.c.b16 %v8556, %v8540
    %v8989 = vpack.c.b16 %v8557, %v8541
    %v8990 = vpack.c.b16 %v8558, %v8542
    %v8991 = vpack.c.b16 %v8559, %v8543
    %v8992 = vpack.c.b16 %v8560, %v8544
    %v8993 = vpack.c.b16 %v8561, %v8545
    %v8994 = vpack.c.b16 %v8562, %v8546
    %v8995 = vpack.c.b16 %v8563, %v8547
    %v8996 = vpack.c.b16 %v8564, %v8548
    %v8997 = vpack.c.b16 %v8565, %v8549
    %v8998 = vpack.c.b16 %v8566, %v8550
    %v8999 = vpack.c.b16 %v8567, %v8551
    %v9000 = vpack.c.b16 %v8584, %v8568
    %v9001 = vpack.c.b16 %v8585, %v8569
    %v9002 = vpack.c.b16 %v8586, %v8570
    %v9003 = vpack.c.b16 %v8587, %v8571
    %v9004 = vpack.c.b16 %v8588, %v8572
    %v9005 = vpack.c.b16 %v8589, %v8573
    %v9006 = vpack.c.b16 %v8590, %v8574
    %v9007 = vpack.c.b16 %v8591, %v8575
    %v9008 = vpack.c.b16 %v8592, %v8576
    %v9009 = vpack.c.b16 %v8593, %v8577
    %v9010 = vpack.c.b16 %v8594, %v8578
    %v9011 = vpack.c.b16 %v8595, %v8579
    %v9012 = vpack.c.b16 %v8596, %v8580
    %v9013 = vpack.c.b16 %v8597, %v8581
    %v9014 = vpack.c.b16 %v8598, %v8582
    %v9015 = vpack.c.b16 %v8599, %v8583
    %v9016 = vpack.c.b16 %v8616, %v8600
    %v9017 = vpack.c.b16 %v8617, %v8601
    %v9018 = vpack.c.b16 %v8618, %v8602
    %v9019 = vpack.c.b16 %v8619, %v8603
    %v9020 = vpack.c.b16 %v8620, %v8604
    %v9021 = vpack.c.b16 %v8621, %v8605
    %v9022 = vpack.c.b16 %v8622, %v8606
    %v9023 = vpack.c.b16 %v8623, %v8607
    %v9024 = vpack.c.b16 %v8624, %v8608
    %v9025 = vpack.c.b16 %v8625, %v8609
    %v9026 = vpack.c.b16 %v8626, %v8610
    %v9027 = vpack.c.b16 %v8627, %v8611
    %v9028 = vpack.c.b16 %v8628, %v8612
    %v9029 = vpack.c.b16 %v8629, %v8613
    %v9030 = vpack.c.b16 %v8630, %v8614
    %v9031 = vpack.c.b16 %v8631, %v8615
    %v9032 = vpack.c.b16 %v8648, %v8632
    %v9033 = vpack.c.b16 %v8649, %v8633
    %v9034 = vpack.c.b16 %v8650, %v8634
    %v9035 = vpack.c.b16 %v8651, %v8635
    %v9036 = vpack.c.b16 %v8652, %v8636
    %v9037 = vpack.c.b16 %v8653, %v8637
    %v9038 = vpack.c.b16 %v8654, %v8638
    %v9039 = vpack.c.b16 %v8655, %v8639
    %v9040 = vpack.c.b16 %v8656, %v8640
    %v9041 = vpack.c.b16 %v8657, %v8641
    %v9042 = vpack.c.b16 %v8658, %v8642
    %v9043 = vpack.c.b16 %v8659, %v8643
    %v9044 = vpack.c.b16 %v8660, %v8644
    %v9045 = vpack.c.b16 %v8661, %v8645
    %v9046 = vpack.c.b16 %v8662, %v8646
    %v9047 = vpack.c.b16 %v8663, %v8647
    %v9048 = vpack.c.b16 %v8680, %v8664
    %v9049 = vpack.c.b16 %v8681, %v8665
    %v9050 = vpack.c.b16 %v8682, %v8666
    %v9051 = vpack.c.b16 %v8683, %v8667
    %v9052 = vpack.c.b16 %v8684, %v8668
    %v9053 = vpack.c.b16 %v8685, %v8669
    %v9054 = vpack.c.b16 %v8686, %v8670
    %v9055 = vpack.c.b16 %v8687, %v8671
    %v9056 = vpack.c.b16 %v8688, %v8672
    %v9057 = vpack.c.b16 %v8689, %v8673
    %v9058 = vpack.c.b16 %v8690, %v8674
    %v9059 = vpack.c.b16 %v8691, %v8675
    %v9060 = vpack.c.b16 %v8692, %v8676
    %v9061 = vpack.c.b16 %v8693, %v8677
    %v9062 = vpack.c.b16 %v8694, %v8678
    %v9063 = vpack.c.b16 %v8695, %v8679
    %v9064 = vpack.c.b16 %v8712, %v8696
    %v9065 = vpack.c.b16 %v8713, %v8697
    %v9066 = vpack.c.b16 %v8714, %v8698
    %v9067 = vpack.c.b16 %v8715, %v8699
    %v9068 = vpack.c.b16 %v8716, %v8700
    %v9069 = vpack.c.b16 %v8717, %v8701
    %v9070 = vpack.c.b16 %v8718, %v8702
    %v9071 = vpack.c.b16 %v8719, %v8703
    %v9072 = vpack.c.b16 %v8720, %v8704
    %v9073 = vpack.c.b16 %v8721, %v8705
    %v9074 = vpack.c.b16 %v8722, %v8706
    %v9075 = vpack.c.b16 %v8723, %v8707
    %v9076 = vpack.c.b16 %v8724, %v8708
    %v9077 = vpack.c.b16 %v8725, %v8709
    %v9078 = vpack.c.b16 %v8726, %v8710
    %v9079 = vpack.c.b16 %v8727, %v8711
    %v9080 = vpack.c.b16 %v8744, %v8728
    %v9081 = vpack.c.b16 %v8745, %v8729
    %v9082 = vpack.c.b16 %v8746, %v8730
    %v9083 = vpack.c.b16 %v8747, %v8731
    %v9084 = vpack.c.b16 %v8748, %v8732
    %v9085 = vpack.c.b16 %v8749, %v8733
    %v9086 = vpack.c.b16 %v8750, %v8734
    %v9087 = vpack.c.b16 %v8751, %v8735
    %v9088 = vpack.c.b16 %v8752, %v8736
    %v9089 = vpack.c.b16 %v8753, %v8737
    %v9090 = vpack.c.b16 %v8754, %v8738
    %v9091 = vpack.c.b16 %v8755, %v8739
    %v9092 = vpack.c.b16 %v8756, %v8740
    %v9093 = vpack.c.b16 %v8757, %v8741
    %v9094 = vpack.c.b16 %v8758, %v8742
    %v9095 = vpack.c.b16 %v8759, %v8743
    %v9096 = vpack.c.b16 %v8776, %v8760
    %v9097 = vpack.c.b16 %v8777, %v8761
    %v9098 = vpack.c.b16 %v8778, %v8762
    %v9099 = vpack.c.b16 %v8779, %v8763
    %v9100 = vpack.c.b16 %v8780, %v8764
    %v9101 = vpack.c.b16 %v8781, %v8765
    %v9102 = vpack.c.b16 %v8782, %v8766
    %v9103 = vpack.c.b16 %v8783, %v8767
    %v9104 = vpack.c.b16 %v8784, %v8768
    %v9105 = vpack.c.b16 %v8785, %v8769
    %v9106 = vpack.c.b16 %v8786, %v8770
    %v9107 = vpack.c.b16 %v8787, %v8771
    %v9108 = vpack.c.b16 %v8788, %v8772
    %v9109 = vpack.c.b16 %v8789, %v8773
    %v9110 = vpack.c.b16 %v8790, %v8774
    %v9111 = vpack.c.b16 %v8791, %v8775
    %v9112 = vpack.c.b16 %v8808, %v8792
    %v9113 = vpack.c.b16 %v8809, %v8793
    %v9114 = vpack.c.b16 %v8810, %v8794
    %v9115 = vpack.c.b16 %v8811, %v8795
    %v9116 = vpack.c.b16 %v8812, %v8796
    %v9117 = vpack.c.b16 %v8813, %v8797
    %v9118 = vpack.c.b16 %v8814, %v8798
    %v9119 = vpack.c.b16 %v8815, %v8799
    %v9120 = vpack.c.b16 %v8816, %v8800
    %v9121 = vpack.c.b16 %v8817, %v8801
    %v9122 = vpack.c.b16 %v8818, %v8802
    %v9123 = vpack.c.b16 %v8819, %v8803
    %v9124 = vpack.c.b16 %v8820, %v8804
    %v9125 = vpack.c.b16 %v8821, %v8805
    %v9126 = vpack.c.b16 %v8822, %v8806
    %v9127 = vpack.c.b16 %v8823, %v8807
    %v9128 = vpack.c.b16 %v8840, %v8824
    %v9129 = vpack.c.b16 %v8841, %v8825
    %v9130 = vpack.c.b16 %v8842, %v8826
    %v9131 = vpack.c.b16 %v8843, %v8827
    %v9132 = vpack.c.b16 %v8844, %v8828
    %v9133 = vpack.c.b16 %v8845, %v8829
    %v9134 = vpack.c.b16 %v8846, %v8830
    %v9135 = vpack.c.b16 %v8847, %v8831
    %v9136 = vpack.c.b16 %v8848, %v8832
    %v9137 = vpack.c.b16 %v8849, %v8833
    %v9138 = vpack.c.b16 %v8850, %v8834
    %v9139 = vpack.c.b16 %v8851, %v8835
    %v9140 = vpack.c.b16 %v8852, %v8836
    %v9141 = vpack.c.b16 %v8853, %v8837
    %v9142 = vpack.c.b16 %v8854, %v8838
    %v9143 = vpack.c.b16 %v8855, %v8839
    %v9144 = vpack.c.b16 %v8872, %v8856
    %v9145 = vpack.c.b16 %v8873, %v8857
    %v9146 = vpack.c.b16 %v8874, %v8858
    %v9147 = vpack.c.b16 %v8875, %v8859
    %v9148 = vpack.c.b16 %v8876, %v8860
    %v9149 = vpack.c.b16 %v8877, %v8861
    %v9150 = vpack.c.b16 %v8878, %v8862
    %v9151 = vpack.c.b16 %v8879, %v8863
    %v9152 = vpack.c.b16 %v8880, %v8864
    %v9153 = vpack.c.b16 %v8881, %v8865
    %v9154 = vpack.c.b16 %v8882, %v8866
    %v9155 = vpack.c.b16 %v8883, %v8867
    %v9156 = vpack.c.b16 %v8884, %v8868
    %v9157 = vpack.c.b16 %v8885, %v8869
    %v9158 = vpack.c.b16 %v8886, %v8870
    %v9159 = vpack.c.b16 %v8887, %v8871
    %v9160 = vpack.c.b16 %v8904, %v8888
    %v9161 = vpack.c.b16 %v8905, %v8889
    %v9162 = vpack.c.b16 %v8906, %v8890
    %v9163 = vpack.c.b16 %v8907, %v8891
    %v9164 = vpack.c.b16 %v8908, %v8892
    %v9165 = vpack.c.b16 %v8909, %v8893
    %v9166 = vpack.c.b16 %v8910, %v8894
    %v9167 = vpack.c.b16 %v8911, %v8895
    %v9168 = vpack.c.b16 %v8912, %v8896
    %v9169 = vpack.c.b16 %v8913, %v8897
    %v9170 = vpack.c.b16 %v8914, %v8898
    %v9171 = vpack.c.b16 %v8915, %v8899
    %v9172 = vpack.c.b16 %v8916, %v8900
    %v9173 = vpack.c.b16 %v8917, %v8901
    %v9174 = vpack.c.b16 %v8918, %v8902
    %v9175 = vpack.c.b16 %v8919, %v8903
    %9432 = vmatprep.subr.bf16.mxu0 %v8921
    %9433 = vmatpush1.bf16.msra.mxu0 %v8920
    %9434 = vmatprep.subr.bf16.mxu0 %v8937
    %9435 = vmatpush1.bf16.msra.mxu0 %v8936
    %9436 = vmatprep.subr.bf16.mxu0 %v8953
    %9437 = vmatpush1.bf16.msra.mxu0 %v8952
    %9438 = vmatprep.subr.bf16.mxu0 %v8969
    %9439 = vmatpush1.bf16.msra.mxu0 %v8968
    %9440 = vmatprep.subr.bf16.mxu0 %v8985
    %9441 = vmatpush1.bf16.msra.mxu0 %v8984
    %9442 = vmatprep.subr.bf16.mxu0 %v9001
    %9443 = vmatpush1.bf16.msra.mxu0 %v9000
    %9444 = vmatprep.subr.bf16.mxu0 %v9017
    %9445 = vmatpush1.bf16.msra.mxu0 %v9016
    %9446 = vmatprep.subr.bf16.mxu0 %v9033
    %9447 = vmatpush1.bf16.msra.mxu0 %v9032
    %9448 = vmatprep.subr.bf16.mxu0 %v9049
    %9449 = vmatpush1.bf16.msra.mxu0 %v9048
    %9450 = vmatprep.subr.bf16.mxu0 %v9065
    %9451 = vmatpush1.bf16.msra.mxu0 %v9064
    %9452 = vmatprep.subr.bf16.mxu0 %v9081
    %9453 = vmatpush1.bf16.msra.mxu0 %v9080
    %9454 = vmatprep.subr.bf16.mxu0 %v9097
    %9455 = vmatpush1.bf16.msra.mxu0 %v9096
    %9456 = vmatprep.subr.bf16.mxu0 %v9113
    %9457 = vmatpush1.bf16.msra.mxu0 %v9112
    %9458 = vmatprep.subr.bf16.mxu0 %v9129
    %9459 = vmatpush1.bf16.msra.mxu0 %v9128
    %9460 = vmatprep.subr.bf16.mxu0 %v9145
    %9461 = vmatpush1.bf16.msra.mxu0 %v9144
    %9462 = vmatprep.subr.bf16.mxu0 %v9161
    %9463 = vmatpush1.bf16.msra.mxu0 %v9160
    %9464 = vmatprep.mubr.bf16.mxu0 %v8149
    %9465 = vmatmul.mubr.bf16.gmra.mrb[0].mxu0 %v8148
    %v9466 = vpop.f32.mrb[0].mxu0
    %v9467 = vadd.f32 %v8068, %v9466
    %v9468 = vpop.f32.mrb[0].mxu0
    %v9469 = vadd.f32 %v8072, %v9468
    %v9470 = vpop.f32.mrb[0].mxu0
    %v9471 = vpop.f32.mrb[0].mxu0
    %9472 = vdwg.mxu0
    %9473 = vmatprep.subr.bf16.mxu0 %v8923
    %9474 = vmatpush1.bf16.msra.mxu0 %v8922
    %9475 = vmatprep.subr.bf16.mxu0 %v8939
    %9476 = vmatpush1.bf16.msra.mxu0 %v8938
    %9477 = vmatprep.subr.bf16.mxu0 %v8955
    %9478 = vmatpush1.bf16.msra.mxu0 %v8954
    %9479 = vmatprep.subr.bf16.mxu0 %v8971
    %9480 = vmatpush1.bf16.msra.mxu0 %v8970
    %9481 = vmatprep.subr.bf16.mxu0 %v8987
    %9482 = vmatpush1.bf16.msra.mxu0 %v8986
    %9483 = vmatprep.subr.bf16.mxu0 %v9003
    %9484 = vmatpush1.bf16.msra.mxu0 %v9002
    %9485 = vmatprep.subr.bf16.mxu0 %v9019
    %9486 = vmatpush1.bf16.msra.mxu0 %v9018
    %9487 = vmatprep.subr.bf16.mxu0 %v9035
    %9488 = vmatpush1.bf16.msra.mxu0 %v9034
    %9489 = vmatprep.subr.bf16.mxu0 %v9051
    %9490 = vmatpush1.bf16.msra.mxu0 %v9050
    %9491 = vmatprep.subr.bf16.mxu0 %v9067
    %9492 = vmatpush1.bf16.msra.mxu0 %v9066
    %9493 = vmatprep.subr.bf16.mxu0 %v9083
    %9494 = vmatpush1.bf16.msra.mxu0 %v9082
    %9495 = vmatprep.subr.bf16.mxu0 %v9099
    %9496 = vmatpush1.bf16.msra.mxu0 %v9098
    %9497 = vmatprep.subr.bf16.mxu0 %v9115
    %9498 = vmatpush1.bf16.msra.mxu0 %v9114
    %9499 = vmatprep.subr.bf16.mxu0 %v9131
    %9500 = vmatpush1.bf16.msra.mxu0 %v9130
    %9501 = vmatprep.subr.bf16.mxu0 %v9147
    %9502 = vmatpush1.bf16.msra.mxu0 %v9146
    %9503 = vmatprep.subr.bf16.mxu0 %v9163
    %9504 = vmatpush1.bf16.msra.mxu0 %v9162
    %9505 = vmatprep.mubr.bf16.mxu0 %v8149
    %9506 = vmatmul.mubr.bf16.gmra.mrb[0].mxu0 %v8148
    %v9507 = vpop.f32.mrb[0].mxu0
    %v9508 = vadd.f32 %v8076, %v9507
    %v9509 = vpop.f32.mrb[0].mxu0
    %v9510 = vadd.f32 %v8080, %v9509
    %v9511 = vpop.f32.mrb[0].mxu0
    %v9512 = vpop.f32.mrb[0].mxu0
    %9513 = vdwg.mxu0
    %9514 = vmatprep.subr.bf16.mxu0 %v8925
    %9515 = vmatpush1.bf16.msra.mxu0 %v8924
    %9516 = vmatprep.subr.bf16.mxu0 %v8941
    %9517 = vmatpush1.bf16.msra.mxu0 %v8940
    %9518 = vmatprep.subr.bf16.mxu0 %v8957
    %9519 = vmatpush1.bf16.msra.mxu0 %v8956
    %9520 = vmatprep.subr.bf16.mxu0 %v8973
    %9521 = vmatpush1.bf16.msra.mxu0 %v8972
    %9522 = vmatprep.subr.bf16.mxu0 %v8989
    %9523 = vmatpush1.bf16.msra.mxu0 %v8988
    %9524 = vmatprep.subr.bf16.mxu0 %v9005
    %9525 = vmatpush1.bf16.msra.mxu0 %v9004
    %9526 = vmatprep.subr.bf16.mxu0 %v9021
    %9527 = vmatpush1.bf16.msra.mxu0 %v9020
    %9528 = vmatprep.subr.bf16.mxu0 %v9037
    %9529 = vmatpush1.bf16.msra.mxu0 %v9036
    %9530 = vmatprep.subr.bf16.mxu0 %v9053
    %9531 = vmatpush1.bf16.msra.mxu0 %v9052
    %9532 = vmatprep.subr.bf16.mxu0 %v9069
    %9533 = vmatpush1.bf16.msra.mxu0 %v9068
    %9534 = vmatprep.subr.bf16.mxu0 %v9085
    %9535 = vmatpush1.bf16.msra.mxu0 %v9084
    %9536 = vmatprep.subr.bf16.mxu0 %v9101
    %9537 = vmatpush1.bf16.msra.mxu0 %v9100
    %9538 = vmatprep.subr.bf16.mxu0 %v9117
    %9539 = vmatpush1.bf16.msra.mxu0 %v9116
    %9540 = vmatprep.subr.bf16.mxu0 %v9133
    %9541 = vmatpush1.bf16.msra.mxu0 %v9132
    %9542 = vmatprep.subr.bf16.mxu0 %v9149
    %9543 = vmatpush1.bf16.msra.mxu0 %v9148
    %9544 = vmatprep.subr.bf16.mxu0 %v9165
    %9545 = vmatpush1.bf16.msra.mxu0 %v9164
    %9546 = vmatprep.mubr.bf16.mxu0 %v8149
    %9547 = vmatmul.mubr.bf16.gmra.mrb[0].mxu0 %v8148
    %v9548 = vpop.f32.mrb[0].mxu0
    %v9549 = vadd.f32 %v8084, %v9548
    %v9550 = vpop.f32.mrb[0].mxu0
    %v9551 = vadd.f32 %v8088, %v9550
    %v9552 = vpop.f32.mrb[0].mxu0
    %v9553 = vpop.f32.mrb[0].mxu0
    %9554 = vdwg.mxu0
    %9555 = vmatprep.subr.bf16.mxu0 %v8927
    %9556 = vmatpush1.bf16.msra.mxu0 %v8926
    %9557 = vmatprep.subr.bf16.mxu0 %v8943
    %9558 = vmatpush1.bf16.msra.mxu0 %v8942
    %9559 = vmatprep.subr.bf16.mxu0 %v8959
    %9560 = vmatpush1.bf16.msra.mxu0 %v8958
    %9561 = vmatprep.subr.bf16.mxu0 %v8975
    %9562 = vmatpush1.bf16.msra.mxu0 %v8974
    %9563 = vmatprep.subr.bf16.mxu0 %v8991
    %9564 = vmatpush1.bf16.msra.mxu0 %v8990
    %9565 = vmatprep.subr.bf16.mxu0 %v9007
    %9566 = vmatpush1.bf16.msra.mxu0 %v9006
    %9567 = vmatprep.subr.bf16.mxu0 %v9023
    %9568 = vmatpush1.bf16.msra.mxu0 %v9022
    %9569 = vmatprep.subr.bf16.mxu0 %v9039
    %9570 = vmatpush1.bf16.msra.mxu0 %v9038
    %9571 = vmatprep.subr.bf16.mxu0 %v9055
    %9572 = vmatpush1.bf16.msra.mxu0 %v9054
    %9573 = vmatprep.subr.bf16.mxu0 %v9071
    %9574 = vmatpush1.bf16.msra.mxu0 %v9070
    %9575 = vmatprep.subr.bf16.mxu0 %v9087
    %9576 = vmatpush1.bf16.msra.mxu0 %v9086
    %9577 = vmatprep.subr.bf16.mxu0 %v9103
    %9578 = vmatpush1.bf16.msra.mxu0 %v9102
    %9579 = vmatprep.subr.bf16.mxu0 %v9119
    %9580 = vmatpush1.bf16.msra.mxu0 %v9118
    %9581 = vmatprep.subr.bf16.mxu0 %v9135
    %9582 = vmatpush1.bf16.msra.mxu0 %v9134
    %9583 = vmatprep.subr.bf16.mxu0 %v9151
    %9584 = vmatpush1.bf16.msra.mxu0 %v9150
    %9585 = vmatprep.subr.bf16.mxu0 %v9167
    %9586 = vmatpush1.bf16.msra.mxu0 %v9166
    %9587 = vmatprep.mubr.bf16.mxu0 %v8149
    %9588 = vmatmul.mubr.bf16.gmra.mrb[0].mxu0 %v8148
    %v9589 = vpop.f32.mrb[0].mxu0
    %v9590 = vadd.f32 %v8092, %v9589
    %v9591 = vpop.f32.mrb[0].mxu0
    %v9592 = vadd.f32 %v8096, %v9591
    %v9593 = vpop.f32.mrb[0].mxu0
    %v9594 = vpop.f32.mrb[0].mxu0
    %9595 = vdwg.mxu0
    %9596 = vmatprep.subr.bf16.mxu0 %v8929
    %9597 = vmatpush1.bf16.msra.mxu0 %v8928
    %9598 = vmatprep.subr.bf16.mxu0 %v8945
    %9599 = vmatpush1.bf16.msra.mxu0 %v8944
    %9600 = vmatprep.subr.bf16.mxu0 %v8961
    %9601 = vmatpush1.bf16.msra.mxu0 %v8960
    %9602 = vmatprep.subr.bf16.mxu0 %v8977
    %9603 = vmatpush1.bf16.msra.mxu0 %v8976
    %9604 = vmatprep.subr.bf16.mxu0 %v8993
    %9605 = vmatpush1.bf16.msra.mxu0 %v8992
    %9606 = vmatprep.subr.bf16.mxu0 %v9009
    %9607 = vmatpush1.bf16.msra.mxu0 %v9008
    %9608 = vmatprep.subr.bf16.mxu0 %v9025
    %9609 = vmatpush1.bf16.msra.mxu0 %v9024
    %9610 = vmatprep.subr.bf16.mxu0 %v9041
    %9611 = vmatpush1.bf16.msra.mxu0 %v9040
    %9612 = vmatprep.subr.bf16.mxu0 %v9057
    %9613 = vmatpush1.bf16.msra.mxu0 %v9056
    %9614 = vmatprep.subr.bf16.mxu0 %v9073
    %9615 = vmatpush1.bf16.msra.mxu0 %v9072
    %9616 = vmatprep.subr.bf16.mxu0 %v9089
    %9617 = vmatpush1.bf16.msra.mxu0 %v9088
    %9618 = vmatprep.subr.bf16.mxu0 %v9105
    %9619 = vmatpush1.bf16.msra.mxu0 %v9104
    %9620 = vmatprep.subr.bf16.mxu0 %v9121
    %9621 = vmatpush1.bf16.msra.mxu0 %v9120
    %9622 = vmatprep.subr.bf16.mxu0 %v9137
    %9623 = vmatpush1.bf16.msra.mxu0 %v9136
    %9624 = vmatprep.subr.bf16.mxu0 %v9153
    %9625 = vmatpush1.bf16.msra.mxu0 %v9152
    %9626 = vmatprep.subr.bf16.mxu0 %v9169
    %9627 = vmatpush1.bf16.msra.mxu0 %v9168
    %9628 = vmatprep.mubr.bf16.mxu0 %v8149
    %9629 = vmatmul.mubr.bf16.gmra.mrb[0].mxu0 %v8148
    %v9630 = vpop.f32.mrb[0].mxu0
    %v9631 = vadd.f32 %v8100, %v9630
    %v9632 = vpop.f32.mrb[0].mxu0
    %v9633 = vadd.f32 %v8104, %v9632
    %v9634 = vpop.f32.mrb[0].mxu0
    %v9635 = vpop.f32.mrb[0].mxu0
    %9636 = vdwg.mxu0
    %9637 = vmatprep.subr.bf16.mxu0 %v8931
    %9638 = vmatpush1.bf16.msra.mxu0 %v8930
    %9639 = vmatprep.subr.bf16.mxu0 %v8947
    %9640 = vmatpush1.bf16.msra.mxu0 %v8946
    %9641 = vmatprep.subr.bf16.mxu0 %v8963
    %9642 = vmatpush1.bf16.msra.mxu0 %v8962
    %9643 = vmatprep.subr.bf16.mxu0 %v8979
    %9644 = vmatpush1.bf16.msra.mxu0 %v8978
    %9645 = vmatprep.subr.bf16.mxu0 %v8995
    %9646 = vmatpush1.bf16.msra.mxu0 %v8994
    %9647 = vmatprep.subr.bf16.mxu0 %v9011
    %9648 = vmatpush1.bf16.msra.mxu0 %v9010
    %9649 = vmatprep.subr.bf16.mxu0 %v9027
    %9650 = vmatpush1.bf16.msra.mxu0 %v9026
    %9651 = vmatprep.subr.bf16.mxu0 %v9043
    %9652 = vmatpush1.bf16.msra.mxu0 %v9042
    %9653 = vmatprep.subr.bf16.mxu0 %v9059
    %9654 = vmatpush1.bf16.msra.mxu0 %v9058
    %9655 = vmatprep.subr.bf16.mxu0 %v9075
    %9656 = vmatpush1.bf16.msra.mxu0 %v9074
    %9657 = vmatprep.subr.bf16.mxu0 %v9091
    %9658 = vmatpush1.bf16.msra.mxu0 %v9090
    %9659 = vmatprep.subr.bf16.mxu0 %v9107
    %9660 = vmatpush1.bf16.msra.mxu0 %v9106
    %9661 = vmatprep.subr.bf16.mxu0 %v9123
    %9662 = vmatpush1.bf16.msra.mxu0 %v9122
    %9663 = vmatprep.subr.bf16.mxu0 %v9139
    %9664 = vmatpush1.bf16.msra.mxu0 %v9138
    %9665 = vmatprep.subr.bf16.mxu0 %v9155
    %9666 = vmatpush1.bf16.msra.mxu0 %v9154
    %9667 = vmatprep.subr.bf16.mxu0 %v9171
    %9668 = vmatpush1.bf16.msra.mxu0 %v9170
    %9669 = vmatprep.mubr.bf16.mxu0 %v8149
    %9670 = vmatmul.mubr.bf16.gmra.mrb[0].mxu0 %v8148
    %v9671 = vpop.f32.mrb[0].mxu0
    %v9672 = vadd.f32 %v8108, %v9671
    %v9673 = vpop.f32.mrb[0].mxu0
    %v9674 = vadd.f32 %v8112, %v9673
    %v9675 = vpop.f32.mrb[0].mxu0
    %v9676 = vpop.f32.mrb[0].mxu0
    %9677 = vdwg.mxu0
    %9678 = vmatprep.subr.bf16.mxu0 %v8933
    %9679 = vmatpush1.bf16.msra.mxu0 %v8932
    %9680 = vmatprep.subr.bf16.mxu0 %v8949
    %9681 = vmatpush1.bf16.msra.mxu0 %v8948
    %9682 = vmatprep.subr.bf16.mxu0 %v8965
    %9683 = vmatpush1.bf16.msra.mxu0 %v8964
    %9684 = vmatprep.subr.bf16.mxu0 %v8981
    %9685 = vmatpush1.bf16.msra.mxu0 %v8980
    %9686 = vmatprep.subr.bf16.mxu0 %v8997
    %9687 = vmatpush1.bf16.msra.mxu0 %v8996
    %9688 = vmatprep.subr.bf16.mxu0 %v9013
    %9689 = vmatpush1.bf16.msra.mxu0 %v9012
    %9690 = vmatprep.subr.bf16.mxu0 %v9029
    %9691 = vmatpush1.bf16.msra.mxu0 %v9028
    %9692 = vmatprep.subr.bf16.mxu0 %v9045
    %9693 = vmatpush1.bf16.msra.mxu0 %v9044
    %9694 = vmatprep.subr.bf16.mxu0 %v9061
    %9695 = vmatpush1.bf16.msra.mxu0 %v9060
    %9696 = vmatprep.subr.bf16.mxu0 %v9077
    %9697 = vmatpush1.bf16.msra.mxu0 %v9076
    %9698 = vmatprep.subr.bf16.mxu0 %v9093
    %9699 = vmatpush1.bf16.msra.mxu0 %v9092
    %9700 = vmatprep.subr.bf16.mxu0 %v9109
    %9701 = vmatpush1.bf16.msra.mxu0 %v9108
    %9702 = vmatprep.subr.bf16.mxu0 %v9125
    %9703 = vmatpush1.bf16.msra.mxu0 %v9124
    %9704 = vmatprep.subr.bf16.mxu0 %v9141
    %9705 = vmatpush1.bf16.msra.mxu0 %v9140
    %9706 = vmatprep.subr.bf16.mxu0 %v9157
    %9707 = vmatpush1.bf16.msra.mxu0 %v9156
    %9708 = vmatprep.subr.bf16.mxu0 %v9173
    %9709 = vmatpush1.bf16.msra.mxu0 %v9172
    %9710 = vmatprep.mubr.bf16.mxu0 %v8149
    %9711 = vmatmul.mubr.bf16.gmra.mrb[0].mxu0 %v8148
    %v9712 = vpop.f32.mrb[0].mxu0
    %v9713 = vadd.f32 %v8116, %v9712
    %v9714 = vpop.f32.mrb[0].mxu0
    %v9715 = vadd.f32 %v8120, %v9714
    %v9716 = vpop.f32.mrb[0].mxu0
    %v9717 = vpop.f32.mrb[0].mxu0
    %9718 = vdwg.mxu0
    %9719 = vmatprep.subr.bf16.mxu0 %v8935
    %9720 = vmatpush1.bf16.msra.mxu0 %v8934
    %9721 = vmatprep.subr.bf16.mxu0 %v8951
    %9722 = vmatpush1.bf16.msra.mxu0 %v8950
    %9723 = vmatprep.subr.bf16.mxu0 %v8967
    %9724 = vmatpush1.bf16.msra.mxu0 %v8966
    %9725 = vmatprep.subr.bf16.mxu0 %v8983
    %9726 = vmatpush1.bf16.msra.mxu0 %v8982
    %9727 = vmatprep.subr.bf16.mxu0 %v8999
    %9728 = vmatpush1.bf16.msra.mxu0 %v8998
    %9729 = vmatprep.subr.bf16.mxu0 %v9015
    %9730 = vmatpush1.bf16.msra.mxu0 %v9014
    %9731 = vmatprep.subr.bf16.mxu0 %v9031
    %9732 = vmatpush1.bf16.msra.mxu0 %v9030
    %9733 = vmatprep.subr.bf16.mxu0 %v9047
    %9734 = vmatpush1.bf16.msra.mxu0 %v9046
    %9735 = vmatprep.subr.bf16.mxu0 %v9063
    %9736 = vmatpush1.bf16.msra.mxu0 %v9062
    %9737 = vmatprep.subr.bf16.mxu0 %v9079
    %9738 = vmatpush1.bf16.msra.mxu0 %v9078
    %9739 = vmatprep.subr.bf16.mxu0 %v9095
    %9740 = vmatpush1.bf16.msra.mxu0 %v9094
    %9741 = vmatprep.subr.bf16.mxu0 %v9111
    %9742 = vmatpush1.bf16.msra.mxu0 %v9110
    %9743 = vmatprep.subr.bf16.mxu0 %v9127
    %9744 = vmatpush1.bf16.msra.mxu0 %v9126
    %9745 = vmatprep.subr.bf16.mxu0 %v9143
    %9746 = vmatpush1.bf16.msra.mxu0 %v9142
    %9747 = vmatprep.subr.bf16.mxu0 %v9159
    %9748 = vmatpush1.bf16.msra.mxu0 %v9158
    %9749 = vmatprep.subr.bf16.mxu0 %v9175
    %9750 = vmatpush1.bf16.msra.mxu0 %v9174
    %9751 = vmatprep.mubr.bf16.mxu0 %v8149
    %9752 = vmatmul.mubr.bf16.gmra.mrb[0].mxu0 %v8148
    %v9753 = vpop.f32.mrb[0].mxu0
    %v9754 = vadd.f32 %v8124, %v9753
    %v9755 = vpop.f32.mrb[0].mxu0
    %v9756 = vadd.f32 %v8128, %v9755
    %v9757 = vpop.f32.mrb[0].mxu0
    %v9758 = vpop.f32.mrb[0].mxu0
    %9759 = vdwg.mxu0
    %v9760 = vmax.f32 %v9467, 0.0
    %v9761 = vmax.f32 %v9469, 0.0
    %v9762 = vmax.f32 %v9508, 0.0
    %v9763 = vmax.f32 %v9510, 0.0
    %v9764 = vmax.f32 %v9549, 0.0
    %v9765 = vmax.f32 %v9551, 0.0
    %v9766 = vmax.f32 %v9590, 0.0
    %v9767 = vmax.f32 %v9592, 0.0
    %v9768 = vmax.f32 %v9631, 0.0
    %v9769 = vmax.f32 %v9633, 0.0
    %v9770 = vmax.f32 %v9672, 0.0
    %v9771 = vmax.f32 %v9674, 0.0
    %v9772 = vmax.f32 %v9713, 0.0
    %v9773 = vmax.f32 %v9715, 0.0
    %v9774 = vmax.f32 %v9754, 0.0
    %v9775 = vmax.f32 %v9756, 0.0
    %s9776 = scalar_lea.vmem %s7, 256
    %9777 = vst [vmem:[%s9776] sm:$0xff] %v9760
    %9778 = vst [vmem:[%s9776 + $0x8] sm:$0xff] %v9761
    %9779 = vst [vmem:[%s9776 + $0x10] sm:$0xff] %v9762
    %9780 = vst [vmem:[%s9776 + $0x18] sm:$0xff] %v9763
    %9781 = vst [vmem:[%s9776 + $0x20] sm:$0xff] %v9764
    %9782 = vst [vmem:[%s9776 + $0x28] sm:$0xff] %v9765
    %9783 = vst [vmem:[%s9776 + $0x30] sm:$0xff] %v9766
    %9784 = vst [vmem:[%s9776 + $0x38] sm:$0xff] %v9767
    %9785 = vst [vmem:[%s9776 + $0x40] sm:$0xff] %v9768
    %9786 = vst [vmem:[%s9776 + $0x48] sm:$0xff] %v9769
    %9787 = vst [vmem:[%s9776 + $0x50] sm:$0xff] %v9770
    %9788 = vst [vmem:[%s9776 + $0x58] sm:$0xff] %v9771
    %9789 = vst [vmem:[%s9776 + $0x60] sm:$0xff] %v9772
    %9790 = vst [vmem:[%s9776 + $0x68] sm:$0xff] %v9773
    %9791 = vst [vmem:[%s9776 + $0x70] sm:$0xff] %v9774
    %9792 = vst [vmem:[%s9776 + $0x78] sm:$0xff] %v9775
    // Predicated region
    $region46: #{_forward.1} parent=1 // pred_check
      _
    $region47: #{_forward.1} parent=1 // pred_check_branch
      %9794 = sbr.rel (0) target = $region49
    $region48: #{_forward.1} parent=1 // pred_region
      _
    $region49: #{_forward.1} parent=1 // pred_fallthru
      _
    // Predicated region
    $region50: #{_forward.1} parent=1 // pred_check
      _
    $region51: #{_forward.1} parent=1 // pred_check_branch
      %9796 = sbr.rel (0) target = $region53
    $region52: #{_forward.1} parent=1 // pred_region
      _
    $region53: #{_forward.1} parent=1 // pred_fallthru
      _
    %9797 = vsyncpa [#allocation3], 1
    %9798 = vsyncpa [#allocation5], 1
    %9799 = vsyncpa [#allocation8], 1

</llo_original>
